<compile_context>
chip_gen: v7x
topology: tpu7x:2x2x1
jax: 0.10.0
libtpu: 0.0.40
codegen_flags: <defaults>
</compile_context>

<pallas_src>
import functools
import math

import jax
import jax.numpy as jnp
from jax.experimental import pallas as pl
from jax.experimental.pallas import tpu as pltpu


# ------------------------------ Fused kernel ------------------------------- #

def _fused_bert_kernel(
        x_ref, mask_ref, emb_g_ref, emb_b_ref,
        wq_ref, bq_ref, wk_ref, bk_ref, wv_ref, bv_ref,
        wo_ref, bo_ref,
        ln1_g_ref, ln1_b_ref, i_w_ref, i_b_ref,
        fo_w_ref, fo_b_ref, ln2_g_ref, ln2_b_ref,
        pool_w_ref, pool_b_ref, cls_w_ref, cls_b_ref,
        out_ref,
        *, B, S, H, nH, Dh, L, NL):
    """Whole BERT forward (post-embedding-gather) in one kernel invocation."""

    def layer_norm(x, g, b):
        mu = jnp.mean(x, axis=-1, keepdims=True)
        var = jnp.mean(jnp.square(x - mu), axis=-1, keepdims=True)
        return (x - mu) * jax.lax.rsqrt(var + 1e-12) * g + b

    # Embedding LayerNorm. Hidden state stays (B*S, H) row-major for every matmul.
    x = layer_norm(x_ref[...], emb_g_ref[...], emb_b_ref[...])           # (B*S, H)

    # Additive attention mask, hoisted: computed once per kernel, shape (B, 1, S).
    addm = (1.0 - mask_ref[...]) * (-1e9)

    for l in range(L):                                     # static unroll (L=2)
        attn_out = jnp.zeros((B * S, H), jnp.float32)
        for h in range(nH):                                # static unroll (nH=4)
            w = l * nH + h
            # Per-head projections: whole (H, Dh) weight blocks, no column slices.
            # 1/sqrt(Dh) is folded into wq / bq at parameter-prep time.
            qh = (jnp.dot(x, wq_ref[w], preferred_element_type=jnp.float32)
                  + bq_ref[w]).reshape(B, S, Dh)
            kh = (jnp.dot(x, wk_ref[w], preferred_element_type=jnp.float32)
                  + bk_ref[w]).reshape(B, S, Dh)
            vh = (jnp.dot(x, wv_ref[w], preferred_element_type=jnp.float32)
                  + bv_ref[w]).reshape(B, S, Dh)

            # Scores + softmax, batched over the whole batch in one shot.
            s = jnp.einsum('bqd,bkd->bqk', qh, kh,
                           preferred_element_type=jnp.float32) + addm     # (B, S, S)
            s = s - jnp.max(s, axis=-1, keepdims=True)
            p = jnp.exp(s)
            p = p * pl.reciprocal(jnp.sum(p, axis=-1, keepdims=True), approx=True)
            ctx = jnp.einsum('bqk,bkd->bqd', p, vh,
                             preferred_element_type=jnp.float32)          # (B, S, Dh)

            # Fold the head context straight into the output projection
            # (sum_h ctx_h @ Wo_h == concat(ctx_heads) @ Wo): no head-concat stores.
            attn_out = attn_out + jnp.dot(ctx.reshape(B * S, Dh), wo_ref[w],
                                          preferred_element_type=jnp.float32)

        # Attention output bias + residual + LayerNorm.
        x = layer_norm(x + attn_out + bo_ref[l], ln1_g_ref[l], ln1_b_ref[l])

        # Feed-forward (GELU) + residual + LayerNorm.
        inter = jax.nn.gelu(
            jnp.dot(x, i_w_ref[l], preferred_element_type=jnp.float32) + i_b_ref[l],
            approximate=True)
        ffn_out = (jnp.dot(inter, fo_w_ref[l],
                           preferred_element_type=jnp.float32) + fo_b_ref[l])
        x = layer_norm(x + ffn_out, ln2_g_ref[l], ln2_b_ref[l])

    # ---- pooler ([CLS]) + classifier + argmax, vectorized over the batch ----
    # [CLS] rows (0, S, 2S, ...) gathered with a one-hot matmul: no strided slices.
    col_ids = jax.lax.broadcasted_iota(jnp.int32, (B, B * S), 1)
    row_ids = jax.lax.broadcasted_iota(jnp.int32, (B, B * S), 0)
    sel = (col_ids == S * row_ids).astype(jnp.float32)                    # (B, B*S)
    cls_tok = jnp.dot(sel, x, preferred_element_type=jnp.float32)         # (B, H)

    pooled = jnp.tanh(jnp.dot(cls_tok, pool_w_ref[...],
                              preferred_element_type=jnp.float32) + pool_b_ref[...])
    logits = (jnp.dot(pooled, cls_w_ref[...],
                      preferred_element_type=jnp.float32) + cls_b_ref[...])  # (B, NL)

    # argmax(softmax(logits), dim=1) == argmax(logits, dim=1): softmax is dropped.
    mx = jnp.max(logits, axis=-1, keepdims=True)
    idx = jax.lax.broadcasted_iota(jnp.int32, logits.shape, 1)
    cand = jnp.where(logits == mx, idx, jnp.full_like(idx, NL))
    out_ref[...] = jnp.min(cand, axis=-1, keepdims=True)   # (B, 1), first-max tie-break


def _full_spec(shape):
    """Whole-array BlockSpec for a grid=(1,) call (block == full array dims)."""
    return pl.BlockSpec(tuple(shape), lambda i, _n=len(shape): (0,) * _n)


# ------------------------------ Model wrapper ------------------------------ #

def bert_for_sentence_codes(input_ids, token_type_ids, attention_mask, params, cfg):
    B, S = input_ids.shape
    H, nH, L = cfg["hidden"], cfg["heads"], cfg["layers"]
    NL = cfg["num_labels"]
    Dh = H // nH

    # Embedding table gathers are glue; dynamic gather stays in plain JAX.
    emb = (jnp.take(params["word_emb"], input_ids, axis=0)
           + params["pos_emb"][:S][None, :, :]
           + jnp.take(params["type_emb"], token_type_ids, axis=0))
    x0 = emb.reshape(B * S, H).astype(jnp.float32)
    mask3 = attention_mask.astype(jnp.float32).reshape(B, 1, S)

    inputs = [
        x0, mask3,
        params["emb_ln_g"], params["emb_ln_b"],
        params["wq"], params["bq"], params["wk"], params["bk"],
        params["wv"], params["bv"], params["wo"], params["bo"],
        params["ln1_g"], params["ln1_b"],
        params["i_w"], params["i_b"],
        params["fo_w"], params["fo_b"],
        params["ln2_g"], params["ln2_b"],
        params["pool_w"], params["pool_b"],
        params["cls_w"], params["cls_b"],
    ]

    kernel = functools.partial(
        _fused_bert_kernel, B=B, S=S, H=H, nH=nH, Dh=Dh, L=L, NL=NL)

    # TODO(synk): at real BERT-base scale, add a grid axis over layers with per-layer
    # weight BlockSpecs (HBM->VMEM streaming) and, on v7x, a parallel batch grid axis
    # to use the second TensorCore.  Unnecessary at this toy size (<1 MiB of weights).
    out = pl.pallas_call(
        kernel,
        out_shape=jax.ShapeDtypeStruct((B, 1), jnp.int32),
        grid=(1,),
        in_specs=[_full_spec(a.shape) for a in inputs],
        out_specs=_full_spec((B, 1)),
        compiler_params=pltpu.CompilerParams(
            dimension_semantics=("arbitrary",),
            vmem_limit_bytes=32 * 1024 * 1024),
    )(*inputs)
    return out[:, 0]


# --------------------------- Parameter creation ----------------------------- #

def init_params(key, cfg):
    H, I, L = cfg["hidden"], cfg["intermediate"], cfg["layers"]
    nH, NL = cfg["heads"], cfg["num_labels"]
    Dh = H // nH
    scale = 1.0 / math.sqrt(Dh)

    def nrm(k, shape):
        return 0.02 * jax.random.normal(k, shape, jnp.float32)

    ks = iter(jax.random.split(key, 16))
    return {
        "word_emb": nrm(next(ks), (cfg["vocab"], H)),
        "pos_emb": nrm(next(ks), (cfg["max_pos"], H)),
        "type_emb": nrm(next(ks), (cfg["type_vocab"], H)),
        "emb_ln_g": jnp.ones((1, H), jnp.float32),
        "emb_ln_b": jnp.zeros((1, H), jnp.float32),
        # HEAD-MAJOR attention weights: leading dim L*nH, so the kernel indexes a whole
        # (H, Dh) / (Dh, H) block per (layer, head).  1/sqrt(Dh) folded into Q (one-time).
        "wq": nrm(next(ks), (L * nH, H, Dh)) * scale,
        "bq": jnp.zeros((L * nH, 1, Dh), jnp.float32),
        "wk": nrm(next(ks), (L * nH, H, Dh)),
        "bk": jnp.zeros((L * nH, 1, Dh), jnp.float32),
        "wv": nrm(next(ks), (L * nH, H, Dh)),
        "bv": jnp.zeros((L * nH, 1, Dh), jnp.float32),
        "wo": nrm(next(ks), (L * nH, Dh, H)),
        "bo": jnp.zeros((L, 1, H), jnp.float32),
        "ln1_g": jnp.ones((L, 1, H), jnp.float32),
        "ln1_b": jnp.zeros((L, 1, H), jnp.float32),
        "i_w": nrm(next(ks), (L, H, I)),
        "i_b": jnp.zeros((L, 1, I), jnp.float32),
        "fo_w": nrm(next(ks), (L, I, H)),
        "fo_b": jnp.zeros((L, 1, H), jnp.float32),
        "ln2_g": jnp.ones((L, 1, H), jnp.float32),
        "ln2_b": jnp.zeros((L, 1, H), jnp.float32),
        "pool_w": nrm(next(ks), (H, H)),
        "pool_b": jnp.zeros((1, H), jnp.float32),
        "cls_w": nrm(next(ks), (H, NL)),
        "cls_b": jnp.zeros((1, NL), jnp.float32),
    }


# ---------------------------------- Main ------------------------------------ #

if __name__ == "__main__":
    cfg = dict(vocab=100, max_pos=16, type_vocab=2,
               hidden=32, heads=4, intermediate=128, layers=2,
               num_labels=5)

    B, S = 2, 8
    key = jax.random.PRNGKey(0)
    k_par, k_ids = jax.random.split(key)

    params = init_params(k_par, cfg)

    # Pre-tokenized, padded batch (what BertTokenizer(padding=True) would emit).
    input_ids = jax.random.randint(k_ids, (B, S), 1, cfg["vocab"], dtype=jnp.int32)
    lengths = jnp.array([8, 5], dtype=jnp.int32)
    attention_mask = (jnp.arange(S)[None, :] < lengths[:, None]).astype(jnp.int32)
    input_ids = input_ids * attention_mask            # pad token id = 0
    token_type_ids = jnp.zeros((B, S), dtype=jnp.int32)

    fwd = jax.jit(functools.partial(bert_for_sentence_codes, params=params, cfg=cfg))
    pred = jax.block_until_ready(fwd(input_ids, token_type_ids, attention_mask))

    assert pred.shape == (B,) and pred.dtype == jnp.int32
    print("KERNEL_OK")
</pallas_src>

<mosaic_0001>
module attributes {stable_mosaic.version = 11 : i64} {
  func.func @_fused_bert_kernel(%arg0: i32, %arg1: memref<16x32xf32, #tpu.memory_space<vmem>>, %arg2: memref<2x1x8xf32, #tpu.memory_space<vmem>>, %arg3: memref<1x32xf32, #tpu.memory_space<vmem>>, %arg4: memref<1x32xf32, #tpu.memory_space<vmem>>, %arg5: memref<8x32x8xf32, #tpu.memory_space<vmem>>, %arg6: memref<8x1x8xf32, #tpu.memory_space<vmem>>, %arg7: memref<8x32x8xf32, #tpu.memory_space<vmem>>, %arg8: memref<8x1x8xf32, #tpu.memory_space<vmem>>, %arg9: memref<8x32x8xf32, #tpu.memory_space<vmem>>, %arg10: memref<8x1x8xf32, #tpu.memory_space<vmem>>, %arg11: memref<8x8x32xf32, #tpu.memory_space<vmem>>, %arg12: memref<2x1x32xf32, #tpu.memory_space<vmem>>, %arg13: memref<2x1x32xf32, #tpu.memory_space<vmem>>, %arg14: memref<2x1x32xf32, #tpu.memory_space<vmem>>, %arg15: memref<2x32x128xf32, #tpu.memory_space<vmem>>, %arg16: memref<2x1x128xf32, #tpu.memory_space<vmem>>, %arg17: memref<2x128x32xf32, #tpu.memory_space<vmem>>, %arg18: memref<2x1x32xf32, #tpu.memory_space<vmem>>, %arg19: memref<2x1x32xf32, #tpu.memory_space<vmem>>, %arg20: memref<2x1x32xf32, #tpu.memory_space<vmem>>, %arg21: memref<32x32xf32, #tpu.memory_space<vmem>>, %arg22: memref<1x32xf32, #tpu.memory_space<vmem>>, %arg23: memref<32x5xf32, #tpu.memory_space<vmem>>, %arg24: memref<1x5xf32, #tpu.memory_space<vmem>>, %arg25: memref<2x1xi32, #tpu.memory_space<vmem>>) attributes {dimension_semantics = [#tpu.dimension_semantics<arbitrary>], iteration_bounds = array<i64: 1>, scalar_prefetch = 0 : i64, scratch_operands = 0 : i64, tpu.core_type = #tpu.core_type<tc>, window_params = [{pipeline_mode = #tpu.pipeline_mode<synchronous>, transform_indices = @transform_0, window_bounds = array<i64: 16, 32>}, {pipeline_mode = #tpu.pipeline_mode<synchronous>, transform_indices = @transform_1, window_bounds = array<i64: 2, 1, 8>}, {pipeline_mode = #tpu.pipeline_mode<synchronous>, transform_indices = @transform_2, window_bounds = array<i64: 1, 32>}, {pipeline_mode = #tpu.pipeline_mode<synchronous>, transform_indices = @transform_3, window_bounds = array<i64: 1, 32>}, {pipeline_mode = #tpu.pipeline_mode<synchronous>, transform_indices = @transform_4, window_bounds = array<i64: 8, 32, 8>}, {pipeline_mode = #tpu.pipeline_mode<synchronous>, transform_indices = @transform_5, window_bounds = array<i64: 8, 1, 8>}, {pipeline_mode = #tpu.pipeline_mode<synchronous>, transform_indices = @transform_6, window_bounds = array<i64: 8, 32, 8>}, {pipeline_mode = #tpu.pipeline_mode<synchronous>, transform_indices = @transform_7, window_bounds = array<i64: 8, 1, 8>}, {pipeline_mode = #tpu.pipeline_mode<synchronous>, transform_indices = @transform_8, window_bounds = array<i64: 8, 32, 8>}, {pipeline_mode = #tpu.pipeline_mode<synchronous>, transform_indices = @transform_9, window_bounds = array<i64: 8, 1, 8>}, {pipeline_mode = #tpu.pipeline_mode<synchronous>, transform_indices = @transform_10, window_bounds = array<i64: 8, 8, 32>}, {pipeline_mode = #tpu.pipeline_mode<synchronous>, transform_indices = @transform_11, window_bounds = array<i64: 2, 1, 32>}, {pipeline_mode = #tpu.pipeline_mode<synchronous>, transform_indices = @transform_12, window_bounds = array<i64: 2, 1, 32>}, {pipeline_mode = #tpu.pipeline_mode<synchronous>, transform_indices = @transform_13, window_bounds = array<i64: 2, 1, 32>}, {pipeline_mode = #tpu.pipeline_mode<synchronous>, transform_indices = @transform_14, window_bounds = array<i64: 2, 32, 128>}, {pipeline_mode = #tpu.pipeline_mode<synchronous>, transform_indices = @transform_15, window_bounds = array<i64: 2, 1, 128>}, {pipeline_mode = #tpu.pipeline_mode<synchronous>, transform_indices = @transform_16, window_bounds = array<i64: 2, 128, 32>}, {pipeline_mode = #tpu.pipeline_mode<synchronous>, transform_indices = @transform_17, window_bounds = array<i64: 2, 1, 32>}, {pipeline_mode = #tpu.pipeline_mode<synchronous>, transform_indices = @transform_18, window_bounds = array<i64: 2, 1, 32>}, {pipeline_mode = #tpu.pipeline_mode<synchronous>, transform_indices = @transform_19, window_bounds = array<i64: 2, 1, 32>}, {pipeline_mode = #tpu.pipeline_mode<synchronous>, transform_indices = @transform_20, window_bounds = array<i64: 32, 32>}, {pipeline_mode = #tpu.pipeline_mode<synchronous>, transform_indices = @transform_21, window_bounds = array<i64: 1, 32>}, {pipeline_mode = #tpu.pipeline_mode<synchronous>, transform_indices = @transform_22, window_bounds = array<i64: 32, 5>}, {pipeline_mode = #tpu.pipeline_mode<synchronous>, transform_indices = @transform_23, window_bounds = array<i64: 1, 5>}, {pipeline_mode = #tpu.pipeline_mode<synchronous>, transform_indices = @transform_24, window_bounds = array<i64: 2, 1>}]} {
    %c0 = arith.constant 0 : index
    %c0_0 = arith.constant 0 : index
    %0 = vector.load %arg1[%c0, %c0_0] : memref<16x32xf32, #tpu.memory_space<vmem>>, vector<16x32xf32>
    %c0_1 = arith.constant 0 : index
    %c0_2 = arith.constant 0 : index
    %1 = vector.load %arg3[%c0_1, %c0_2] : memref<1x32xf32, #tpu.memory_space<vmem>>, vector<1x32xf32>
    %c0_3 = arith.constant 0 : index
    %c0_4 = arith.constant 0 : index
    %2 = vector.load %arg4[%c0_3, %c0_4] : memref<1x32xf32, #tpu.memory_space<vmem>>, vector<1x32xf32>
    %cst = arith.constant dense<0.000000e+00> : vector<16xf32>
    %3 = vector.multi_reduction <add>, %0, %cst [1] : vector<16x32xf32> to vector<16xf32>
    %4 = vector.shape_cast %3 : vector<16xf32> to vector<16x1xf32>
    %cst_5 = arith.constant 3.200000e+01 : f32
    %5 = vector.broadcast %cst_5 : f32 to vector<16x1xf32>
    %6 = arith.divf %4, %5 : vector<16x1xf32>
    %7 = vector.broadcast %6 : vector<16x1xf32> to vector<16x32xf32>
    %8 = arith.subf %0, %7 : vector<16x32xf32>
    %9 = arith.mulf %8, %8 : vector<16x32xf32>
    %cst_6 = arith.constant dense<0.000000e+00> : vector<16xf32>
    %10 = vector.multi_reduction <add>, %9, %cst_6 [1] : vector<16x32xf32> to vector<16xf32>
    %11 = vector.shape_cast %10 : vector<16xf32> to vector<16x1xf32>
    %cst_7 = arith.constant 3.200000e+01 : f32
    %12 = vector.broadcast %cst_7 : f32 to vector<16x1xf32>
    %13 = arith.divf %11, %12 : vector<16x1xf32>
    %14 = vector.broadcast %6 : vector<16x1xf32> to vector<16x32xf32>
    %15 = arith.subf %0, %14 : vector<16x32xf32>
    %cst_8 = arith.constant 9.99999996E-13 : f32
    %16 = vector.broadcast %cst_8 : f32 to vector<16x1xf32>
    %17 = arith.addf %13, %16 : vector<16x1xf32>
    %18 = math.rsqrt %17 : vector<16x1xf32>
    %19 = vector.broadcast %18 : vector<16x1xf32> to vector<16x32xf32>
    %20 = arith.mulf %15, %19 : vector<16x32xf32>
    %21 = vector.broadcast %1 : vector<1x32xf32> to vector<16x32xf32>
    %22 = arith.mulf %20, %21 : vector<16x32xf32>
    %23 = vector.broadcast %2 : vector<1x32xf32> to vector<16x32xf32>
    %24 = arith.addf %22, %23 : vector<16x32xf32>
    %c0_9 = arith.constant 0 : index
    %c0_10 = arith.constant 0 : index
    %c0_11 = arith.constant 0 : index
    %25 = vector.load %arg2[%c0_9, %c0_10, %c0_11] : memref<2x1x8xf32, #tpu.memory_space<vmem>>, vector<2x1x8xf32>
    %cst_12 = arith.constant 1.000000e+00 : f32
    %26 = vector.broadcast %cst_12 : f32 to vector<2x1x8xf32>
    %27 = arith.subf %26, %25 : vector<2x1x8xf32>
    %cst_13 = arith.constant -1.000000e+09 : f32
    %28 = vector.broadcast %cst_13 : f32 to vector<2x1x8xf32>
    %29 = arith.mulf %27, %28 : vector<2x1x8xf32>
    %cst_14 = arith.constant 0.000000e+00 : f32
    %30 = vector.broadcast %cst_14 : f32 to vector<16x32xf32>
    %c0_15 = arith.constant 0 : index
    %c0_16 = arith.constant 0 : index
    %c0_17 = arith.constant 0 : index
    %31 = vector.load %arg5[%c0_15, %c0_16, %c0_17] : memref<8x32x8xf32, #tpu.memory_space<vmem>>, vector<1x32x8xf32>
    %32 = vector.shape_cast %31 : vector<1x32x8xf32> to vector<32x8xf32>
    %cst_18 = arith.constant dense<0.000000e+00> : vector<16x8xf32>
    %33 = tpu.matmul %24, %32, %cst_18 {dimension_numbers = #tpu.dot_dimension_numbers<[1], [0], [0], [1], [0, 0, 1, 1], [], []>} : vector<16x32xf32>, vector<32x8xf32>, vector<16x8xf32> -> vector<16x8xf32>
    %c0_19 = arith.constant 0 : index
    %c0_20 = arith.constant 0 : index
    %c0_21 = arith.constant 0 : index
    %34 = vector.load %arg6[%c0_19, %c0_20, %c0_21] : memref<8x1x8xf32, #tpu.memory_space<vmem>>, vector<1x1x8xf32>
    %35 = vector.shape_cast %34 : vector<1x1x8xf32> to vector<1x8xf32>
    %36 = vector.broadcast %35 : vector<1x8xf32> to vector<16x8xf32>
    %37 = arith.addf %33, %36 : vector<16x8xf32>
    %38 = vector.shape_cast %37 : vector<16x8xf32> to vector<2x8x8xf32>
    %c0_22 = arith.constant 0 : index
    %c0_23 = arith.constant 0 : index
    %c0_24 = arith.constant 0 : index
    %39 = vector.load %arg7[%c0_22, %c0_23, %c0_24] : memref<8x32x8xf32, #tpu.memory_space<vmem>>, vector<1x32x8xf32>
    %40 = vector.shape_cast %39 : vector<1x32x8xf32> to vector<32x8xf32>
    %cst_25 = arith.constant dense<0.000000e+00> : vector<16x8xf32>
    %41 = tpu.matmul %24, %40, %cst_25 {dimension_numbers = #tpu.dot_dimension_numbers<[1], [0], [0], [1], [0, 0, 1, 1], [], []>} : vector<16x32xf32>, vector<32x8xf32>, vector<16x8xf32> -> vector<16x8xf32>
    %c0_26 = arith.constant 0 : index
    %c0_27 = arith.constant 0 : index
    %c0_28 = arith.constant 0 : index
    %42 = vector.load %arg8[%c0_26, %c0_27, %c0_28] : memref<8x1x8xf32, #tpu.memory_space<vmem>>, vector<1x1x8xf32>
    %43 = vector.shape_cast %42 : vector<1x1x8xf32> to vector<1x8xf32>
    %44 = vector.broadcast %43 : vector<1x8xf32> to vector<16x8xf32>
    %45 = arith.addf %41, %44 : vector<16x8xf32>
    %46 = vector.shape_cast %45 : vector<16x8xf32> to vector<2x8x8xf32>
    %c0_29 = arith.constant 0 : index
    %c0_30 = arith.constant 0 : index
    %c0_31 = arith.constant 0 : index
    %47 = vector.load %arg9[%c0_29, %c0_30, %c0_31] : memref<8x32x8xf32, #tpu.memory_space<vmem>>, vector<1x32x8xf32>
    %48 = vector.shape_cast %47 : vector<1x32x8xf32> to vector<32x8xf32>
    %cst_32 = arith.constant dense<0.000000e+00> : vector<16x8xf32>
    %49 = tpu.matmul %24, %48, %cst_32 {dimension_numbers = #tpu.dot_dimension_numbers<[1], [0], [0], [1], [0, 0, 1, 1], [], []>} : vector<16x32xf32>, vector<32x8xf32>, vector<16x8xf32> -> vector<16x8xf32>
    %c0_33 = arith.constant 0 : index
    %c0_34 = arith.constant 0 : index
    %c0_35 = arith.constant 0 : index
    %50 = vector.load %arg10[%c0_33, %c0_34, %c0_35] : memref<8x1x8xf32, #tpu.memory_space<vmem>>, vector<1x1x8xf32>
    %51 = vector.shape_cast %50 : vector<1x1x8xf32> to vector<1x8xf32>
    %52 = vector.broadcast %51 : vector<1x8xf32> to vector<16x8xf32>
    %53 = arith.addf %49, %52 : vector<16x8xf32>
    %54 = vector.shape_cast %53 : vector<16x8xf32> to vector<2x8x8xf32>
    "tpu.trace_start"() <{level = 10 : i32, message = "bqd,bkd->bqk"}> : () -> ()
    %cst_36 = arith.constant dense<0.000000e+00> : vector<2x8x8xf32>
    %55 = tpu.matmul %38, %46, %cst_36 {dimension_numbers = #tpu.dot_dimension_numbers<[2], [2], [1], [1], [0, 0, 0, 1, 1, 1], [0], [0]>} : vector<2x8x8xf32>, vector<2x8x8xf32>, vector<2x8x8xf32> -> vector<2x8x8xf32>
    "tpu.trace_stop"() : () -> ()
    %56 = vector.broadcast %29 : vector<2x1x8xf32> to vector<2x8x8xf32>
    %57 = arith.addf %55, %56 : vector<2x8x8xf32>
    %cst_37 = arith.constant dense<0xFF800000> : vector<2x8xf32>
    %58 = vector.multi_reduction <maximumf>, %57, %cst_37 [2] : vector<2x8x8xf32> to vector<2x8xf32>
    %59 = vector.shape_cast %58 : vector<2x8xf32> to vector<2x8x1xf32>
    %60 = vector.broadcast %59 : vector<2x8x1xf32> to vector<2x8x8xf32>
    %61 = arith.subf %57, %60 : vector<2x8x8xf32>
    %62 = math.exp %61 : vector<2x8x8xf32>
    %cst_38 = arith.constant dense<0.000000e+00> : vector<2x8xf32>
    %63 = vector.multi_reduction <add>, %62, %cst_38 [2] : vector<2x8x8xf32> to vector<2x8xf32>
    %64 = vector.shape_cast %63 : vector<2x8xf32> to vector<2x8x1xf32>
    %65 = tpu.reciprocal %64 {approx = true} : vector<2x8x1xf32> -> vector<2x8x1xf32>
    %66 = vector.broadcast %65 : vector<2x8x1xf32> to vector<2x8x8xf32>
    %67 = arith.mulf %62, %66 : vector<2x8x8xf32>
    "tpu.trace_start"() <{level = 10 : i32, message = "bqk,bkd->bqd"}> : () -> ()
    %cst_39 = arith.constant dense<0.000000e+00> : vector<2x8x8xf32>
    %68 = tpu.matmul %67, %54, %cst_39 {dimension_numbers = #tpu.dot_dimension_numbers<[2], [1], [1], [2], [0, 0, 0, 1, 1, 2], [0], [0]>} : vector<2x8x8xf32>, vector<2x8x8xf32>, vector<2x8x8xf32> -> vector<2x8x8xf32>
    "tpu.trace_stop"() : () -> ()
    %69 = vector.shape_cast %68 : vector<2x8x8xf32> to vector<16x8xf32>
    %c0_40 = arith.constant 0 : index
    %c0_41 = arith.constant 0 : index
    %c0_42 = arith.constant 0 : index
    %70 = vector.load %arg11[%c0_40, %c0_41, %c0_42] : memref<8x8x32xf32, #tpu.memory_space<vmem>>, vector<1x8x32xf32>
    %71 = vector.shape_cast %70 : vector<1x8x32xf32> to vector<8x32xf32>
    %cst_43 = arith.constant dense<0.000000e+00> : vector<16x32xf32>
    %72 = tpu.matmul %69, %71, %cst_43 {dimension_numbers = #tpu.dot_dimension_numbers<[1], [0], [0], [1], [0, 0, 1, 1], [], []>} : vector<16x8xf32>, vector<8x32xf32>, vector<16x32xf32> -> vector<16x32xf32>
    %73 = arith.addf %30, %72 : vector<16x32xf32>
    %c1 = arith.constant 1 : index
    %c0_44 = arith.constant 0 : index
    %c0_45 = arith.constant 0 : index
    %74 = vector.load %arg5[%c1, %c0_44, %c0_45] : memref<8x32x8xf32, #tpu.memory_space<vmem>>, vector<1x32x8xf32>
    %75 = vector.shape_cast %74 : vector<1x32x8xf32> to vector<32x8xf32>
    %cst_46 = arith.constant dense<0.000000e+00> : vector<16x8xf32>
    %76 = tpu.matmul %24, %75, %cst_46 {dimension_numbers = #tpu.dot_dimension_numbers<[1], [0], [0], [1], [0, 0, 1, 1], [], []>} : vector<16x32xf32>, vector<32x8xf32>, vector<16x8xf32> -> vector<16x8xf32>
    %c1_47 = arith.constant 1 : index
    %c0_48 = arith.constant 0 : index
    %c0_49 = arith.constant 0 : index
    %77 = vector.load %arg6[%c1_47, %c0_48, %c0_49] : memref<8x1x8xf32, #tpu.memory_space<vmem>>, vector<1x1x8xf32>
    %78 = vector.shape_cast %77 : vector<1x1x8xf32> to vector<1x8xf32>
    %79 = vector.broadcast %78 : vector<1x8xf32> to vector<16x8xf32>
    %80 = arith.addf %76, %79 : vector<16x8xf32>
    %81 = vector.shape_cast %80 : vector<16x8xf32> to vector<2x8x8xf32>
    %c1_50 = arith.constant 1 : index
    %c0_51 = arith.constant 0 : index
    %c0_52 = arith.constant 0 : index
    %82 = vector.load %arg7[%c1_50, %c0_51, %c0_52] : memref<8x32x8xf32, #tpu.memory_space<vmem>>, vector<1x32x8xf32>
    %83 = vector.shape_cast %82 : vector<1x32x8xf32> to vector<32x8xf32>
    %cst_53 = arith.constant dense<0.000000e+00> : vector<16x8xf32>
    %84 = tpu.matmul %24, %83, %cst_53 {dimension_numbers = #tpu.dot_dimension_numbers<[1], [0], [0], [1], [0, 0, 1, 1], [], []>} : vector<16x32xf32>, vector<32x8xf32>, vector<16x8xf32> -> vector<16x8xf32>
    %c1_54 = arith.constant 1 : index
    %c0_55 = arith.constant 0 : index
    %c0_56 = arith.constant 0 : index
    %85 = vector.load %arg8[%c1_54, %c0_55, %c0_56] : memref<8x1x8xf32, #tpu.memory_space<vmem>>, vector<1x1x8xf32>
    %86 = vector.shape_cast %85 : vector<1x1x8xf32> to vector<1x8xf32>
    %87 = vector.broadcast %86 : vector<1x8xf32> to vector<16x8xf32>
    %88 = arith.addf %84, %87 : vector<16x8xf32>
    %89 = vector.shape_cast %88 : vector<16x8xf32> to vector<2x8x8xf32>
    %c1_57 = arith.constant 1 : index
    %c0_58 = arith.constant 0 : index
    %c0_59 = arith.constant 0 : index
    %90 = vector.load %arg9[%c1_57, %c0_58, %c0_59] : memref<8x32x8xf32, #tpu.memory_space<vmem>>, vector<1x32x8xf32>
    %91 = vector.shape_cast %90 : vector<1x32x8xf32> to vector<32x8xf32>
    %cst_60 = arith.constant dense<0.000000e+00> : vector<16x8xf32>
    %92 = tpu.matmul %24, %91, %cst_60 {dimension_numbers = #tpu.dot_dimension_numbers<[1], [0], [0], [1], [0, 0, 1, 1], [], []>} : vector<16x32xf32>, vector<32x8xf32>, vector<16x8xf32> -> vector<16x8xf32>
    %c1_61 = arith.constant 1 : index
    %c0_62 = arith.constant 0 : index
    %c0_63 = arith.constant 0 : index
    %93 = vector.load %arg10[%c1_61, %c0_62, %c0_63] : memref<8x1x8xf32, #tpu.memory_space<vmem>>, vector<1x1x8xf32>
    %94 = vector.shape_cast %93 : vector<1x1x8xf32> to vector<1x8xf32>
    %95 = vector.broadcast %94 : vector<1x8xf32> to vector<16x8xf32>
    %96 = arith.addf %92, %95 : vector<16x8xf32>
    %97 = vector.shape_cast %96 : vector<16x8xf32> to vector<2x8x8xf32>
    "tpu.trace_start"() <{level = 10 : i32, message = "bqd,bkd->bqk"}> : () -> ()
    %cst_64 = arith.constant dense<0.000000e+00> : vector<2x8x8xf32>
    %98 = tpu.matmul %81, %89, %cst_64 {dimension_numbers = #tpu.dot_dimension_numbers<[2], [2], [1], [1], [0, 0, 0, 1, 1, 1], [0], [0]>} : vector<2x8x8xf32>, vector<2x8x8xf32>, vector<2x8x8xf32> -> vector<2x8x8xf32>
    "tpu.trace_stop"() : () -> ()
    %99 = vector.broadcast %29 : vector<2x1x8xf32> to vector<2x8x8xf32>
    %100 = arith.addf %98, %99 : vector<2x8x8xf32>
    %cst_65 = arith.constant dense<0xFF800000> : vector<2x8xf32>
    %101 = vector.multi_reduction <maximumf>, %100, %cst_65 [2] : vector<2x8x8xf32> to vector<2x8xf32>
    %102 = vector.shape_cast %101 : vector<2x8xf32> to vector<2x8x1xf32>
    %103 = vector.broadcast %102 : vector<2x8x1xf32> to vector<2x8x8xf32>
    %104 = arith.subf %100, %103 : vector<2x8x8xf32>
    %105 = math.exp %104 : vector<2x8x8xf32>
    %cst_66 = arith.constant dense<0.000000e+00> : vector<2x8xf32>
    %106 = vector.multi_reduction <add>, %105, %cst_66 [2] : vector<2x8x8xf32> to vector<2x8xf32>
    %107 = vector.shape_cast %106 : vector<2x8xf32> to vector<2x8x1xf32>
    %108 = tpu.reciprocal %107 {approx = true} : vector<2x8x1xf32> -> vector<2x8x1xf32>
    %109 = vector.broadcast %108 : vector<2x8x1xf32> to vector<2x8x8xf32>
    %110 = arith.mulf %105, %109 : vector<2x8x8xf32>
    "tpu.trace_start"() <{level = 10 : i32, message = "bqk,bkd->bqd"}> : () -> ()
    %cst_67 = arith.constant dense<0.000000e+00> : vector<2x8x8xf32>
    %111 = tpu.matmul %110, %97, %cst_67 {dimension_numbers = #tpu.dot_dimension_numbers<[2], [1], [1], [2], [0, 0, 0, 1, 1, 2], [0], [0]>} : vector<2x8x8xf32>, vector<2x8x8xf32>, vector<2x8x8xf32> -> vector<2x8x8xf32>
    "tpu.trace_stop"() : () -> ()
    %112 = vector.shape_cast %111 : vector<2x8x8xf32> to vector<16x8xf32>
    %c1_68 = arith.constant 1 : index
    %c0_69 = arith.constant 0 : index
    %c0_70 = arith.constant 0 : index
    %113 = vector.load %arg11[%c1_68, %c0_69, %c0_70] : memref<8x8x32xf32, #tpu.memory_space<vmem>>, vector<1x8x32xf32>
    %114 = vector.shape_cast %113 : vector<1x8x32xf32> to vector<8x32xf32>
    %cst_71 = arith.constant dense<0.000000e+00> : vector<16x32xf32>
    %115 = tpu.matmul %112, %114, %cst_71 {dimension_numbers = #tpu.dot_dimension_numbers<[1], [0], [0], [1], [0, 0, 1, 1], [], []>} : vector<16x8xf32>, vector<8x32xf32>, vector<16x32xf32> -> vector<16x32xf32>
    %116 = arith.addf %73, %115 : vector<16x32xf32>
    %c2 = arith.constant 2 : index
    %c0_72 = arith.constant 0 : index
    %c0_73 = arith.constant 0 : index
    %117 = vector.load %arg5[%c2, %c0_72, %c0_73] : memref<8x32x8xf32, #tpu.memory_space<vmem>>, vector<1x32x8xf32>
    %118 = vector.shape_cast %117 : vector<1x32x8xf32> to vector<32x8xf32>
    %cst_74 = arith.constant dense<0.000000e+00> : vector<16x8xf32>
    %119 = tpu.matmul %24, %118, %cst_74 {dimension_numbers = #tpu.dot_dimension_numbers<[1], [0], [0], [1], [0, 0, 1, 1], [], []>} : vector<16x32xf32>, vector<32x8xf32>, vector<16x8xf32> -> vector<16x8xf32>
    %c2_75 = arith.constant 2 : index
    %c0_76 = arith.constant 0 : index
    %c0_77 = arith.constant 0 : index
    %120 = vector.load %arg6[%c2_75, %c0_76, %c0_77] : memref<8x1x8xf32, #tpu.memory_space<vmem>>, vector<1x1x8xf32>
    %121 = vector.shape_cast %120 : vector<1x1x8xf32> to vector<1x8xf32>
    %122 = vector.broadcast %121 : vector<1x8xf32> to vector<16x8xf32>
    %123 = arith.addf %119, %122 : vector<16x8xf32>
    %124 = vector.shape_cast %123 : vector<16x8xf32> to vector<2x8x8xf32>
    %c2_78 = arith.constant 2 : index
    %c0_79 = arith.constant 0 : index
    %c0_80 = arith.constant 0 : index
    %125 = vector.load %arg7[%c2_78, %c0_79, %c0_80] : memref<8x32x8xf32, #tpu.memory_space<vmem>>, vector<1x32x8xf32>
    %126 = vector.shape_cast %125 : vector<1x32x8xf32> to vector<32x8xf32>
    %cst_81 = arith.constant dense<0.000000e+00> : vector<16x8xf32>
    %127 = tpu.matmul %24, %126, %cst_81 {dimension_numbers = #tpu.dot_dimension_numbers<[1], [0], [0], [1], [0, 0, 1, 1], [], []>} : vector<16x32xf32>, vector<32x8xf32>, vector<16x8xf32> -> vector<16x8xf32>
    %c2_82 = arith.constant 2 : index
    %c0_83 = arith.constant 0 : index
    %c0_84 = arith.constant 0 : index
    %128 = vector.load %arg8[%c2_82, %c0_83, %c0_84] : memref<8x1x8xf32, #tpu.memory_space<vmem>>, vector<1x1x8xf32>
    %129 = vector.shape_cast %128 : vector<1x1x8xf32> to vector<1x8xf32>
    %130 = vector.broadcast %129 : vector<1x8xf32> to vector<16x8xf32>
    %131 = arith.addf %127, %130 : vector<16x8xf32>
    %132 = vector.shape_cast %131 : vector<16x8xf32> to vector<2x8x8xf32>
    %c2_85 = arith.constant 2 : index
    %c0_86 = arith.constant 0 : index
    %c0_87 = arith.constant 0 : index
    %133 = vector.load %arg9[%c2_85, %c0_86, %c0_87] : memref<8x32x8xf32, #tpu.memory_space<vmem>>, vector<1x32x8xf32>
    %134 = vector.shape_cast %133 : vector<1x32x8xf32> to vector<32x8xf32>
    %cst_88 = arith.constant dense<0.000000e+00> : vector<16x8xf32>
    %135 = tpu.matmul %24, %134, %cst_88 {dimension_numbers = #tpu.dot_dimension_numbers<[1], [0], [0], [1], [0, 0, 1, 1], [], []>} : vector<16x32xf32>, vector<32x8xf32>, vector<16x8xf32> -> vector<16x8xf32>
    %c2_89 = arith.constant 2 : index
    %c0_90 = arith.constant 0 : index
    %c0_91 = arith.constant 0 : index
    %136 = vector.load %arg10[%c2_89, %c0_90, %c0_91] : memref<8x1x8xf32, #tpu.memory_space<vmem>>, vector<1x1x8xf32>
    %137 = vector.shape_cast %136 : vector<1x1x8xf32> to vector<1x8xf32>
    %138 = vector.broadcast %137 : vector<1x8xf32> to vector<16x8xf32>
    %139 = arith.addf %135, %138 : vector<16x8xf32>
    %140 = vector.shape_cast %139 : vector<16x8xf32> to vector<2x8x8xf32>
    "tpu.trace_start"() <{level = 10 : i32, message = "bqd,bkd->bqk"}> : () -> ()
    %cst_92 = arith.constant dense<0.000000e+00> : vector<2x8x8xf32>
    %141 = tpu.matmul %124, %132, %cst_92 {dimension_numbers = #tpu.dot_dimension_numbers<[2], [2], [1], [1], [0, 0, 0, 1, 1, 1], [0], [0]>} : vector<2x8x8xf32>, vector<2x8x8xf32>, vector<2x8x8xf32> -> vector<2x8x8xf32>
    "tpu.trace_stop"() : () -> ()
    %142 = vector.broadcast %29 : vector<2x1x8xf32> to vector<2x8x8xf32>
    %143 = arith.addf %141, %142 : vector<2x8x8xf32>
    %cst_93 = arith.constant dense<0xFF800000> : vector<2x8xf32>
    %144 = vector.multi_reduction <maximumf>, %143, %cst_93 [2] : vector<2x8x8xf32> to vector<2x8xf32>
    %145 = vector.shape_cast %144 : vector<2x8xf32> to vector<2x8x1xf32>
    %146 = vector.broadcast %145 : vector<2x8x1xf32> to vector<2x8x8xf32>
    %147 = arith.subf %143, %146 : vector<2x8x8xf32>
    %148 = math.exp %147 : vector<2x8x8xf32>
    %cst_94 = arith.constant dense<0.000000e+00> : vector<2x8xf32>
    %149 = vector.multi_reduction <add>, %148, %cst_94 [2] : vector<2x8x8xf32> to vector<2x8xf32>
    %150 = vector.shape_cast %149 : vector<2x8xf32> to vector<2x8x1xf32>
    %151 = tpu.reciprocal %150 {approx = true} : vector<2x8x1xf32> -> vector<2x8x1xf32>
    %152 = vector.broadcast %151 : vector<2x8x1xf32> to vector<2x8x8xf32>
    %153 = arith.mulf %148, %152 : vector<2x8x8xf32>
    "tpu.trace_start"() <{level = 10 : i32, message = "bqk,bkd->bqd"}> : () -> ()
    %cst_95 = arith.constant dense<0.000000e+00> : vector<2x8x8xf32>
    %154 = tpu.matmul %153, %140, %cst_95 {dimension_numbers = #tpu.dot_dimension_numbers<[2], [1], [1], [2], [0, 0, 0, 1, 1, 2], [0], [0]>} : vector<2x8x8xf32>, vector<2x8x8xf32>, vector<2x8x8xf32> -> vector<2x8x8xf32>
    "tpu.trace_stop"() : () -> ()
    %155 = vector.shape_cast %154 : vector<2x8x8xf32> to vector<16x8xf32>
    %c2_96 = arith.constant 2 : index
    %c0_97 = arith.constant 0 : index
    %c0_98 = arith.constant 0 : index
    %156 = vector.load %arg11[%c2_96, %c0_97, %c0_98] : memref<8x8x32xf32, #tpu.memory_space<vmem>>, vector<1x8x32xf32>
    %157 = vector.shape_cast %156 : vector<1x8x32xf32> to vector<8x32xf32>
    %cst_99 = arith.constant dense<0.000000e+00> : vector<16x32xf32>
    %158 = tpu.matmul %155, %157, %cst_99 {dimension_numbers = #tpu.dot_dimension_numbers<[1], [0], [0], [1], [0, 0, 1, 1], [], []>} : vector<16x8xf32>, vector<8x32xf32>, vector<16x32xf32> -> vector<16x32xf32>
    %159 = arith.addf %116, %158 : vector<16x32xf32>
    %c3 = arith.constant 3 : index
    %c0_100 = arith.constant 0 : index
    %c0_101 = arith.constant 0 : index
    %160 = vector.load %arg5[%c3, %c0_100, %c0_101] : memref<8x32x8xf32, #tpu.memory_space<vmem>>, vector<1x32x8xf32>
    %161 = vector.shape_cast %160 : vector<1x32x8xf32> to vector<32x8xf32>
    %cst_102 = arith.constant dense<0.000000e+00> : vector<16x8xf32>
    %162 = tpu.matmul %24, %161, %cst_102 {dimension_numbers = #tpu.dot_dimension_numbers<[1], [0], [0], [1], [0, 0, 1, 1], [], []>} : vector<16x32xf32>, vector<32x8xf32>, vector<16x8xf32> -> vector<16x8xf32>
    %c3_103 = arith.constant 3 : index
    %c0_104 = arith.constant 0 : index
    %c0_105 = arith.constant 0 : index
    %163 = vector.load %arg6[%c3_103, %c0_104, %c0_105] : memref<8x1x8xf32, #tpu.memory_space<vmem>>, vector<1x1x8xf32>
    %164 = vector.shape_cast %163 : vector<1x1x8xf32> to vector<1x8xf32>
    %165 = vector.broadcast %164 : vector<1x8xf32> to vector<16x8xf32>
    %166 = arith.addf %162, %165 : vector<16x8xf32>
    %167 = vector.shape_cast %166 : vector<16x8xf32> to vector<2x8x8xf32>
    %c3_106 = arith.constant 3 : index
    %c0_107 = arith.constant 0 : index
    %c0_108 = arith.constant 0 : index
    %168 = vector.load %arg7[%c3_106, %c0_107, %c0_108] : memref<8x32x8xf32, #tpu.memory_space<vmem>>, vector<1x32x8xf32>
    %169 = vector.shape_cast %168 : vector<1x32x8xf32> to vector<32x8xf32>
    %cst_109 = arith.constant dense<0.000000e+00> : vector<16x8xf32>
    %170 = tpu.matmul %24, %169, %cst_109 {dimension_numbers = #tpu.dot_dimension_numbers<[1], [0], [0], [1], [0, 0, 1, 1], [], []>} : vector<16x32xf32>, vector<32x8xf32>, vector<16x8xf32> -> vector<16x8xf32>
    %c3_110 = arith.constant 3 : index
    %c0_111 = arith.constant 0 : index
    %c0_112 = arith.constant 0 : index
    %171 = vector.load %arg8[%c3_110, %c0_111, %c0_112] : memref<8x1x8xf32, #tpu.memory_space<vmem>>, vector<1x1x8xf32>
    %172 = vector.shape_cast %171 : vector<1x1x8xf32> to vector<1x8xf32>
    %173 = vector.broadcast %172 : vector<1x8xf32> to vector<16x8xf32>
    %174 = arith.addf %170, %173 : vector<16x8xf32>
    %175 = vector.shape_cast %174 : vector<16x8xf32> to vector<2x8x8xf32>
    %c3_113 = arith.constant 3 : index
    %c0_114 = arith.constant 0 : index
    %c0_115 = arith.constant 0 : index
    %176 = vector.load %arg9[%c3_113, %c0_114, %c0_115] : memref<8x32x8xf32, #tpu.memory_space<vmem>>, vector<1x32x8xf32>
    %177 = vector.shape_cast %176 : vector<1x32x8xf32> to vector<32x8xf32>
    %cst_116 = arith.constant dense<0.000000e+00> : vector<16x8xf32>
    %178 = tpu.matmul %24, %177, %cst_116 {dimension_numbers = #tpu.dot_dimension_numbers<[1], [0], [0], [1], [0, 0, 1, 1], [], []>} : vector<16x32xf32>, vector<32x8xf32>, vector<16x8xf32> -> vector<16x8xf32>
    %c3_117 = arith.constant 3 : index
    %c0_118 = arith.constant 0 : index
    %c0_119 = arith.constant 0 : index
    %179 = vector.load %arg10[%c3_117, %c0_118, %c0_119] : memref<8x1x8xf32, #tpu.memory_space<vmem>>, vector<1x1x8xf32>
    %180 = vector.shape_cast %179 : vector<1x1x8xf32> to vector<1x8xf32>
    %181 = vector.broadcast %180 : vector<1x8xf32> to vector<16x8xf32>
    %182 = arith.addf %178, %181 : vector<16x8xf32>
    %183 = vector.shape_cast %182 : vector<16x8xf32> to vector<2x8x8xf32>
    "tpu.trace_start"() <{level = 10 : i32, message = "bqd,bkd->bqk"}> : () -> ()
    %cst_120 = arith.constant dense<0.000000e+00> : vector<2x8x8xf32>
    %184 = tpu.matmul %167, %175, %cst_120 {dimension_numbers = #tpu.dot_dimension_numbers<[2], [2], [1], [1], [0, 0, 0, 1, 1, 1], [0], [0]>} : vector<2x8x8xf32>, vector<2x8x8xf32>, vector<2x8x8xf32> -> vector<2x8x8xf32>
    "tpu.trace_stop"() : () -> ()
    %185 = vector.broadcast %29 : vector<2x1x8xf32> to vector<2x8x8xf32>
    %186 = arith.addf %184, %185 : vector<2x8x8xf32>
    %cst_121 = arith.constant dense<0xFF800000> : vector<2x8xf32>
    %187 = vector.multi_reduction <maximumf>, %186, %cst_121 [2] : vector<2x8x8xf32> to vector<2x8xf32>
    %188 = vector.shape_cast %187 : vector<2x8xf32> to vector<2x8x1xf32>
    %189 = vector.broadcast %188 : vector<2x8x1xf32> to vector<2x8x8xf32>
    %190 = arith.subf %186, %189 : vector<2x8x8xf32>
    %191 = math.exp %190 : vector<2x8x8xf32>
    %cst_122 = arith.constant dense<0.000000e+00> : vector<2x8xf32>
    %192 = vector.multi_reduction <add>, %191, %cst_122 [2] : vector<2x8x8xf32> to vector<2x8xf32>
    %193 = vector.shape_cast %192 : vector<2x8xf32> to vector<2x8x1xf32>
    %194 = tpu.reciprocal %193 {approx = true} : vector<2x8x1xf32> -> vector<2x8x1xf32>
    %195 = vector.broadcast %194 : vector<2x8x1xf32> to vector<2x8x8xf32>
    %196 = arith.mulf %191, %195 : vector<2x8x8xf32>
    "tpu.trace_start"() <{level = 10 : i32, message = "bqk,bkd->bqd"}> : () -> ()
    %cst_123 = arith.constant dense<0.000000e+00> : vector<2x8x8xf32>
    %197 = tpu.matmul %196, %183, %cst_123 {dimension_numbers = #tpu.dot_dimension_numbers<[2], [1], [1], [2], [0, 0, 0, 1, 1, 2], [0], [0]>} : vector<2x8x8xf32>, vector<2x8x8xf32>, vector<2x8x8xf32> -> vector<2x8x8xf32>
    "tpu.trace_stop"() : () -> ()
    %198 = vector.shape_cast %197 : vector<2x8x8xf32> to vector<16x8xf32>
    %c3_124 = arith.constant 3 : index
    %c0_125 = arith.constant 0 : index
    %c0_126 = arith.constant 0 : index
    %199 = vector.load %arg11[%c3_124, %c0_125, %c0_126] : memref<8x8x32xf32, #tpu.memory_space<vmem>>, vector<1x8x32xf32>
    %200 = vector.shape_cast %199 : vector<1x8x32xf32> to vector<8x32xf32>
    %cst_127 = arith.constant dense<0.000000e+00> : vector<16x32xf32>
    %201 = tpu.matmul %198, %200, %cst_127 {dimension_numbers = #tpu.dot_dimension_numbers<[1], [0], [0], [1], [0, 0, 1, 1], [], []>} : vector<16x8xf32>, vector<8x32xf32>, vector<16x32xf32> -> vector<16x32xf32>
    %202 = arith.addf %159, %201 : vector<16x32xf32>
    %203 = arith.addf %24, %202 : vector<16x32xf32>
    %c0_128 = arith.constant 0 : index
    %c0_129 = arith.constant 0 : index
    %c0_130 = arith.constant 0 : index
    %204 = vector.load %arg12[%c0_128, %c0_129, %c0_130] : memref<2x1x32xf32, #tpu.memory_space<vmem>>, vector<1x1x32xf32>
    %205 = vector.shape_cast %204 : vector<1x1x32xf32> to vector<1x32xf32>
    %206 = vector.broadcast %205 : vector<1x32xf32> to vector<16x32xf32>
    %207 = arith.addf %203, %206 : vector<16x32xf32>
    %c0_131 = arith.constant 0 : index
    %c0_132 = arith.constant 0 : index
    %c0_133 = arith.constant 0 : index
    %208 = vector.load %arg13[%c0_131, %c0_132, %c0_133] : memref<2x1x32xf32, #tpu.memory_space<vmem>>, vector<1x1x32xf32>
    %209 = vector.shape_cast %208 : vector<1x1x32xf32> to vector<1x32xf32>
    %c0_134 = arith.constant 0 : index
    %c0_135 = arith.constant 0 : index
    %c0_136 = arith.constant 0 : index
    %210 = vector.load %arg14[%c0_134, %c0_135, %c0_136] : memref<2x1x32xf32, #tpu.memory_space<vmem>>, vector<1x1x32xf32>
    %211 = vector.shape_cast %210 : vector<1x1x32xf32> to vector<1x32xf32>
    %cst_137 = arith.constant dense<0.000000e+00> : vector<16xf32>
    %212 = vector.multi_reduction <add>, %207, %cst_137 [1] : vector<16x32xf32> to vector<16xf32>
    %213 = vector.shape_cast %212 : vector<16xf32> to vector<16x1xf32>
    %cst_138 = arith.constant 3.200000e+01 : f32
    %214 = vector.broadcast %cst_138 : f32 to vector<16x1xf32>
    %215 = arith.divf %213, %214 : vector<16x1xf32>
    %216 = vector.broadcast %215 : vector<16x1xf32> to vector<16x32xf32>
    %217 = arith.subf %207, %216 : vector<16x32xf32>
    %218 = arith.mulf %217, %217 : vector<16x32xf32>
    %cst_139 = arith.constant dense<0.000000e+00> : vector<16xf32>
    %219 = vector.multi_reduction <add>, %218, %cst_139 [1] : vector<16x32xf32> to vector<16xf32>
    %220 = vector.shape_cast %219 : vector<16xf32> to vector<16x1xf32>
    %cst_140 = arith.constant 3.200000e+01 : f32
    %221 = vector.broadcast %cst_140 : f32 to vector<16x1xf32>
    %222 = arith.divf %220, %221 : vector<16x1xf32>
    %223 = vector.broadcast %215 : vector<16x1xf32> to vector<16x32xf32>
    %224 = arith.subf %207, %223 : vector<16x32xf32>
    %cst_141 = arith.constant 9.99999996E-13 : f32
    %225 = vector.broadcast %cst_141 : f32 to vector<16x1xf32>
    %226 = arith.addf %222, %225 : vector<16x1xf32>
    %227 = math.rsqrt %226 : vector<16x1xf32>
    %228 = vector.broadcast %227 : vector<16x1xf32> to vector<16x32xf32>
    %229 = arith.mulf %224, %228 : vector<16x32xf32>
    %230 = vector.broadcast %209 : vector<1x32xf32> to vector<16x32xf32>
    %231 = arith.mulf %229, %230 : vector<16x32xf32>
    %232 = vector.broadcast %211 : vector<1x32xf32> to vector<16x32xf32>
    %233 = arith.addf %231, %232 : vector<16x32xf32>
    %c0_142 = arith.constant 0 : index
    %c0_143 = arith.constant 0 : index
    %c0_144 = arith.constant 0 : index
    %234 = vector.load %arg15[%c0_142, %c0_143, %c0_144] : memref<2x32x128xf32, #tpu.memory_space<vmem>>, vector<1x32x128xf32>
    %235 = vector.shape_cast %234 : vector<1x32x128xf32> to vector<32x128xf32>
    %cst_145 = arith.constant dense<0.000000e+00> : vector<16x128xf32>
    %236 = tpu.matmul %233, %235, %cst_145 {dimension_numbers = #tpu.dot_dimension_numbers<[1], [0], [0], [1], [0, 0, 1, 1], [], []>} : vector<16x32xf32>, vector<32x128xf32>, vector<16x128xf32> -> vector<16x128xf32>
    %c0_146 = arith.constant 0 : index
    %c0_147 = arith.constant 0 : index
    %c0_148 = arith.constant 0 : index
    %237 = vector.load %arg16[%c0_146, %c0_147, %c0_148] : memref<2x1x128xf32, #tpu.memory_space<vmem>>, vector<1x1x128xf32>
    %238 = vector.shape_cast %237 : vector<1x1x128xf32> to vector<1x128xf32>
    %239 = vector.broadcast %238 : vector<1x128xf32> to vector<16x128xf32>
    %240 = arith.addf %236, %239 : vector<16x128xf32>
    %241 = arith.mulf %240, %240 : vector<16x128xf32>
    %242 = arith.mulf %240, %241 : vector<16x128xf32>
    %cst_149 = arith.constant 4.471500e-02 : f32
    %243 = vector.broadcast %cst_149 : f32 to vector<16x128xf32>
    %244 = arith.mulf %243, %242 : vector<16x128xf32>
    %245 = arith.addf %240, %244 : vector<16x128xf32>
    %cst_150 = arith.constant 0.797884583 : f32
    %246 = vector.broadcast %cst_150 : f32 to vector<16x128xf32>
    %247 = arith.mulf %246, %245 : vector<16x128xf32>
    %248 = math.tanh %247 : vector<16x128xf32>
    %cst_151 = arith.constant 1.000000e+00 : f32
    %249 = vector.broadcast %cst_151 : f32 to vector<16x128xf32>
    %250 = arith.addf %249, %248 : vector<16x128xf32>
    %cst_152 = arith.constant 5.000000e-01 : f32
    %251 = vector.broadcast %cst_152 : f32 to vector<16x128xf32>
    %252 = arith.mulf %251, %250 : vector<16x128xf32>
    %253 = arith.mulf %240, %252 : vector<16x128xf32>
    %c0_153 = arith.constant 0 : index
    %c0_154 = arith.constant 0 : index
    %c0_155 = arith.constant 0 : index
    %254 = vector.load %arg17[%c0_153, %c0_154, %c0_155] : memref<2x128x32xf32, #tpu.memory_space<vmem>>, vector<1x128x32xf32>
    %255 = vector.shape_cast %254 : vector<1x128x32xf32> to vector<128x32xf32>
    %cst_156 = arith.constant dense<0.000000e+00> : vector<16x32xf32>
    %256 = tpu.matmul %253, %255, %cst_156 {dimension_numbers = #tpu.dot_dimension_numbers<[1], [0], [0], [1], [0, 0, 1, 1], [], []>} : vector<16x128xf32>, vector<128x32xf32>, vector<16x32xf32> -> vector<16x32xf32>
    %c0_157 = arith.constant 0 : index
    %c0_158 = arith.constant 0 : index
    %c0_159 = arith.constant 0 : index
    %257 = vector.load %arg18[%c0_157, %c0_158, %c0_159] : memref<2x1x32xf32, #tpu.memory_space<vmem>>, vector<1x1x32xf32>
    %258 = vector.shape_cast %257 : vector<1x1x32xf32> to vector<1x32xf32>
    %259 = vector.broadcast %258 : vector<1x32xf32> to vector<16x32xf32>
    %260 = arith.addf %256, %259 : vector<16x32xf32>
    %261 = arith.addf %233, %260 : vector<16x32xf32>
    %c0_160 = arith.constant 0 : index
    %c0_161 = arith.constant 0 : index
    %c0_162 = arith.constant 0 : index
    %262 = vector.load %arg19[%c0_160, %c0_161, %c0_162] : memref<2x1x32xf32, #tpu.memory_space<vmem>>, vector<1x1x32xf32>
    %263 = vector.shape_cast %262 : vector<1x1x32xf32> to vector<1x32xf32>
    %c0_163 = arith.constant 0 : index
    %c0_164 = arith.constant 0 : index
    %c0_165 = arith.constant 0 : index
    %264 = vector.load %arg20[%c0_163, %c0_164, %c0_165] : memref<2x1x32xf32, #tpu.memory_space<vmem>>, vector<1x1x32xf32>
    %265 = vector.shape_cast %264 : vector<1x1x32xf32> to vector<1x32xf32>
    %cst_166 = arith.constant dense<0.000000e+00> : vector<16xf32>
    %266 = vector.multi_reduction <add>, %261, %cst_166 [1] : vector<16x32xf32> to vector<16xf32>
    %267 = vector.shape_cast %266 : vector<16xf32> to vector<16x1xf32>
    %cst_167 = arith.constant 3.200000e+01 : f32
    %268 = vector.broadcast %cst_167 : f32 to vector<16x1xf32>
    %269 = arith.divf %267, %268 : vector<16x1xf32>
    %270 = vector.broadcast %269 : vector<16x1xf32> to vector<16x32xf32>
    %271 = arith.subf %261, %270 : vector<16x32xf32>
    %272 = arith.mulf %271, %271 : vector<16x32xf32>
    %cst_168 = arith.constant dense<0.000000e+00> : vector<16xf32>
    %273 = vector.multi_reduction <add>, %272, %cst_168 [1] : vector<16x32xf32> to vector<16xf32>
    %274 = vector.shape_cast %273 : vector<16xf32> to vector<16x1xf32>
    %cst_169 = arith.constant 3.200000e+01 : f32
    %275 = vector.broadcast %cst_169 : f32 to vector<16x1xf32>
    %276 = arith.divf %274, %275 : vector<16x1xf32>
    %277 = vector.broadcast %269 : vector<16x1xf32> to vector<16x32xf32>
    %278 = arith.subf %261, %277 : vector<16x32xf32>
    %cst_170 = arith.constant 9.99999996E-13 : f32
    %279 = vector.broadcast %cst_170 : f32 to vector<16x1xf32>
    %280 = arith.addf %276, %279 : vector<16x1xf32>
    %281 = math.rsqrt %280 : vector<16x1xf32>
    %282 = vector.broadcast %281 : vector<16x1xf32> to vector<16x32xf32>
    %283 = arith.mulf %278, %282 : vector<16x32xf32>
    %284 = vector.broadcast %263 : vector<1x32xf32> to vector<16x32xf32>
    %285 = arith.mulf %283, %284 : vector<16x32xf32>
    %286 = vector.broadcast %265 : vector<1x32xf32> to vector<16x32xf32>
    %287 = arith.addf %285, %286 : vector<16x32xf32>
    %cst_171 = arith.constant 0.000000e+00 : f32
    %288 = vector.broadcast %cst_171 : f32 to vector<16x32xf32>
    %c4 = arith.constant 4 : index
    %c0_172 = arith.constant 0 : index
    %c0_173 = arith.constant 0 : index
    %289 = vector.load %arg5[%c4, %c0_172, %c0_173] : memref<8x32x8xf32, #tpu.memory_space<vmem>>, vector<1x32x8xf32>
    %290 = vector.shape_cast %289 : vector<1x32x8xf32> to vector<32x8xf32>
    %cst_174 = arith.constant dense<0.000000e+00> : vector<16x8xf32>
    %291 = tpu.matmul %287, %290, %cst_174 {dimension_numbers = #tpu.dot_dimension_numbers<[1], [0], [0], [1], [0, 0, 1, 1], [], []>} : vector<16x32xf32>, vector<32x8xf32>, vector<16x8xf32> -> vector<16x8xf32>
    %c4_175 = arith.constant 4 : index
    %c0_176 = arith.constant 0 : index
    %c0_177 = arith.constant 0 : index
    %292 = vector.load %arg6[%c4_175, %c0_176, %c0_177] : memref<8x1x8xf32, #tpu.memory_space<vmem>>, vector<1x1x8xf32>
    %293 = vector.shape_cast %292 : vector<1x1x8xf32> to vector<1x8xf32>
    %294 = vector.broadcast %293 : vector<1x8xf32> to vector<16x8xf32>
    %295 = arith.addf %291, %294 : vector<16x8xf32>
    %296 = vector.shape_cast %295 : vector<16x8xf32> to vector<2x8x8xf32>
    %c4_178 = arith.constant 4 : index
    %c0_179 = arith.constant 0 : index
    %c0_180 = arith.constant 0 : index
    %297 = vector.load %arg7[%c4_178, %c0_179, %c0_180] : memref<8x32x8xf32, #tpu.memory_space<vmem>>, vector<1x32x8xf32>
    %298 = vector.shape_cast %297 : vector<1x32x8xf32> to vector<32x8xf32>
    %cst_181 = arith.constant dense<0.000000e+00> : vector<16x8xf32>
    %299 = tpu.matmul %287, %298, %cst_181 {dimension_numbers = #tpu.dot_dimension_numbers<[1], [0], [0], [1], [0, 0, 1, 1], [], []>} : vector<16x32xf32>, vector<32x8xf32>, vector<16x8xf32> -> vector<16x8xf32>
    %c4_182 = arith.constant 4 : index
    %c0_183 = arith.constant 0 : index
    %c0_184 = arith.constant 0 : index
    %300 = vector.load %arg8[%c4_182, %c0_183, %c0_184] : memref<8x1x8xf32, #tpu.memory_space<vmem>>, vector<1x1x8xf32>
    %301 = vector.shape_cast %300 : vector<1x1x8xf32> to vector<1x8xf32>
    %302 = vector.broadcast %301 : vector<1x8xf32> to vector<16x8xf32>
    %303 = arith.addf %299, %302 : vector<16x8xf32>
    %304 = vector.shape_cast %303 : vector<16x8xf32> to vector<2x8x8xf32>
    %c4_185 = arith.constant 4 : index
    %c0_186 = arith.constant 0 : index
    %c0_187 = arith.constant 0 : index
    %305 = vector.load %arg9[%c4_185, %c0_186, %c0_187] : memref<8x32x8xf32, #tpu.memory_space<vmem>>, vector<1x32x8xf32>
    %306 = vector.shape_cast %305 : vector<1x32x8xf32> to vector<32x8xf32>
    %cst_188 = arith.constant dense<0.000000e+00> : vector<16x8xf32>
    %307 = tpu.matmul %287, %306, %cst_188 {dimension_numbers = #tpu.dot_dimension_numbers<[1], [0], [0], [1], [0, 0, 1, 1], [], []>} : vector<16x32xf32>, vector<32x8xf32>, vector<16x8xf32> -> vector<16x8xf32>
    %c4_189 = arith.constant 4 : index
    %c0_190 = arith.constant 0 : index
    %c0_191 = arith.constant 0 : index
    %308 = vector.load %arg10[%c4_189, %c0_190, %c0_191] : memref<8x1x8xf32, #tpu.memory_space<vmem>>, vector<1x1x8xf32>
    %309 = vector.shape_cast %308 : vector<1x1x8xf32> to vector<1x8xf32>
    %310 = vector.broadcast %309 : vector<1x8xf32> to vector<16x8xf32>
    %311 = arith.addf %307, %310 : vector<16x8xf32>
    %312 = vector.shape_cast %311 : vector<16x8xf32> to vector<2x8x8xf32>
    "tpu.trace_start"() <{level = 10 : i32, message = "bqd,bkd->bqk"}> : () -> ()
    %cst_192 = arith.constant dense<0.000000e+00> : vector<2x8x8xf32>
    %313 = tpu.matmul %296, %304, %cst_192 {dimension_numbers = #tpu.dot_dimension_numbers<[2], [2], [1], [1], [0, 0, 0, 1, 1, 1], [0], [0]>} : vector<2x8x8xf32>, vector<2x8x8xf32>, vector<2x8x8xf32> -> vector<2x8x8xf32>
    "tpu.trace_stop"() : () -> ()
    %314 = vector.broadcast %29 : vector<2x1x8xf32> to vector<2x8x8xf32>
    %315 = arith.addf %313, %314 : vector<2x8x8xf32>
    %cst_193 = arith.constant dense<0xFF800000> : vector<2x8xf32>
    %316 = vector.multi_reduction <maximumf>, %315, %cst_193 [2] : vector<2x8x8xf32> to vector<2x8xf32>
    %317 = vector.shape_cast %316 : vector<2x8xf32> to vector<2x8x1xf32>
    %318 = vector.broadcast %317 : vector<2x8x1xf32> to vector<2x8x8xf32>
    %319 = arith.subf %315, %318 : vector<2x8x8xf32>
    %320 = math.exp %319 : vector<2x8x8xf32>
    %cst_194 = arith.constant dense<0.000000e+00> : vector<2x8xf32>
    %321 = vector.multi_reduction <add>, %320, %cst_194 [2] : vector<2x8x8xf32> to vector<2x8xf32>
    %322 = vector.shape_cast %321 : vector<2x8xf32> to vector<2x8x1xf32>
    %323 = tpu.reciprocal %322 {approx = true} : vector<2x8x1xf32> -> vector<2x8x1xf32>
    %324 = vector.broadcast %323 : vector<2x8x1xf32> to vector<2x8x8xf32>
    %325 = arith.mulf %320, %324 : vector<2x8x8xf32>
    "tpu.trace_start"() <{level = 10 : i32, message = "bqk,bkd->bqd"}> : () -> ()
    %cst_195 = arith.constant dense<0.000000e+00> : vector<2x8x8xf32>
    %326 = tpu.matmul %325, %312, %cst_195 {dimension_numbers = #tpu.dot_dimension_numbers<[2], [1], [1], [2], [0, 0, 0, 1, 1, 2], [0], [0]>} : vector<2x8x8xf32>, vector<2x8x8xf32>, vector<2x8x8xf32> -> vector<2x8x8xf32>
    "tpu.trace_stop"() : () -> ()
    %327 = vector.shape_cast %326 : vector<2x8x8xf32> to vector<16x8xf32>
    %c4_196 = arith.constant 4 : index
    %c0_197 = arith.constant 0 : index
    %c0_198 = arith.constant 0 : index
    %328 = vector.load %arg11[%c4_196, %c0_197, %c0_198] : memref<8x8x32xf32, #tpu.memory_space<vmem>>, vector<1x8x32xf32>
    %329 = vector.shape_cast %328 : vector<1x8x32xf32> to vector<8x32xf32>
    %cst_199 = arith.constant dense<0.000000e+00> : vector<16x32xf32>
    %330 = tpu.matmul %327, %329, %cst_199 {dimension_numbers = #tpu.dot_dimension_numbers<[1], [0], [0], [1], [0, 0, 1, 1], [], []>} : vector<16x8xf32>, vector<8x32xf32>, vector<16x32xf32> -> vector<16x32xf32>
    %331 = arith.addf %288, %330 : vector<16x32xf32>
    %c5 = arith.constant 5 : index
    %c0_200 = arith.constant 0 : index
    %c0_201 = arith.constant 0 : index
    %332 = vector.load %arg5[%c5, %c0_200, %c0_201] : memref<8x32x8xf32, #tpu.memory_space<vmem>>, vector<1x32x8xf32>
    %333 = vector.shape_cast %332 : vector<1x32x8xf32> to vector<32x8xf32>
    %cst_202 = arith.constant dense<0.000000e+00> : vector<16x8xf32>
    %334 = tpu.matmul %287, %333, %cst_202 {dimension_numbers = #tpu.dot_dimension_numbers<[1], [0], [0], [1], [0, 0, 1, 1], [], []>} : vector<16x32xf32>, vector<32x8xf32>, vector<16x8xf32> -> vector<16x8xf32>
    %c5_203 = arith.constant 5 : index
    %c0_204 = arith.constant 0 : index
    %c0_205 = arith.constant 0 : index
    %335 = vector.load %arg6[%c5_203, %c0_204, %c0_205] : memref<8x1x8xf32, #tpu.memory_space<vmem>>, vector<1x1x8xf32>
    %336 = vector.shape_cast %335 : vector<1x1x8xf32> to vector<1x8xf32>
    %337 = vector.broadcast %336 : vector<1x8xf32> to vector<16x8xf32>
    %338 = arith.addf %334, %337 : vector<16x8xf32>
    %339 = vector.shape_cast %338 : vector<16x8xf32> to vector<2x8x8xf32>
    %c5_206 = arith.constant 5 : index
    %c0_207 = arith.constant 0 : index
    %c0_208 = arith.constant 0 : index
    %340 = vector.load %arg7[%c5_206, %c0_207, %c0_208] : memref<8x32x8xf32, #tpu.memory_space<vmem>>, vector<1x32x8xf32>
    %341 = vector.shape_cast %340 : vector<1x32x8xf32> to vector<32x8xf32>
    %cst_209 = arith.constant dense<0.000000e+00> : vector<16x8xf32>
    %342 = tpu.matmul %287, %341, %cst_209 {dimension_numbers = #tpu.dot_dimension_numbers<[1], [0], [0], [1], [0, 0, 1, 1], [], []>} : vector<16x32xf32>, vector<32x8xf32>, vector<16x8xf32> -> vector<16x8xf32>
    %c5_210 = arith.constant 5 : index
    %c0_211 = arith.constant 0 : index
    %c0_212 = arith.constant 0 : index
    %343 = vector.load %arg8[%c5_210, %c0_211, %c0_212] : memref<8x1x8xf32, #tpu.memory_space<vmem>>, vector<1x1x8xf32>
    %344 = vector.shape_cast %343 : vector<1x1x8xf32> to vector<1x8xf32>
    %345 = vector.broadcast %344 : vector<1x8xf32> to vector<16x8xf32>
    %346 = arith.addf %342, %345 : vector<16x8xf32>
    %347 = vector.shape_cast %346 : vector<16x8xf32> to vector<2x8x8xf32>
    %c5_213 = arith.constant 5 : index
    %c0_214 = arith.constant 0 : index
    %c0_215 = arith.constant 0 : index
    %348 = vector.load %arg9[%c5_213, %c0_214, %c0_215] : memref<8x32x8xf32, #tpu.memory_space<vmem>>, vector<1x32x8xf32>
    %349 = vector.shape_cast %348 : vector<1x32x8xf32> to vector<32x8xf32>
    %cst_216 = arith.constant dense<0.000000e+00> : vector<16x8xf32>
    %350 = tpu.matmul %287, %349, %cst_216 {dimension_numbers = #tpu.dot_dimension_numbers<[1], [0], [0], [1], [0, 0, 1, 1], [], []>} : vector<16x32xf32>, vector<32x8xf32>, vector<16x8xf32> -> vector<16x8xf32>
    %c5_217 = arith.constant 5 : index
    %c0_218 = arith.constant 0 : index
    %c0_219 = arith.constant 0 : index
    %351 = vector.load %arg10[%c5_217, %c0_218, %c0_219] : memref<8x1x8xf32, #tpu.memory_space<vmem>>, vector<1x1x8xf32>
    %352 = vector.shape_cast %351 : vector<1x1x8xf32> to vector<1x8xf32>
    %353 = vector.broadcast %352 : vector<1x8xf32> to vector<16x8xf32>
    %354 = arith.addf %350, %353 : vector<16x8xf32>
    %355 = vector.shape_cast %354 : vector<16x8xf32> to vector<2x8x8xf32>
    "tpu.trace_start"() <{level = 10 : i32, message = "bqd,bkd->bqk"}> : () -> ()
    %cst_220 = arith.constant dense<0.000000e+00> : vector<2x8x8xf32>
    %356 = tpu.matmul %339, %347, %cst_220 {dimension_numbers = #tpu.dot_dimension_numbers<[2], [2], [1], [1], [0, 0, 0, 1, 1, 1], [0], [0]>} : vector<2x8x8xf32>, vector<2x8x8xf32>, vector<2x8x8xf32> -> vector<2x8x8xf32>
    "tpu.trace_stop"() : () -> ()
    %357 = vector.broadcast %29 : vector<2x1x8xf32> to vector<2x8x8xf32>
    %358 = arith.addf %356, %357 : vector<2x8x8xf32>
    %cst_221 = arith.constant dense<0xFF800000> : vector<2x8xf32>
    %359 = vector.multi_reduction <maximumf>, %358, %cst_221 [2] : vector<2x8x8xf32> to vector<2x8xf32>
    %360 = vector.shape_cast %359 : vector<2x8xf32> to vector<2x8x1xf32>
    %361 = vector.broadcast %360 : vector<2x8x1xf32> to vector<2x8x8xf32>
    %362 = arith.subf %358, %361 : vector<2x8x8xf32>
    %363 = math.exp %362 : vector<2x8x8xf32>
    %cst_222 = arith.constant dense<0.000000e+00> : vector<2x8xf32>
    %364 = vector.multi_reduction <add>, %363, %cst_222 [2] : vector<2x8x8xf32> to vector<2x8xf32>
    %365 = vector.shape_cast %364 : vector<2x8xf32> to vector<2x8x1xf32>
    %366 = tpu.reciprocal %365 {approx = true} : vector<2x8x1xf32> -> vector<2x8x1xf32>
    %367 = vector.broadcast %366 : vector<2x8x1xf32> to vector<2x8x8xf32>
    %368 = arith.mulf %363, %367 : vector<2x8x8xf32>
    "tpu.trace_start"() <{level = 10 : i32, message = "bqk,bkd->bqd"}> : () -> ()
    %cst_223 = arith.constant dense<0.000000e+00> : vector<2x8x8xf32>
    %369 = tpu.matmul %368, %355, %cst_223 {dimension_numbers = #tpu.dot_dimension_numbers<[2], [1], [1], [2], [0, 0, 0, 1, 1, 2], [0], [0]>} : vector<2x8x8xf32>, vector<2x8x8xf32>, vector<2x8x8xf32> -> vector<2x8x8xf32>
    "tpu.trace_stop"() : () -> ()
    %370 = vector.shape_cast %369 : vector<2x8x8xf32> to vector<16x8xf32>
    %c5_224 = arith.constant 5 : index
    %c0_225 = arith.constant 0 : index
    %c0_226 = arith.constant 0 : index
    %371 = vector.load %arg11[%c5_224, %c0_225, %c0_226] : memref<8x8x32xf32, #tpu.memory_space<vmem>>, vector<1x8x32xf32>
    %372 = vector.shape_cast %371 : vector<1x8x32xf32> to vector<8x32xf32>
    %cst_227 = arith.constant dense<0.000000e+00> : vector<16x32xf32>
    %373 = tpu.matmul %370, %372, %cst_227 {dimension_numbers = #tpu.dot_dimension_numbers<[1], [0], [0], [1], [0, 0, 1, 1], [], []>} : vector<16x8xf32>, vector<8x32xf32>, vector<16x32xf32> -> vector<16x32xf32>
    %374 = arith.addf %331, %373 : vector<16x32xf32>
    %c6 = arith.constant 6 : index
    %c0_228 = arith.constant 0 : index
    %c0_229 = arith.constant 0 : index
    %375 = vector.load %arg5[%c6, %c0_228, %c0_229] : memref<8x32x8xf32, #tpu.memory_space<vmem>>, vector<1x32x8xf32>
    %376 = vector.shape_cast %375 : vector<1x32x8xf32> to vector<32x8xf32>
    %cst_230 = arith.constant dense<0.000000e+00> : vector<16x8xf32>
    %377 = tpu.matmul %287, %376, %cst_230 {dimension_numbers = #tpu.dot_dimension_numbers<[1], [0], [0], [1], [0, 0, 1, 1], [], []>} : vector<16x32xf32>, vector<32x8xf32>, vector<16x8xf32> -> vector<16x8xf32>
    %c6_231 = arith.constant 6 : index
    %c0_232 = arith.constant 0 : index
    %c0_233 = arith.constant 0 : index
    %378 = vector.load %arg6[%c6_231, %c0_232, %c0_233] : memref<8x1x8xf32, #tpu.memory_space<vmem>>, vector<1x1x8xf32>
    %379 = vector.shape_cast %378 : vector<1x1x8xf32> to vector<1x8xf32>
    %380 = vector.broadcast %379 : vector<1x8xf32> to vector<16x8xf32>
    %381 = arith.addf %377, %380 : vector<16x8xf32>
    %382 = vector.shape_cast %381 : vector<16x8xf32> to vector<2x8x8xf32>
    %c6_234 = arith.constant 6 : index
    %c0_235 = arith.constant 0 : index
    %c0_236 = arith.constant 0 : index
    %383 = vector.load %arg7[%c6_234, %c0_235, %c0_236] : memref<8x32x8xf32, #tpu.memory_space<vmem>>, vector<1x32x8xf32>
    %384 = vector.shape_cast %383 : vector<1x32x8xf32> to vector<32x8xf32>
    %cst_237 = arith.constant dense<0.000000e+00> : vector<16x8xf32>
    %385 = tpu.matmul %287, %384, %cst_237 {dimension_numbers = #tpu.dot_dimension_numbers<[1], [0], [0], [1], [0, 0, 1, 1], [], []>} : vector<16x32xf32>, vector<32x8xf32>, vector<16x8xf32> -> vector<16x8xf32>
    %c6_238 = arith.constant 6 : index
    %c0_239 = arith.constant 0 : index
    %c0_240 = arith.constant 0 : index
    %386 = vector.load %arg8[%c6_238, %c0_239, %c0_240] : memref<8x1x8xf32, #tpu.memory_space<vmem>>, vector<1x1x8xf32>
    %387 = vector.shape_cast %386 : vector<1x1x8xf32> to vector<1x8xf32>
    %388 = vector.broadcast %387 : vector<1x8xf32> to vector<16x8xf32>
    %389 = arith.addf %385, %388 : vector<16x8xf32>
    %390 = vector.shape_cast %389 : vector<16x8xf32> to vector<2x8x8xf32>
    %c6_241 = arith.constant 6 : index
    %c0_242 = arith.constant 0 : index
    %c0_243 = arith.constant 0 : index
    %391 = vector.load %arg9[%c6_241, %c0_242, %c0_243] : memref<8x32x8xf32, #tpu.memory_space<vmem>>, vector<1x32x8xf32>
    %392 = vector.shape_cast %391 : vector<1x32x8xf32> to vector<32x8xf32>
    %cst_244 = arith.constant dense<0.000000e+00> : vector<16x8xf32>
    %393 = tpu.matmul %287, %392, %cst_244 {dimension_numbers = #tpu.dot_dimension_numbers<[1], [0], [0], [1], [0, 0, 1, 1], [], []>} : vector<16x32xf32>, vector<32x8xf32>, vector<16x8xf32> -> vector<16x8xf32>
    %c6_245 = arith.constant 6 : index
    %c0_246 = arith.constant 0 : index
    %c0_247 = arith.constant 0 : index
    %394 = vector.load %arg10[%c6_245, %c0_246, %c0_247] : memref<8x1x8xf32, #tpu.memory_space<vmem>>, vector<1x1x8xf32>
    %395 = vector.shape_cast %394 : vector<1x1x8xf32> to vector<1x8xf32>
    %396 = vector.broadcast %395 : vector<1x8xf32> to vector<16x8xf32>
    %397 = arith.addf %393, %396 : vector<16x8xf32>
    %398 = vector.shape_cast %397 : vector<16x8xf32> to vector<2x8x8xf32>
    "tpu.trace_start"() <{level = 10 : i32, message = "bqd,bkd->bqk"}> : () -> ()
    %cst_248 = arith.constant dense<0.000000e+00> : vector<2x8x8xf32>
    %399 = tpu.matmul %382, %390, %cst_248 {dimension_numbers = #tpu.dot_dimension_numbers<[2], [2], [1], [1], [0, 0, 0, 1, 1, 1], [0], [0]>} : vector<2x8x8xf32>, vector<2x8x8xf32>, vector<2x8x8xf32> -> vector<2x8x8xf32>
    "tpu.trace_stop"() : () -> ()
    %400 = vector.broadcast %29 : vector<2x1x8xf32> to vector<2x8x8xf32>
    %401 = arith.addf %399, %400 : vector<2x8x8xf32>
    %cst_249 = arith.constant dense<0xFF800000> : vector<2x8xf32>
    %402 = vector.multi_reduction <maximumf>, %401, %cst_249 [2] : vector<2x8x8xf32> to vector<2x8xf32>
    %403 = vector.shape_cast %402 : vector<2x8xf32> to vector<2x8x1xf32>
    %404 = vector.broadcast %403 : vector<2x8x1xf32> to vector<2x8x8xf32>
    %405 = arith.subf %401, %404 : vector<2x8x8xf32>
    %406 = math.exp %405 : vector<2x8x8xf32>
    %cst_250 = arith.constant dense<0.000000e+00> : vector<2x8xf32>
    %407 = vector.multi_reduction <add>, %406, %cst_250 [2] : vector<2x8x8xf32> to vector<2x8xf32>
    %408 = vector.shape_cast %407 : vector<2x8xf32> to vector<2x8x1xf32>
    %409 = tpu.reciprocal %408 {approx = true} : vector<2x8x1xf32> -> vector<2x8x1xf32>
    %410 = vector.broadcast %409 : vector<2x8x1xf32> to vector<2x8x8xf32>
    %411 = arith.mulf %406, %410 : vector<2x8x8xf32>
    "tpu.trace_start"() <{level = 10 : i32, message = "bqk,bkd->bqd"}> : () -> ()
    %cst_251 = arith.constant dense<0.000000e+00> : vector<2x8x8xf32>
    %412 = tpu.matmul %411, %398, %cst_251 {dimension_numbers = #tpu.dot_dimension_numbers<[2], [1], [1], [2], [0, 0, 0, 1, 1, 2], [0], [0]>} : vector<2x8x8xf32>, vector<2x8x8xf32>, vector<2x8x8xf32> -> vector<2x8x8xf32>
    "tpu.trace_stop"() : () -> ()
    %413 = vector.shape_cast %412 : vector<2x8x8xf32> to vector<16x8xf32>
    %c6_252 = arith.constant 6 : index
    %c0_253 = arith.constant 0 : index
    %c0_254 = arith.constant 0 : index
    %414 = vector.load %arg11[%c6_252, %c0_253, %c0_254] : memref<8x8x32xf32, #tpu.memory_space<vmem>>, vector<1x8x32xf32>
    %415 = vector.shape_cast %414 : vector<1x8x32xf32> to vector<8x32xf32>
    %cst_255 = arith.constant dense<0.000000e+00> : vector<16x32xf32>
    %416 = tpu.matmul %413, %415, %cst_255 {dimension_numbers = #tpu.dot_dimension_numbers<[1], [0], [0], [1], [0, 0, 1, 1], [], []>} : vector<16x8xf32>, vector<8x32xf32>, vector<16x32xf32> -> vector<16x32xf32>
    %417 = arith.addf %374, %416 : vector<16x32xf32>
    %c7 = arith.constant 7 : index
    %c0_256 = arith.constant 0 : index
    %c0_257 = arith.constant 0 : index
    %418 = vector.load %arg5[%c7, %c0_256, %c0_257] : memref<8x32x8xf32, #tpu.memory_space<vmem>>, vector<1x32x8xf32>
    %419 = vector.shape_cast %418 : vector<1x32x8xf32> to vector<32x8xf32>
    %cst_258 = arith.constant dense<0.000000e+00> : vector<16x8xf32>
    %420 = tpu.matmul %287, %419, %cst_258 {dimension_numbers = #tpu.dot_dimension_numbers<[1], [0], [0], [1], [0, 0, 1, 1], [], []>} : vector<16x32xf32>, vector<32x8xf32>, vector<16x8xf32> -> vector<16x8xf32>
    %c7_259 = arith.constant 7 : index
    %c0_260 = arith.constant 0 : index
    %c0_261 = arith.constant 0 : index
    %421 = vector.load %arg6[%c7_259, %c0_260, %c0_261] : memref<8x1x8xf32, #tpu.memory_space<vmem>>, vector<1x1x8xf32>
    %422 = vector.shape_cast %421 : vector<1x1x8xf32> to vector<1x8xf32>
    %423 = vector.broadcast %422 : vector<1x8xf32> to vector<16x8xf32>
    %424 = arith.addf %420, %423 : vector<16x8xf32>
    %425 = vector.shape_cast %424 : vector<16x8xf32> to vector<2x8x8xf32>
    %c7_262 = arith.constant 7 : index
    %c0_263 = arith.constant 0 : index
    %c0_264 = arith.constant 0 : index
    %426 = vector.load %arg7[%c7_262, %c0_263, %c0_264] : memref<8x32x8xf32, #tpu.memory_space<vmem>>, vector<1x32x8xf32>
    %427 = vector.shape_cast %426 : vector<1x32x8xf32> to vector<32x8xf32>
    %cst_265 = arith.constant dense<0.000000e+00> : vector<16x8xf32>
    %428 = tpu.matmul %287, %427, %cst_265 {dimension_numbers = #tpu.dot_dimension_numbers<[1], [0], [0], [1], [0, 0, 1, 1], [], []>} : vector<16x32xf32>, vector<32x8xf32>, vector<16x8xf32> -> vector<16x8xf32>
    %c7_266 = arith.constant 7 : index
    %c0_267 = arith.constant 0 : index
    %c0_268 = arith.constant 0 : index
    %429 = vector.load %arg8[%c7_266, %c0_267, %c0_268] : memref<8x1x8xf32, #tpu.memory_space<vmem>>, vector<1x1x8xf32>
    %430 = vector.shape_cast %429 : vector<1x1x8xf32> to vector<1x8xf32>
    %431 = vector.broadcast %430 : vector<1x8xf32> to vector<16x8xf32>
    %432 = arith.addf %428, %431 : vector<16x8xf32>
    %433 = vector.shape_cast %432 : vector<16x8xf32> to vector<2x8x8xf32>
    %c7_269 = arith.constant 7 : index
    %c0_270 = arith.constant 0 : index
    %c0_271 = arith.constant 0 : index
    %434 = vector.load %arg9[%c7_269, %c0_270, %c0_271] : memref<8x32x8xf32, #tpu.memory_space<vmem>>, vector<1x32x8xf32>
    %435 = vector.shape_cast %434 : vector<1x32x8xf32> to vector<32x8xf32>
    %cst_272 = arith.constant dense<0.000000e+00> : vector<16x8xf32>
    %436 = tpu.matmul %287, %435, %cst_272 {dimension_numbers = #tpu.dot_dimension_numbers<[1], [0], [0], [1], [0, 0, 1, 1], [], []>} : vector<16x32xf32>, vector<32x8xf32>, vector<16x8xf32> -> vector<16x8xf32>
    %c7_273 = arith.constant 7 : index
    %c0_274 = arith.constant 0 : index
    %c0_275 = arith.constant 0 : index
    %437 = vector.load %arg10[%c7_273, %c0_274, %c0_275] : memref<8x1x8xf32, #tpu.memory_space<vmem>>, vector<1x1x8xf32>
    %438 = vector.shape_cast %437 : vector<1x1x8xf32> to vector<1x8xf32>
    %439 = vector.broadcast %438 : vector<1x8xf32> to vector<16x8xf32>
    %440 = arith.addf %436, %439 : vector<16x8xf32>
    %441 = vector.shape_cast %440 : vector<16x8xf32> to vector<2x8x8xf32>
    "tpu.trace_start"() <{level = 10 : i32, message = "bqd,bkd->bqk"}> : () -> ()
    %cst_276 = arith.constant dense<0.000000e+00> : vector<2x8x8xf32>
    %442 = tpu.matmul %425, %433, %cst_276 {dimension_numbers = #tpu.dot_dimension_numbers<[2], [2], [1], [1], [0, 0, 0, 1, 1, 1], [0], [0]>} : vector<2x8x8xf32>, vector<2x8x8xf32>, vector<2x8x8xf32> -> vector<2x8x8xf32>
    "tpu.trace_stop"() : () -> ()
    %443 = vector.broadcast %29 : vector<2x1x8xf32> to vector<2x8x8xf32>
    %444 = arith.addf %442, %443 : vector<2x8x8xf32>
    %cst_277 = arith.constant dense<0xFF800000> : vector<2x8xf32>
    %445 = vector.multi_reduction <maximumf>, %444, %cst_277 [2] : vector<2x8x8xf32> to vector<2x8xf32>
    %446 = vector.shape_cast %445 : vector<2x8xf32> to vector<2x8x1xf32>
    %447 = vector.broadcast %446 : vector<2x8x1xf32> to vector<2x8x8xf32>
    %448 = arith.subf %444, %447 : vector<2x8x8xf32>
    %449 = math.exp %448 : vector<2x8x8xf32>
    %cst_278 = arith.constant dense<0.000000e+00> : vector<2x8xf32>
    %450 = vector.multi_reduction <add>, %449, %cst_278 [2] : vector<2x8x8xf32> to vector<2x8xf32>
    %451 = vector.shape_cast %450 : vector<2x8xf32> to vector<2x8x1xf32>
    %452 = tpu.reciprocal %451 {approx = true} : vector<2x8x1xf32> -> vector<2x8x1xf32>
    %453 = vector.broadcast %452 : vector<2x8x1xf32> to vector<2x8x8xf32>
    %454 = arith.mulf %449, %453 : vector<2x8x8xf32>
    "tpu.trace_start"() <{level = 10 : i32, message = "bqk,bkd->bqd"}> : () -> ()
    %cst_279 = arith.constant dense<0.000000e+00> : vector<2x8x8xf32>
    %455 = tpu.matmul %454, %441, %cst_279 {dimension_numbers = #tpu.dot_dimension_numbers<[2], [1], [1], [2], [0, 0, 0, 1, 1, 2], [0], [0]>} : vector<2x8x8xf32>, vector<2x8x8xf32>, vector<2x8x8xf32> -> vector<2x8x8xf32>
    "tpu.trace_stop"() : () -> ()
    %456 = vector.shape_cast %455 : vector<2x8x8xf32> to vector<16x8xf32>
    %c7_280 = arith.constant 7 : index
    %c0_281 = arith.constant 0 : index
    %c0_282 = arith.constant 0 : index
    %457 = vector.load %arg11[%c7_280, %c0_281, %c0_282] : memref<8x8x32xf32, #tpu.memory_space<vmem>>, vector<1x8x32xf32>
    %458 = vector.shape_cast %457 : vector<1x8x32xf32> to vector<8x32xf32>
    %cst_283 = arith.constant dense<0.000000e+00> : vector<16x32xf32>
    %459 = tpu.matmul %456, %458, %cst_283 {dimension_numbers = #tpu.dot_dimension_numbers<[1], [0], [0], [1], [0, 0, 1, 1], [], []>} : vector<16x8xf32>, vector<8x32xf32>, vector<16x32xf32> -> vector<16x32xf32>
    %460 = arith.addf %417, %459 : vector<16x32xf32>
    %461 = arith.addf %287, %460 : vector<16x32xf32>
    %c1_284 = arith.constant 1 : index
    %c0_285 = arith.constant 0 : index
    %c0_286 = arith.constant 0 : index
    %462 = vector.load %arg12[%c1_284, %c0_285, %c0_286] : memref<2x1x32xf32, #tpu.memory_space<vmem>>, vector<1x1x32xf32>
    %463 = vector.shape_cast %462 : vector<1x1x32xf32> to vector<1x32xf32>
    %464 = vector.broadcast %463 : vector<1x32xf32> to vector<16x32xf32>
    %465 = arith.addf %461, %464 : vector<16x32xf32>
    %c1_287 = arith.constant 1 : index
    %c0_288 = arith.constant 0 : index
    %c0_289 = arith.constant 0 : index
    %466 = vector.load %arg13[%c1_287, %c0_288, %c0_289] : memref<2x1x32xf32, #tpu.memory_space<vmem>>, vector<1x1x32xf32>
    %467 = vector.shape_cast %466 : vector<1x1x32xf32> to vector<1x32xf32>
    %c1_290 = arith.constant 1 : index
    %c0_291 = arith.constant 0 : index
    %c0_292 = arith.constant 0 : index
    %468 = vector.load %arg14[%c1_290, %c0_291, %c0_292] : memref<2x1x32xf32, #tpu.memory_space<vmem>>, vector<1x1x32xf32>
    %469 = vector.shape_cast %468 : vector<1x1x32xf32> to vector<1x32xf32>
    %cst_293 = arith.constant dense<0.000000e+00> : vector<16xf32>
    %470 = vector.multi_reduction <add>, %465, %cst_293 [1] : vector<16x32xf32> to vector<16xf32>
    %471 = vector.shape_cast %470 : vector<16xf32> to vector<16x1xf32>
    %cst_294 = arith.constant 3.200000e+01 : f32
    %472 = vector.broadcast %cst_294 : f32 to vector<16x1xf32>
    %473 = arith.divf %471, %472 : vector<16x1xf32>
    %474 = vector.broadcast %473 : vector<16x1xf32> to vector<16x32xf32>
    %475 = arith.subf %465, %474 : vector<16x32xf32>
    %476 = arith.mulf %475, %475 : vector<16x32xf32>
    %cst_295 = arith.constant dense<0.000000e+00> : vector<16xf32>
    %477 = vector.multi_reduction <add>, %476, %cst_295 [1] : vector<16x32xf32> to vector<16xf32>
    %478 = vector.shape_cast %477 : vector<16xf32> to vector<16x1xf32>
    %cst_296 = arith.constant 3.200000e+01 : f32
    %479 = vector.broadcast %cst_296 : f32 to vector<16x1xf32>
    %480 = arith.divf %478, %479 : vector<16x1xf32>
    %481 = vector.broadcast %473 : vector<16x1xf32> to vector<16x32xf32>
    %482 = arith.subf %465, %481 : vector<16x32xf32>
    %cst_297 = arith.constant 9.99999996E-13 : f32
    %483 = vector.broadcast %cst_297 : f32 to vector<16x1xf32>
    %484 = arith.addf %480, %483 : vector<16x1xf32>
    %485 = math.rsqrt %484 : vector<16x1xf32>
    %486 = vector.broadcast %485 : vector<16x1xf32> to vector<16x32xf32>
    %487 = arith.mulf %482, %486 : vector<16x32xf32>
    %488 = vector.broadcast %467 : vector<1x32xf32> to vector<16x32xf32>
    %489 = arith.mulf %487, %488 : vector<16x32xf32>
    %490 = vector.broadcast %469 : vector<1x32xf32> to vector<16x32xf32>
    %491 = arith.addf %489, %490 : vector<16x32xf32>
    %c1_298 = arith.constant 1 : index
    %c0_299 = arith.constant 0 : index
    %c0_300 = arith.constant 0 : index
    %492 = vector.load %arg15[%c1_298, %c0_299, %c0_300] : memref<2x32x128xf32, #tpu.memory_space<vmem>>, vector<1x32x128xf32>
    %493 = vector.shape_cast %492 : vector<1x32x128xf32> to vector<32x128xf32>
    %cst_301 = arith.constant dense<0.000000e+00> : vector<16x128xf32>
    %494 = tpu.matmul %491, %493, %cst_301 {dimension_numbers = #tpu.dot_dimension_numbers<[1], [0], [0], [1], [0, 0, 1, 1], [], []>} : vector<16x32xf32>, vector<32x128xf32>, vector<16x128xf32> -> vector<16x128xf32>
    %c1_302 = arith.constant 1 : index
    %c0_303 = arith.constant 0 : index
    %c0_304 = arith.constant 0 : index
    %495 = vector.load %arg16[%c1_302, %c0_303, %c0_304] : memref<2x1x128xf32, #tpu.memory_space<vmem>>, vector<1x1x128xf32>
    %496 = vector.shape_cast %495 : vector<1x1x128xf32> to vector<1x128xf32>
    %497 = vector.broadcast %496 : vector<1x128xf32> to vector<16x128xf32>
    %498 = arith.addf %494, %497 : vector<16x128xf32>
    %499 = arith.mulf %498, %498 : vector<16x128xf32>
    %500 = arith.mulf %498, %499 : vector<16x128xf32>
    %cst_305 = arith.constant 4.471500e-02 : f32
    %501 = vector.broadcast %cst_305 : f32 to vector<16x128xf32>
    %502 = arith.mulf %501, %500 : vector<16x128xf32>
    %503 = arith.addf %498, %502 : vector<16x128xf32>
    %cst_306 = arith.constant 0.797884583 : f32
    %504 = vector.broadcast %cst_306 : f32 to vector<16x128xf32>
    %505 = arith.mulf %504, %503 : vector<16x128xf32>
    %506 = math.tanh %505 : vector<16x128xf32>
    %cst_307 = arith.constant 1.000000e+00 : f32
    %507 = vector.broadcast %cst_307 : f32 to vector<16x128xf32>
    %508 = arith.addf %507, %506 : vector<16x128xf32>
    %cst_308 = arith.constant 5.000000e-01 : f32
    %509 = vector.broadcast %cst_308 : f32 to vector<16x128xf32>
    %510 = arith.mulf %509, %508 : vector<16x128xf32>
    %511 = arith.mulf %498, %510 : vector<16x128xf32>
    %c1_309 = arith.constant 1 : index
    %c0_310 = arith.constant 0 : index
    %c0_311 = arith.constant 0 : index
    %512 = vector.load %arg17[%c1_309, %c0_310, %c0_311] : memref<2x128x32xf32, #tpu.memory_space<vmem>>, vector<1x128x32xf32>
    %513 = vector.shape_cast %512 : vector<1x128x32xf32> to vector<128x32xf32>
    %cst_312 = arith.constant dense<0.000000e+00> : vector<16x32xf32>
    %514 = tpu.matmul %511, %513, %cst_312 {dimension_numbers = #tpu.dot_dimension_numbers<[1], [0], [0], [1], [0, 0, 1, 1], [], []>} : vector<16x128xf32>, vector<128x32xf32>, vector<16x32xf32> -> vector<16x32xf32>
    %c1_313 = arith.constant 1 : index
    %c0_314 = arith.constant 0 : index
    %c0_315 = arith.constant 0 : index
    %515 = vector.load %arg18[%c1_313, %c0_314, %c0_315] : memref<2x1x32xf32, #tpu.memory_space<vmem>>, vector<1x1x32xf32>
    %516 = vector.shape_cast %515 : vector<1x1x32xf32> to vector<1x32xf32>
    %517 = vector.broadcast %516 : vector<1x32xf32> to vector<16x32xf32>
    %518 = arith.addf %514, %517 : vector<16x32xf32>
    %519 = arith.addf %491, %518 : vector<16x32xf32>
    %c1_316 = arith.constant 1 : index
    %c0_317 = arith.constant 0 : index
    %c0_318 = arith.constant 0 : index
    %520 = vector.load %arg19[%c1_316, %c0_317, %c0_318] : memref<2x1x32xf32, #tpu.memory_space<vmem>>, vector<1x1x32xf32>
    %521 = vector.shape_cast %520 : vector<1x1x32xf32> to vector<1x32xf32>
    %c1_319 = arith.constant 1 : index
    %c0_320 = arith.constant 0 : index
    %c0_321 = arith.constant 0 : index
    %522 = vector.load %arg20[%c1_319, %c0_320, %c0_321] : memref<2x1x32xf32, #tpu.memory_space<vmem>>, vector<1x1x32xf32>
    %523 = vector.shape_cast %522 : vector<1x1x32xf32> to vector<1x32xf32>
    %cst_322 = arith.constant dense<0.000000e+00> : vector<16xf32>
    %524 = vector.multi_reduction <add>, %519, %cst_322 [1] : vector<16x32xf32> to vector<16xf32>
    %525 = vector.shape_cast %524 : vector<16xf32> to vector<16x1xf32>
    %cst_323 = arith.constant 3.200000e+01 : f32
    %526 = vector.broadcast %cst_323 : f32 to vector<16x1xf32>
    %527 = arith.divf %525, %526 : vector<16x1xf32>
    %528 = vector.broadcast %527 : vector<16x1xf32> to vector<16x32xf32>
    %529 = arith.subf %519, %528 : vector<16x32xf32>
    %530 = arith.mulf %529, %529 : vector<16x32xf32>
    %cst_324 = arith.constant dense<0.000000e+00> : vector<16xf32>
    %531 = vector.multi_reduction <add>, %530, %cst_324 [1] : vector<16x32xf32> to vector<16xf32>
    %532 = vector.shape_cast %531 : vector<16xf32> to vector<16x1xf32>
    %cst_325 = arith.constant 3.200000e+01 : f32
    %533 = vector.broadcast %cst_325 : f32 to vector<16x1xf32>
    %534 = arith.divf %532, %533 : vector<16x1xf32>
    %535 = vector.broadcast %527 : vector<16x1xf32> to vector<16x32xf32>
    %536 = arith.subf %519, %535 : vector<16x32xf32>
    %cst_326 = arith.constant 9.99999996E-13 : f32
    %537 = vector.broadcast %cst_326 : f32 to vector<16x1xf32>
    %538 = arith.addf %534, %537 : vector<16x1xf32>
    %539 = math.rsqrt %538 : vector<16x1xf32>
    %540 = vector.broadcast %539 : vector<16x1xf32> to vector<16x32xf32>
    %541 = arith.mulf %536, %540 : vector<16x32xf32>
    %542 = vector.broadcast %521 : vector<1x32xf32> to vector<16x32xf32>
    %543 = arith.mulf %541, %542 : vector<16x32xf32>
    %544 = vector.broadcast %523 : vector<1x32xf32> to vector<16x32xf32>
    %545 = arith.addf %543, %544 : vector<16x32xf32>
    %546 = tpu.iota {dimensions = array<i32: 1>} : vector<2x16xi32>
    %547 = tpu.iota {dimensions = array<i32: 0>} : vector<2x16xi32>
    %c8_i32 = arith.constant 8 : i32
    %548 = vector.broadcast %c8_i32 : i32 to vector<2x16xi32>
    %549 = arith.muli %548, %547 : vector<2x16xi32>
    %550 = arith.cmpi eq, %546, %549 : vector<2x16xi32>
    %551 = arith.extui %550 : vector<2x16xi1> to vector<2x16xi32>
    %552 = arith.sitofp %551 : vector<2x16xi32> to vector<2x16xf32>
    %cst_327 = arith.constant dense<0.000000e+00> : vector<2x32xf32>
    %553 = tpu.matmul %552, %545, %cst_327 {dimension_numbers = #tpu.dot_dimension_numbers<[1], [0], [0], [1], [0, 0, 1, 1], [], []>} : vector<2x16xf32>, vector<16x32xf32>, vector<2x32xf32> -> vector<2x32xf32>
    %c0_328 = arith.constant 0 : index
    %c0_329 = arith.constant 0 : index
    %554 = vector.load %arg21[%c0_328, %c0_329] : memref<32x32xf32, #tpu.memory_space<vmem>>, vector<32x32xf32>
    %cst_330 = arith.constant dense<0.000000e+00> : vector<2x32xf32>
    %555 = tpu.matmul %553, %554, %cst_330 {dimension_numbers = #tpu.dot_dimension_numbers<[1], [0], [0], [1], [0, 0, 1, 1], [], []>} : vector<2x32xf32>, vector<32x32xf32>, vector<2x32xf32> -> vector<2x32xf32>
    %c0_331 = arith.constant 0 : index
    %c0_332 = arith.constant 0 : index
    %556 = vector.load %arg22[%c0_331, %c0_332] : memref<1x32xf32, #tpu.memory_space<vmem>>, vector<1x32xf32>
    %557 = vector.broadcast %556 : vector<1x32xf32> to vector<2x32xf32>
    %558 = arith.addf %555, %557 : vector<2x32xf32>
    %559 = math.tanh %558 : vector<2x32xf32>
    %c0_333 = arith.constant 0 : index
    %c0_334 = arith.constant 0 : index
    %560 = vector.load %arg23[%c0_333, %c0_334] : memref<32x5xf32, #tpu.memory_space<vmem>>, vector<32x5xf32>
    %cst_335 = arith.constant dense<0.000000e+00> : vector<2x5xf32>
    %561 = tpu.matmul %559, %560, %cst_335 {dimension_numbers = #tpu.dot_dimension_numbers<[1], [0], [0], [1], [0, 0, 1, 1], [], []>} : vector<2x32xf32>, vector<32x5xf32>, vector<2x5xf32> -> vector<2x5xf32>
    %c0_336 = arith.constant 0 : index
    %c0_337 = arith.constant 0 : index
    %562 = vector.load %arg24[%c0_336, %c0_337] : memref<1x5xf32, #tpu.memory_space<vmem>>, vector<1x5xf32>
    %563 = vector.broadcast %562 : vector<1x5xf32> to vector<2x5xf32>
    %564 = arith.addf %561, %563 : vector<2x5xf32>
    %cst_338 = arith.constant dense<0xFF800000> : vector<2xf32>
    %565 = vector.multi_reduction <maximumf>, %564, %cst_338 [1] : vector<2x5xf32> to vector<2xf32>
    %566 = vector.shape_cast %565 : vector<2xf32> to vector<2x1xf32>
    %567 = tpu.iota {dimensions = array<i32: 1>} : vector<2x5xi32>
    %568 = vector.broadcast %566 : vector<2x1xf32> to vector<2x5xf32>
    %569 = arith.cmpf oeq, %564, %568 : vector<2x5xf32>
    %c5_i32 = arith.constant 5 : i32
    %570 = vector.broadcast %c5_i32 : i32 to vector<2x5xi32>
    %571 = arith.select %569, %567, %570 : vector<2x5xi1>, vector<2x5xi32>
    %cst_339 = arith.constant dense<2147483647> : vector<2xi32>
    %572 = vector.multi_reduction <minsi>, %571, %cst_339 [1] : vector<2x5xi32> to vector<2xi32>
    %573 = vector.shape_cast %572 : vector<2xi32> to vector<2x1xi32>
    %c0_340 = arith.constant 0 : index
    %c0_341 = arith.constant 0 : index
    %574 = vector.load %arg25[%c0_340, %c0_341] : memref<2x1xi32, #tpu.memory_space<vmem>>, vector<2x1xi32>
    tpu.vector_store %arg25[%c0_340, %c0_341], %573 {strides = array<i32>} : memref<2x1xi32, #tpu.memory_space<vmem>>, vector<2x1xi32>,
    return
  }
  func.func @transform_0(%arg0: i32) -> (i32, i32) {
    %c0_i32 = arith.constant 0 : i32
    %c0_i32_0 = arith.constant 0 : i32
    %c0_i32_1 = arith.constant 0 : i32
    return %c0_i32, %c0_i32_0 : i32, i32
  }
  func.func @transform_1(%arg0: i32) -> (i32, i32, i32) {
    %c0_i32 = arith.constant 0 : i32
    %c0_i32_0 = arith.constant 0 : i32
    %c0_i32_1 = arith.constant 0 : i32
    %c0_i32_2 = arith.constant 0 : i32
    return %c0_i32, %c0_i32_0, %c0_i32_1 : i32, i32, i32
  }
  func.func @transform_2(%arg0: i32) -> (i32, i32) {
    %c0_i32 = arith.constant 0 : i32
    %c0_i32_0 = arith.constant 0 : i32
    %c0_i32_1 = arith.constant 0 : i32
    return %c0_i32, %c0_i32_0 : i32, i32
  }
  func.func @transform_3(%arg0: i32) -> (i32, i32) {
    %c0_i32 = arith.constant 0 : i32
    %c0_i32_0 = arith.constant 0 : i32
    %c0_i32_1 = arith.constant 0 : i32
    return %c0_i32, %c0_i32_0 : i32, i32
  }
  func.func @transform_4(%arg0: i32) -> (i32, i32, i32) {
    %c0_i32 = arith.constant 0 : i32
    %c0_i32_0 = arith.constant 0 : i32
    %c0_i32_1 = arith.constant 0 : i32
    %c0_i32_2 = arith.constant 0 : i32
    return %c0_i32, %c0_i32_0, %c0_i32_1 : i32, i32, i32
  }
  func.func @transform_5(%arg0: i32) -> (i32, i32, i32) {
    %c0_i32 = arith.constant 0 : i32
    %c0_i32_0 = arith.constant 0 : i32
    %c0_i32_1 = arith.constant 0 : i32
    %c0_i32_2 = arith.constant 0 : i32
    return %c0_i32, %c0_i32_0, %c0_i32_1 : i32, i32, i32
  }
  func.func @transform_6(%arg0: i32) -> (i32, i32, i32) {
    %c0_i32 = arith.constant 0 : i32
    %c0_i32_0 = arith.constant 0 : i32
    %c0_i32_1 = arith.constant 0 : i32
    %c0_i32_2 = arith.constant 0 : i32
    return %c0_i32, %c0_i32_0, %c0_i32_1 : i32, i32, i32
  }
  func.func @transform_7(%arg0: i32) -> (i32, i32, i32) {
    %c0_i32 = arith.constant 0 : i32
    %c0_i32_0 = arith.constant 0 : i32
    %c0_i32_1 = arith.constant 0 : i32
    %c0_i32_2 = arith.constant 0 : i32
    return %c0_i32, %c0_i32_0, %c0_i32_1 : i32, i32, i32
  }
  func.func @transform_8(%arg0: i32) -> (i32, i32, i32) {
    %c0_i32 = arith.constant 0 : i32
    %c0_i32_0 = arith.constant 0 : i32
    %c0_i32_1 = arith.constant 0 : i32
    %c0_i32_2 = arith.constant 0 : i32
    return %c0_i32, %c0_i32_0, %c0_i32_1 : i32, i32, i32
  }
  func.func @transform_9(%arg0: i32) -> (i32, i32, i32) {
    %c0_i32 = arith.constant 0 : i32
    %c0_i32_0 = arith.constant 0 : i32
    %c0_i32_1 = arith.constant 0 : i32
    %c0_i32_2 = arith.constant 0 : i32
    return %c0_i32, %c0_i32_0, %c0_i32_1 : i32, i32, i32
  }
  func.func @transform_10(%arg0: i32) -> (i32, i32, i32) {
    %c0_i32 = arith.constant 0 : i32
    %c0_i32_0 = arith.constant 0 : i32
    %c0_i32_1 = arith.constant 0 : i32
    %c0_i32_2 = arith.constant 0 : i32
    return %c0_i32, %c0_i32_0, %c0_i32_1 : i32, i32, i32
  }
  func.func @transform_11(%arg0: i32) -> (i32, i32, i32) {
    %c0_i32 = arith.constant 0 : i32
    %c0_i32_0 = arith.constant 0 : i32
    %c0_i32_1 = arith.constant 0 : i32
    %c0_i32_2 = arith.constant 0 : i32
    return %c0_i32, %c0_i32_0, %c0_i32_1 : i32, i32, i32
  }
  func.func @transform_12(%arg0: i32) -> (i32, i32, i32) {
    %c0_i32 = arith.constant 0 : i32
    %c0_i32_0 = arith.constant 0 : i32
    %c0_i32_1 = arith.constant 0 : i32
    %c0_i32_2 = arith.constant 0 : i32
    return %c0_i32, %c0_i32_0, %c0_i32_1 : i32, i32, i32
  }
  func.func @transform_13(%arg0: i32) -> (i32, i32, i32) {
    %c0_i32 = arith.constant 0 : i32
    %c0_i32_0 = arith.constant 0 : i32
    %c0_i32_1 = arith.constant 0 : i32
    %c0_i32_2 = arith.constant 0 : i32
    return %c0_i32, %c0_i32_0, %c0_i32_1 : i32, i32, i32
  }
  func.func @transform_14(%arg0: i32) -> (i32, i32, i32) {
    %c0_i32 = arith.constant 0 : i32
    %c0_i32_0 = arith.constant 0 : i32
    %c0_i32_1 = arith.constant 0 : i32
    %c0_i32_2 = arith.constant 0 : i32
    return %c0_i32, %c0_i32_0, %c0_i32_1 : i32, i32, i32
  }
  func.func @transform_15(%arg0: i32) -> (i32, i32, i32) {
    %c0_i32 = arith.constant 0 : i32
    %c0_i32_0 = arith.constant 0 : i32
    %c0_i32_1 = arith.constant 0 : i32
    %c0_i32_2 = arith.constant 0 : i32
    return %c0_i32, %c0_i32_0, %c0_i32_1 : i32, i32, i32
  }
  func.func @transform_16(%arg0: i32) -> (i32, i32, i32) {
    %c0_i32 = arith.constant 0 : i32
    %c0_i32_0 = arith.constant 0 : i32
    %c0_i32_1 = arith.constant 0 : i32
    %c0_i32_2 = arith.constant 0 : i32
    return %c0_i32, %c0_i32_0, %c0_i32_1 : i32, i32, i32
  }
  func.func @transform_17(%arg0: i32) -> (i32, i32, i32) {
    %c0_i32 = arith.constant 0 : i32
    %c0_i32_0 = arith.constant 0 : i32
    %c0_i32_1 = arith.constant 0 : i32
    %c0_i32_2 = arith.constant 0 : i32
    return %c0_i32, %c0_i32_0, %c0_i32_1 : i32, i32, i32
  }
  func.func @transform_18(%arg0: i32) -> (i32, i32, i32) {
    %c0_i32 = arith.constant 0 : i32
    %c0_i32_0 = arith.constant 0 : i32
    %c0_i32_1 = arith.constant 0 : i32
    %c0_i32_2 = arith.constant 0 : i32
    return %c0_i32, %c0_i32_0, %c0_i32_1 : i32, i32, i32
  }
  func.func @transform_19(%arg0: i32) -> (i32, i32, i32) {
    %c0_i32 = arith.constant 0 : i32
    %c0_i32_0 = arith.constant 0 : i32
    %c0_i32_1 = arith.constant 0 : i32
    %c0_i32_2 = arith.constant 0 : i32
    return %c0_i32, %c0_i32_0, %c0_i32_1 : i32, i32, i32
  }
  func.func @transform_20(%arg0: i32) -> (i32, i32) {
    %c0_i32 = arith.constant 0 : i32
    %c0_i32_0 = arith.constant 0 : i32
    %c0_i32_1 = arith.constant 0 : i32
    return %c0_i32, %c0_i32_0 : i32, i32
  }
  func.func @transform_21(%arg0: i32) -> (i32, i32) {
    %c0_i32 = arith.constant 0 : i32
    %c0_i32_0 = arith.constant 0 : i32
    %c0_i32_1 = arith.constant 0 : i32
    return %c0_i32, %c0_i32_0 : i32, i32
  }
  func.func @transform_22(%arg0: i32) -> (i32, i32) {
    %c0_i32 = arith.constant 0 : i32
    %c0_i32_0 = arith.constant 0 : i32
    %c0_i32_1 = arith.constant 0 : i32
    return %c0_i32, %c0_i32_0 : i32, i32
  }
  func.func @transform_23(%arg0: i32) -> (i32, i32) {
    %c0_i32 = arith.constant 0 : i32
    %c0_i32_0 = arith.constant 0 : i32
    %c0_i32_1 = arith.constant 0 : i32
    return %c0_i32, %c0_i32_0 : i32, i32
  }
  func.func @transform_24(%arg0: i32) -> (i32, i32) {
    %c0_i32 = arith.constant 0 : i32
    %c0_i32_0 = arith.constant 0 : i32
    %c0_i32_1 = arith.constant 0 : i32
    return %c0_i32, %c0_i32_0 : i32, i32
  }
}

</mosaic_0001>

<llo_original>
// kernel: bert_for_sentence_codes.1
$region0: #{bert_for_sentence_codes.1}
  #allocation0 [shape = 'u32[]', space=smem, size = 0x4, offset = 0x4, fixed_abs, tag = 'smem constant byte address 0x4 - core index']
  #allocation1 [shape = 'u32[144,128]{1,0:T(1,128)}', space=vmem, size = 0x12000, scoped, tag = 'internal scratch']
  %s0 = inlined_call_operand.vmem [shape: f32[16,32], index: 0, kind: input, shape index: {}]
  %s1 = inlined_call_operand.vmem [shape: f32[2,1,8], index: 1, kind: input, shape index: {}]
  %s2 = inlined_call_operand.vmem [shape: f32[1,32], index: 2, kind: input, shape index: {}]
  %s3 = inlined_call_operand.vmem [shape: f32[1,32], index: 3, kind: input, shape index: {}, may-alias: {3,21}]
  %s4 = inlined_call_operand.vmem [shape: f32[8,32,8], index: 4, kind: input, shape index: {}]
  %s5 = inlined_call_operand.vmem [shape: f32[8,1,8], index: 5, kind: input, shape index: {}, may-alias: {5,7,9}]
  %s6 = inlined_call_operand.hbm [shape: f32[8,32,8], index: 6, kind: input, shape index: {}]
  %s7 = inlined_call_operand.vmem [shape: f32[8,1,8], index: 7, kind: input, shape index: {}, may-alias: {5,7,9}]
  %s8 = inlined_call_operand.hbm [shape: f32[8,32,8], index: 8, kind: input, shape index: {}]
  %s9 = inlined_call_operand.vmem [shape: f32[8,1,8], index: 9, kind: input, shape index: {}, may-alias: {5,7,9}]
  %s10 = inlined_call_operand.vmem [shape: f32[8,8,32], index: 10, kind: input, shape index: {}]
  %s11 = inlined_call_operand.vmem [shape: f32[2,1,32], index: 11, kind: input, shape index: {}, may-alias: {11,13,17,19}]
  %s12 = inlined_call_operand.vmem [shape: f32[2,1,32], index: 12, kind: input, shape index: {}, may-alias: {12,18}]
  %s13 = inlined_call_operand.vmem [shape: f32[2,1,32], index: 13, kind: input, shape index: {}, may-alias: {11,13,17,19}]
  %s14 = inlined_call_operand.vmem [shape: f32[2,32,128], index: 14, kind: input, shape index: {}]
  %s15 = inlined_call_operand.vmem [shape: f32[2,1,128], index: 15, kind: input, shape index: {}]
  %s16 = inlined_call_operand.hbm [shape: f32[2,128,32], index: 16, kind: input, shape index: {}]
  %s17 = inlined_call_operand.vmem [shape: f32[2,1,32], index: 17, kind: input, shape index: {}, may-alias: {11,13,17,19}]
  %s18 = inlined_call_operand.vmem [shape: f32[2,1,32], index: 18, kind: input, shape index: {}, may-alias: {12,18}]
  %s19 = inlined_call_operand.vmem [shape: f32[2,1,32], index: 19, kind: input, shape index: {}, may-alias: {11,13,17,19}]
  %s20 = inlined_call_operand.vmem [shape: f32[32,32], index: 20, kind: input, shape index: {}]
  %s21 = inlined_call_operand.vmem [shape: f32[1,32], index: 21, kind: input, shape index: {}, may-alias: {3,21}]
  %s22 = inlined_call_operand.vmem [shape: f32[32,5], index: 22, kind: input, shape index: {}]
  %s23 = inlined_call_operand.vmem [shape: f32[1,5], index: 23, kind: input, shape index: {}]
  %s24 = inlined_call_operand.vmem [shape: s32[2,1], index: 24, kind: output, shape index: {}]
  %s25 = sld [smem:[#allocation0]]
  $region118: #{bert_for_sentence_codes.1} parent=0
    _
  %s27 = ssub.s32 1, %s25
  %s28 = scalar_select 0, %s27, %s25
  $region1: #{bert_for_sentence_codes.1} parent=0
    #allocation2 [shape = 'u8[131072]{0}', space=vmem, size = 0x20000, scoped, tag = 'input window, operand 6, single buffered']
    #allocation3 [shape = 's32[1]{0}', space=sflag, size = 0x4, scoped, tag = 'scoped memory for bert_for_sentence_codes.1']
    #allocation4 [shape = 'u8[131072]{0}', space=vmem, size = 0x20000, scoped, tag = 'input window, operand 8, single buffered']
    #allocation5 [shape = 's32[1]{0}', space=sflag, size = 0x4, scoped, tag = 'scoped memory for bert_for_sentence_codes.1']
    #allocation6 [shape = 'u8[131072]{0}', space=vmem, size = 0x20000, scoped, tag = 'input window, operand 16, single buffered']
    %29 = vsyncpa [#allocation3], 0
    %30 = vsyncpa [#allocation5], 0
    // Predicated region
    $region2: #{bert_for_sentence_codes.1} parent=1 // pred_check
      _
    $region3: #{bert_for_sentence_codes.1} parent=1 // pred_check_branch
      %32 = sbr.rel (0) target = $region5
    $region4: #{bert_for_sentence_codes.1} parent=1 // pred_region
      _
    $region5: #{bert_for_sentence_codes.1} parent=1 // pred_fallthru
      _
    // Predicated region
    $region6: #{bert_for_sentence_codes.1} parent=1 // pred_check
      _
    $region7: #{bert_for_sentence_codes.1} parent=1 // pred_check_branch
      %34 = sbr.rel (0) target = $region9
    $region8: #{bert_for_sentence_codes.1} parent=1 // pred_region
      _
    $region9: #{bert_for_sentence_codes.1} parent=1 // pred_fallthru
      _
    // Predicated region
    $region10: #{bert_for_sentence_codes.1} parent=1 // pred_check
      _
    $region11: #{bert_for_sentence_codes.1} parent=1 // pred_check_branch
      %36 = sbr.rel (0) target = $region13
    $region12: #{bert_for_sentence_codes.1} parent=1 // pred_region
      _
    $region13: #{bert_for_sentence_codes.1} parent=1 // pred_fallthru
      _
    // Predicated region
    $region14: #{bert_for_sentence_codes.1} parent=1 // pred_check
      _
    $region15: #{bert_for_sentence_codes.1} parent=1 // pred_check_branch
      %38 = sbr.rel (0) target = $region17
    $region16: #{bert_for_sentence_codes.1} parent=1 // pred_region
      _
    $region17: #{bert_for_sentence_codes.1} parent=1 // pred_fallthru
      _
    // Predicated region
    $region18: #{bert_for_sentence_codes.1} parent=1 // pred_check
      _
    $region19: #{bert_for_sentence_codes.1} parent=1 // pred_check_branch
      %40 = sbr.rel (0) target = $region21
    $region20: #{bert_for_sentence_codes.1} parent=1 // pred_region
      _
    $region21: #{bert_for_sentence_codes.1} parent=1 // pred_fallthru
      _
    // Predicated region
    $region22: #{bert_for_sentence_codes.1} parent=1 // pred_check
      _
    $region23: #{bert_for_sentence_codes.1} parent=1 // pred_check_branch
      %42 = sbr.rel (0) target = $region25
    $region24: #{bert_for_sentence_codes.1} parent=1 // pred_region
      _
    $region25: #{bert_for_sentence_codes.1} parent=1 // pred_fallthru
      _
    // Predicated region
    $region26: #{bert_for_sentence_codes.1} parent=1 // pred_check
      _
    $region27: #{bert_for_sentence_codes.1} parent=1 // pred_check_branch
      %44 = sbr.rel (0) target = $region29
    $region28: #{bert_for_sentence_codes.1} parent=1 // pred_region
      %s46 = ssub.s32 4096, 4096
      %47 = vsyncadd [#allocation3], %s46
      %s48 = sshll.u32 [#allocation2], 4
      %s49 = int_to_ptr.vmem [resolvable:$true] %s48
      %54 = dma.hbm_to_vmem [thread:$0]  %s6, 4096, %s49, [#allocation3], 128, 128, 8
    $region29: #{bert_for_sentence_codes.1} parent=1 // pred_fallthru
      _
    // Predicated region
    $region30: #{bert_for_sentence_codes.1} parent=1 // pred_check
      _
    $region31: #{bert_for_sentence_codes.1} parent=1 // pred_check_branch
      %56 = sbr.rel (0) target = $region33
    $region32: #{bert_for_sentence_codes.1} parent=1 // pred_region
      _
    $region33: #{bert_for_sentence_codes.1} parent=1 // pred_fallthru
      _
    // Predicated region
    $region34: #{bert_for_sentence_codes.1} parent=1 // pred_check
      _
    $region35: #{bert_for_sentence_codes.1} parent=1 // pred_check_branch
      %58 = sbr.rel (0) target = $region37
    $region36: #{bert_for_sentence_codes.1} parent=1 // pred_region
      %s60 = ssub.s32 4096, 4096
      %61 = vsyncadd [#allocation5], %s60
      %s62 = sshll.u32 [#allocation4], 4
      %s63 = int_to_ptr.vmem [resolvable:$true] %s62
      %68 = dma.hbm_to_vmem [thread:$0]  %s8, 4096, %s63, [#allocation5], 128, 128, 8
    $region37: #{bert_for_sentence_codes.1} parent=1 // pred_fallthru
      _
    // Predicated region
    $region38: #{bert_for_sentence_codes.1} parent=1 // pred_check
      _
    $region39: #{bert_for_sentence_codes.1} parent=1 // pred_check_branch
      %70 = sbr.rel (0) target = $region41
    $region40: #{bert_for_sentence_codes.1} parent=1 // pred_region
      _
    $region41: #{bert_for_sentence_codes.1} parent=1 // pred_fallthru
      _
    // Predicated region
    $region42: #{bert_for_sentence_codes.1} parent=1 // pred_check
      _
    $region43: #{bert_for_sentence_codes.1} parent=1 // pred_check_branch
      %72 = sbr.rel (0) target = $region45
    $region44: #{bert_for_sentence_codes.1} parent=1 // pred_region
      _
    $region45: #{bert_for_sentence_codes.1} parent=1 // pred_fallthru
      _
    // Predicated region
    $region46: #{bert_for_sentence_codes.1} parent=1 // pred_check
      _
    $region47: #{bert_for_sentence_codes.1} parent=1 // pred_check_branch
      %74 = sbr.rel (0) target = $region49
    $region48: #{bert_for_sentence_codes.1} parent=1 // pred_region
      _
    $region49: #{bert_for_sentence_codes.1} parent=1 // pred_fallthru
      _
    // Predicated region
    $region50: #{bert_for_sentence_codes.1} parent=1 // pred_check
      _
    $region51: #{bert_for_sentence_codes.1} parent=1 // pred_check_branch
      %76 = sbr.rel (0) target = $region53
    $region52: #{bert_for_sentence_codes.1} parent=1 // pred_region
      _
    $region53: #{bert_for_sentence_codes.1} parent=1 // pred_fallthru
      _
    // Predicated region
    $region54: #{bert_for_sentence_codes.1} parent=1 // pred_check
      _
    $region55: #{bert_for_sentence_codes.1} parent=1 // pred_check_branch
      %78 = sbr.rel (0) target = $region57
    $region56: #{bert_for_sentence_codes.1} parent=1 // pred_region
      _
    $region57: #{bert_for_sentence_codes.1} parent=1 // pred_fallthru
      _
    // Predicated region
    $region58: #{bert_for_sentence_codes.1} parent=1 // pred_check
      _
    $region59: #{bert_for_sentence_codes.1} parent=1 // pred_check_branch
      %80 = sbr.rel (0) target = $region61
    $region60: #{bert_for_sentence_codes.1} parent=1 // pred_region
      _
    $region61: #{bert_for_sentence_codes.1} parent=1 // pred_fallthru
      _
    // Predicated region
    $region62: #{bert_for_sentence_codes.1} parent=1 // pred_check
      _
    $region63: #{bert_for_sentence_codes.1} parent=1 // pred_check_branch
      %82 = sbr.rel (0) target = $region65
    $region64: #{bert_for_sentence_codes.1} parent=1 // pred_region
      _
    $region65: #{bert_for_sentence_codes.1} parent=1 // pred_fallthru
      _
    // Predicated region
    $region66: #{bert_for_sentence_codes.1} parent=1 // pred_check
      _
    $region67: #{bert_for_sentence_codes.1} parent=1 // pred_check_branch
      %84 = sbr.rel (0) target = $region69
    $region68: #{bert_for_sentence_codes.1} parent=1 // pred_region
      %s86 = ssub.s32 4096, 4096
      %87 = vsyncadd [#allocation5], %s86
      %s88 = sshll.u32 [#allocation6], 4
      %s89 = int_to_ptr.vmem [resolvable:$true] %s88
      %94 = dma.hbm_to_vmem [thread:$0]  %s16, 4096, %s89, [#allocation5], 128, 128, 8
    $region69: #{bert_for_sentence_codes.1} parent=1 // pred_fallthru
      _
    // Predicated region
    $region70: #{bert_for_sentence_codes.1} parent=1 // pred_check
      _
    $region71: #{bert_for_sentence_codes.1} parent=1 // pred_check_branch
      %96 = sbr.rel (0) target = $region73
    $region72: #{bert_for_sentence_codes.1} parent=1 // pred_region
      _
    $region73: #{bert_for_sentence_codes.1} parent=1 // pred_fallthru
      _
    // Predicated region
    $region74: #{bert_for_sentence_codes.1} parent=1 // pred_check
      _
    $region75: #{bert_for_sentence_codes.1} parent=1 // pred_check_branch
      %98 = sbr.rel (0) target = $region77
    $region76: #{bert_for_sentence_codes.1} parent=1 // pred_region
      _
    $region77: #{bert_for_sentence_codes.1} parent=1 // pred_fallthru
      _
    // Predicated region
    $region78: #{bert_for_sentence_codes.1} parent=1 // pred_check
      _
    $region79: #{bert_for_sentence_codes.1} parent=1 // pred_check_branch
      %100 = sbr.rel (0) target = $region81
    $region80: #{bert_for_sentence_codes.1} parent=1 // pred_region
      _
    $region81: #{bert_for_sentence_codes.1} parent=1 // pred_fallthru
      _
    // Predicated region
    $region82: #{bert_for_sentence_codes.1} parent=1 // pred_check
      _
    $region83: #{bert_for_sentence_codes.1} parent=1 // pred_check_branch
      %102 = sbr.rel (0) target = $region85
    $region84: #{bert_for_sentence_codes.1} parent=1 // pred_region
      _
    $region85: #{bert_for_sentence_codes.1} parent=1 // pred_fallthru
      _
    // Predicated region
    $region86: #{bert_for_sentence_codes.1} parent=1 // pred_check
      _
    $region87: #{bert_for_sentence_codes.1} parent=1 // pred_check_branch
      %104 = sbr.rel (0) target = $region89
    $region88: #{bert_for_sentence_codes.1} parent=1 // pred_region
      _
    $region89: #{bert_for_sentence_codes.1} parent=1 // pred_fallthru
      _
    // Predicated region
    $region90: #{bert_for_sentence_codes.1} parent=1 // pred_check
      _
    $region91: #{bert_for_sentence_codes.1} parent=1 // pred_check_branch
      %106 = sbr.rel (0) target = $region93
    $region92: #{bert_for_sentence_codes.1} parent=1 // pred_region
      _
    $region93: #{bert_for_sentence_codes.1} parent=1 // pred_fallthru
      _
    // Predicated region
    $region94: #{bert_for_sentence_codes.1} parent=1 // pred_check
      _
    $region95: #{bert_for_sentence_codes.1} parent=1 // pred_check_branch
      %108 = sbr.rel (0) target = $region97
    $region96: #{bert_for_sentence_codes.1} parent=1 // pred_region
      _
    $region97: #{bert_for_sentence_codes.1} parent=1 // pred_fallthru
      _
    // Predicated region
    $region98: #{bert_for_sentence_codes.1} parent=1 // pred_check
      _
    $region99: #{bert_for_sentence_codes.1} parent=1 // pred_check_branch
      %110 = sbr.rel (0) target = $region101
    $region100: #{bert_for_sentence_codes.1} parent=1 // pred_region
      %111 = dma.done [#allocation3], 4096
    $region101: #{bert_for_sentence_codes.1} parent=1 // pred_fallthru
      _
    // Predicated region
    $region102: #{bert_for_sentence_codes.1} parent=1 // pred_check
      _
    $region103: #{bert_for_sentence_codes.1} parent=1 // pred_check_branch
      %113 = sbr.rel (0) target = $region105
    $region104: #{bert_for_sentence_codes.1} parent=1 // pred_region
      %114 = dma.done [#allocation5], 4096
    $region105: #{bert_for_sentence_codes.1} parent=1 // pred_fallthru
      _
    // Predicated region
    $region106: #{bert_for_sentence_codes.1} parent=1 // pred_check
      _
    $region107: #{bert_for_sentence_codes.1} parent=1 // pred_check_branch
      %116 = sbr.rel (0) target = $region109
    $region108: #{bert_for_sentence_codes.1} parent=1 // pred_region
      %117 = dma.done [#allocation5], 4096
    $region109: #{bert_for_sentence_codes.1} parent=1 // pred_fallthru
      _
    %v118 = vld [vmem:[%s0] sm:$0xff]
    %v119 = vld [vmem:[%s0 + $0x8] sm:$0xff]
    %v120 = vld [vmem:[%s2] sm:$0x1]
    %v121 = vld [vmem:[%s3] sm:$0x1]
    %vm122 = vcmask 261120
    %v123 = vsel %vm122, %v118, 0.0
    %124 = vadd.xlane.f32.xlu0 %v123
    %v125 = vpop.xlane.xlu0 %124
    %v126 = vsel %vm122, %v119, 0.0
    %127 = vadd.xlane.f32.xlu0 %v126
    %v128 = vpop.xlane.xlu0 %127
    %v129 = vrcp.pop 32.0
    %v130 = vmul.f32 %v125, %v129
    %v131 = vmul.f32 %v128, %v129
    %v132 = vsub.f32 %v118, %v130
    %v133 = vsub.f32 %v119, %v131
    %v134 = vmul.f32 %v132, %v132
    %v135 = vmul.f32 %v133, %v133
    %v136 = vsel %vm122, %v134, 0.0
    %137 = vadd.xlane.f32.xlu0 %v136
    %v138 = vpop.xlane.xlu0 %137
    %v139 = vsel %vm122, %v135, 0.0
    %140 = vadd.xlane.f32.xlu0 %v139
    %v141 = vpop.xlane.xlu0 %140
    %v142 = vmul.f32 %v138, %v129
    %v143 = vmul.f32 %v141, %v129
    %v144 = vadd.f32 %v142, 1e-12
    %v145 = vadd.f32 %v143, 1e-12
    %v146 = vrsqrt.pop %v144
    %v147 = vrsqrt.pop %v145
    %v148 = vmul.f32 %v132, %v146
    %v149 = vmul.f32 %v133, %v147
    %v151 = vlaneseq
    %v152 = vshrl.u32 %v151, 7
    %v153 = vsub.s32 0, %v152
    %v154 = vrot.slane %v120, %v153
    %v156 = vmul.f32 %v148, %v154
    %v157 = vmul.f32 %v149, %v154
    %v159 = vlaneseq
    %v160 = vshrl.u32 %v159, 7
    %v161 = vsub.s32 0, %v160
    %v162 = vrot.slane %v121, %v161
    %v164 = vadd.f32 %v156, %v162
    %v165 = vadd.f32 %v157, %v162
    %v166 = vld [vmem:[%s1] sm:$0x1]
    %v167 = vld [vmem:[%s1 + $0x1] sm:$0x1]
    %v168 = vsub.f32 1.0, %v166
    %v169 = vsub.f32 1.0, %v167
    %v170 = vmul.f32 %v168, -1e+09
    %v171 = vmul.f32 %v169, -1e+09
    %v172 = vld [vmem:[%s4] sm:$0xff]
    %v173 = vld [vmem:[%s4 + $0x8] sm:$0xff]
    %v174 = vld [vmem:[%s4 + $0x10] sm:$0xff]
    %v175 = vld [vmem:[%s4 + $0x18] sm:$0xff]
    %v176 = vld [vmem:[%s5] sm:$0x1]
    %v178 = vlaneseq
    %v179 = vshrl.u32 %v178, 7
    %v180 = vsub.s32 0, %v179
    %v181 = vrot.slane %v176, %v180
    %v184 = vsel %vm122, %v164, 0
    %v187 = vsel %vm122, %v165, 0
    %189 = vmatprep.subr.mxu0 0.0
    %190 = vmatpush1.msra.mxu0 %v172
    %191 = vmatprep.subr.mxu0 0.0
    %192 = vmatpush1.msra.mxu0 %v173
    %193 = vmatprep.subr.mxu0 0.0
    %194 = vmatpush1.msra.mxu0 %v174
    %195 = vmatprep.subr.mxu0 0.0
    %196 = vmatpush1.msra.mxu0 %v175
    %197 = vmatprep.subr.mxu0 0.0
    %198 = vmatpush1.msra.mxu0 0.0
    %199 = vmatprep.subr.mxu0 0.0
    %200 = vmatpush1.msra.mxu0 0.0
    %201 = vmatprep.subr.mxu0 0.0
    %202 = vmatpush1.msra.mxu0 0.0
    %203 = vmatprep.subr.mxu0 0.0
    %204 = vmatpush1.msra.mxu0 0.0
    %205 = vmatprep.subr.mxu0 0.0
    %206 = vmatpush1.msra.mxu0 0.0
    %207 = vmatprep.subr.mxu0 0.0
    %208 = vmatpush1.msra.mxu0 0.0
    %209 = vmatprep.subr.mxu0 0.0
    %210 = vmatpush1.msra.mxu0 0.0
    %211 = vmatprep.subr.mxu0 0.0
    %212 = vmatpush1.msra.mxu0 0.0
    %213 = vmatprep.subr.mxu0 0.0
    %214 = vmatpush1.msra.mxu0 0.0
    %215 = vmatprep.subr.mxu0 0.0
    %216 = vmatpush1.msra.mxu0 0.0
    %217 = vmatprep.subr.mxu0 0.0
    %218 = vmatpush1.msra.mxu0 0.0
    %219 = vmatprep.subr.mxu0 0.0
    %220 = vmatpush1.msra.mxu0 0.0
    %221 = vmatprep.subr.mxu0 0.0
    %222 = vmatpush1.msra.mxu0 0.0
    %223 = vmatprep.subr.mxu0 0.0
    %224 = vmatpush1.msra.mxu0 0.0
    %225 = vmatprep.subr.mxu0 0.0
    %226 = vmatpush1.msra.mxu0 0.0
    %227 = vmatprep.subr.mxu0 0.0
    %228 = vmatpush1.msra.mxu0 0.0
    %229 = vmatprep.subr.mxu0 0.0
    %230 = vmatpush1.msra.mxu0 0.0
    %231 = vmatprep.subr.mxu0 0.0
    %232 = vmatpush1.msra.mxu0 0.0
    %233 = vmatprep.subr.mxu0 0.0
    %234 = vmatpush1.msra.mxu0 0.0
    %235 = vmatprep.subr.mxu0 0.0
    %236 = vmatpush1.msra.mxu0 0.0
    %237 = vmatprep.subr.mxu0 0.0
    %238 = vmatpush1.msra.mxu0 0.0
    %239 = vmatprep.subr.mxu0 0.0
    %240 = vmatpush1.msra.mxu0 0.0
    %241 = vmatprep.subr.mxu0 0.0
    %242 = vmatpush1.msra.mxu0 0.0
    %243 = vmatprep.subr.mxu0 0.0
    %244 = vmatpush1.msra.mxu0 0.0
    %245 = vmatprep.subr.mxu0 0.0
    %246 = vmatpush1.msra.mxu0 0.0
    %247 = vmatprep.subr.mxu0 0.0
    %248 = vmatpush1.msra.mxu0 0.0
    %249 = vmatprep.subr.mxu0 0.0
    %250 = vmatpush1.msra.mxu0 0.0
    %251 = vmatprep.subr.mxu0 0.0
    %252 = vmatpush1.msra.mxu0 0.0
    %253 = vmatprep.mubr.f32.mxu0 0.0
    %254 = vmatmul.mubr.f32.gmra.mrb[0].mxu0 %v184
    %v255 = vpop.f32.mrb[0].mxu0
    %v256 = vadd.f32 %v181, %v255
    %v257 = vpop.f32.mrb[0].mxu0
    %258 = vmatprep.mubr.f32.mxu0 0.0
    %259 = vmatmul.mubr.f32.gmra.mrb[0].mxu0 %v187
    %v260 = vpop.f32.mrb[0].mxu0
    %v261 = vadd.f32 %v181, %v260
    %v262 = vpop.f32.mrb[0].mxu0
    %263 = vdwg.mxu0
    %v264 = vld [vmem:[#allocation2] sm:$0xff]
    %v265 = vld [vmem:[#allocation2 + $0x8] sm:$0xff]
    %v266 = vld [vmem:[#allocation2 + $0x10] sm:$0xff]
    %v267 = vld [vmem:[#allocation2 + $0x18] sm:$0xff]
    %v268 = vld [vmem:[%s7] sm:$0x1]
    %v270 = vlaneseq
    %v271 = vshrl.u32 %v270, 7
    %v272 = vsub.s32 0, %v271
    %v273 = vrot.slane %v268, %v272
    %275 = vmatprep.subr.mxu0 0.0
    %276 = vmatpush1.msra.mxu0 %v264
    %277 = vmatprep.subr.mxu0 0.0
    %278 = vmatpush1.msra.mxu0 %v265
    %279 = vmatprep.subr.mxu0 0.0
    %280 = vmatpush1.msra.mxu0 %v266
    %281 = vmatprep.subr.mxu0 0.0
    %282 = vmatpush1.msra.mxu0 %v267
    %283 = vmatprep.subr.mxu0 0.0
    %284 = vmatpush1.msra.mxu0 0.0
    %285 = vmatprep.subr.mxu0 0.0
    %286 = vmatpush1.msra.mxu0 0.0
    %287 = vmatprep.subr.mxu0 0.0
    %288 = vmatpush1.msra.mxu0 0.0
    %289 = vmatprep.subr.mxu0 0.0
    %290 = vmatpush1.msra.mxu0 0.0
    %291 = vmatprep.subr.mxu0 0.0
    %292 = vmatpush1.msra.mxu0 0.0
    %293 = vmatprep.subr.mxu0 0.0
    %294 = vmatpush1.msra.mxu0 0.0
    %295 = vmatprep.subr.mxu0 0.0
    %296 = vmatpush1.msra.mxu0 0.0
    %297 = vmatprep.subr.mxu0 0.0
    %298 = vmatpush1.msra.mxu0 0.0
    %299 = vmatprep.subr.mxu0 0.0
    %300 = vmatpush1.msra.mxu0 0.0
    %301 = vmatprep.subr.mxu0 0.0
    %302 = vmatpush1.msra.mxu0 0.0
    %303 = vmatprep.subr.mxu0 0.0
    %304 = vmatpush1.msra.mxu0 0.0
    %305 = vmatprep.subr.mxu0 0.0
    %306 = vmatpush1.msra.mxu0 0.0
    %307 = vmatprep.subr.mxu0 0.0
    %308 = vmatpush1.msra.mxu0 0.0
    %309 = vmatprep.subr.mxu0 0.0
    %310 = vmatpush1.msra.mxu0 0.0
    %311 = vmatprep.subr.mxu0 0.0
    %312 = vmatpush1.msra.mxu0 0.0
    %313 = vmatprep.subr.mxu0 0.0
    %314 = vmatpush1.msra.mxu0 0.0
    %315 = vmatprep.subr.mxu0 0.0
    %316 = vmatpush1.msra.mxu0 0.0
    %317 = vmatprep.subr.mxu0 0.0
    %318 = vmatpush1.msra.mxu0 0.0
    %319 = vmatprep.subr.mxu0 0.0
    %320 = vmatpush1.msra.mxu0 0.0
    %321 = vmatprep.subr.mxu0 0.0
    %322 = vmatpush1.msra.mxu0 0.0
    %323 = vmatprep.subr.mxu0 0.0
    %324 = vmatpush1.msra.mxu0 0.0
    %325 = vmatprep.subr.mxu0 0.0
    %326 = vmatpush1.msra.mxu0 0.0
    %327 = vmatprep.subr.mxu0 0.0
    %328 = vmatpush1.msra.mxu0 0.0
    %329 = vmatprep.subr.mxu0 0.0
    %330 = vmatpush1.msra.mxu0 0.0
    %331 = vmatprep.subr.mxu0 0.0
    %332 = vmatpush1.msra.mxu0 0.0
    %333 = vmatprep.subr.mxu0 0.0
    %334 = vmatpush1.msra.mxu0 0.0
    %335 = vmatprep.subr.mxu0 0.0
    %336 = vmatpush1.msra.mxu0 0.0
    %337 = vmatprep.subr.mxu0 0.0
    %338 = vmatpush1.msra.mxu0 0.0
    %339 = vmatprep.mubr.f32.mxu0 0.0
    %340 = vmatmul.mubr.f32.gmra.mrb[0].mxu0 %v184
    %v341 = vpop.f32.mrb[0].mxu0
    %v342 = vadd.f32 %v273, %v341
    %v343 = vpop.f32.mrb[0].mxu0
    %344 = vmatprep.mubr.f32.mxu0 0.0
    %345 = vmatmul.mubr.f32.gmra.mrb[0].mxu0 %v187
    %v346 = vpop.f32.mrb[0].mxu0
    %v347 = vadd.f32 %v273, %v346
    %v348 = vpop.f32.mrb[0].mxu0
    %349 = vdwg.mxu0
    %v350 = vld [vmem:[#allocation4] sm:$0xff]
    %v351 = vld [vmem:[#allocation4 + $0x8] sm:$0xff]
    %v352 = vld [vmem:[#allocation4 + $0x10] sm:$0xff]
    %v353 = vld [vmem:[#allocation4 + $0x18] sm:$0xff]
    %v354 = vld [vmem:[%s9] sm:$0x1]
    %v356 = vlaneseq
    %v357 = vshrl.u32 %v356, 7
    %v358 = vsub.s32 0, %v357
    %v359 = vrot.slane %v354, %v358
    %361 = vmatprep.subr.mxu0 0.0
    %362 = vmatpush1.msra.mxu0 %v350
    %363 = vmatprep.subr.mxu0 0.0
    %364 = vmatpush1.msra.mxu0 %v351
    %365 = vmatprep.subr.mxu0 0.0
    %366 = vmatpush1.msra.mxu0 %v352
    %367 = vmatprep.subr.mxu0 0.0
    %368 = vmatpush1.msra.mxu0 %v353
    %369 = vmatprep.subr.mxu0 0.0
    %370 = vmatpush1.msra.mxu0 0.0
    %371 = vmatprep.subr.mxu0 0.0
    %372 = vmatpush1.msra.mxu0 0.0
    %373 = vmatprep.subr.mxu0 0.0
    %374 = vmatpush1.msra.mxu0 0.0
    %375 = vmatprep.subr.mxu0 0.0
    %376 = vmatpush1.msra.mxu0 0.0
    %377 = vmatprep.subr.mxu0 0.0
    %378 = vmatpush1.msra.mxu0 0.0
    %379 = vmatprep.subr.mxu0 0.0
    %380 = vmatpush1.msra.mxu0 0.0
    %381 = vmatprep.subr.mxu0 0.0
    %382 = vmatpush1.msra.mxu0 0.0
    %383 = vmatprep.subr.mxu0 0.0
    %384 = vmatpush1.msra.mxu0 0.0
    %385 = vmatprep.subr.mxu0 0.0
    %386 = vmatpush1.msra.mxu0 0.0
    %387 = vmatprep.subr.mxu0 0.0
    %388 = vmatpush1.msra.mxu0 0.0
    %389 = vmatprep.subr.mxu0 0.0
    %390 = vmatpush1.msra.mxu0 0.0
    %391 = vmatprep.subr.mxu0 0.0
    %392 = vmatpush1.msra.mxu0 0.0
    %393 = vmatprep.subr.mxu0 0.0
    %394 = vmatpush1.msra.mxu0 0.0
    %395 = vmatprep.subr.mxu0 0.0
    %396 = vmatpush1.msra.mxu0 0.0
    %397 = vmatprep.subr.mxu0 0.0
    %398 = vmatpush1.msra.mxu0 0.0
    %399 = vmatprep.subr.mxu0 0.0
    %400 = vmatpush1.msra.mxu0 0.0
    %401 = vmatprep.subr.mxu0 0.0
    %402 = vmatpush1.msra.mxu0 0.0
    %403 = vmatprep.subr.mxu0 0.0
    %404 = vmatpush1.msra.mxu0 0.0
    %405 = vmatprep.subr.mxu0 0.0
    %406 = vmatpush1.msra.mxu0 0.0
    %407 = vmatprep.subr.mxu0 0.0
    %408 = vmatpush1.msra.mxu0 0.0
    %409 = vmatprep.subr.mxu0 0.0
    %410 = vmatpush1.msra.mxu0 0.0
    %411 = vmatprep.subr.mxu0 0.0
    %412 = vmatpush1.msra.mxu0 0.0
    %413 = vmatprep.subr.mxu0 0.0
    %414 = vmatpush1.msra.mxu0 0.0
    %415 = vmatprep.subr.mxu0 0.0
    %416 = vmatpush1.msra.mxu0 0.0
    %417 = vmatprep.subr.mxu0 0.0
    %418 = vmatpush1.msra.mxu0 0.0
    %419 = vmatprep.subr.mxu0 0.0
    %420 = vmatpush1.msra.mxu0 0.0
    %421 = vmatprep.subr.mxu0 0.0
    %422 = vmatpush1.msra.mxu0 0.0
    %423 = vmatprep.subr.mxu0 0.0
    %424 = vmatpush1.msra.mxu0 0.0
    %425 = vmatprep.mubr.f32.mxu0 0.0
    %426 = vmatmul.mubr.f32.gmra.mrb[0].mxu0 %v184
    %v427 = vpop.f32.mrb[0].mxu0
    %v428 = vadd.f32 %v359, %v427
    %v429 = vpop.f32.mrb[0].mxu0
    %430 = vmatprep.mubr.f32.mxu0 0.0
    %431 = vmatmul.mubr.f32.gmra.mrb[0].mxu0 %v187
    %v432 = vpop.f32.mrb[0].mxu0
    %v433 = vadd.f32 %v359, %v432
    %v434 = vpop.f32.mrb[0].mxu0
    %435 = vdwg.mxu0
    %v438 = vlaneseq
    %v439 = vshrl.u32 %v438, 7
    %v440 = vsub.s32 0, %v439
    %v441 = vrot.slane %v170, %v440
    %v442 = vlaneseq
    %v443 = vshrl.u32 %v442, 7
    %v444 = vsub.s32 0, %v443
    %v445 = vrot.slane %v171, %v444
    %vm448 = vcmask 64512
    %v450 = vsel %vm448, %v256, 0
    %v453 = vsel %vm448, %v342, 0
    %455 = vmatprep.subr.mxu0 0.0
    %456 = vmatpush1.xpose.msra.mxu0 %v453
    %457 = vmatprep.subr.mxu0 0.0
    %458 = vmatpush1.xpose.msra.mxu0 0.0
    %459 = vmatprep.subr.mxu0 0.0
    %460 = vmatpush1.xpose.msra.mxu0 0.0
    %461 = vmatprep.subr.mxu0 0.0
    %462 = vmatpush1.xpose.msra.mxu0 0.0
    %463 = vmatprep.subr.mxu0 0.0
    %464 = vmatpush1.xpose.msra.mxu0 0.0
    %465 = vmatprep.subr.mxu0 0.0
    %466 = vmatpush1.xpose.msra.mxu0 0.0
    %467 = vmatprep.subr.mxu0 0.0
    %468 = vmatpush1.xpose.msra.mxu0 0.0
    %469 = vmatprep.subr.mxu0 0.0
    %470 = vmatpush1.xpose.msra.mxu0 0.0
    %471 = vmatprep.subr.mxu0 0.0
    %472 = vmatpush1.xpose.msra.mxu0 0.0
    %473 = vmatprep.subr.mxu0 0.0
    %474 = vmatpush1.xpose.msra.mxu0 0.0
    %475 = vmatprep.subr.mxu0 0.0
    %476 = vmatpush1.xpose.msra.mxu0 0.0
    %477 = vmatprep.subr.mxu0 0.0
    %478 = vmatpush1.xpose.msra.mxu0 0.0
    %479 = vmatprep.subr.mxu0 0.0
    %480 = vmatpush1.xpose.msra.mxu0 0.0
    %481 = vmatprep.subr.mxu0 0.0
    %482 = vmatpush1.xpose.msra.mxu0 0.0
    %483 = vmatprep.subr.mxu0 0.0
    %484 = vmatpush1.xpose.msra.mxu0 0.0
    %485 = vmatprep.subr.mxu0 0.0
    %486 = vmatpush1.xpose.msra.mxu0 0.0
    %487 = vmatprep.subr.mxu0 0.0
    %488 = vmatpush1.xpose.msra.mxu0 0.0
    %489 = vmatprep.subr.mxu0 0.0
    %490 = vmatpush1.xpose.msra.mxu0 0.0
    %491 = vmatprep.subr.mxu0 0.0
    %492 = vmatpush1.xpose.msra.mxu0 0.0
    %493 = vmatprep.subr.mxu0 0.0
    %494 = vmatpush1.xpose.msra.mxu0 0.0
    %495 = vmatprep.subr.mxu0 0.0
    %496 = vmatpush1.xpose.msra.mxu0 0.0
    %497 = vmatprep.subr.mxu0 0.0
    %498 = vmatpush1.xpose.msra.mxu0 0.0
    %499 = vmatprep.subr.mxu0 0.0
    %500 = vmatpush1.xpose.msra.mxu0 0.0
    %501 = vmatprep.subr.mxu0 0.0
    %502 = vmatpush1.xpose.msra.mxu0 0.0
    %503 = vmatprep.subr.mxu0 0.0
    %504 = vmatpush1.xpose.msra.mxu0 0.0
    %505 = vmatprep.subr.mxu0 0.0
    %506 = vmatpush1.xpose.msra.mxu0 0.0
    %507 = vmatprep.subr.mxu0 0.0
    %508 = vmatpush1.xpose.msra.mxu0 0.0
    %509 = vmatprep.subr.mxu0 0.0
    %510 = vmatpush1.xpose.msra.mxu0 0.0
    %511 = vmatprep.subr.mxu0 0.0
    %512 = vmatpush1.xpose.msra.mxu0 0.0
    %513 = vmatprep.subr.mxu0 0.0
    %514 = vmatpush1.xpose.msra.mxu0 0.0
    %515 = vmatprep.subr.mxu0 0.0
    %516 = vmatpush1.xpose.msra.mxu0 0.0
    %517 = vmatprep.subr.mxu0 0.0
    %518 = vmatpush1.xpose.msra.mxu0 0.0
    %519 = vmatprep.mubr.f32.mxu0 0.0
    %520 = vmatmul.mubr.f32.gmra.mrb[0].mxu0 %v450
    %v521 = vpop.f32.mrb[0].mxu0
    %v522 = vadd.f32 %v441, %v521
    %v523 = vpop.f32.mrb[0].mxu0
    %524 = vdwg.mxu0
    %v526 = vsel %vm448, %v261, 0
    %v529 = vsel %vm448, %v347, 0
    %531 = vmatprep.subr.mxu0 0.0
    %532 = vmatpush1.xpose.msra.mxu0 %v529
    %533 = vmatprep.subr.mxu0 0.0
    %534 = vmatpush1.xpose.msra.mxu0 0.0
    %535 = vmatprep.subr.mxu0 0.0
    %536 = vmatpush1.xpose.msra.mxu0 0.0
    %537 = vmatprep.subr.mxu0 0.0
    %538 = vmatpush1.xpose.msra.mxu0 0.0
    %539 = vmatprep.subr.mxu0 0.0
    %540 = vmatpush1.xpose.msra.mxu0 0.0
    %541 = vmatprep.subr.mxu0 0.0
    %542 = vmatpush1.xpose.msra.mxu0 0.0
    %543 = vmatprep.subr.mxu0 0.0
    %544 = vmatpush1.xpose.msra.mxu0 0.0
    %545 = vmatprep.subr.mxu0 0.0
    %546 = vmatpush1.xpose.msra.mxu0 0.0
    %547 = vmatprep.subr.mxu0 0.0
    %548 = vmatpush1.xpose.msra.mxu0 0.0
    %549 = vmatprep.subr.mxu0 0.0
    %550 = vmatpush1.xpose.msra.mxu0 0.0
    %551 = vmatprep.subr.mxu0 0.0
    %552 = vmatpush1.xpose.msra.mxu0 0.0
    %553 = vmatprep.subr.mxu0 0.0
    %554 = vmatpush1.xpose.msra.mxu0 0.0
    %555 = vmatprep.subr.mxu0 0.0
    %556 = vmatpush1.xpose.msra.mxu0 0.0
    %557 = vmatprep.subr.mxu0 0.0
    %558 = vmatpush1.xpose.msra.mxu0 0.0
    %559 = vmatprep.subr.mxu0 0.0
    %560 = vmatpush1.xpose.msra.mxu0 0.0
    %561 = vmatprep.subr.mxu0 0.0
    %562 = vmatpush1.xpose.msra.mxu0 0.0
    %563 = vmatprep.subr.mxu0 0.0
    %564 = vmatpush1.xpose.msra.mxu0 0.0
    %565 = vmatprep.subr.mxu0 0.0
    %566 = vmatpush1.xpose.msra.mxu0 0.0
    %567 = vmatprep.subr.mxu0 0.0
    %568 = vmatpush1.xpose.msra.mxu0 0.0
    %569 = vmatprep.subr.mxu0 0.0
    %570 = vmatpush1.xpose.msra.mxu0 0.0
    %571 = vmatprep.subr.mxu0 0.0
    %572 = vmatpush1.xpose.msra.mxu0 0.0
    %573 = vmatprep.subr.mxu0 0.0
    %574 = vmatpush1.xpose.msra.mxu0 0.0
    %575 = vmatprep.subr.mxu0 0.0
    %576 = vmatpush1.xpose.msra.mxu0 0.0
    %577 = vmatprep.subr.mxu0 0.0
    %578 = vmatpush1.xpose.msra.mxu0 0.0
    %579 = vmatprep.subr.mxu0 0.0
    %580 = vmatpush1.xpose.msra.mxu0 0.0
    %581 = vmatprep.subr.mxu0 0.0
    %582 = vmatpush1.xpose.msra.mxu0 0.0
    %583 = vmatprep.subr.mxu0 0.0
    %584 = vmatpush1.xpose.msra.mxu0 0.0
    %585 = vmatprep.subr.mxu0 0.0
    %586 = vmatpush1.xpose.msra.mxu0 0.0
    %587 = vmatprep.subr.mxu0 0.0
    %588 = vmatpush1.xpose.msra.mxu0 0.0
    %589 = vmatprep.subr.mxu0 0.0
    %590 = vmatpush1.xpose.msra.mxu0 0.0
    %591 = vmatprep.subr.mxu0 0.0
    %592 = vmatpush1.xpose.msra.mxu0 0.0
    %593 = vmatprep.subr.mxu0 0.0
    %594 = vmatpush1.xpose.msra.mxu0 0.0
    %595 = vmatprep.mubr.f32.mxu0 0.0
    %596 = vmatmul.mubr.f32.gmra.mrb[0].mxu0 %v526
    %v597 = vpop.f32.mrb[0].mxu0
    %v598 = vadd.f32 %v445, %v597
    %v599 = vpop.f32.mrb[0].mxu0
    %600 = vdwg.mxu0
    %v601 = vsel %vm448, %v522, -inf
    %602 = vmax.xlane.f32.xlu0 %v601
    %v603 = vpop.xlane.xlu0 %602
    %v604 = vsel %vm448, %v598, -inf
    %605 = vmax.xlane.f32.xlu0 %v604
    %v606 = vpop.xlane.xlu0 %605
    %v607 = vsub.f32 %v522, %v603
    %v608 = vsub.f32 %v598, %v606
    %v609 = vmul.f32 %v607, 1.442695
    %v610 = vpow.pop %v609
    %v611 = vmul.f32 %v608, 1.442695
    %v612 = vpow.pop %v611
    %v613 = vsel %vm448, %v610, 0.0
    %614 = vadd.xlane.f32.xlu0 %v613
    %v615 = vpop.xlane.xlu0 %614
    %v616 = vsel %vm448, %v612, 0.0
    %617 = vadd.xlane.f32.xlu0 %v616
    %v618 = vpop.xlane.xlu0 %617
    %v619 = vrcp.pop %v615
    %v620 = vrcp.pop %v618
    %v621 = vmul.f32 %v610, %v619
    %v622 = vmul.f32 %v612, %v620
    %v624 = vsel %vm448, %v621, 0
    %626 = vmatprep.subr.mxu0 0.0
    %627 = vmatpush1.msra.mxu0 %v428
    %628 = vmatprep.subr.mxu0 0.0
    %629 = vmatpush1.msra.mxu0 0.0
    %630 = vmatprep.subr.mxu0 0.0
    %631 = vmatpush1.msra.mxu0 0.0
    %632 = vmatprep.subr.mxu0 0.0
    %633 = vmatpush1.msra.mxu0 0.0
    %634 = vmatprep.subr.mxu0 0.0
    %635 = vmatpush1.msra.mxu0 0.0
    %636 = vmatprep.subr.mxu0 0.0
    %637 = vmatpush1.msra.mxu0 0.0
    %638 = vmatprep.subr.mxu0 0.0
    %639 = vmatpush1.msra.mxu0 0.0
    %640 = vmatprep.subr.mxu0 0.0
    %641 = vmatpush1.msra.mxu0 0.0
    %642 = vmatprep.subr.mxu0 0.0
    %643 = vmatpush1.msra.mxu0 0.0
    %644 = vmatprep.subr.mxu0 0.0
    %645 = vmatpush1.msra.mxu0 0.0
    %646 = vmatprep.subr.mxu0 0.0
    %647 = vmatpush1.msra.mxu0 0.0
    %648 = vmatprep.subr.mxu0 0.0
    %649 = vmatpush1.msra.mxu0 0.0
    %650 = vmatprep.subr.mxu0 0.0
    %651 = vmatpush1.msra.mxu0 0.0
    %652 = vmatprep.subr.mxu0 0.0
    %653 = vmatpush1.msra.mxu0 0.0
    %654 = vmatprep.subr.mxu0 0.0
    %655 = vmatpush1.msra.mxu0 0.0
    %656 = vmatprep.subr.mxu0 0.0
    %657 = vmatpush1.msra.mxu0 0.0
    %658 = vmatprep.subr.mxu0 0.0
    %659 = vmatpush1.msra.mxu0 0.0
    %660 = vmatprep.subr.mxu0 0.0
    %661 = vmatpush1.msra.mxu0 0.0
    %662 = vmatprep.subr.mxu0 0.0
    %663 = vmatpush1.msra.mxu0 0.0
    %664 = vmatprep.subr.mxu0 0.0
    %665 = vmatpush1.msra.mxu0 0.0
    %666 = vmatprep.subr.mxu0 0.0
    %667 = vmatpush1.msra.mxu0 0.0
    %668 = vmatprep.subr.mxu0 0.0
    %669 = vmatpush1.msra.mxu0 0.0
    %670 = vmatprep.subr.mxu0 0.0
    %671 = vmatpush1.msra.mxu0 0.0
    %672 = vmatprep.subr.mxu0 0.0
    %673 = vmatpush1.msra.mxu0 0.0
    %674 = vmatprep.subr.mxu0 0.0
    %675 = vmatpush1.msra.mxu0 0.0
    %676 = vmatprep.subr.mxu0 0.0
    %677 = vmatpush1.msra.mxu0 0.0
    %678 = vmatprep.subr.mxu0 0.0
    %679 = vmatpush1.msra.mxu0 0.0
    %680 = vmatprep.subr.mxu0 0.0
    %681 = vmatpush1.msra.mxu0 0.0
    %682 = vmatprep.subr.mxu0 0.0
    %683 = vmatpush1.msra.mxu0 0.0
    %684 = vmatprep.subr.mxu0 0.0
    %685 = vmatpush1.msra.mxu0 0.0
    %686 = vmatprep.subr.mxu0 0.0
    %687 = vmatpush1.msra.mxu0 0.0
    %688 = vmatprep.subr.mxu0 0.0
    %689 = vmatpush1.msra.mxu0 0.0
    %690 = vmatprep.mubr.f32.mxu0 0.0
    %691 = vmatmul.mubr.f32.gmra.mrb[0].mxu0 %v624
    %v692 = vpop.f32.mrb[0].mxu0
    %v693 = vadd.f32 0.0, %v692
    %v694 = vpop.f32.mrb[0].mxu0
    %695 = vdwg.mxu0
    %v697 = vsel %vm448, %v622, 0
    %699 = vmatprep.subr.mxu0 0.0
    %700 = vmatpush1.msra.mxu0 %v433
    %701 = vmatprep.subr.mxu0 0.0
    %702 = vmatpush1.msra.mxu0 0.0
    %703 = vmatprep.subr.mxu0 0.0
    %704 = vmatpush1.msra.mxu0 0.0
    %705 = vmatprep.subr.mxu0 0.0
    %706 = vmatpush1.msra.mxu0 0.0
    %707 = vmatprep.subr.mxu0 0.0
    %708 = vmatpush1.msra.mxu0 0.0
    %709 = vmatprep.subr.mxu0 0.0
    %710 = vmatpush1.msra.mxu0 0.0
    %711 = vmatprep.subr.mxu0 0.0
    %712 = vmatpush1.msra.mxu0 0.0
    %713 = vmatprep.subr.mxu0 0.0
    %714 = vmatpush1.msra.mxu0 0.0
    %715 = vmatprep.subr.mxu0 0.0
    %716 = vmatpush1.msra.mxu0 0.0
    %717 = vmatprep.subr.mxu0 0.0
    %718 = vmatpush1.msra.mxu0 0.0
    %719 = vmatprep.subr.mxu0 0.0
    %720 = vmatpush1.msra.mxu0 0.0
    %721 = vmatprep.subr.mxu0 0.0
    %722 = vmatpush1.msra.mxu0 0.0
    %723 = vmatprep.subr.mxu0 0.0
    %724 = vmatpush1.msra.mxu0 0.0
    %725 = vmatprep.subr.mxu0 0.0
    %726 = vmatpush1.msra.mxu0 0.0
    %727 = vmatprep.subr.mxu0 0.0
    %728 = vmatpush1.msra.mxu0 0.0
    %729 = vmatprep.subr.mxu0 0.0
    %730 = vmatpush1.msra.mxu0 0.0
    %731 = vmatprep.subr.mxu0 0.0
    %732 = vmatpush1.msra.mxu0 0.0
    %733 = vmatprep.subr.mxu0 0.0
    %734 = vmatpush1.msra.mxu0 0.0
    %735 = vmatprep.subr.mxu0 0.0
    %736 = vmatpush1.msra.mxu0 0.0
    %737 = vmatprep.subr.mxu0 0.0
    %738 = vmatpush1.msra.mxu0 0.0
    %739 = vmatprep.subr.mxu0 0.0
    %740 = vmatpush1.msra.mxu0 0.0
    %741 = vmatprep.subr.mxu0 0.0
    %742 = vmatpush1.msra.mxu0 0.0
    %743 = vmatprep.subr.mxu0 0.0
    %744 = vmatpush1.msra.mxu0 0.0
    %745 = vmatprep.subr.mxu0 0.0
    %746 = vmatpush1.msra.mxu0 0.0
    %747 = vmatprep.subr.mxu0 0.0
    %748 = vmatpush1.msra.mxu0 0.0
    %749 = vmatprep.subr.mxu0 0.0
    %750 = vmatpush1.msra.mxu0 0.0
    %751 = vmatprep.subr.mxu0 0.0
    %752 = vmatpush1.msra.mxu0 0.0
    %753 = vmatprep.subr.mxu0 0.0
    %754 = vmatpush1.msra.mxu0 0.0
    %755 = vmatprep.subr.mxu0 0.0
    %756 = vmatpush1.msra.mxu0 0.0
    %757 = vmatprep.subr.mxu0 0.0
    %758 = vmatpush1.msra.mxu0 0.0
    %759 = vmatprep.subr.mxu0 0.0
    %760 = vmatpush1.msra.mxu0 0.0
    %761 = vmatprep.subr.mxu0 0.0
    %762 = vmatpush1.msra.mxu0 0.0
    %763 = vmatprep.mubr.f32.mxu0 0.0
    %764 = vmatmul.mubr.f32.gmra.mrb[0].mxu0 %v697
    %v765 = vpop.f32.mrb[0].mxu0
    %v766 = vadd.f32 0.0, %v765
    %v767 = vpop.f32.mrb[0].mxu0
    %768 = vdwg.mxu0
    %v769 = vld [vmem:[%s10] sm:$0xff]
    %s770 = scalar_lea.vmem %s4, 32
    %v771 = vld [vmem:[%s770] sm:$0xff]
    %v772 = vld [vmem:[%s770 + $0x8] sm:$0xff]
    %v773 = vld [vmem:[%s770 + $0x10] sm:$0xff]
    %v774 = vld [vmem:[%s770 + $0x18] sm:$0xff]
    %s775 = scalar_lea.vmem %s5, 1
    %v776 = vld [vmem:[%s775] sm:$0x1]
    %v778 = vlaneseq
    %v779 = vshrl.u32 %v778, 7
    %v780 = vsub.s32 0, %v779
    %v781 = vrot.slane %v776, %v780
    %783 = vmatprep.subr.mxu0 0.0
    %784 = vmatpush1.msra.mxu0 %v771
    %785 = vmatprep.subr.mxu0 0.0
    %786 = vmatpush1.msra.mxu0 %v772
    %787 = vmatprep.subr.mxu0 0.0
    %788 = vmatpush1.msra.mxu0 %v773
    %789 = vmatprep.subr.mxu0 0.0
    %790 = vmatpush1.msra.mxu0 %v774
    %791 = vmatprep.subr.mxu0 0.0
    %792 = vmatpush1.msra.mxu0 0.0
    %793 = vmatprep.subr.mxu0 0.0
    %794 = vmatpush1.msra.mxu0 0.0
    %795 = vmatprep.subr.mxu0 0.0
    %796 = vmatpush1.msra.mxu0 0.0
    %797 = vmatprep.subr.mxu0 0.0
    %798 = vmatpush1.msra.mxu0 0.0
    %799 = vmatprep.subr.mxu0 0.0
    %800 = vmatpush1.msra.mxu0 0.0
    %801 = vmatprep.subr.mxu0 0.0
    %802 = vmatpush1.msra.mxu0 0.0
    %803 = vmatprep.subr.mxu0 0.0
    %804 = vmatpush1.msra.mxu0 0.0
    %805 = vmatprep.subr.mxu0 0.0
    %806 = vmatpush1.msra.mxu0 0.0
    %807 = vmatprep.subr.mxu0 0.0
    %808 = vmatpush1.msra.mxu0 0.0
    %809 = vmatprep.subr.mxu0 0.0
    %810 = vmatpush1.msra.mxu0 0.0
    %811 = vmatprep.subr.mxu0 0.0
    %812 = vmatpush1.msra.mxu0 0.0
    %813 = vmatprep.subr.mxu0 0.0
    %814 = vmatpush1.msra.mxu0 0.0
    %815 = vmatprep.subr.mxu0 0.0
    %816 = vmatpush1.msra.mxu0 0.0
    %817 = vmatprep.subr.mxu0 0.0
    %818 = vmatpush1.msra.mxu0 0.0
    %819 = vmatprep.subr.mxu0 0.0
    %820 = vmatpush1.msra.mxu0 0.0
    %821 = vmatprep.subr.mxu0 0.0
    %822 = vmatpush1.msra.mxu0 0.0
    %823 = vmatprep.subr.mxu0 0.0
    %824 = vmatpush1.msra.mxu0 0.0
    %825 = vmatprep.subr.mxu0 0.0
    %826 = vmatpush1.msra.mxu0 0.0
    %827 = vmatprep.subr.mxu0 0.0
    %828 = vmatpush1.msra.mxu0 0.0
    %829 = vmatprep.subr.mxu0 0.0
    %830 = vmatpush1.msra.mxu0 0.0
    %831 = vmatprep.subr.mxu0 0.0
    %832 = vmatpush1.msra.mxu0 0.0
    %833 = vmatprep.subr.mxu0 0.0
    %834 = vmatpush1.msra.mxu0 0.0
    %835 = vmatprep.subr.mxu0 0.0
    %836 = vmatpush1.msra.mxu0 0.0
    %837 = vmatprep.subr.mxu0 0.0
    %838 = vmatpush1.msra.mxu0 0.0
    %839 = vmatprep.subr.mxu0 0.0
    %840 = vmatpush1.msra.mxu0 0.0
    %841 = vmatprep.subr.mxu0 0.0
    %842 = vmatpush1.msra.mxu0 0.0
    %843 = vmatprep.subr.mxu0 0.0
    %844 = vmatpush1.msra.mxu0 0.0
    %845 = vmatprep.subr.mxu0 0.0
    %846 = vmatpush1.msra.mxu0 0.0
    %847 = vmatprep.mubr.f32.mxu0 0.0
    %848 = vmatmul.mubr.f32.gmra.mrb[0].mxu0 %v184
    %v849 = vpop.f32.mrb[0].mxu0
    %v850 = vadd.f32 %v781, %v849
    %v851 = vpop.f32.mrb[0].mxu0
    %852 = vmatprep.mubr.f32.mxu0 0.0
    %853 = vmatmul.mubr.f32.gmra.mrb[0].mxu0 %v187
    %v854 = vpop.f32.mrb[0].mxu0
    %v855 = vadd.f32 %v781, %v854
    %v856 = vpop.f32.mrb[0].mxu0
    %857 = vdwg.mxu0
    %s858 = scalar_lea.vmem [#allocation2], 32
    %v859 = vld [vmem:[%s858] sm:$0xff]
    %v860 = vld [vmem:[%s858 + $0x8] sm:$0xff]
    %v861 = vld [vmem:[%s858 + $0x10] sm:$0xff]
    %v862 = vld [vmem:[%s858 + $0x18] sm:$0xff]
    %s863 = scalar_lea.vmem %s7, 1
    %v864 = vld [vmem:[%s863] sm:$0x1]
    %v866 = vlaneseq
    %v867 = vshrl.u32 %v866, 7
    %v868 = vsub.s32 0, %v867
    %v869 = vrot.slane %v864, %v868
    %871 = vmatprep.subr.mxu0 0.0
    %872 = vmatpush1.msra.mxu0 %v859
    %873 = vmatprep.subr.mxu0 0.0
    %874 = vmatpush1.msra.mxu0 %v860
    %875 = vmatprep.subr.mxu0 0.0
    %876 = vmatpush1.msra.mxu0 %v861
    %877 = vmatprep.subr.mxu0 0.0
    %878 = vmatpush1.msra.mxu0 %v862
    %879 = vmatprep.subr.mxu0 0.0
    %880 = vmatpush1.msra.mxu0 0.0
    %881 = vmatprep.subr.mxu0 0.0
    %882 = vmatpush1.msra.mxu0 0.0
    %883 = vmatprep.subr.mxu0 0.0
    %884 = vmatpush1.msra.mxu0 0.0
    %885 = vmatprep.subr.mxu0 0.0
    %886 = vmatpush1.msra.mxu0 0.0
    %887 = vmatprep.subr.mxu0 0.0
    %888 = vmatpush1.msra.mxu0 0.0
    %889 = vmatprep.subr.mxu0 0.0
    %890 = vmatpush1.msra.mxu0 0.0
    %891 = vmatprep.subr.mxu0 0.0
    %892 = vmatpush1.msra.mxu0 0.0
    %893 = vmatprep.subr.mxu0 0.0
    %894 = vmatpush1.msra.mxu0 0.0
    %895 = vmatprep.subr.mxu0 0.0
    %896 = vmatpush1.msra.mxu0 0.0
    %897 = vmatprep.subr.mxu0 0.0
    %898 = vmatpush1.msra.mxu0 0.0
    %899 = vmatprep.subr.mxu0 0.0
    %900 = vmatpush1.msra.mxu0 0.0
    %901 = vmatprep.subr.mxu0 0.0
    %902 = vmatpush1.msra.mxu0 0.0
    %903 = vmatprep.subr.mxu0 0.0
    %904 = vmatpush1.msra.mxu0 0.0
    %905 = vmatprep.subr.mxu0 0.0
    %906 = vmatpush1.msra.mxu0 0.0
    %907 = vmatprep.subr.mxu0 0.0
    %908 = vmatpush1.msra.mxu0 0.0
    %909 = vmatprep.subr.mxu0 0.0
    %910 = vmatpush1.msra.mxu0 0.0
    %911 = vmatprep.subr.mxu0 0.0
    %912 = vmatpush1.msra.mxu0 0.0
    %913 = vmatprep.subr.mxu0 0.0
    %914 = vmatpush1.msra.mxu0 0.0
    %915 = vmatprep.subr.mxu0 0.0
    %916 = vmatpush1.msra.mxu0 0.0
    %917 = vmatprep.subr.mxu0 0.0
    %918 = vmatpush1.msra.mxu0 0.0
    %919 = vmatprep.subr.mxu0 0.0
    %920 = vmatpush1.msra.mxu0 0.0
    %921 = vmatprep.subr.mxu0 0.0
    %922 = vmatpush1.msra.mxu0 0.0
    %923 = vmatprep.subr.mxu0 0.0
    %924 = vmatpush1.msra.mxu0 0.0
    %925 = vmatprep.subr.mxu0 0.0
    %926 = vmatpush1.msra.mxu0 0.0
    %927 = vmatprep.subr.mxu0 0.0
    %928 = vmatpush1.msra.mxu0 0.0
    %929 = vmatprep.subr.mxu0 0.0
    %930 = vmatpush1.msra.mxu0 0.0
    %931 = vmatprep.subr.mxu0 0.0
    %932 = vmatpush1.msra.mxu0 0.0
    %933 = vmatprep.subr.mxu0 0.0
    %934 = vmatpush1.msra.mxu0 0.0
    %935 = vmatprep.mubr.f32.mxu0 0.0
    %936 = vmatmul.mubr.f32.gmra.mrb[0].mxu0 %v184
    %v937 = vpop.f32.mrb[0].mxu0
    %v938 = vadd.f32 %v869, %v937
    %v939 = vpop.f32.mrb[0].mxu0
    %940 = vmatprep.mubr.f32.mxu0 0.0
    %941 = vmatmul.mubr.f32.gmra.mrb[0].mxu0 %v187
    %v942 = vpop.f32.mrb[0].mxu0
    %v943 = vadd.f32 %v869, %v942
    %v944 = vpop.f32.mrb[0].mxu0
    %945 = vdwg.mxu0
    %s946 = scalar_lea.vmem [#allocation4], 32
    %v947 = vld [vmem:[%s946] sm:$0xff]
    %v948 = vld [vmem:[%s946 + $0x8] sm:$0xff]
    %v949 = vld [vmem:[%s946 + $0x10] sm:$0xff]
    %v950 = vld [vmem:[%s946 + $0x18] sm:$0xff]
    %s951 = scalar_lea.vmem %s9, 1
    %v952 = vld [vmem:[%s951] sm:$0x1]
    %v954 = vlaneseq
    %v955 = vshrl.u32 %v954, 7
    %v956 = vsub.s32 0, %v955
    %v957 = vrot.slane %v952, %v956
    %959 = vmatprep.subr.mxu0 0.0
    %960 = vmatpush1.msra.mxu0 %v947
    %961 = vmatprep.subr.mxu0 0.0
    %962 = vmatpush1.msra.mxu0 %v948
    %963 = vmatprep.subr.mxu0 0.0
    %964 = vmatpush1.msra.mxu0 %v949
    %965 = vmatprep.subr.mxu0 0.0
    %966 = vmatpush1.msra.mxu0 %v950
    %967 = vmatprep.subr.mxu0 0.0
    %968 = vmatpush1.msra.mxu0 0.0
    %969 = vmatprep.subr.mxu0 0.0
    %970 = vmatpush1.msra.mxu0 0.0
    %971 = vmatprep.subr.mxu0 0.0
    %972 = vmatpush1.msra.mxu0 0.0
    %973 = vmatprep.subr.mxu0 0.0
    %974 = vmatpush1.msra.mxu0 0.0
    %975 = vmatprep.subr.mxu0 0.0
    %976 = vmatpush1.msra.mxu0 0.0
    %977 = vmatprep.subr.mxu0 0.0
    %978 = vmatpush1.msra.mxu0 0.0
    %979 = vmatprep.subr.mxu0 0.0
    %980 = vmatpush1.msra.mxu0 0.0
    %981 = vmatprep.subr.mxu0 0.0
    %982 = vmatpush1.msra.mxu0 0.0
    %983 = vmatprep.subr.mxu0 0.0
    %984 = vmatpush1.msra.mxu0 0.0
    %985 = vmatprep.subr.mxu0 0.0
    %986 = vmatpush1.msra.mxu0 0.0
    %987 = vmatprep.subr.mxu0 0.0
    %988 = vmatpush1.msra.mxu0 0.0
    %989 = vmatprep.subr.mxu0 0.0
    %990 = vmatpush1.msra.mxu0 0.0
    %991 = vmatprep.subr.mxu0 0.0
    %992 = vmatpush1.msra.mxu0 0.0
    %993 = vmatprep.subr.mxu0 0.0
    %994 = vmatpush1.msra.mxu0 0.0
    %995 = vmatprep.subr.mxu0 0.0
    %996 = vmatpush1.msra.mxu0 0.0
    %997 = vmatprep.subr.mxu0 0.0
    %998 = vmatpush1.msra.mxu0 0.0
    %999 = vmatprep.subr.mxu0 0.0
    %1000 = vmatpush1.msra.mxu0 0.0
    %1001 = vmatprep.subr.mxu0 0.0
    %1002 = vmatpush1.msra.mxu0 0.0
    %1003 = vmatprep.subr.mxu0 0.0
    %1004 = vmatpush1.msra.mxu0 0.0
    %1005 = vmatprep.subr.mxu0 0.0
    %1006 = vmatpush1.msra.mxu0 0.0
    %1007 = vmatprep.subr.mxu0 0.0
    %1008 = vmatpush1.msra.mxu0 0.0
    %1009 = vmatprep.subr.mxu0 0.0
    %1010 = vmatpush1.msra.mxu0 0.0
    %1011 = vmatprep.subr.mxu0 0.0
    %1012 = vmatpush1.msra.mxu0 0.0
    %1013 = vmatprep.subr.mxu0 0.0
    %1014 = vmatpush1.msra.mxu0 0.0
    %1015 = vmatprep.subr.mxu0 0.0
    %1016 = vmatpush1.msra.mxu0 0.0
    %1017 = vmatprep.subr.mxu0 0.0
    %1018 = vmatpush1.msra.mxu0 0.0
    %1019 = vmatprep.subr.mxu0 0.0
    %1020 = vmatpush1.msra.mxu0 0.0
    %1021 = vmatprep.subr.mxu0 0.0
    %1022 = vmatpush1.msra.mxu0 0.0
    %1023 = vmatprep.mubr.f32.mxu0 0.0
    %1024 = vmatmul.mubr.f32.gmra.mrb[0].mxu0 %v184
    %v1025 = vpop.f32.mrb[0].mxu0
    %v1026 = vadd.f32 %v957, %v1025
    %v1027 = vpop.f32.mrb[0].mxu0
    %1028 = vmatprep.mubr.f32.mxu0 0.0
    %1029 = vmatmul.mubr.f32.gmra.mrb[0].mxu0 %v187
    %v1030 = vpop.f32.mrb[0].mxu0
    %v1031 = vadd.f32 %v957, %v1030
    %v1032 = vpop.f32.mrb[0].mxu0
    %1033 = vdwg.mxu0
    %v1035 = vsel %vm448, %v850, 0
    %v1038 = vsel %vm448, %v938, 0
    %1040 = vmatprep.subr.mxu0 0.0
    %1041 = vmatpush1.xpose.msra.mxu0 %v1038
    %1042 = vmatprep.subr.mxu0 0.0
    %1043 = vmatpush1.xpose.msra.mxu0 0.0
    %1044 = vmatprep.subr.mxu0 0.0
    %1045 = vmatpush1.xpose.msra.mxu0 0.0
    %1046 = vmatprep.subr.mxu0 0.0
    %1047 = vmatpush1.xpose.msra.mxu0 0.0
    %1048 = vmatprep.subr.mxu0 0.0
    %1049 = vmatpush1.xpose.msra.mxu0 0.0
    %1050 = vmatprep.subr.mxu0 0.0
    %1051 = vmatpush1.xpose.msra.mxu0 0.0
    %1052 = vmatprep.subr.mxu0 0.0
    %1053 = vmatpush1.xpose.msra.mxu0 0.0
    %1054 = vmatprep.subr.mxu0 0.0
    %1055 = vmatpush1.xpose.msra.mxu0 0.0
    %1056 = vmatprep.subr.mxu0 0.0
    %1057 = vmatpush1.xpose.msra.mxu0 0.0
    %1058 = vmatprep.subr.mxu0 0.0
    %1059 = vmatpush1.xpose.msra.mxu0 0.0
    %1060 = vmatprep.subr.mxu0 0.0
    %1061 = vmatpush1.xpose.msra.mxu0 0.0
    %1062 = vmatprep.subr.mxu0 0.0
    %1063 = vmatpush1.xpose.msra.mxu0 0.0
    %1064 = vmatprep.subr.mxu0 0.0
    %1065 = vmatpush1.xpose.msra.mxu0 0.0
    %1066 = vmatprep.subr.mxu0 0.0
    %1067 = vmatpush1.xpose.msra.mxu0 0.0
    %1068 = vmatprep.subr.mxu0 0.0
    %1069 = vmatpush1.xpose.msra.mxu0 0.0
    %1070 = vmatprep.subr.mxu0 0.0
    %1071 = vmatpush1.xpose.msra.mxu0 0.0
    %1072 = vmatprep.subr.mxu0 0.0
    %1073 = vmatpush1.xpose.msra.mxu0 0.0
    %1074 = vmatprep.subr.mxu0 0.0
    %1075 = vmatpush1.xpose.msra.mxu0 0.0
    %1076 = vmatprep.subr.mxu0 0.0
    %1077 = vmatpush1.xpose.msra.mxu0 0.0
    %1078 = vmatprep.subr.mxu0 0.0
    %1079 = vmatpush1.xpose.msra.mxu0 0.0
    %1080 = vmatprep.subr.mxu0 0.0
    %1081 = vmatpush1.xpose.msra.mxu0 0.0
    %1082 = vmatprep.subr.mxu0 0.0
    %1083 = vmatpush1.xpose.msra.mxu0 0.0
    %1084 = vmatprep.subr.mxu0 0.0
    %1085 = vmatpush1.xpose.msra.mxu0 0.0
    %1086 = vmatprep.subr.mxu0 0.0
    %1087 = vmatpush1.xpose.msra.mxu0 0.0
    %1088 = vmatprep.subr.mxu0 0.0
    %1089 = vmatpush1.xpose.msra.mxu0 0.0
    %1090 = vmatprep.subr.mxu0 0.0
    %1091 = vmatpush1.xpose.msra.mxu0 0.0
    %1092 = vmatprep.subr.mxu0 0.0
    %1093 = vmatpush1.xpose.msra.mxu0 0.0
    %1094 = vmatprep.subr.mxu0 0.0
    %1095 = vmatpush1.xpose.msra.mxu0 0.0
    %1096 = vmatprep.subr.mxu0 0.0
    %1097 = vmatpush1.xpose.msra.mxu0 0.0
    %1098 = vmatprep.subr.mxu0 0.0
    %1099 = vmatpush1.xpose.msra.mxu0 0.0
    %1100 = vmatprep.subr.mxu0 0.0
    %1101 = vmatpush1.xpose.msra.mxu0 0.0
    %1102 = vmatprep.subr.mxu0 0.0
    %1103 = vmatpush1.xpose.msra.mxu0 0.0
    %1104 = vmatprep.mubr.f32.mxu0 0.0
    %1105 = vmatmul.mubr.f32.gmra.mrb[0].mxu0 %v1035
    %v1106 = vpop.f32.mrb[0].mxu0
    %v1107 = vadd.f32 %v441, %v1106
    %v1108 = vpop.f32.mrb[0].mxu0
    %1109 = vdwg.mxu0
    %v1111 = vsel %vm448, %v855, 0
    %v1114 = vsel %vm448, %v943, 0
    %1116 = vmatprep.subr.mxu0 0.0
    %1117 = vmatpush1.xpose.msra.mxu0 %v1114
    %1118 = vmatprep.subr.mxu0 0.0
    %1119 = vmatpush1.xpose.msra.mxu0 0.0
    %1120 = vmatprep.subr.mxu0 0.0
    %1121 = vmatpush1.xpose.msra.mxu0 0.0
    %1122 = vmatprep.subr.mxu0 0.0
    %1123 = vmatpush1.xpose.msra.mxu0 0.0
    %1124 = vmatprep.subr.mxu0 0.0
    %1125 = vmatpush1.xpose.msra.mxu0 0.0
    %1126 = vmatprep.subr.mxu0 0.0
    %1127 = vmatpush1.xpose.msra.mxu0 0.0
    %1128 = vmatprep.subr.mxu0 0.0
    %1129 = vmatpush1.xpose.msra.mxu0 0.0
    %1130 = vmatprep.subr.mxu0 0.0
    %1131 = vmatpush1.xpose.msra.mxu0 0.0
    %1132 = vmatprep.subr.mxu0 0.0
    %1133 = vmatpush1.xpose.msra.mxu0 0.0
    %1134 = vmatprep.subr.mxu0 0.0
    %1135 = vmatpush1.xpose.msra.mxu0 0.0
    %1136 = vmatprep.subr.mxu0 0.0
    %1137 = vmatpush1.xpose.msra.mxu0 0.0
    %1138 = vmatprep.subr.mxu0 0.0
    %1139 = vmatpush1.xpose.msra.mxu0 0.0
    %1140 = vmatprep.subr.mxu0 0.0
    %1141 = vmatpush1.xpose.msra.mxu0 0.0
    %1142 = vmatprep.subr.mxu0 0.0
    %1143 = vmatpush1.xpose.msra.mxu0 0.0
    %1144 = vmatprep.subr.mxu0 0.0
    %1145 = vmatpush1.xpose.msra.mxu0 0.0
    %1146 = vmatprep.subr.mxu0 0.0
    %1147 = vmatpush1.xpose.msra.mxu0 0.0
    %1148 = vmatprep.subr.mxu0 0.0
    %1149 = vmatpush1.xpose.msra.mxu0 0.0
    %1150 = vmatprep.subr.mxu0 0.0
    %1151 = vmatpush1.xpose.msra.mxu0 0.0
    %1152 = vmatprep.subr.mxu0 0.0
    %1153 = vmatpush1.xpose.msra.mxu0 0.0
    %1154 = vmatprep.subr.mxu0 0.0
    %1155 = vmatpush1.xpose.msra.mxu0 0.0
    %1156 = vmatprep.subr.mxu0 0.0
    %1157 = vmatpush1.xpose.msra.mxu0 0.0
    %1158 = vmatprep.subr.mxu0 0.0
    %1159 = vmatpush1.xpose.msra.mxu0 0.0
    %1160 = vmatprep.subr.mxu0 0.0
    %1161 = vmatpush1.xpose.msra.mxu0 0.0
    %1162 = vmatprep.subr.mxu0 0.0
    %1163 = vmatpush1.xpose.msra.mxu0 0.0
    %1164 = vmatprep.subr.mxu0 0.0
    %1165 = vmatpush1.xpose.msra.mxu0 0.0
    %1166 = vmatprep.subr.mxu0 0.0
    %1167 = vmatpush1.xpose.msra.mxu0 0.0
    %1168 = vmatprep.subr.mxu0 0.0
    %1169 = vmatpush1.xpose.msra.mxu0 0.0
    %1170 = vmatprep.subr.mxu0 0.0
    %1171 = vmatpush1.xpose.msra.mxu0 0.0
    %1172 = vmatprep.subr.mxu0 0.0
    %1173 = vmatpush1.xpose.msra.mxu0 0.0
    %1174 = vmatprep.subr.mxu0 0.0
    %1175 = vmatpush1.xpose.msra.mxu0 0.0
    %1176 = vmatprep.subr.mxu0 0.0
    %1177 = vmatpush1.xpose.msra.mxu0 0.0
    %1178 = vmatprep.subr.mxu0 0.0
    %1179 = vmatpush1.xpose.msra.mxu0 0.0
    %1180 = vmatprep.mubr.f32.mxu0 0.0
    %1181 = vmatmul.mubr.f32.gmra.mrb[0].mxu0 %v1111
    %v1182 = vpop.f32.mrb[0].mxu0
    %v1183 = vadd.f32 %v445, %v1182
    %v1184 = vpop.f32.mrb[0].mxu0
    %1185 = vdwg.mxu0
    %v1186 = vsel %vm448, %v1107, -inf
    %1187 = vmax.xlane.f32.xlu0 %v1186
    %v1188 = vpop.xlane.xlu0 %1187
    %v1189 = vsel %vm448, %v1183, -inf
    %1190 = vmax.xlane.f32.xlu0 %v1189
    %v1191 = vpop.xlane.xlu0 %1190
    %v1192 = vsub.f32 %v1107, %v1188
    %v1193 = vsub.f32 %v1183, %v1191
    %v1194 = vmul.f32 %v1192, 1.442695
    %v1195 = vpow.pop %v1194
    %v1196 = vmul.f32 %v1193, 1.442695
    %v1197 = vpow.pop %v1196
    %v1198 = vsel %vm448, %v1195, 0.0
    %1199 = vadd.xlane.f32.xlu0 %v1198
    %v1200 = vpop.xlane.xlu0 %1199
    %v1201 = vsel %vm448, %v1197, 0.0
    %1202 = vadd.xlane.f32.xlu0 %v1201
    %v1203 = vpop.xlane.xlu0 %1202
    %v1204 = vrcp.pop %v1200
    %v1205 = vrcp.pop %v1203
    %v1206 = vmul.f32 %v1195, %v1204
    %v1207 = vmul.f32 %v1197, %v1205
    %v1209 = vsel %vm448, %v1206, 0
    %1211 = vmatprep.subr.mxu0 0.0
    %1212 = vmatpush1.msra.mxu0 %v1026
    %1213 = vmatprep.subr.mxu0 0.0
    %1214 = vmatpush1.msra.mxu0 0.0
    %1215 = vmatprep.subr.mxu0 0.0
    %1216 = vmatpush1.msra.mxu0 0.0
    %1217 = vmatprep.subr.mxu0 0.0
    %1218 = vmatpush1.msra.mxu0 0.0
    %1219 = vmatprep.subr.mxu0 0.0
    %1220 = vmatpush1.msra.mxu0 0.0
    %1221 = vmatprep.subr.mxu0 0.0
    %1222 = vmatpush1.msra.mxu0 0.0
    %1223 = vmatprep.subr.mxu0 0.0
    %1224 = vmatpush1.msra.mxu0 0.0
    %1225 = vmatprep.subr.mxu0 0.0
    %1226 = vmatpush1.msra.mxu0 0.0
    %1227 = vmatprep.subr.mxu0 0.0
    %1228 = vmatpush1.msra.mxu0 0.0
    %1229 = vmatprep.subr.mxu0 0.0
    %1230 = vmatpush1.msra.mxu0 0.0
    %1231 = vmatprep.subr.mxu0 0.0
    %1232 = vmatpush1.msra.mxu0 0.0
    %1233 = vmatprep.subr.mxu0 0.0
    %1234 = vmatpush1.msra.mxu0 0.0
    %1235 = vmatprep.subr.mxu0 0.0
    %1236 = vmatpush1.msra.mxu0 0.0
    %1237 = vmatprep.subr.mxu0 0.0
    %1238 = vmatpush1.msra.mxu0 0.0
    %1239 = vmatprep.subr.mxu0 0.0
    %1240 = vmatpush1.msra.mxu0 0.0
    %1241 = vmatprep.subr.mxu0 0.0
    %1242 = vmatpush1.msra.mxu0 0.0
    %1243 = vmatprep.subr.mxu0 0.0
    %1244 = vmatpush1.msra.mxu0 0.0
    %1245 = vmatprep.subr.mxu0 0.0
    %1246 = vmatpush1.msra.mxu0 0.0
    %1247 = vmatprep.subr.mxu0 0.0
    %1248 = vmatpush1.msra.mxu0 0.0
    %1249 = vmatprep.subr.mxu0 0.0
    %1250 = vmatpush1.msra.mxu0 0.0
    %1251 = vmatprep.subr.mxu0 0.0
    %1252 = vmatpush1.msra.mxu0 0.0
    %1253 = vmatprep.subr.mxu0 0.0
    %1254 = vmatpush1.msra.mxu0 0.0
    %1255 = vmatprep.subr.mxu0 0.0
    %1256 = vmatpush1.msra.mxu0 0.0
    %1257 = vmatprep.subr.mxu0 0.0
    %1258 = vmatpush1.msra.mxu0 0.0
    %1259 = vmatprep.subr.mxu0 0.0
    %1260 = vmatpush1.msra.mxu0 0.0
    %1261 = vmatprep.subr.mxu0 0.0
    %1262 = vmatpush1.msra.mxu0 0.0
    %1263 = vmatprep.subr.mxu0 0.0
    %1264 = vmatpush1.msra.mxu0 0.0
    %1265 = vmatprep.subr.mxu0 0.0
    %1266 = vmatpush1.msra.mxu0 0.0
    %1267 = vmatprep.subr.mxu0 0.0
    %1268 = vmatpush1.msra.mxu0 0.0
    %1269 = vmatprep.subr.mxu0 0.0
    %1270 = vmatpush1.msra.mxu0 0.0
    %1271 = vmatprep.subr.mxu0 0.0
    %1272 = vmatpush1.msra.mxu0 0.0
    %1273 = vmatprep.subr.mxu0 0.0
    %1274 = vmatpush1.msra.mxu0 0.0
    %1275 = vmatprep.mubr.f32.mxu0 0.0
    %1276 = vmatmul.mubr.f32.gmra.mrb[0].mxu0 %v1209
    %v1277 = vpop.f32.mrb[0].mxu0
    %v1278 = vadd.f32 0.0, %v1277
    %v1279 = vpop.f32.mrb[0].mxu0
    %1280 = vdwg.mxu0
    %v1282 = vsel %vm448, %v1207, 0
    %1284 = vmatprep.subr.mxu0 0.0
    %1285 = vmatpush1.msra.mxu0 %v1031
    %1286 = vmatprep.subr.mxu0 0.0
    %1287 = vmatpush1.msra.mxu0 0.0
    %1288 = vmatprep.subr.mxu0 0.0
    %1289 = vmatpush1.msra.mxu0 0.0
    %1290 = vmatprep.subr.mxu0 0.0
    %1291 = vmatpush1.msra.mxu0 0.0
    %1292 = vmatprep.subr.mxu0 0.0
    %1293 = vmatpush1.msra.mxu0 0.0
    %1294 = vmatprep.subr.mxu0 0.0
    %1295 = vmatpush1.msra.mxu0 0.0
    %1296 = vmatprep.subr.mxu0 0.0
    %1297 = vmatpush1.msra.mxu0 0.0
    %1298 = vmatprep.subr.mxu0 0.0
    %1299 = vmatpush1.msra.mxu0 0.0
    %1300 = vmatprep.subr.mxu0 0.0
    %1301 = vmatpush1.msra.mxu0 0.0
    %1302 = vmatprep.subr.mxu0 0.0
    %1303 = vmatpush1.msra.mxu0 0.0
    %1304 = vmatprep.subr.mxu0 0.0
    %1305 = vmatpush1.msra.mxu0 0.0
    %1306 = vmatprep.subr.mxu0 0.0
    %1307 = vmatpush1.msra.mxu0 0.0
    %1308 = vmatprep.subr.mxu0 0.0
    %1309 = vmatpush1.msra.mxu0 0.0
    %1310 = vmatprep.subr.mxu0 0.0
    %1311 = vmatpush1.msra.mxu0 0.0
    %1312 = vmatprep.subr.mxu0 0.0
    %1313 = vmatpush1.msra.mxu0 0.0
    %1314 = vmatprep.subr.mxu0 0.0
    %1315 = vmatpush1.msra.mxu0 0.0
    %1316 = vmatprep.subr.mxu0 0.0
    %1317 = vmatpush1.msra.mxu0 0.0
    %1318 = vmatprep.subr.mxu0 0.0
    %1319 = vmatpush1.msra.mxu0 0.0
    %1320 = vmatprep.subr.mxu0 0.0
    %1321 = vmatpush1.msra.mxu0 0.0
    %1322 = vmatprep.subr.mxu0 0.0
    %1323 = vmatpush1.msra.mxu0 0.0
    %1324 = vmatprep.subr.mxu0 0.0
    %1325 = vmatpush1.msra.mxu0 0.0
    %1326 = vmatprep.subr.mxu0 0.0
    %1327 = vmatpush1.msra.mxu0 0.0
    %1328 = vmatprep.subr.mxu0 0.0
    %1329 = vmatpush1.msra.mxu0 0.0
    %1330 = vmatprep.subr.mxu0 0.0
    %1331 = vmatpush1.msra.mxu0 0.0
    %1332 = vmatprep.subr.mxu0 0.0
    %1333 = vmatpush1.msra.mxu0 0.0
    %1334 = vmatprep.subr.mxu0 0.0
    %1335 = vmatpush1.msra.mxu0 0.0
    %1336 = vmatprep.subr.mxu0 0.0
    %1337 = vmatpush1.msra.mxu0 0.0
    %1338 = vmatprep.subr.mxu0 0.0
    %1339 = vmatpush1.msra.mxu0 0.0
    %1340 = vmatprep.subr.mxu0 0.0
    %1341 = vmatpush1.msra.mxu0 0.0
    %1342 = vmatprep.subr.mxu0 0.0
    %1343 = vmatpush1.msra.mxu0 0.0
    %1344 = vmatprep.subr.mxu0 0.0
    %1345 = vmatpush1.msra.mxu0 0.0
    %1346 = vmatprep.subr.mxu0 0.0
    %1347 = vmatpush1.msra.mxu0 0.0
    %1348 = vmatprep.mubr.f32.mxu0 0.0
    %1349 = vmatmul.mubr.f32.gmra.mrb[0].mxu0 %v1282
    %v1350 = vpop.f32.mrb[0].mxu0
    %v1351 = vadd.f32 0.0, %v1350
    %v1352 = vpop.f32.mrb[0].mxu0
    %1353 = vdwg.mxu0
    %s1354 = scalar_lea.vmem %s10, 8
    %v1355 = vld [vmem:[%s1354] sm:$0xff]
    %v1357 = vsel %vm448, %v1278, 0
    %v1360 = vsel %vm448, %v1351, 0
    %1362 = vmatprep.subr.mxu0 0.0
    %1363 = vmatpush1.msra.mxu0 %v1355
    %1364 = vmatprep.subr.mxu0 0.0
    %1365 = vmatpush1.msra.mxu0 0.0
    %1366 = vmatprep.subr.mxu0 0.0
    %1367 = vmatpush1.msra.mxu0 0.0
    %1368 = vmatprep.subr.mxu0 0.0
    %1369 = vmatpush1.msra.mxu0 0.0
    %1370 = vmatprep.subr.mxu0 0.0
    %1371 = vmatpush1.msra.mxu0 0.0
    %1372 = vmatprep.subr.mxu0 0.0
    %1373 = vmatpush1.msra.mxu0 0.0
    %1374 = vmatprep.subr.mxu0 0.0
    %1375 = vmatpush1.msra.mxu0 0.0
    %1376 = vmatprep.subr.mxu0 0.0
    %1377 = vmatpush1.msra.mxu0 0.0
    %1378 = vmatprep.subr.mxu0 0.0
    %1379 = vmatpush1.msra.mxu0 0.0
    %1380 = vmatprep.subr.mxu0 0.0
    %1381 = vmatpush1.msra.mxu0 0.0
    %1382 = vmatprep.subr.mxu0 0.0
    %1383 = vmatpush1.msra.mxu0 0.0
    %1384 = vmatprep.subr.mxu0 0.0
    %1385 = vmatpush1.msra.mxu0 0.0
    %1386 = vmatprep.subr.mxu0 0.0
    %1387 = vmatpush1.msra.mxu0 0.0
    %1388 = vmatprep.subr.mxu0 0.0
    %1389 = vmatpush1.msra.mxu0 0.0
    %1390 = vmatprep.subr.mxu0 0.0
    %1391 = vmatpush1.msra.mxu0 0.0
    %1392 = vmatprep.subr.mxu0 0.0
    %1393 = vmatpush1.msra.mxu0 0.0
    %1394 = vmatprep.subr.mxu0 0.0
    %1395 = vmatpush1.msra.mxu0 0.0
    %1396 = vmatprep.subr.mxu0 0.0
    %1397 = vmatpush1.msra.mxu0 0.0
    %1398 = vmatprep.subr.mxu0 0.0
    %1399 = vmatpush1.msra.mxu0 0.0
    %1400 = vmatprep.subr.mxu0 0.0
    %1401 = vmatpush1.msra.mxu0 0.0
    %1402 = vmatprep.subr.mxu0 0.0
    %1403 = vmatpush1.msra.mxu0 0.0
    %1404 = vmatprep.subr.mxu0 0.0
    %1405 = vmatpush1.msra.mxu0 0.0
    %1406 = vmatprep.subr.mxu0 0.0
    %1407 = vmatpush1.msra.mxu0 0.0
    %1408 = vmatprep.subr.mxu0 0.0
    %1409 = vmatpush1.msra.mxu0 0.0
    %1410 = vmatprep.subr.mxu0 0.0
    %1411 = vmatpush1.msra.mxu0 0.0
    %1412 = vmatprep.subr.mxu0 0.0
    %1413 = vmatpush1.msra.mxu0 0.0
    %1414 = vmatprep.subr.mxu0 0.0
    %1415 = vmatpush1.msra.mxu0 0.0
    %1416 = vmatprep.subr.mxu0 0.0
    %1417 = vmatpush1.msra.mxu0 0.0
    %1418 = vmatprep.subr.mxu0 0.0
    %1419 = vmatpush1.msra.mxu0 0.0
    %1420 = vmatprep.subr.mxu0 0.0
    %1421 = vmatpush1.msra.mxu0 0.0
    %1422 = vmatprep.subr.mxu0 0.0
    %1423 = vmatpush1.msra.mxu0 0.0
    %1424 = vmatprep.subr.mxu0 0.0
    %1425 = vmatpush1.msra.mxu0 0.0
    %1426 = vmatprep.mubr.f32.mxu0 0.0
    %1427 = vmatmul.mubr.f32.gmra.mrb[0].mxu0 %v1357
    %v1428 = vpop.f32.mrb[0].mxu0
    %v1429 = vadd.f32 0.0, %v1428
    %v1430 = vpop.f32.mrb[0].mxu0
    %1431 = vmatprep.mubr.f32.mxu0 0.0
    %1432 = vmatmul.mubr.f32.gmra.mrb[0].mxu0 %v1360
    %v1433 = vpop.f32.mrb[0].mxu0
    %v1434 = vadd.f32 0.0, %v1433
    %v1435 = vpop.f32.mrb[0].mxu0
    %1436 = vdwg.mxu0
    %v1438 = vsel %vm448, %v693, 0
    %v1441 = vsel %vm448, %v766, 0
    %1443 = vmatprep.subr.mxu0 0.0
    %1444 = vmatpush1.msra.mxu0 %v769
    %1445 = vmatprep.subr.mxu0 0.0
    %1446 = vmatpush1.msra.mxu0 0.0
    %1447 = vmatprep.subr.mxu0 0.0
    %1448 = vmatpush1.msra.mxu0 0.0
    %1449 = vmatprep.subr.mxu0 0.0
    %1450 = vmatpush1.msra.mxu0 0.0
    %1451 = vmatprep.subr.mxu0 0.0
    %1452 = vmatpush1.msra.mxu0 0.0
    %1453 = vmatprep.subr.mxu0 0.0
    %1454 = vmatpush1.msra.mxu0 0.0
    %1455 = vmatprep.subr.mxu0 0.0
    %1456 = vmatpush1.msra.mxu0 0.0
    %1457 = vmatprep.subr.mxu0 0.0
    %1458 = vmatpush1.msra.mxu0 0.0
    %1459 = vmatprep.subr.mxu0 0.0
    %1460 = vmatpush1.msra.mxu0 0.0
    %1461 = vmatprep.subr.mxu0 0.0
    %1462 = vmatpush1.msra.mxu0 0.0
    %1463 = vmatprep.subr.mxu0 0.0
    %1464 = vmatpush1.msra.mxu0 0.0
    %1465 = vmatprep.subr.mxu0 0.0
    %1466 = vmatpush1.msra.mxu0 0.0
    %1467 = vmatprep.subr.mxu0 0.0
    %1468 = vmatpush1.msra.mxu0 0.0
    %1469 = vmatprep.subr.mxu0 0.0
    %1470 = vmatpush1.msra.mxu0 0.0
    %1471 = vmatprep.subr.mxu0 0.0
    %1472 = vmatpush1.msra.mxu0 0.0
    %1473 = vmatprep.subr.mxu0 0.0
    %1474 = vmatpush1.msra.mxu0 0.0
    %1475 = vmatprep.subr.mxu0 0.0
    %1476 = vmatpush1.msra.mxu0 0.0
    %1477 = vmatprep.subr.mxu0 0.0
    %1478 = vmatpush1.msra.mxu0 0.0
    %1479 = vmatprep.subr.mxu0 0.0
    %1480 = vmatpush1.msra.mxu0 0.0
    %1481 = vmatprep.subr.mxu0 0.0
    %1482 = vmatpush1.msra.mxu0 0.0
    %1483 = vmatprep.subr.mxu0 0.0
    %1484 = vmatpush1.msra.mxu0 0.0
    %1485 = vmatprep.subr.mxu0 0.0
    %1486 = vmatpush1.msra.mxu0 0.0
    %1487 = vmatprep.subr.mxu0 0.0
    %1488 = vmatpush1.msra.mxu0 0.0
    %1489 = vmatprep.subr.mxu0 0.0
    %1490 = vmatpush1.msra.mxu0 0.0
    %1491 = vmatprep.subr.mxu0 0.0
    %1492 = vmatpush1.msra.mxu0 0.0
    %1493 = vmatprep.subr.mxu0 0.0
    %1494 = vmatpush1.msra.mxu0 0.0
    %1495 = vmatprep.subr.mxu0 0.0
    %1496 = vmatpush1.msra.mxu0 0.0
    %1497 = vmatprep.subr.mxu0 0.0
    %1498 = vmatpush1.msra.mxu0 0.0
    %1499 = vmatprep.subr.mxu0 0.0
    %1500 = vmatpush1.msra.mxu0 0.0
    %1501 = vmatprep.subr.mxu0 0.0
    %1502 = vmatpush1.msra.mxu0 0.0
    %1503 = vmatprep.subr.mxu0 0.0
    %1504 = vmatpush1.msra.mxu0 0.0
    %1505 = vmatprep.subr.mxu0 0.0
    %1506 = vmatpush1.msra.mxu0 0.0
    %1507 = vmatprep.mubr.f32.mxu0 0.0
    %1508 = vmatmul.mubr.f32.gmra.mrb[0].mxu0 %v1438
    %v1509 = vpop.f32.mrb[0].mxu0
    %v1510 = vadd.f32 %v1429, %v1509
    %v1511 = vpop.f32.mrb[0].mxu0
    %1512 = vmatprep.mubr.f32.mxu0 0.0
    %1513 = vmatmul.mubr.f32.gmra.mrb[0].mxu0 %v1441
    %v1514 = vpop.f32.mrb[0].mxu0
    %v1515 = vadd.f32 %v1434, %v1514
    %v1516 = vpop.f32.mrb[0].mxu0
    %1517 = vdwg.mxu0
    %s1518 = scalar_lea.vmem %s4, 64
    %v1519 = vld [vmem:[%s1518] sm:$0xff]
    %v1520 = vld [vmem:[%s1518 + $0x8] sm:$0xff]
    %v1521 = vld [vmem:[%s1518 + $0x10] sm:$0xff]
    %v1522 = vld [vmem:[%s1518 + $0x18] sm:$0xff]
    %s1523 = scalar_lea.vmem %s5, 2
    %v1524 = vld [vmem:[%s1523] sm:$0x1]
    %v1526 = vlaneseq
    %v1527 = vshrl.u32 %v1526, 7
    %v1528 = vsub.s32 0, %v1527
    %v1529 = vrot.slane %v1524, %v1528
    %1531 = vmatprep.subr.mxu0 0.0
    %1532 = vmatpush1.msra.mxu0 %v1519
    %1533 = vmatprep.subr.mxu0 0.0
    %1534 = vmatpush1.msra.mxu0 %v1520
    %1535 = vmatprep.subr.mxu0 0.0
    %1536 = vmatpush1.msra.mxu0 %v1521
    %1537 = vmatprep.subr.mxu0 0.0
    %1538 = vmatpush1.msra.mxu0 %v1522
    %1539 = vmatprep.subr.mxu0 0.0
    %1540 = vmatpush1.msra.mxu0 0.0
    %1541 = vmatprep.subr.mxu0 0.0
    %1542 = vmatpush1.msra.mxu0 0.0
    %1543 = vmatprep.subr.mxu0 0.0
    %1544 = vmatpush1.msra.mxu0 0.0
    %1545 = vmatprep.subr.mxu0 0.0
    %1546 = vmatpush1.msra.mxu0 0.0
    %1547 = vmatprep.subr.mxu0 0.0
    %1548 = vmatpush1.msra.mxu0 0.0
    %1549 = vmatprep.subr.mxu0 0.0
    %1550 = vmatpush1.msra.mxu0 0.0
    %1551 = vmatprep.subr.mxu0 0.0
    %1552 = vmatpush1.msra.mxu0 0.0
    %1553 = vmatprep.subr.mxu0 0.0
    %1554 = vmatpush1.msra.mxu0 0.0
    %1555 = vmatprep.subr.mxu0 0.0
    %1556 = vmatpush1.msra.mxu0 0.0
    %1557 = vmatprep.subr.mxu0 0.0
    %1558 = vmatpush1.msra.mxu0 0.0
    %1559 = vmatprep.subr.mxu0 0.0
    %1560 = vmatpush1.msra.mxu0 0.0
    %1561 = vmatprep.subr.mxu0 0.0
    %1562 = vmatpush1.msra.mxu0 0.0
    %1563 = vmatprep.subr.mxu0 0.0
    %1564 = vmatpush1.msra.mxu0 0.0
    %1565 = vmatprep.subr.mxu0 0.0
    %1566 = vmatpush1.msra.mxu0 0.0
    %1567 = vmatprep.subr.mxu0 0.0
    %1568 = vmatpush1.msra.mxu0 0.0
    %1569 = vmatprep.subr.mxu0 0.0
    %1570 = vmatpush1.msra.mxu0 0.0
    %1571 = vmatprep.subr.mxu0 0.0
    %1572 = vmatpush1.msra.mxu0 0.0
    %1573 = vmatprep.subr.mxu0 0.0
    %1574 = vmatpush1.msra.mxu0 0.0
    %1575 = vmatprep.subr.mxu0 0.0
    %1576 = vmatpush1.msra.mxu0 0.0
    %1577 = vmatprep.subr.mxu0 0.0
    %1578 = vmatpush1.msra.mxu0 0.0
    %1579 = vmatprep.subr.mxu0 0.0
    %1580 = vmatpush1.msra.mxu0 0.0
    %1581 = vmatprep.subr.mxu0 0.0
    %1582 = vmatpush1.msra.mxu0 0.0
    %1583 = vmatprep.subr.mxu0 0.0
    %1584 = vmatpush1.msra.mxu0 0.0
    %1585 = vmatprep.subr.mxu0 0.0
    %1586 = vmatpush1.msra.mxu0 0.0
    %1587 = vmatprep.subr.mxu0 0.0
    %1588 = vmatpush1.msra.mxu0 0.0
    %1589 = vmatprep.subr.mxu0 0.0
    %1590 = vmatpush1.msra.mxu0 0.0
    %1591 = vmatprep.subr.mxu0 0.0
    %1592 = vmatpush1.msra.mxu0 0.0
    %1593 = vmatprep.subr.mxu0 0.0
    %1594 = vmatpush1.msra.mxu0 0.0
    %1595 = vmatprep.mubr.f32.mxu0 0.0
    %1596 = vmatmul.mubr.f32.gmra.mrb[0].mxu0 %v184
    %v1597 = vpop.f32.mrb[0].mxu0
    %v1598 = vadd.f32 %v1529, %v1597
    %v1599 = vpop.f32.mrb[0].mxu0
    %1600 = vmatprep.mubr.f32.mxu0 0.0
    %1601 = vmatmul.mubr.f32.gmra.mrb[0].mxu0 %v187
    %v1602 = vpop.f32.mrb[0].mxu0
    %v1603 = vadd.f32 %v1529, %v1602
    %v1604 = vpop.f32.mrb[0].mxu0
    %1605 = vdwg.mxu0
    %s1606 = scalar_lea.vmem [#allocation2], 64
    %v1607 = vld [vmem:[%s1606] sm:$0xff]
    %v1608 = vld [vmem:[%s1606 + $0x8] sm:$0xff]
    %v1609 = vld [vmem:[%s1606 + $0x10] sm:$0xff]
    %v1610 = vld [vmem:[%s1606 + $0x18] sm:$0xff]
    %s1611 = scalar_lea.vmem %s7, 2
    %v1612 = vld [vmem:[%s1611] sm:$0x1]
    %v1614 = vlaneseq
    %v1615 = vshrl.u32 %v1614, 7
    %v1616 = vsub.s32 0, %v1615
    %v1617 = vrot.slane %v1612, %v1616
    %1619 = vmatprep.subr.mxu0 0.0
    %1620 = vmatpush1.msra.mxu0 %v1607
    %1621 = vmatprep.subr.mxu0 0.0
    %1622 = vmatpush1.msra.mxu0 %v1608
    %1623 = vmatprep.subr.mxu0 0.0
    %1624 = vmatpush1.msra.mxu0 %v1609
    %1625 = vmatprep.subr.mxu0 0.0
    %1626 = vmatpush1.msra.mxu0 %v1610
    %1627 = vmatprep.subr.mxu0 0.0
    %1628 = vmatpush1.msra.mxu0 0.0
    %1629 = vmatprep.subr.mxu0 0.0
    %1630 = vmatpush1.msra.mxu0 0.0
    %1631 = vmatprep.subr.mxu0 0.0
    %1632 = vmatpush1.msra.mxu0 0.0
    %1633 = vmatprep.subr.mxu0 0.0
    %1634 = vmatpush1.msra.mxu0 0.0
    %1635 = vmatprep.subr.mxu0 0.0
    %1636 = vmatpush1.msra.mxu0 0.0
    %1637 = vmatprep.subr.mxu0 0.0
    %1638 = vmatpush1.msra.mxu0 0.0
    %1639 = vmatprep.subr.mxu0 0.0
    %1640 = vmatpush1.msra.mxu0 0.0
    %1641 = vmatprep.subr.mxu0 0.0
    %1642 = vmatpush1.msra.mxu0 0.0
    %1643 = vmatprep.subr.mxu0 0.0
    %1644 = vmatpush1.msra.mxu0 0.0
    %1645 = vmatprep.subr.mxu0 0.0
    %1646 = vmatpush1.msra.mxu0 0.0
    %1647 = vmatprep.subr.mxu0 0.0
    %1648 = vmatpush1.msra.mxu0 0.0
    %1649 = vmatprep.subr.mxu0 0.0
    %1650 = vmatpush1.msra.mxu0 0.0
    %1651 = vmatprep.subr.mxu0 0.0
    %1652 = vmatpush1.msra.mxu0 0.0
    %1653 = vmatprep.subr.mxu0 0.0
    %1654 = vmatpush1.msra.mxu0 0.0
    %1655 = vmatprep.subr.mxu0 0.0
    %1656 = vmatpush1.msra.mxu0 0.0
    %1657 = vmatprep.subr.mxu0 0.0
    %1658 = vmatpush1.msra.mxu0 0.0
    %1659 = vmatprep.subr.mxu0 0.0
    %1660 = vmatpush1.msra.mxu0 0.0
    %1661 = vmatprep.subr.mxu0 0.0
    %1662 = vmatpush1.msra.mxu0 0.0
    %1663 = vmatprep.subr.mxu0 0.0
    %1664 = vmatpush1.msra.mxu0 0.0
    %1665 = vmatprep.subr.mxu0 0.0
    %1666 = vmatpush1.msra.mxu0 0.0
    %1667 = vmatprep.subr.mxu0 0.0
    %1668 = vmatpush1.msra.mxu0 0.0
    %1669 = vmatprep.subr.mxu0 0.0
    %1670 = vmatpush1.msra.mxu0 0.0
    %1671 = vmatprep.subr.mxu0 0.0
    %1672 = vmatpush1.msra.mxu0 0.0
    %1673 = vmatprep.subr.mxu0 0.0
    %1674 = vmatpush1.msra.mxu0 0.0
    %1675 = vmatprep.subr.mxu0 0.0
    %1676 = vmatpush1.msra.mxu0 0.0
    %1677 = vmatprep.subr.mxu0 0.0
    %1678 = vmatpush1.msra.mxu0 0.0
    %1679 = vmatprep.subr.mxu0 0.0
    %1680 = vmatpush1.msra.mxu0 0.0
    %1681 = vmatprep.subr.mxu0 0.0
    %1682 = vmatpush1.msra.mxu0 0.0
    %1683 = vmatprep.mubr.f32.mxu0 0.0
    %1684 = vmatmul.mubr.f32.gmra.mrb[0].mxu0 %v184
    %v1685 = vpop.f32.mrb[0].mxu0
    %v1686 = vadd.f32 %v1617, %v1685
    %v1687 = vpop.f32.mrb[0].mxu0
    %1688 = vmatprep.mubr.f32.mxu0 0.0
    %1689 = vmatmul.mubr.f32.gmra.mrb[0].mxu0 %v187
    %v1690 = vpop.f32.mrb[0].mxu0
    %v1691 = vadd.f32 %v1617, %v1690
    %v1692 = vpop.f32.mrb[0].mxu0
    %1693 = vdwg.mxu0
    %s1694 = scalar_lea.vmem [#allocation4], 64
    %v1695 = vld [vmem:[%s1694] sm:$0xff]
    %v1696 = vld [vmem:[%s1694 + $0x8] sm:$0xff]
    %v1697 = vld [vmem:[%s1694 + $0x10] sm:$0xff]
    %v1698 = vld [vmem:[%s1694 + $0x18] sm:$0xff]
    %s1699 = scalar_lea.vmem %s9, 2
    %v1700 = vld [vmem:[%s1699] sm:$0x1]
    %v1702 = vlaneseq
    %v1703 = vshrl.u32 %v1702, 7
    %v1704 = vsub.s32 0, %v1703
    %v1705 = vrot.slane %v1700, %v1704
    %1707 = vmatprep.subr.mxu0 0.0
    %1708 = vmatpush1.msra.mxu0 %v1695
    %1709 = vmatprep.subr.mxu0 0.0
    %1710 = vmatpush1.msra.mxu0 %v1696
    %1711 = vmatprep.subr.mxu0 0.0
    %1712 = vmatpush1.msra.mxu0 %v1697
    %1713 = vmatprep.subr.mxu0 0.0
    %1714 = vmatpush1.msra.mxu0 %v1698
    %1715 = vmatprep.subr.mxu0 0.0
    %1716 = vmatpush1.msra.mxu0 0.0
    %1717 = vmatprep.subr.mxu0 0.0
    %1718 = vmatpush1.msra.mxu0 0.0
    %1719 = vmatprep.subr.mxu0 0.0
    %1720 = vmatpush1.msra.mxu0 0.0
    %1721 = vmatprep.subr.mxu0 0.0
    %1722 = vmatpush1.msra.mxu0 0.0
    %1723 = vmatprep.subr.mxu0 0.0
    %1724 = vmatpush1.msra.mxu0 0.0
    %1725 = vmatprep.subr.mxu0 0.0
    %1726 = vmatpush1.msra.mxu0 0.0
    %1727 = vmatprep.subr.mxu0 0.0
    %1728 = vmatpush1.msra.mxu0 0.0
    %1729 = vmatprep.subr.mxu0 0.0
    %1730 = vmatpush1.msra.mxu0 0.0
    %1731 = vmatprep.subr.mxu0 0.0
    %1732 = vmatpush1.msra.mxu0 0.0
    %1733 = vmatprep.subr.mxu0 0.0
    %1734 = vmatpush1.msra.mxu0 0.0
    %1735 = vmatprep.subr.mxu0 0.0
    %1736 = vmatpush1.msra.mxu0 0.0
    %1737 = vmatprep.subr.mxu0 0.0
    %1738 = vmatpush1.msra.mxu0 0.0
    %1739 = vmatprep.subr.mxu0 0.0
    %1740 = vmatpush1.msra.mxu0 0.0
    %1741 = vmatprep.subr.mxu0 0.0
    %1742 = vmatpush1.msra.mxu0 0.0
    %1743 = vmatprep.subr.mxu0 0.0
    %1744 = vmatpush1.msra.mxu0 0.0
    %1745 = vmatprep.subr.mxu0 0.0
    %1746 = vmatpush1.msra.mxu0 0.0
    %1747 = vmatprep.subr.mxu0 0.0
    %1748 = vmatpush1.msra.mxu0 0.0
    %1749 = vmatprep.subr.mxu0 0.0
    %1750 = vmatpush1.msra.mxu0 0.0
    %1751 = vmatprep.subr.mxu0 0.0
    %1752 = vmatpush1.msra.mxu0 0.0
    %1753 = vmatprep.subr.mxu0 0.0
    %1754 = vmatpush1.msra.mxu0 0.0
    %1755 = vmatprep.subr.mxu0 0.0
    %1756 = vmatpush1.msra.mxu0 0.0
    %1757 = vmatprep.subr.mxu0 0.0
    %1758 = vmatpush1.msra.mxu0 0.0
    %1759 = vmatprep.subr.mxu0 0.0
    %1760 = vmatpush1.msra.mxu0 0.0
    %1761 = vmatprep.subr.mxu0 0.0
    %1762 = vmatpush1.msra.mxu0 0.0
    %1763 = vmatprep.subr.mxu0 0.0
    %1764 = vmatpush1.msra.mxu0 0.0
    %1765 = vmatprep.subr.mxu0 0.0
    %1766 = vmatpush1.msra.mxu0 0.0
    %1767 = vmatprep.subr.mxu0 0.0
    %1768 = vmatpush1.msra.mxu0 0.0
    %1769 = vmatprep.subr.mxu0 0.0
    %1770 = vmatpush1.msra.mxu0 0.0
    %1771 = vmatprep.mubr.f32.mxu0 0.0
    %1772 = vmatmul.mubr.f32.gmra.mrb[0].mxu0 %v184
    %v1773 = vpop.f32.mrb[0].mxu0
    %v1774 = vadd.f32 %v1705, %v1773
    %v1775 = vpop.f32.mrb[0].mxu0
    %1776 = vmatprep.mubr.f32.mxu0 0.0
    %1777 = vmatmul.mubr.f32.gmra.mrb[0].mxu0 %v187
    %v1778 = vpop.f32.mrb[0].mxu0
    %v1779 = vadd.f32 %v1705, %v1778
    %v1780 = vpop.f32.mrb[0].mxu0
    %1781 = vdwg.mxu0
    %v1783 = vsel %vm448, %v1598, 0
    %v1786 = vsel %vm448, %v1686, 0
    %1788 = vmatprep.subr.mxu0 0.0
    %1789 = vmatpush1.xpose.msra.mxu0 %v1786
    %1790 = vmatprep.subr.mxu0 0.0
    %1791 = vmatpush1.xpose.msra.mxu0 0.0
    %1792 = vmatprep.subr.mxu0 0.0
    %1793 = vmatpush1.xpose.msra.mxu0 0.0
    %1794 = vmatprep.subr.mxu0 0.0
    %1795 = vmatpush1.xpose.msra.mxu0 0.0
    %1796 = vmatprep.subr.mxu0 0.0
    %1797 = vmatpush1.xpose.msra.mxu0 0.0
    %1798 = vmatprep.subr.mxu0 0.0
    %1799 = vmatpush1.xpose.msra.mxu0 0.0
    %1800 = vmatprep.subr.mxu0 0.0
    %1801 = vmatpush1.xpose.msra.mxu0 0.0
    %1802 = vmatprep.subr.mxu0 0.0
    %1803 = vmatpush1.xpose.msra.mxu0 0.0
    %1804 = vmatprep.subr.mxu0 0.0
    %1805 = vmatpush1.xpose.msra.mxu0 0.0
    %1806 = vmatprep.subr.mxu0 0.0
    %1807 = vmatpush1.xpose.msra.mxu0 0.0
    %1808 = vmatprep.subr.mxu0 0.0
    %1809 = vmatpush1.xpose.msra.mxu0 0.0
    %1810 = vmatprep.subr.mxu0 0.0
    %1811 = vmatpush1.xpose.msra.mxu0 0.0
    %1812 = vmatprep.subr.mxu0 0.0
    %1813 = vmatpush1.xpose.msra.mxu0 0.0
    %1814 = vmatprep.subr.mxu0 0.0
    %1815 = vmatpush1.xpose.msra.mxu0 0.0
    %1816 = vmatprep.subr.mxu0 0.0
    %1817 = vmatpush1.xpose.msra.mxu0 0.0
    %1818 = vmatprep.subr.mxu0 0.0
    %1819 = vmatpush1.xpose.msra.mxu0 0.0
    %1820 = vmatprep.subr.mxu0 0.0
    %1821 = vmatpush1.xpose.msra.mxu0 0.0
    %1822 = vmatprep.subr.mxu0 0.0
    %1823 = vmatpush1.xpose.msra.mxu0 0.0
    %1824 = vmatprep.subr.mxu0 0.0
    %1825 = vmatpush1.xpose.msra.mxu0 0.0
    %1826 = vmatprep.subr.mxu0 0.0
    %1827 = vmatpush1.xpose.msra.mxu0 0.0
    %1828 = vmatprep.subr.mxu0 0.0
    %1829 = vmatpush1.xpose.msra.mxu0 0.0
    %1830 = vmatprep.subr.mxu0 0.0
    %1831 = vmatpush1.xpose.msra.mxu0 0.0
    %1832 = vmatprep.subr.mxu0 0.0
    %1833 = vmatpush1.xpose.msra.mxu0 0.0
    %1834 = vmatprep.subr.mxu0 0.0
    %1835 = vmatpush1.xpose.msra.mxu0 0.0
    %1836 = vmatprep.subr.mxu0 0.0
    %1837 = vmatpush1.xpose.msra.mxu0 0.0
    %1838 = vmatprep.subr.mxu0 0.0
    %1839 = vmatpush1.xpose.msra.mxu0 0.0
    %1840 = vmatprep.subr.mxu0 0.0
    %1841 = vmatpush1.xpose.msra.mxu0 0.0
    %1842 = vmatprep.subr.mxu0 0.0
    %1843 = vmatpush1.xpose.msra.mxu0 0.0
    %1844 = vmatprep.subr.mxu0 0.0
    %1845 = vmatpush1.xpose.msra.mxu0 0.0
    %1846 = vmatprep.subr.mxu0 0.0
    %1847 = vmatpush1.xpose.msra.mxu0 0.0
    %1848 = vmatprep.subr.mxu0 0.0
    %1849 = vmatpush1.xpose.msra.mxu0 0.0
    %1850 = vmatprep.subr.mxu0 0.0
    %1851 = vmatpush1.xpose.msra.mxu0 0.0
    %1852 = vmatprep.mubr.f32.mxu0 0.0
    %1853 = vmatmul.mubr.f32.gmra.mrb[0].mxu0 %v1783
    %v1854 = vpop.f32.mrb[0].mxu0
    %v1855 = vadd.f32 %v441, %v1854
    %v1856 = vpop.f32.mrb[0].mxu0
    %1857 = vdwg.mxu0
    %v1859 = vsel %vm448, %v1603, 0
    %v1862 = vsel %vm448, %v1691, 0
    %1864 = vmatprep.subr.mxu0 0.0
    %1865 = vmatpush1.xpose.msra.mxu0 %v1862
    %1866 = vmatprep.subr.mxu0 0.0
    %1867 = vmatpush1.xpose.msra.mxu0 0.0
    %1868 = vmatprep.subr.mxu0 0.0
    %1869 = vmatpush1.xpose.msra.mxu0 0.0
    %1870 = vmatprep.subr.mxu0 0.0
    %1871 = vmatpush1.xpose.msra.mxu0 0.0
    %1872 = vmatprep.subr.mxu0 0.0
    %1873 = vmatpush1.xpose.msra.mxu0 0.0
    %1874 = vmatprep.subr.mxu0 0.0
    %1875 = vmatpush1.xpose.msra.mxu0 0.0
    %1876 = vmatprep.subr.mxu0 0.0
    %1877 = vmatpush1.xpose.msra.mxu0 0.0
    %1878 = vmatprep.subr.mxu0 0.0
    %1879 = vmatpush1.xpose.msra.mxu0 0.0
    %1880 = vmatprep.subr.mxu0 0.0
    %1881 = vmatpush1.xpose.msra.mxu0 0.0
    %1882 = vmatprep.subr.mxu0 0.0
    %1883 = vmatpush1.xpose.msra.mxu0 0.0
    %1884 = vmatprep.subr.mxu0 0.0
    %1885 = vmatpush1.xpose.msra.mxu0 0.0
    %1886 = vmatprep.subr.mxu0 0.0
    %1887 = vmatpush1.xpose.msra.mxu0 0.0
    %1888 = vmatprep.subr.mxu0 0.0
    %1889 = vmatpush1.xpose.msra.mxu0 0.0
    %1890 = vmatprep.subr.mxu0 0.0
    %1891 = vmatpush1.xpose.msra.mxu0 0.0
    %1892 = vmatprep.subr.mxu0 0.0
    %1893 = vmatpush1.xpose.msra.mxu0 0.0
    %1894 = vmatprep.subr.mxu0 0.0
    %1895 = vmatpush1.xpose.msra.mxu0 0.0
    %1896 = vmatprep.subr.mxu0 0.0
    %1897 = vmatpush1.xpose.msra.mxu0 0.0
    %1898 = vmatprep.subr.mxu0 0.0
    %1899 = vmatpush1.xpose.msra.mxu0 0.0
    %1900 = vmatprep.subr.mxu0 0.0
    %1901 = vmatpush1.xpose.msra.mxu0 0.0
    %1902 = vmatprep.subr.mxu0 0.0
    %1903 = vmatpush1.xpose.msra.mxu0 0.0
    %1904 = vmatprep.subr.mxu0 0.0
    %1905 = vmatpush1.xpose.msra.mxu0 0.0
    %1906 = vmatprep.subr.mxu0 0.0
    %1907 = vmatpush1.xpose.msra.mxu0 0.0
    %1908 = vmatprep.subr.mxu0 0.0
    %1909 = vmatpush1.xpose.msra.mxu0 0.0
    %1910 = vmatprep.subr.mxu0 0.0
    %1911 = vmatpush1.xpose.msra.mxu0 0.0
    %1912 = vmatprep.subr.mxu0 0.0
    %1913 = vmatpush1.xpose.msra.mxu0 0.0
    %1914 = vmatprep.subr.mxu0 0.0
    %1915 = vmatpush1.xpose.msra.mxu0 0.0
    %1916 = vmatprep.subr.mxu0 0.0
    %1917 = vmatpush1.xpose.msra.mxu0 0.0
    %1918 = vmatprep.subr.mxu0 0.0
    %1919 = vmatpush1.xpose.msra.mxu0 0.0
    %1920 = vmatprep.subr.mxu0 0.0
    %1921 = vmatpush1.xpose.msra.mxu0 0.0
    %1922 = vmatprep.subr.mxu0 0.0
    %1923 = vmatpush1.xpose.msra.mxu0 0.0
    %1924 = vmatprep.subr.mxu0 0.0
    %1925 = vmatpush1.xpose.msra.mxu0 0.0
    %1926 = vmatprep.subr.mxu0 0.0
    %1927 = vmatpush1.xpose.msra.mxu0 0.0
    %1928 = vmatprep.mubr.f32.mxu0 0.0
    %1929 = vmatmul.mubr.f32.gmra.mrb[0].mxu0 %v1859
    %v1930 = vpop.f32.mrb[0].mxu0
    %v1931 = vadd.f32 %v445, %v1930
    %v1932 = vpop.f32.mrb[0].mxu0
    %1933 = vdwg.mxu0
    %v1934 = vsel %vm448, %v1855, -inf
    %1935 = vmax.xlane.f32.xlu0 %v1934
    %v1936 = vpop.xlane.xlu0 %1935
    %v1937 = vsel %vm448, %v1931, -inf
    %1938 = vmax.xlane.f32.xlu0 %v1937
    %v1939 = vpop.xlane.xlu0 %1938
    %v1940 = vsub.f32 %v1855, %v1936
    %v1941 = vsub.f32 %v1931, %v1939
    %v1942 = vmul.f32 %v1940, 1.442695
    %v1943 = vpow.pop %v1942
    %v1944 = vmul.f32 %v1941, 1.442695
    %v1945 = vpow.pop %v1944
    %v1946 = vsel %vm448, %v1943, 0.0
    %1947 = vadd.xlane.f32.xlu0 %v1946
    %v1948 = vpop.xlane.xlu0 %1947
    %v1949 = vsel %vm448, %v1945, 0.0
    %1950 = vadd.xlane.f32.xlu0 %v1949
    %v1951 = vpop.xlane.xlu0 %1950
    %v1952 = vrcp.pop %v1948
    %v1953 = vrcp.pop %v1951
    %v1954 = vmul.f32 %v1943, %v1952
    %v1955 = vmul.f32 %v1945, %v1953
    %v1957 = vsel %vm448, %v1954, 0
    %1959 = vmatprep.subr.mxu0 0.0
    %1960 = vmatpush1.msra.mxu0 %v1774
    %1961 = vmatprep.subr.mxu0 0.0
    %1962 = vmatpush1.msra.mxu0 0.0
    %1963 = vmatprep.subr.mxu0 0.0
    %1964 = vmatpush1.msra.mxu0 0.0
    %1965 = vmatprep.subr.mxu0 0.0
    %1966 = vmatpush1.msra.mxu0 0.0
    %1967 = vmatprep.subr.mxu0 0.0
    %1968 = vmatpush1.msra.mxu0 0.0
    %1969 = vmatprep.subr.mxu0 0.0
    %1970 = vmatpush1.msra.mxu0 0.0
    %1971 = vmatprep.subr.mxu0 0.0
    %1972 = vmatpush1.msra.mxu0 0.0
    %1973 = vmatprep.subr.mxu0 0.0
    %1974 = vmatpush1.msra.mxu0 0.0
    %1975 = vmatprep.subr.mxu0 0.0
    %1976 = vmatpush1.msra.mxu0 0.0
    %1977 = vmatprep.subr.mxu0 0.0
    %1978 = vmatpush1.msra.mxu0 0.0
    %1979 = vmatprep.subr.mxu0 0.0
    %1980 = vmatpush1.msra.mxu0 0.0
    %1981 = vmatprep.subr.mxu0 0.0
    %1982 = vmatpush1.msra.mxu0 0.0
    %1983 = vmatprep.subr.mxu0 0.0
    %1984 = vmatpush1.msra.mxu0 0.0
    %1985 = vmatprep.subr.mxu0 0.0
    %1986 = vmatpush1.msra.mxu0 0.0
    %1987 = vmatprep.subr.mxu0 0.0
    %1988 = vmatpush1.msra.mxu0 0.0
    %1989 = vmatprep.subr.mxu0 0.0
    %1990 = vmatpush1.msra.mxu0 0.0
    %1991 = vmatprep.subr.mxu0 0.0
    %1992 = vmatpush1.msra.mxu0 0.0
    %1993 = vmatprep.subr.mxu0 0.0
    %1994 = vmatpush1.msra.mxu0 0.0
    %1995 = vmatprep.subr.mxu0 0.0
    %1996 = vmatpush1.msra.mxu0 0.0
    %1997 = vmatprep.subr.mxu0 0.0
    %1998 = vmatpush1.msra.mxu0 0.0
    %1999 = vmatprep.subr.mxu0 0.0
    %2000 = vmatpush1.msra.mxu0 0.0
    %2001 = vmatprep.subr.mxu0 0.0
    %2002 = vmatpush1.msra.mxu0 0.0
    %2003 = vmatprep.subr.mxu0 0.0
    %2004 = vmatpush1.msra.mxu0 0.0
    %2005 = vmatprep.subr.mxu0 0.0
    %2006 = vmatpush1.msra.mxu0 0.0
    %2007 = vmatprep.subr.mxu0 0.0
    %2008 = vmatpush1.msra.mxu0 0.0
    %2009 = vmatprep.subr.mxu0 0.0
    %2010 = vmatpush1.msra.mxu0 0.0
    %2011 = vmatprep.subr.mxu0 0.0
    %2012 = vmatpush1.msra.mxu0 0.0
    %2013 = vmatprep.subr.mxu0 0.0
    %2014 = vmatpush1.msra.mxu0 0.0
    %2015 = vmatprep.subr.mxu0 0.0
    %2016 = vmatpush1.msra.mxu0 0.0
    %2017 = vmatprep.subr.mxu0 0.0
    %2018 = vmatpush1.msra.mxu0 0.0
    %2019 = vmatprep.subr.mxu0 0.0
    %2020 = vmatpush1.msra.mxu0 0.0
    %2021 = vmatprep.subr.mxu0 0.0
    %2022 = vmatpush1.msra.mxu0 0.0
    %2023 = vmatprep.mubr.f32.mxu0 0.0
    %2024 = vmatmul.mubr.f32.gmra.mrb[0].mxu0 %v1957
    %v2025 = vpop.f32.mrb[0].mxu0
    %v2026 = vadd.f32 0.0, %v2025
    %v2027 = vpop.f32.mrb[0].mxu0
    %2028 = vdwg.mxu0
    %v2030 = vsel %vm448, %v1955, 0
    %2032 = vmatprep.subr.mxu0 0.0
    %2033 = vmatpush1.msra.mxu0 %v1779
    %2034 = vmatprep.subr.mxu0 0.0
    %2035 = vmatpush1.msra.mxu0 0.0
    %2036 = vmatprep.subr.mxu0 0.0
    %2037 = vmatpush1.msra.mxu0 0.0
    %2038 = vmatprep.subr.mxu0 0.0
    %2039 = vmatpush1.msra.mxu0 0.0
    %2040 = vmatprep.subr.mxu0 0.0
    %2041 = vmatpush1.msra.mxu0 0.0
    %2042 = vmatprep.subr.mxu0 0.0
    %2043 = vmatpush1.msra.mxu0 0.0
    %2044 = vmatprep.subr.mxu0 0.0
    %2045 = vmatpush1.msra.mxu0 0.0
    %2046 = vmatprep.subr.mxu0 0.0
    %2047 = vmatpush1.msra.mxu0 0.0
    %2048 = vmatprep.subr.mxu0 0.0
    %2049 = vmatpush1.msra.mxu0 0.0
    %2050 = vmatprep.subr.mxu0 0.0
    %2051 = vmatpush1.msra.mxu0 0.0
    %2052 = vmatprep.subr.mxu0 0.0
    %2053 = vmatpush1.msra.mxu0 0.0
    %2054 = vmatprep.subr.mxu0 0.0
    %2055 = vmatpush1.msra.mxu0 0.0
    %2056 = vmatprep.subr.mxu0 0.0
    %2057 = vmatpush1.msra.mxu0 0.0
    %2058 = vmatprep.subr.mxu0 0.0
    %2059 = vmatpush1.msra.mxu0 0.0
    %2060 = vmatprep.subr.mxu0 0.0
    %2061 = vmatpush1.msra.mxu0 0.0
    %2062 = vmatprep.subr.mxu0 0.0
    %2063 = vmatpush1.msra.mxu0 0.0
    %2064 = vmatprep.subr.mxu0 0.0
    %2065 = vmatpush1.msra.mxu0 0.0
    %2066 = vmatprep.subr.mxu0 0.0
    %2067 = vmatpush1.msra.mxu0 0.0
    %2068 = vmatprep.subr.mxu0 0.0
    %2069 = vmatpush1.msra.mxu0 0.0
    %2070 = vmatprep.subr.mxu0 0.0
    %2071 = vmatpush1.msra.mxu0 0.0
    %2072 = vmatprep.subr.mxu0 0.0
    %2073 = vmatpush1.msra.mxu0 0.0
    %2074 = vmatprep.subr.mxu0 0.0
    %2075 = vmatpush1.msra.mxu0 0.0
    %2076 = vmatprep.subr.mxu0 0.0
    %2077 = vmatpush1.msra.mxu0 0.0
    %2078 = vmatprep.subr.mxu0 0.0
    %2079 = vmatpush1.msra.mxu0 0.0
    %2080 = vmatprep.subr.mxu0 0.0
    %2081 = vmatpush1.msra.mxu0 0.0
    %2082 = vmatprep.subr.mxu0 0.0
    %2083 = vmatpush1.msra.mxu0 0.0
    %2084 = vmatprep.subr.mxu0 0.0
    %2085 = vmatpush1.msra.mxu0 0.0
    %2086 = vmatprep.subr.mxu0 0.0
    %2087 = vmatpush1.msra.mxu0 0.0
    %2088 = vmatprep.subr.mxu0 0.0
    %2089 = vmatpush1.msra.mxu0 0.0
    %2090 = vmatprep.subr.mxu0 0.0
    %2091 = vmatpush1.msra.mxu0 0.0
    %2092 = vmatprep.subr.mxu0 0.0
    %2093 = vmatpush1.msra.mxu0 0.0
    %2094 = vmatprep.subr.mxu0 0.0
    %2095 = vmatpush1.msra.mxu0 0.0
    %2096 = vmatprep.mubr.f32.mxu0 0.0
    %2097 = vmatmul.mubr.f32.gmra.mrb[0].mxu0 %v2030
    %v2098 = vpop.f32.mrb[0].mxu0
    %v2099 = vadd.f32 0.0, %v2098
    %v2100 = vpop.f32.mrb[0].mxu0
    %2101 = vdwg.mxu0
    %s2102 = scalar_lea.vmem %s10, 16
    %v2103 = vld [vmem:[%s2102] sm:$0xff]
    %v2105 = vsel %vm448, %v2026, 0
    %v2108 = vsel %vm448, %v2099, 0
    %2110 = vmatprep.subr.mxu0 0.0
    %2111 = vmatpush1.msra.mxu0 %v2103
    %2112 = vmatprep.subr.mxu0 0.0
    %2113 = vmatpush1.msra.mxu0 0.0
    %2114 = vmatprep.subr.mxu0 0.0
    %2115 = vmatpush1.msra.mxu0 0.0
    %2116 = vmatprep.subr.mxu0 0.0
    %2117 = vmatpush1.msra.mxu0 0.0
    %2118 = vmatprep.subr.mxu0 0.0
    %2119 = vmatpush1.msra.mxu0 0.0
    %2120 = vmatprep.subr.mxu0 0.0
    %2121 = vmatpush1.msra.mxu0 0.0
    %2122 = vmatprep.subr.mxu0 0.0
    %2123 = vmatpush1.msra.mxu0 0.0
    %2124 = vmatprep.subr.mxu0 0.0
    %2125 = vmatpush1.msra.mxu0 0.0
    %2126 = vmatprep.subr.mxu0 0.0
    %2127 = vmatpush1.msra.mxu0 0.0
    %2128 = vmatprep.subr.mxu0 0.0
    %2129 = vmatpush1.msra.mxu0 0.0
    %2130 = vmatprep.subr.mxu0 0.0
    %2131 = vmatpush1.msra.mxu0 0.0
    %2132 = vmatprep.subr.mxu0 0.0
    %2133 = vmatpush1.msra.mxu0 0.0
    %2134 = vmatprep.subr.mxu0 0.0
    %2135 = vmatpush1.msra.mxu0 0.0
    %2136 = vmatprep.subr.mxu0 0.0
    %2137 = vmatpush1.msra.mxu0 0.0
    %2138 = vmatprep.subr.mxu0 0.0
    %2139 = vmatpush1.msra.mxu0 0.0
    %2140 = vmatprep.subr.mxu0 0.0
    %2141 = vmatpush1.msra.mxu0 0.0
    %2142 = vmatprep.subr.mxu0 0.0
    %2143 = vmatpush1.msra.mxu0 0.0
    %2144 = vmatprep.subr.mxu0 0.0
    %2145 = vmatpush1.msra.mxu0 0.0
    %2146 = vmatprep.subr.mxu0 0.0
    %2147 = vmatpush1.msra.mxu0 0.0
    %2148 = vmatprep.subr.mxu0 0.0
    %2149 = vmatpush1.msra.mxu0 0.0
    %2150 = vmatprep.subr.mxu0 0.0
    %2151 = vmatpush1.msra.mxu0 0.0
    %2152 = vmatprep.subr.mxu0 0.0
    %2153 = vmatpush1.msra.mxu0 0.0
    %2154 = vmatprep.subr.mxu0 0.0
    %2155 = vmatpush1.msra.mxu0 0.0
    %2156 = vmatprep.subr.mxu0 0.0
    %2157 = vmatpush1.msra.mxu0 0.0
    %2158 = vmatprep.subr.mxu0 0.0
    %2159 = vmatpush1.msra.mxu0 0.0
    %2160 = vmatprep.subr.mxu0 0.0
    %2161 = vmatpush1.msra.mxu0 0.0
    %2162 = vmatprep.subr.mxu0 0.0
    %2163 = vmatpush1.msra.mxu0 0.0
    %2164 = vmatprep.subr.mxu0 0.0
    %2165 = vmatpush1.msra.mxu0 0.0
    %2166 = vmatprep.subr.mxu0 0.0
    %2167 = vmatpush1.msra.mxu0 0.0
    %2168 = vmatprep.subr.mxu0 0.0
    %2169 = vmatpush1.msra.mxu0 0.0
    %2170 = vmatprep.subr.mxu0 0.0
    %2171 = vmatpush1.msra.mxu0 0.0
    %2172 = vmatprep.subr.mxu0 0.0
    %2173 = vmatpush1.msra.mxu0 0.0
    %2174 = vmatprep.mubr.f32.mxu0 0.0
    %2175 = vmatmul.mubr.f32.gmra.mrb[0].mxu0 %v2105
    %v2176 = vpop.f32.mrb[0].mxu0
    %v2177 = vadd.f32 0.0, %v2176
    %v2178 = vpop.f32.mrb[0].mxu0
    %2179 = vmatprep.mubr.f32.mxu0 0.0
    %2180 = vmatmul.mubr.f32.gmra.mrb[0].mxu0 %v2108
    %v2181 = vpop.f32.mrb[0].mxu0
    %v2182 = vadd.f32 0.0, %v2181
    %v2183 = vpop.f32.mrb[0].mxu0
    %2184 = vdwg.mxu0
    %v2185 = vadd.f32 %v1510, %v2177
    %v2186 = vadd.f32 %v1515, %v2182
    %s2187 = scalar_lea.vmem %s4, 96
    %v2188 = vld [vmem:[%s2187] sm:$0xff]
    %v2189 = vld [vmem:[%s2187 + $0x8] sm:$0xff]
    %v2190 = vld [vmem:[%s2187 + $0x10] sm:$0xff]
    %v2191 = vld [vmem:[%s2187 + $0x18] sm:$0xff]
    %s2192 = scalar_lea.vmem %s5, 3
    %v2193 = vld [vmem:[%s2192] sm:$0x1]
    %v2195 = vlaneseq
    %v2196 = vshrl.u32 %v2195, 7
    %v2197 = vsub.s32 0, %v2196
    %v2198 = vrot.slane %v2193, %v2197
    %2200 = vmatprep.subr.mxu0 0.0
    %2201 = vmatpush1.msra.mxu0 %v2188
    %2202 = vmatprep.subr.mxu0 0.0
    %2203 = vmatpush1.msra.mxu0 %v2189
    %2204 = vmatprep.subr.mxu0 0.0
    %2205 = vmatpush1.msra.mxu0 %v2190
    %2206 = vmatprep.subr.mxu0 0.0
    %2207 = vmatpush1.msra.mxu0 %v2191
    %2208 = vmatprep.subr.mxu0 0.0
    %2209 = vmatpush1.msra.mxu0 0.0
    %2210 = vmatprep.subr.mxu0 0.0
    %2211 = vmatpush1.msra.mxu0 0.0
    %2212 = vmatprep.subr.mxu0 0.0
    %2213 = vmatpush1.msra.mxu0 0.0
    %2214 = vmatprep.subr.mxu0 0.0
    %2215 = vmatpush1.msra.mxu0 0.0
    %2216 = vmatprep.subr.mxu0 0.0
    %2217 = vmatpush1.msra.mxu0 0.0
    %2218 = vmatprep.subr.mxu0 0.0
    %2219 = vmatpush1.msra.mxu0 0.0
    %2220 = vmatprep.subr.mxu0 0.0
    %2221 = vmatpush1.msra.mxu0 0.0
    %2222 = vmatprep.subr.mxu0 0.0
    %2223 = vmatpush1.msra.mxu0 0.0
    %2224 = vmatprep.subr.mxu0 0.0
    %2225 = vmatpush1.msra.mxu0 0.0
    %2226 = vmatprep.subr.mxu0 0.0
    %2227 = vmatpush1.msra.mxu0 0.0
    %2228 = vmatprep.subr.mxu0 0.0
    %2229 = vmatpush1.msra.mxu0 0.0
    %2230 = vmatprep.subr.mxu0 0.0
    %2231 = vmatpush1.msra.mxu0 0.0
    %2232 = vmatprep.subr.mxu0 0.0
    %2233 = vmatpush1.msra.mxu0 0.0
    %2234 = vmatprep.subr.mxu0 0.0
    %2235 = vmatpush1.msra.mxu0 0.0
    %2236 = vmatprep.subr.mxu0 0.0
    %2237 = vmatpush1.msra.mxu0 0.0
    %2238 = vmatprep.subr.mxu0 0.0
    %2239 = vmatpush1.msra.mxu0 0.0
    %2240 = vmatprep.subr.mxu0 0.0
    %2241 = vmatpush1.msra.mxu0 0.0
    %2242 = vmatprep.subr.mxu0 0.0
    %2243 = vmatpush1.msra.mxu0 0.0
    %2244 = vmatprep.subr.mxu0 0.0
    %2245 = vmatpush1.msra.mxu0 0.0
    %2246 = vmatprep.subr.mxu0 0.0
    %2247 = vmatpush1.msra.mxu0 0.0
    %2248 = vmatprep.subr.mxu0 0.0
    %2249 = vmatpush1.msra.mxu0 0.0
    %2250 = vmatprep.subr.mxu0 0.0
    %2251 = vmatpush1.msra.mxu0 0.0
    %2252 = vmatprep.subr.mxu0 0.0
    %2253 = vmatpush1.msra.mxu0 0.0
    %2254 = vmatprep.subr.mxu0 0.0
    %2255 = vmatpush1.msra.mxu0 0.0
    %2256 = vmatprep.subr.mxu0 0.0
    %2257 = vmatpush1.msra.mxu0 0.0
    %2258 = vmatprep.subr.mxu0 0.0
    %2259 = vmatpush1.msra.mxu0 0.0
    %2260 = vmatprep.subr.mxu0 0.0
    %2261 = vmatpush1.msra.mxu0 0.0
    %2262 = vmatprep.subr.mxu0 0.0
    %2263 = vmatpush1.msra.mxu0 0.0
    %2264 = vmatprep.mubr.f32.mxu0 0.0
    %2265 = vmatmul.mubr.f32.gmra.mrb[0].mxu0 %v184
    %v2266 = vpop.f32.mrb[0].mxu0
    %v2267 = vadd.f32 %v2198, %v2266
    %v2268 = vpop.f32.mrb[0].mxu0
    %2269 = vmatprep.mubr.f32.mxu0 0.0
    %2270 = vmatmul.mubr.f32.gmra.mrb[0].mxu0 %v187
    %v2271 = vpop.f32.mrb[0].mxu0
    %v2272 = vadd.f32 %v2198, %v2271
    %v2273 = vpop.f32.mrb[0].mxu0
    %2274 = vdwg.mxu0
    %s2275 = scalar_lea.vmem [#allocation2], 96
    %v2276 = vld [vmem:[%s2275] sm:$0xff]
    %v2277 = vld [vmem:[%s2275 + $0x8] sm:$0xff]
    %v2278 = vld [vmem:[%s2275 + $0x10] sm:$0xff]
    %v2279 = vld [vmem:[%s2275 + $0x18] sm:$0xff]
    %s2280 = scalar_lea.vmem %s7, 3
    %v2281 = vld [vmem:[%s2280] sm:$0x1]
    %v2283 = vlaneseq
    %v2284 = vshrl.u32 %v2283, 7
    %v2285 = vsub.s32 0, %v2284
    %v2286 = vrot.slane %v2281, %v2285
    %2288 = vmatprep.subr.mxu0 0.0
    %2289 = vmatpush1.msra.mxu0 %v2276
    %2290 = vmatprep.subr.mxu0 0.0
    %2291 = vmatpush1.msra.mxu0 %v2277
    %2292 = vmatprep.subr.mxu0 0.0
    %2293 = vmatpush1.msra.mxu0 %v2278
    %2294 = vmatprep.subr.mxu0 0.0
    %2295 = vmatpush1.msra.mxu0 %v2279
    %2296 = vmatprep.subr.mxu0 0.0
    %2297 = vmatpush1.msra.mxu0 0.0
    %2298 = vmatprep.subr.mxu0 0.0
    %2299 = vmatpush1.msra.mxu0 0.0
    %2300 = vmatprep.subr.mxu0 0.0
    %2301 = vmatpush1.msra.mxu0 0.0
    %2302 = vmatprep.subr.mxu0 0.0
    %2303 = vmatpush1.msra.mxu0 0.0
    %2304 = vmatprep.subr.mxu0 0.0
    %2305 = vmatpush1.msra.mxu0 0.0
    %2306 = vmatprep.subr.mxu0 0.0
    %2307 = vmatpush1.msra.mxu0 0.0
    %2308 = vmatprep.subr.mxu0 0.0
    %2309 = vmatpush1.msra.mxu0 0.0
    %2310 = vmatprep.subr.mxu0 0.0
    %2311 = vmatpush1.msra.mxu0 0.0
    %2312 = vmatprep.subr.mxu0 0.0
    %2313 = vmatpush1.msra.mxu0 0.0
    %2314 = vmatprep.subr.mxu0 0.0
    %2315 = vmatpush1.msra.mxu0 0.0
    %2316 = vmatprep.subr.mxu0 0.0
    %2317 = vmatpush1.msra.mxu0 0.0
    %2318 = vmatprep.subr.mxu0 0.0
    %2319 = vmatpush1.msra.mxu0 0.0
    %2320 = vmatprep.subr.mxu0 0.0
    %2321 = vmatpush1.msra.mxu0 0.0
    %2322 = vmatprep.subr.mxu0 0.0
    %2323 = vmatpush1.msra.mxu0 0.0
    %2324 = vmatprep.subr.mxu0 0.0
    %2325 = vmatpush1.msra.mxu0 0.0
    %2326 = vmatprep.subr.mxu0 0.0
    %2327 = vmatpush1.msra.mxu0 0.0
    %2328 = vmatprep.subr.mxu0 0.0
    %2329 = vmatpush1.msra.mxu0 0.0
    %2330 = vmatprep.subr.mxu0 0.0
    %2331 = vmatpush1.msra.mxu0 0.0
    %2332 = vmatprep.subr.mxu0 0.0
    %2333 = vmatpush1.msra.mxu0 0.0
    %2334 = vmatprep.subr.mxu0 0.0
    %2335 = vmatpush1.msra.mxu0 0.0
    %2336 = vmatprep.subr.mxu0 0.0
    %2337 = vmatpush1.msra.mxu0 0.0
    %2338 = vmatprep.subr.mxu0 0.0
    %2339 = vmatpush1.msra.mxu0 0.0
    %2340 = vmatprep.subr.mxu0 0.0
    %2341 = vmatpush1.msra.mxu0 0.0
    %2342 = vmatprep.subr.mxu0 0.0
    %2343 = vmatpush1.msra.mxu0 0.0
    %2344 = vmatprep.subr.mxu0 0.0
    %2345 = vmatpush1.msra.mxu0 0.0
    %2346 = vmatprep.subr.mxu0 0.0
    %2347 = vmatpush1.msra.mxu0 0.0
    %2348 = vmatprep.subr.mxu0 0.0
    %2349 = vmatpush1.msra.mxu0 0.0
    %2350 = vmatprep.subr.mxu0 0.0
    %2351 = vmatpush1.msra.mxu0 0.0
    %2352 = vmatprep.mubr.f32.mxu0 0.0
    %2353 = vmatmul.mubr.f32.gmra.mrb[0].mxu0 %v184
    %v2354 = vpop.f32.mrb[0].mxu0
    %v2355 = vadd.f32 %v2286, %v2354
    %v2356 = vpop.f32.mrb[0].mxu0
    %2357 = vmatprep.mubr.f32.mxu0 0.0
    %2358 = vmatmul.mubr.f32.gmra.mrb[0].mxu0 %v187
    %v2359 = vpop.f32.mrb[0].mxu0
    %v2360 = vadd.f32 %v2286, %v2359
    %v2361 = vpop.f32.mrb[0].mxu0
    %2362 = vdwg.mxu0
    %s2363 = scalar_lea.vmem [#allocation4], 96
    %v2364 = vld [vmem:[%s2363] sm:$0xff]
    %v2365 = vld [vmem:[%s2363 + $0x8] sm:$0xff]
    %v2366 = vld [vmem:[%s2363 + $0x10] sm:$0xff]
    %v2367 = vld [vmem:[%s2363 + $0x18] sm:$0xff]
    %s2368 = scalar_lea.vmem %s9, 3
    %v2369 = vld [vmem:[%s2368] sm:$0x1]
    %v2371 = vlaneseq
    %v2372 = vshrl.u32 %v2371, 7
    %v2373 = vsub.s32 0, %v2372
    %v2374 = vrot.slane %v2369, %v2373
    %2376 = vmatprep.subr.mxu0 0.0
    %2377 = vmatpush1.msra.mxu0 %v2364
    %2378 = vmatprep.subr.mxu0 0.0
    %2379 = vmatpush1.msra.mxu0 %v2365
    %2380 = vmatprep.subr.mxu0 0.0
    %2381 = vmatpush1.msra.mxu0 %v2366
    %2382 = vmatprep.subr.mxu0 0.0
    %2383 = vmatpush1.msra.mxu0 %v2367
    %2384 = vmatprep.subr.mxu0 0.0
    %2385 = vmatpush1.msra.mxu0 0.0
    %2386 = vmatprep.subr.mxu0 0.0
    %2387 = vmatpush1.msra.mxu0 0.0
    %2388 = vmatprep.subr.mxu0 0.0
    %2389 = vmatpush1.msra.mxu0 0.0
    %2390 = vmatprep.subr.mxu0 0.0
    %2391 = vmatpush1.msra.mxu0 0.0
    %2392 = vmatprep.subr.mxu0 0.0
    %2393 = vmatpush1.msra.mxu0 0.0
    %2394 = vmatprep.subr.mxu0 0.0
    %2395 = vmatpush1.msra.mxu0 0.0
    %2396 = vmatprep.subr.mxu0 0.0
    %2397 = vmatpush1.msra.mxu0 0.0
    %2398 = vmatprep.subr.mxu0 0.0
    %2399 = vmatpush1.msra.mxu0 0.0
    %2400 = vmatprep.subr.mxu0 0.0
    %2401 = vmatpush1.msra.mxu0 0.0
    %2402 = vmatprep.subr.mxu0 0.0
    %2403 = vmatpush1.msra.mxu0 0.0
    %2404 = vmatprep.subr.mxu0 0.0
    %2405 = vmatpush1.msra.mxu0 0.0
    %2406 = vmatprep.subr.mxu0 0.0
    %2407 = vmatpush1.msra.mxu0 0.0
    %2408 = vmatprep.subr.mxu0 0.0
    %2409 = vmatpush1.msra.mxu0 0.0
    %2410 = vmatprep.subr.mxu0 0.0
    %2411 = vmatpush1.msra.mxu0 0.0
    %2412 = vmatprep.subr.mxu0 0.0
    %2413 = vmatpush1.msra.mxu0 0.0
    %2414 = vmatprep.subr.mxu0 0.0
    %2415 = vmatpush1.msra.mxu0 0.0
    %2416 = vmatprep.subr.mxu0 0.0
    %2417 = vmatpush1.msra.mxu0 0.0
    %2418 = vmatprep.subr.mxu0 0.0
    %2419 = vmatpush1.msra.mxu0 0.0
    %2420 = vmatprep.subr.mxu0 0.0
    %2421 = vmatpush1.msra.mxu0 0.0
    %2422 = vmatprep.subr.mxu0 0.0
    %2423 = vmatpush1.msra.mxu0 0.0
    %2424 = vmatprep.subr.mxu0 0.0
    %2425 = vmatpush1.msra.mxu0 0.0
    %2426 = vmatprep.subr.mxu0 0.0
    %2427 = vmatpush1.msra.mxu0 0.0
    %2428 = vmatprep.subr.mxu0 0.0
    %2429 = vmatpush1.msra.mxu0 0.0
    %2430 = vmatprep.subr.mxu0 0.0
    %2431 = vmatpush1.msra.mxu0 0.0
    %2432 = vmatprep.subr.mxu0 0.0
    %2433 = vmatpush1.msra.mxu0 0.0
    %2434 = vmatprep.subr.mxu0 0.0
    %2435 = vmatpush1.msra.mxu0 0.0
    %2436 = vmatprep.subr.mxu0 0.0
    %2437 = vmatpush1.msra.mxu0 0.0
    %2438 = vmatprep.subr.mxu0 0.0
    %2439 = vmatpush1.msra.mxu0 0.0
    %2440 = vmatprep.mubr.f32.mxu0 0.0
    %2441 = vmatmul.mubr.f32.gmra.mrb[0].mxu0 %v184
    %v2442 = vpop.f32.mrb[0].mxu0
    %v2443 = vadd.f32 %v2374, %v2442
    %v2444 = vpop.f32.mrb[0].mxu0
    %2445 = vmatprep.mubr.f32.mxu0 0.0
    %2446 = vmatmul.mubr.f32.gmra.mrb[0].mxu0 %v187
    %v2447 = vpop.f32.mrb[0].mxu0
    %v2448 = vadd.f32 %v2374, %v2447
    %v2449 = vpop.f32.mrb[0].mxu0
    %2450 = vdwg.mxu0
    %v2452 = vsel %vm448, %v2267, 0
    %v2455 = vsel %vm448, %v2355, 0
    %2457 = vmatprep.subr.mxu0 0.0
    %2458 = vmatpush1.xpose.msra.mxu0 %v2455
    %2459 = vmatprep.subr.mxu0 0.0
    %2460 = vmatpush1.xpose.msra.mxu0 0.0
    %2461 = vmatprep.subr.mxu0 0.0
    %2462 = vmatpush1.xpose.msra.mxu0 0.0
    %2463 = vmatprep.subr.mxu0 0.0
    %2464 = vmatpush1.xpose.msra.mxu0 0.0
    %2465 = vmatprep.subr.mxu0 0.0
    %2466 = vmatpush1.xpose.msra.mxu0 0.0
    %2467 = vmatprep.subr.mxu0 0.0
    %2468 = vmatpush1.xpose.msra.mxu0 0.0
    %2469 = vmatprep.subr.mxu0 0.0
    %2470 = vmatpush1.xpose.msra.mxu0 0.0
    %2471 = vmatprep.subr.mxu0 0.0
    %2472 = vmatpush1.xpose.msra.mxu0 0.0
    %2473 = vmatprep.subr.mxu0 0.0
    %2474 = vmatpush1.xpose.msra.mxu0 0.0
    %2475 = vmatprep.subr.mxu0 0.0
    %2476 = vmatpush1.xpose.msra.mxu0 0.0
    %2477 = vmatprep.subr.mxu0 0.0
    %2478 = vmatpush1.xpose.msra.mxu0 0.0
    %2479 = vmatprep.subr.mxu0 0.0
    %2480 = vmatpush1.xpose.msra.mxu0 0.0
    %2481 = vmatprep.subr.mxu0 0.0
    %2482 = vmatpush1.xpose.msra.mxu0 0.0
    %2483 = vmatprep.subr.mxu0 0.0
    %2484 = vmatpush1.xpose.msra.mxu0 0.0
    %2485 = vmatprep.subr.mxu0 0.0
    %2486 = vmatpush1.xpose.msra.mxu0 0.0
    %2487 = vmatprep.subr.mxu0 0.0
    %2488 = vmatpush1.xpose.msra.mxu0 0.0
    %2489 = vmatprep.subr.mxu0 0.0
    %2490 = vmatpush1.xpose.msra.mxu0 0.0
    %2491 = vmatprep.subr.mxu0 0.0
    %2492 = vmatpush1.xpose.msra.mxu0 0.0
    %2493 = vmatprep.subr.mxu0 0.0
    %2494 = vmatpush1.xpose.msra.mxu0 0.0
    %2495 = vmatprep.subr.mxu0 0.0
    %2496 = vmatpush1.xpose.msra.mxu0 0.0
    %2497 = vmatprep.subr.mxu0 0.0
    %2498 = vmatpush1.xpose.msra.mxu0 0.0
    %2499 = vmatprep.subr.mxu0 0.0
    %2500 = vmatpush1.xpose.msra.mxu0 0.0
    %2501 = vmatprep.subr.mxu0 0.0
    %2502 = vmatpush1.xpose.msra.mxu0 0.0
    %2503 = vmatprep.subr.mxu0 0.0
    %2504 = vmatpush1.xpose.msra.mxu0 0.0
    %2505 = vmatprep.subr.mxu0 0.0
    %2506 = vmatpush1.xpose.msra.mxu0 0.0
    %2507 = vmatprep.subr.mxu0 0.0
    %2508 = vmatpush1.xpose.msra.mxu0 0.0
    %2509 = vmatprep.subr.mxu0 0.0
    %2510 = vmatpush1.xpose.msra.mxu0 0.0
    %2511 = vmatprep.subr.mxu0 0.0
    %2512 = vmatpush1.xpose.msra.mxu0 0.0
    %2513 = vmatprep.subr.mxu0 0.0
    %2514 = vmatpush1.xpose.msra.mxu0 0.0
    %2515 = vmatprep.subr.mxu0 0.0
    %2516 = vmatpush1.xpose.msra.mxu0 0.0
    %2517 = vmatprep.subr.mxu0 0.0
    %2518 = vmatpush1.xpose.msra.mxu0 0.0
    %2519 = vmatprep.subr.mxu0 0.0
    %2520 = vmatpush1.xpose.msra.mxu0 0.0
    %2521 = vmatprep.mubr.f32.mxu0 0.0
    %2522 = vmatmul.mubr.f32.gmra.mrb[0].mxu0 %v2452
    %v2523 = vpop.f32.mrb[0].mxu0
    %v2524 = vadd.f32 %v441, %v2523
    %v2525 = vpop.f32.mrb[0].mxu0
    %2526 = vdwg.mxu0
    %v2528 = vsel %vm448, %v2272, 0
    %v2531 = vsel %vm448, %v2360, 0
    %2533 = vmatprep.subr.mxu0 0.0
    %2534 = vmatpush1.xpose.msra.mxu0 %v2531
    %2535 = vmatprep.subr.mxu0 0.0
    %2536 = vmatpush1.xpose.msra.mxu0 0.0
    %2537 = vmatprep.subr.mxu0 0.0
    %2538 = vmatpush1.xpose.msra.mxu0 0.0
    %2539 = vmatprep.subr.mxu0 0.0
    %2540 = vmatpush1.xpose.msra.mxu0 0.0
    %2541 = vmatprep.subr.mxu0 0.0
    %2542 = vmatpush1.xpose.msra.mxu0 0.0
    %2543 = vmatprep.subr.mxu0 0.0
    %2544 = vmatpush1.xpose.msra.mxu0 0.0
    %2545 = vmatprep.subr.mxu0 0.0
    %2546 = vmatpush1.xpose.msra.mxu0 0.0
    %2547 = vmatprep.subr.mxu0 0.0
    %2548 = vmatpush1.xpose.msra.mxu0 0.0
    %2549 = vmatprep.subr.mxu0 0.0
    %2550 = vmatpush1.xpose.msra.mxu0 0.0
    %2551 = vmatprep.subr.mxu0 0.0
    %2552 = vmatpush1.xpose.msra.mxu0 0.0
    %2553 = vmatprep.subr.mxu0 0.0
    %2554 = vmatpush1.xpose.msra.mxu0 0.0
    %2555 = vmatprep.subr.mxu0 0.0
    %2556 = vmatpush1.xpose.msra.mxu0 0.0
    %2557 = vmatprep.subr.mxu0 0.0
    %2558 = vmatpush1.xpose.msra.mxu0 0.0
    %2559 = vmatprep.subr.mxu0 0.0
    %2560 = vmatpush1.xpose.msra.mxu0 0.0
    %2561 = vmatprep.subr.mxu0 0.0
    %2562 = vmatpush1.xpose.msra.mxu0 0.0
    %2563 = vmatprep.subr.mxu0 0.0
    %2564 = vmatpush1.xpose.msra.mxu0 0.0
    %2565 = vmatprep.subr.mxu0 0.0
    %2566 = vmatpush1.xpose.msra.mxu0 0.0
    %2567 = vmatprep.subr.mxu0 0.0
    %2568 = vmatpush1.xpose.msra.mxu0 0.0
    %2569 = vmatprep.subr.mxu0 0.0
    %2570 = vmatpush1.xpose.msra.mxu0 0.0
    %2571 = vmatprep.subr.mxu0 0.0
    %2572 = vmatpush1.xpose.msra.mxu0 0.0
    %2573 = vmatprep.subr.mxu0 0.0
    %2574 = vmatpush1.xpose.msra.mxu0 0.0
    %2575 = vmatprep.subr.mxu0 0.0
    %2576 = vmatpush1.xpose.msra.mxu0 0.0
    %2577 = vmatprep.subr.mxu0 0.0
    %2578 = vmatpush1.xpose.msra.mxu0 0.0
    %2579 = vmatprep.subr.mxu0 0.0
    %2580 = vmatpush1.xpose.msra.mxu0 0.0
    %2581 = vmatprep.subr.mxu0 0.0
    %2582 = vmatpush1.xpose.msra.mxu0 0.0
    %2583 = vmatprep.subr.mxu0 0.0
    %2584 = vmatpush1.xpose.msra.mxu0 0.0
    %2585 = vmatprep.subr.mxu0 0.0
    %2586 = vmatpush1.xpose.msra.mxu0 0.0
    %2587 = vmatprep.subr.mxu0 0.0
    %2588 = vmatpush1.xpose.msra.mxu0 0.0
    %2589 = vmatprep.subr.mxu0 0.0
    %2590 = vmatpush1.xpose.msra.mxu0 0.0
    %2591 = vmatprep.subr.mxu0 0.0
    %2592 = vmatpush1.xpose.msra.mxu0 0.0
    %2593 = vmatprep.subr.mxu0 0.0
    %2594 = vmatpush1.xpose.msra.mxu0 0.0
    %2595 = vmatprep.subr.mxu0 0.0
    %2596 = vmatpush1.xpose.msra.mxu0 0.0
    %2597 = vmatprep.mubr.f32.mxu0 0.0
    %2598 = vmatmul.mubr.f32.gmra.mrb[0].mxu0 %v2528
    %v2599 = vpop.f32.mrb[0].mxu0
    %v2600 = vadd.f32 %v445, %v2599
    %v2601 = vpop.f32.mrb[0].mxu0
    %2602 = vdwg.mxu0
    %v2603 = vsel %vm448, %v2524, -inf
    %2604 = vmax.xlane.f32.xlu0 %v2603
    %v2605 = vpop.xlane.xlu0 %2604
    %v2606 = vsel %vm448, %v2600, -inf
    %2607 = vmax.xlane.f32.xlu0 %v2606
    %v2608 = vpop.xlane.xlu0 %2607
    %v2609 = vsub.f32 %v2524, %v2605
    %v2610 = vsub.f32 %v2600, %v2608
    %v2611 = vmul.f32 %v2609, 1.442695
    %v2612 = vpow.pop %v2611
    %v2613 = vmul.f32 %v2610, 1.442695
    %v2614 = vpow.pop %v2613
    %v2615 = vsel %vm448, %v2612, 0.0
    %2616 = vadd.xlane.f32.xlu0 %v2615
    %v2617 = vpop.xlane.xlu0 %2616
    %v2618 = vsel %vm448, %v2614, 0.0
    %2619 = vadd.xlane.f32.xlu0 %v2618
    %v2620 = vpop.xlane.xlu0 %2619
    %v2621 = vrcp.pop %v2617
    %v2622 = vrcp.pop %v2620
    %v2623 = vmul.f32 %v2612, %v2621
    %v2624 = vmul.f32 %v2614, %v2622
    %v2626 = vsel %vm448, %v2623, 0
    %2628 = vmatprep.subr.mxu0 0.0
    %2629 = vmatpush1.msra.mxu0 %v2443
    %2630 = vmatprep.subr.mxu0 0.0
    %2631 = vmatpush1.msra.mxu0 0.0
    %2632 = vmatprep.subr.mxu0 0.0
    %2633 = vmatpush1.msra.mxu0 0.0
    %2634 = vmatprep.subr.mxu0 0.0
    %2635 = vmatpush1.msra.mxu0 0.0
    %2636 = vmatprep.subr.mxu0 0.0
    %2637 = vmatpush1.msra.mxu0 0.0
    %2638 = vmatprep.subr.mxu0 0.0
    %2639 = vmatpush1.msra.mxu0 0.0
    %2640 = vmatprep.subr.mxu0 0.0
    %2641 = vmatpush1.msra.mxu0 0.0
    %2642 = vmatprep.subr.mxu0 0.0
    %2643 = vmatpush1.msra.mxu0 0.0
    %2644 = vmatprep.subr.mxu0 0.0
    %2645 = vmatpush1.msra.mxu0 0.0
    %2646 = vmatprep.subr.mxu0 0.0
    %2647 = vmatpush1.msra.mxu0 0.0
    %2648 = vmatprep.subr.mxu0 0.0
    %2649 = vmatpush1.msra.mxu0 0.0
    %2650 = vmatprep.subr.mxu0 0.0
    %2651 = vmatpush1.msra.mxu0 0.0
    %2652 = vmatprep.subr.mxu0 0.0
    %2653 = vmatpush1.msra.mxu0 0.0
    %2654 = vmatprep.subr.mxu0 0.0
    %2655 = vmatpush1.msra.mxu0 0.0
    %2656 = vmatprep.subr.mxu0 0.0
    %2657 = vmatpush1.msra.mxu0 0.0
    %2658 = vmatprep.subr.mxu0 0.0
    %2659 = vmatpush1.msra.mxu0 0.0
    %2660 = vmatprep.subr.mxu0 0.0
    %2661 = vmatpush1.msra.mxu0 0.0
    %2662 = vmatprep.subr.mxu0 0.0
    %2663 = vmatpush1.msra.mxu0 0.0
    %2664 = vmatprep.subr.mxu0 0.0
    %2665 = vmatpush1.msra.mxu0 0.0
    %2666 = vmatprep.subr.mxu0 0.0
    %2667 = vmatpush1.msra.mxu0 0.0
    %2668 = vmatprep.subr.mxu0 0.0
    %2669 = vmatpush1.msra.mxu0 0.0
    %2670 = vmatprep.subr.mxu0 0.0
    %2671 = vmatpush1.msra.mxu0 0.0
    %2672 = vmatprep.subr.mxu0 0.0
    %2673 = vmatpush1.msra.mxu0 0.0
    %2674 = vmatprep.subr.mxu0 0.0
    %2675 = vmatpush1.msra.mxu0 0.0
    %2676 = vmatprep.subr.mxu0 0.0
    %2677 = vmatpush1.msra.mxu0 0.0
    %2678 = vmatprep.subr.mxu0 0.0
    %2679 = vmatpush1.msra.mxu0 0.0
    %2680 = vmatprep.subr.mxu0 0.0
    %2681 = vmatpush1.msra.mxu0 0.0
    %2682 = vmatprep.subr.mxu0 0.0
    %2683 = vmatpush1.msra.mxu0 0.0
    %2684 = vmatprep.subr.mxu0 0.0
    %2685 = vmatpush1.msra.mxu0 0.0
    %2686 = vmatprep.subr.mxu0 0.0
    %2687 = vmatpush1.msra.mxu0 0.0
    %2688 = vmatprep.subr.mxu0 0.0
    %2689 = vmatpush1.msra.mxu0 0.0
    %2690 = vmatprep.subr.mxu0 0.0
    %2691 = vmatpush1.msra.mxu0 0.0
    %2692 = vmatprep.mubr.f32.mxu0 0.0
    %2693 = vmatmul.mubr.f32.gmra.mrb[0].mxu0 %v2626
    %v2694 = vpop.f32.mrb[0].mxu0
    %v2695 = vadd.f32 0.0, %v2694
    %v2696 = vpop.f32.mrb[0].mxu0
    %2697 = vdwg.mxu0
    %v2699 = vsel %vm448, %v2624, 0
    %2701 = vmatprep.subr.mxu0 0.0
    %2702 = vmatpush1.msra.mxu0 %v2448
    %2703 = vmatprep.subr.mxu0 0.0
    %2704 = vmatpush1.msra.mxu0 0.0
    %2705 = vmatprep.subr.mxu0 0.0
    %2706 = vmatpush1.msra.mxu0 0.0
    %2707 = vmatprep.subr.mxu0 0.0
    %2708 = vmatpush1.msra.mxu0 0.0
    %2709 = vmatprep.subr.mxu0 0.0
    %2710 = vmatpush1.msra.mxu0 0.0
    %2711 = vmatprep.subr.mxu0 0.0
    %2712 = vmatpush1.msra.mxu0 0.0
    %2713 = vmatprep.subr.mxu0 0.0
    %2714 = vmatpush1.msra.mxu0 0.0
    %2715 = vmatprep.subr.mxu0 0.0
    %2716 = vmatpush1.msra.mxu0 0.0
    %2717 = vmatprep.subr.mxu0 0.0
    %2718 = vmatpush1.msra.mxu0 0.0
    %2719 = vmatprep.subr.mxu0 0.0
    %2720 = vmatpush1.msra.mxu0 0.0
    %2721 = vmatprep.subr.mxu0 0.0
    %2722 = vmatpush1.msra.mxu0 0.0
    %2723 = vmatprep.subr.mxu0 0.0
    %2724 = vmatpush1.msra.mxu0 0.0
    %2725 = vmatprep.subr.mxu0 0.0
    %2726 = vmatpush1.msra.mxu0 0.0
    %2727 = vmatprep.subr.mxu0 0.0
    %2728 = vmatpush1.msra.mxu0 0.0
    %2729 = vmatprep.subr.mxu0 0.0
    %2730 = vmatpush1.msra.mxu0 0.0
    %2731 = vmatprep.subr.mxu0 0.0
    %2732 = vmatpush1.msra.mxu0 0.0
    %2733 = vmatprep.subr.mxu0 0.0
    %2734 = vmatpush1.msra.mxu0 0.0
    %2735 = vmatprep.subr.mxu0 0.0
    %2736 = vmatpush1.msra.mxu0 0.0
    %2737 = vmatprep.subr.mxu0 0.0
    %2738 = vmatpush1.msra.mxu0 0.0
    %2739 = vmatprep.subr.mxu0 0.0
    %2740 = vmatpush1.msra.mxu0 0.0
    %2741 = vmatprep.subr.mxu0 0.0
    %2742 = vmatpush1.msra.mxu0 0.0
    %2743 = vmatprep.subr.mxu0 0.0
    %2744 = vmatpush1.msra.mxu0 0.0
    %2745 = vmatprep.subr.mxu0 0.0
    %2746 = vmatpush1.msra.mxu0 0.0
    %2747 = vmatprep.subr.mxu0 0.0
    %2748 = vmatpush1.msra.mxu0 0.0
    %2749 = vmatprep.subr.mxu0 0.0
    %2750 = vmatpush1.msra.mxu0 0.0
    %2751 = vmatprep.subr.mxu0 0.0
    %2752 = vmatpush1.msra.mxu0 0.0
    %2753 = vmatprep.subr.mxu0 0.0
    %2754 = vmatpush1.msra.mxu0 0.0
    %2755 = vmatprep.subr.mxu0 0.0
    %2756 = vmatpush1.msra.mxu0 0.0
    %2757 = vmatprep.subr.mxu0 0.0
    %2758 = vmatpush1.msra.mxu0 0.0
    %2759 = vmatprep.subr.mxu0 0.0
    %2760 = vmatpush1.msra.mxu0 0.0
    %2761 = vmatprep.subr.mxu0 0.0
    %2762 = vmatpush1.msra.mxu0 0.0
    %2763 = vmatprep.subr.mxu0 0.0
    %2764 = vmatpush1.msra.mxu0 0.0
    %2765 = vmatprep.mubr.f32.mxu0 0.0
    %2766 = vmatmul.mubr.f32.gmra.mrb[0].mxu0 %v2699
    %v2767 = vpop.f32.mrb[0].mxu0
    %v2768 = vadd.f32 0.0, %v2767
    %v2769 = vpop.f32.mrb[0].mxu0
    %2770 = vdwg.mxu0
    %s2771 = scalar_lea.vmem %s10, 24
    %v2772 = vld [vmem:[%s2771] sm:$0xff]
    %v2774 = vsel %vm448, %v2695, 0
    %v2777 = vsel %vm448, %v2768, 0
    %2779 = vmatprep.subr.mxu0 0.0
    %2780 = vmatpush1.msra.mxu0 %v2772
    %2781 = vmatprep.subr.mxu0 0.0
    %2782 = vmatpush1.msra.mxu0 0.0
    %2783 = vmatprep.subr.mxu0 0.0
    %2784 = vmatpush1.msra.mxu0 0.0
    %2785 = vmatprep.subr.mxu0 0.0
    %2786 = vmatpush1.msra.mxu0 0.0
    %2787 = vmatprep.subr.mxu0 0.0
    %2788 = vmatpush1.msra.mxu0 0.0
    %2789 = vmatprep.subr.mxu0 0.0
    %2790 = vmatpush1.msra.mxu0 0.0
    %2791 = vmatprep.subr.mxu0 0.0
    %2792 = vmatpush1.msra.mxu0 0.0
    %2793 = vmatprep.subr.mxu0 0.0
    %2794 = vmatpush1.msra.mxu0 0.0
    %2795 = vmatprep.subr.mxu0 0.0
    %2796 = vmatpush1.msra.mxu0 0.0
    %2797 = vmatprep.subr.mxu0 0.0
    %2798 = vmatpush1.msra.mxu0 0.0
    %2799 = vmatprep.subr.mxu0 0.0
    %2800 = vmatpush1.msra.mxu0 0.0
    %2801 = vmatprep.subr.mxu0 0.0
    %2802 = vmatpush1.msra.mxu0 0.0
    %2803 = vmatprep.subr.mxu0 0.0
    %2804 = vmatpush1.msra.mxu0 0.0
    %2805 = vmatprep.subr.mxu0 0.0
    %2806 = vmatpush1.msra.mxu0 0.0
    %2807 = vmatprep.subr.mxu0 0.0
    %2808 = vmatpush1.msra.mxu0 0.0
    %2809 = vmatprep.subr.mxu0 0.0
    %2810 = vmatpush1.msra.mxu0 0.0
    %2811 = vmatprep.subr.mxu0 0.0
    %2812 = vmatpush1.msra.mxu0 0.0
    %2813 = vmatprep.subr.mxu0 0.0
    %2814 = vmatpush1.msra.mxu0 0.0
    %2815 = vmatprep.subr.mxu0 0.0
    %2816 = vmatpush1.msra.mxu0 0.0
    %2817 = vmatprep.subr.mxu0 0.0
    %2818 = vmatpush1.msra.mxu0 0.0
    %2819 = vmatprep.subr.mxu0 0.0
    %2820 = vmatpush1.msra.mxu0 0.0
    %2821 = vmatprep.subr.mxu0 0.0
    %2822 = vmatpush1.msra.mxu0 0.0
    %2823 = vmatprep.subr.mxu0 0.0
    %2824 = vmatpush1.msra.mxu0 0.0
    %2825 = vmatprep.subr.mxu0 0.0
    %2826 = vmatpush1.msra.mxu0 0.0
    %2827 = vmatprep.subr.mxu0 0.0
    %2828 = vmatpush1.msra.mxu0 0.0
    %2829 = vmatprep.subr.mxu0 0.0
    %2830 = vmatpush1.msra.mxu0 0.0
    %2831 = vmatprep.subr.mxu0 0.0
    %2832 = vmatpush1.msra.mxu0 0.0
    %2833 = vmatprep.subr.mxu0 0.0
    %2834 = vmatpush1.msra.mxu0 0.0
    %2835 = vmatprep.subr.mxu0 0.0
    %2836 = vmatpush1.msra.mxu0 0.0
    %2837 = vmatprep.subr.mxu0 0.0
    %2838 = vmatpush1.msra.mxu0 0.0
    %2839 = vmatprep.subr.mxu0 0.0
    %2840 = vmatpush1.msra.mxu0 0.0
    %2841 = vmatprep.subr.mxu0 0.0
    %2842 = vmatpush1.msra.mxu0 0.0
    %2843 = vmatprep.mubr.f32.mxu0 0.0
    %2844 = vmatmul.mubr.f32.gmra.mrb[0].mxu0 %v2774
    %v2845 = vpop.f32.mrb[0].mxu0
    %v2846 = vadd.f32 0.0, %v2845
    %v2847 = vpop.f32.mrb[0].mxu0
    %2848 = vmatprep.mubr.f32.mxu0 0.0
    %2849 = vmatmul.mubr.f32.gmra.mrb[0].mxu0 %v2777
    %v2850 = vpop.f32.mrb[0].mxu0
    %v2851 = vadd.f32 0.0, %v2850
    %v2852 = vpop.f32.mrb[0].mxu0
    %2853 = vdwg.mxu0
    %v2854 = vadd.f32 %v2185, %v2846
    %v2855 = vadd.f32 %v2186, %v2851
    %v2856 = vadd.f32 %v164, %v2854
    %v2857 = vadd.f32 %v165, %v2855
    %v2858 = vld [vmem:[%s11] sm:$0x1]
    %v2860 = vlaneseq
    %v2861 = vshrl.u32 %v2860, 7
    %v2862 = vsub.s32 0, %v2861
    %v2863 = vrot.slane %v2858, %v2862
    %v2865 = vadd.f32 %v2856, %v2863
    %v2866 = vadd.f32 %v2857, %v2863
    %v2867 = vld [vmem:[%s12] sm:$0x1]
    %v2868 = vld [vmem:[%s13] sm:$0x1]
    %v2869 = vsel %vm122, %v2865, 0.0
    %2870 = vadd.xlane.f32.xlu0 %v2869
    %v2871 = vpop.xlane.xlu0 %2870
    %v2872 = vsel %vm122, %v2866, 0.0
    %2873 = vadd.xlane.f32.xlu0 %v2872
    %v2874 = vpop.xlane.xlu0 %2873
    %v2875 = vmul.f32 %v2871, %v129
    %v2876 = vmul.f32 %v2874, %v129
    %v2877 = vsub.f32 %v2865, %v2875
    %v2878 = vsub.f32 %v2866, %v2876
    %v2879 = vmul.f32 %v2877, %v2877
    %v2880 = vmul.f32 %v2878, %v2878
    %v2881 = vsel %vm122, %v2879, 0.0
    %2882 = vadd.xlane.f32.xlu0 %v2881
    %v2883 = vpop.xlane.xlu0 %2882
    %v2884 = vsel %vm122, %v2880, 0.0
    %2885 = vadd.xlane.f32.xlu0 %v2884
    %v2886 = vpop.xlane.xlu0 %2885
    %v2887 = vmul.f32 %v2883, %v129
    %v2888 = vmul.f32 %v2886, %v129
    %v2889 = vadd.f32 %v2887, 1e-12
    %v2890 = vadd.f32 %v2888, 1e-12
    %v2891 = vrsqrt.pop %v2889
    %v2892 = vrsqrt.pop %v2890
    %v2893 = vmul.f32 %v2877, %v2891
    %v2894 = vmul.f32 %v2878, %v2892
    %v2896 = vlaneseq
    %v2897 = vshrl.u32 %v2896, 7
    %v2898 = vsub.s32 0, %v2897
    %v2899 = vrot.slane %v2867, %v2898
    %v2901 = vmul.f32 %v2893, %v2899
    %v2902 = vmul.f32 %v2894, %v2899
    %v2904 = vlaneseq
    %v2905 = vshrl.u32 %v2904, 7
    %v2906 = vsub.s32 0, %v2905
    %v2907 = vrot.slane %v2868, %v2906
    %v2909 = vadd.f32 %v2901, %v2907
    %v2910 = vadd.f32 %v2902, %v2907
    %v2911 = vld [vmem:[%s14] sm:$0xff]
    %v2912 = vld [vmem:[%s14 + $0x8] sm:$0xff]
    %v2913 = vld [vmem:[%s14 + $0x10] sm:$0xff]
    %v2914 = vld [vmem:[%s14 + $0x18] sm:$0xff]
    %v2915 = vld [vmem:[%s15] sm:$0x1]
    %v2917 = vlaneseq
    %v2918 = vshrl.u32 %v2917, 7
    %v2919 = vsub.s32 0, %v2918
    %v2920 = vrot.slane %v2915, %v2919
    %v2923 = vsel %vm122, %v2909, 0
    %v2926 = vsel %vm122, %v2910, 0
    %2928 = vmatprep.subr.mxu0 0.0
    %2929 = vmatpush1.msra.mxu0 %v2911
    %2930 = vmatprep.subr.mxu0 0.0
    %2931 = vmatpush1.msra.mxu0 %v2912
    %2932 = vmatprep.subr.mxu0 0.0
    %2933 = vmatpush1.msra.mxu0 %v2913
    %2934 = vmatprep.subr.mxu0 0.0
    %2935 = vmatpush1.msra.mxu0 %v2914
    %2936 = vmatprep.subr.mxu0 0.0
    %2937 = vmatpush1.msra.mxu0 0.0
    %2938 = vmatprep.subr.mxu0 0.0
    %2939 = vmatpush1.msra.mxu0 0.0
    %2940 = vmatprep.subr.mxu0 0.0
    %2941 = vmatpush1.msra.mxu0 0.0
    %2942 = vmatprep.subr.mxu0 0.0
    %2943 = vmatpush1.msra.mxu0 0.0
    %2944 = vmatprep.subr.mxu0 0.0
    %2945 = vmatpush1.msra.mxu0 0.0
    %2946 = vmatprep.subr.mxu0 0.0
    %2947 = vmatpush1.msra.mxu0 0.0
    %2948 = vmatprep.subr.mxu0 0.0
    %2949 = vmatpush1.msra.mxu0 0.0
    %2950 = vmatprep.subr.mxu0 0.0
    %2951 = vmatpush1.msra.mxu0 0.0
    %2952 = vmatprep.subr.mxu0 0.0
    %2953 = vmatpush1.msra.mxu0 0.0
    %2954 = vmatprep.subr.mxu0 0.0
    %2955 = vmatpush1.msra.mxu0 0.0
    %2956 = vmatprep.subr.mxu0 0.0
    %2957 = vmatpush1.msra.mxu0 0.0
    %2958 = vmatprep.subr.mxu0 0.0
    %2959 = vmatpush1.msra.mxu0 0.0
    %2960 = vmatprep.subr.mxu0 0.0
    %2961 = vmatpush1.msra.mxu0 0.0
    %2962 = vmatprep.subr.mxu0 0.0
    %2963 = vmatpush1.msra.mxu0 0.0
    %2964 = vmatprep.subr.mxu0 0.0
    %2965 = vmatpush1.msra.mxu0 0.0
    %2966 = vmatprep.subr.mxu0 0.0
    %2967 = vmatpush1.msra.mxu0 0.0
    %2968 = vmatprep.subr.mxu0 0.0
    %2969 = vmatpush1.msra.mxu0 0.0
    %2970 = vmatprep.subr.mxu0 0.0
    %2971 = vmatpush1.msra.mxu0 0.0
    %2972 = vmatprep.subr.mxu0 0.0
    %2973 = vmatpush1.msra.mxu0 0.0
    %2974 = vmatprep.subr.mxu0 0.0
    %2975 = vmatpush1.msra.mxu0 0.0
    %2976 = vmatprep.subr.mxu0 0.0
    %2977 = vmatpush1.msra.mxu0 0.0
    %2978 = vmatprep.subr.mxu0 0.0
    %2979 = vmatpush1.msra.mxu0 0.0
    %2980 = vmatprep.subr.mxu0 0.0
    %2981 = vmatpush1.msra.mxu0 0.0
    %2982 = vmatprep.subr.mxu0 0.0
    %2983 = vmatpush1.msra.mxu0 0.0
    %2984 = vmatprep.subr.mxu0 0.0
    %2985 = vmatpush1.msra.mxu0 0.0
    %2986 = vmatprep.subr.mxu0 0.0
    %2987 = vmatpush1.msra.mxu0 0.0
    %2988 = vmatprep.subr.mxu0 0.0
    %2989 = vmatpush1.msra.mxu0 0.0
    %2990 = vmatprep.subr.mxu0 0.0
    %2991 = vmatpush1.msra.mxu0 0.0
    %2992 = vmatprep.mubr.f32.mxu0 0.0
    %2993 = vmatmul.mubr.f32.gmra.mrb[0].mxu0 %v2923
    %v2994 = vpop.f32.mrb[0].mxu0
    %v2995 = vadd.f32 %v2920, %v2994
    %v2996 = vpop.f32.mrb[0].mxu0
    %2997 = vmatprep.mubr.f32.mxu0 0.0
    %2998 = vmatmul.mubr.f32.gmra.mrb[0].mxu0 %v2926
    %v2999 = vpop.f32.mrb[0].mxu0
    %v3000 = vadd.f32 %v2920, %v2999
    %v3001 = vpop.f32.mrb[0].mxu0
    %3002 = vdwg.mxu0
    %v3003 = vmul.f32 %v2995, %v2995
    %v3004 = vmul.f32 %v3000, %v3000
    %v3005 = vmul.f32 %v2995, %v3003
    %v3006 = vmul.f32 %v3000, %v3004
    %v3007 = vmul.f32 %v3005, 0.044715
    %v3008 = vmul.f32 %v3006, 0.044715
    %v3009 = vadd.f32 %v2995, %v3007
    %v3010 = vadd.f32 %v3000, %v3008
    %v3011 = vmul.f32 %v3009, 0.7978846
    %v3012 = vmul.f32 %v3010, 0.7978846
    %v3013 = vtanh.pop %v3011
    %v3014 = vtanh.pop %v3012
    %v3015 = vadd.f32 %v3013, 1.0
    %v3016 = vadd.f32 %v3014, 1.0
    %v3017 = vmul.f32 %v3015, 0.5
    %v3018 = vmul.f32 %v3016, 0.5
    %v3019 = vmul.f32 %v2995, %v3017
    %v3020 = vmul.f32 %v3000, %v3018
    %v3021 = vld [vmem:[#allocation6] sm:$0xff]
    %v3022 = vld [vmem:[#allocation6 + $0x8] sm:$0xff]
    %v3023 = vld [vmem:[#allocation6 + $0x10] sm:$0xff]
    %v3024 = vld [vmem:[#allocation6 + $0x18] sm:$0xff]
    %v3025 = vld [vmem:[#allocation6 + $0x20] sm:$0xff]
    %v3026 = vld [vmem:[#allocation6 + $0x28] sm:$0xff]
    %v3027 = vld [vmem:[#allocation6 + $0x30] sm:$0xff]
    %v3028 = vld [vmem:[#allocation6 + $0x38] sm:$0xff]
    %v3029 = vld [vmem:[#allocation6 + $0x40] sm:$0xff]
    %v3030 = vld [vmem:[#allocation6 + $0x48] sm:$0xff]
    %v3031 = vld [vmem:[#allocation6 + $0x50] sm:$0xff]
    %v3032 = vld [vmem:[#allocation6 + $0x58] sm:$0xff]
    %v3033 = vld [vmem:[#allocation6 + $0x60] sm:$0xff]
    %v3034 = vld [vmem:[#allocation6 + $0x68] sm:$0xff]
    %v3035 = vld [vmem:[#allocation6 + $0x70] sm:$0xff]
    %v3036 = vld [vmem:[#allocation6 + $0x78] sm:$0xff]
    %v3037 = vld [vmem:[%s17] sm:$0x1]
    %v3039 = vlaneseq
    %v3040 = vshrl.u32 %v3039, 7
    %v3041 = vsub.s32 0, %v3040
    %v3042 = vrot.slane %v3037, %v3041
    %3044 = vmatprep.subr.mxu0 0.0
    %3045 = vmatpush1.msra.mxu0 %v3021
    %3046 = vmatprep.subr.mxu0 0.0
    %3047 = vmatpush1.msra.mxu0 %v3022
    %3048 = vmatprep.subr.mxu0 0.0
    %3049 = vmatpush1.msra.mxu0 %v3023
    %3050 = vmatprep.subr.mxu0 0.0
    %3051 = vmatpush1.msra.mxu0 %v3024
    %3052 = vmatprep.subr.mxu0 0.0
    %3053 = vmatpush1.msra.mxu0 %v3025
    %3054 = vmatprep.subr.mxu0 0.0
    %3055 = vmatpush1.msra.mxu0 %v3026
    %3056 = vmatprep.subr.mxu0 0.0
    %3057 = vmatpush1.msra.mxu0 %v3027
    %3058 = vmatprep.subr.mxu0 0.0
    %3059 = vmatpush1.msra.mxu0 %v3028
    %3060 = vmatprep.subr.mxu0 0.0
    %3061 = vmatpush1.msra.mxu0 %v3029
    %3062 = vmatprep.subr.mxu0 0.0
    %3063 = vmatpush1.msra.mxu0 %v3030
    %3064 = vmatprep.subr.mxu0 0.0
    %3065 = vmatpush1.msra.mxu0 %v3031
    %3066 = vmatprep.subr.mxu0 0.0
    %3067 = vmatpush1.msra.mxu0 %v3032
    %3068 = vmatprep.subr.mxu0 0.0
    %3069 = vmatpush1.msra.mxu0 %v3033
    %3070 = vmatprep.subr.mxu0 0.0
    %3071 = vmatpush1.msra.mxu0 %v3034
    %3072 = vmatprep.subr.mxu0 0.0
    %3073 = vmatpush1.msra.mxu0 %v3035
    %3074 = vmatprep.subr.mxu0 0.0
    %3075 = vmatpush1.msra.mxu0 %v3036
    %3076 = vmatprep.subr.mxu0 0.0
    %3077 = vmatpush1.msra.mxu0 0.0
    %3078 = vmatprep.subr.mxu0 0.0
    %3079 = vmatpush1.msra.mxu0 0.0
    %3080 = vmatprep.subr.mxu0 0.0
    %3081 = vmatpush1.msra.mxu0 0.0
    %3082 = vmatprep.subr.mxu0 0.0
    %3083 = vmatpush1.msra.mxu0 0.0
    %3084 = vmatprep.subr.mxu0 0.0
    %3085 = vmatpush1.msra.mxu0 0.0
    %3086 = vmatprep.subr.mxu0 0.0
    %3087 = vmatpush1.msra.mxu0 0.0
    %3088 = vmatprep.subr.mxu0 0.0
    %3089 = vmatpush1.msra.mxu0 0.0
    %3090 = vmatprep.subr.mxu0 0.0
    %3091 = vmatpush1.msra.mxu0 0.0
    %3092 = vmatprep.subr.mxu0 0.0
    %3093 = vmatpush1.msra.mxu0 0.0
    %3094 = vmatprep.subr.mxu0 0.0
    %3095 = vmatpush1.msra.mxu0 0.0
    %3096 = vmatprep.subr.mxu0 0.0
    %3097 = vmatpush1.msra.mxu0 0.0
    %3098 = vmatprep.subr.mxu0 0.0
    %3099 = vmatpush1.msra.mxu0 0.0
    %3100 = vmatprep.subr.mxu0 0.0
    %3101 = vmatpush1.msra.mxu0 0.0
    %3102 = vmatprep.subr.mxu0 0.0
    %3103 = vmatpush1.msra.mxu0 0.0
    %3104 = vmatprep.subr.mxu0 0.0
    %3105 = vmatpush1.msra.mxu0 0.0
    %3106 = vmatprep.subr.mxu0 0.0
    %3107 = vmatpush1.msra.mxu0 0.0
    %3108 = vmatprep.mubr.f32.mxu0 0.0
    %3109 = vmatmul.mubr.f32.gmra.mrb[0].mxu0 %v3019
    %v3110 = vpop.f32.mrb[0].mxu0
    %v3111 = vadd.f32 %v3042, %v3110
    %v3112 = vpop.f32.mrb[0].mxu0
    %3113 = vmatprep.mubr.f32.mxu0 0.0
    %3114 = vmatmul.mubr.f32.gmra.mrb[0].mxu0 %v3020
    %v3115 = vpop.f32.mrb[0].mxu0
    %v3116 = vadd.f32 %v3042, %v3115
    %v3117 = vpop.f32.mrb[0].mxu0
    %3118 = vdwg.mxu0
    %v3119 = vadd.f32 %v2909, %v3111
    %v3120 = vadd.f32 %v2910, %v3116
    %v3121 = vld [vmem:[%s18] sm:$0x1]
    %v3122 = vld [vmem:[%s19] sm:$0x1]
    %v3123 = vsel %vm122, %v3119, 0.0
    %3124 = vadd.xlane.f32.xlu0 %v3123
    %v3125 = vpop.xlane.xlu0 %3124
    %v3126 = vsel %vm122, %v3120, 0.0
    %3127 = vadd.xlane.f32.xlu0 %v3126
    %v3128 = vpop.xlane.xlu0 %3127
    %v3129 = vmul.f32 %v3125, %v129
    %v3130 = vmul.f32 %v3128, %v129
    %v3131 = vsub.f32 %v3119, %v3129
    %v3132 = vsub.f32 %v3120, %v3130
    %v3133 = vmul.f32 %v3131, %v3131
    %v3134 = vmul.f32 %v3132, %v3132
    %v3135 = vsel %vm122, %v3133, 0.0
    %3136 = vadd.xlane.f32.xlu0 %v3135
    %v3137 = vpop.xlane.xlu0 %3136
    %v3138 = vsel %vm122, %v3134, 0.0
    %3139 = vadd.xlane.f32.xlu0 %v3138
    %v3140 = vpop.xlane.xlu0 %3139
    %v3141 = vmul.f32 %v3137, %v129
    %v3142 = vmul.f32 %v3140, %v129
    %v3143 = vadd.f32 %v3141, 1e-12
    %v3144 = vadd.f32 %v3142, 1e-12
    %v3145 = vrsqrt.pop %v3143
    %v3146 = vrsqrt.pop %v3144
    %v3147 = vmul.f32 %v3131, %v3145
    %v3148 = vmul.f32 %v3132, %v3146
    %v3150 = vlaneseq
    %v3151 = vshrl.u32 %v3150, 7
    %v3152 = vsub.s32 0, %v3151
    %v3153 = vrot.slane %v3121, %v3152
    %v3155 = vmul.f32 %v3147, %v3153
    %v3156 = vmul.f32 %v3148, %v3153
    %v3158 = vlaneseq
    %v3159 = vshrl.u32 %v3158, 7
    %v3160 = vsub.s32 0, %v3159
    %v3161 = vrot.slane %v3122, %v3160
    %v3163 = vadd.f32 %v3155, %v3161
    %v3164 = vadd.f32 %v3156, %v3161
    %s3165 = scalar_lea.vmem %s4, 128
    %v3166 = vld [vmem:[%s3165] sm:$0xff]
    %v3167 = vld [vmem:[%s3165 + $0x8] sm:$0xff]
    %v3168 = vld [vmem:[%s3165 + $0x10] sm:$0xff]
    %v3169 = vld [vmem:[%s3165 + $0x18] sm:$0xff]
    %s3170 = scalar_lea.vmem %s5, 4
    %v3171 = vld [vmem:[%s3170] sm:$0x1]
    %v3173 = vlaneseq
    %v3174 = vshrl.u32 %v3173, 7
    %v3175 = vsub.s32 0, %v3174
    %v3176 = vrot.slane %v3171, %v3175
    %v3179 = vsel %vm122, %v3163, 0
    %v3182 = vsel %vm122, %v3164, 0
    %3184 = vmatprep.subr.mxu0 0.0
    %3185 = vmatpush1.msra.mxu0 %v3166
    %3186 = vmatprep.subr.mxu0 0.0
    %3187 = vmatpush1.msra.mxu0 %v3167
    %3188 = vmatprep.subr.mxu0 0.0
    %3189 = vmatpush1.msra.mxu0 %v3168
    %3190 = vmatprep.subr.mxu0 0.0
    %3191 = vmatpush1.msra.mxu0 %v3169
    %3192 = vmatprep.subr.mxu0 0.0
    %3193 = vmatpush1.msra.mxu0 0.0
    %3194 = vmatprep.subr.mxu0 0.0
    %3195 = vmatpush1.msra.mxu0 0.0
    %3196 = vmatprep.subr.mxu0 0.0
    %3197 = vmatpush1.msra.mxu0 0.0
    %3198 = vmatprep.subr.mxu0 0.0
    %3199 = vmatpush1.msra.mxu0 0.0
    %3200 = vmatprep.subr.mxu0 0.0
    %3201 = vmatpush1.msra.mxu0 0.0
    %3202 = vmatprep.subr.mxu0 0.0
    %3203 = vmatpush1.msra.mxu0 0.0
    %3204 = vmatprep.subr.mxu0 0.0
    %3205 = vmatpush1.msra.mxu0 0.0
    %3206 = vmatprep.subr.mxu0 0.0
    %3207 = vmatpush1.msra.mxu0 0.0
    %3208 = vmatprep.subr.mxu0 0.0
    %3209 = vmatpush1.msra.mxu0 0.0
    %3210 = vmatprep.subr.mxu0 0.0
    %3211 = vmatpush1.msra.mxu0 0.0
    %3212 = vmatprep.subr.mxu0 0.0
    %3213 = vmatpush1.msra.mxu0 0.0
    %3214 = vmatprep.subr.mxu0 0.0
    %3215 = vmatpush1.msra.mxu0 0.0
    %3216 = vmatprep.subr.mxu0 0.0
    %3217 = vmatpush1.msra.mxu0 0.0
    %3218 = vmatprep.subr.mxu0 0.0
    %3219 = vmatpush1.msra.mxu0 0.0
    %3220 = vmatprep.subr.mxu0 0.0
    %3221 = vmatpush1.msra.mxu0 0.0
    %3222 = vmatprep.subr.mxu0 0.0
    %3223 = vmatpush1.msra.mxu0 0.0
    %3224 = vmatprep.subr.mxu0 0.0
    %3225 = vmatpush1.msra.mxu0 0.0
    %3226 = vmatprep.subr.mxu0 0.0
    %3227 = vmatpush1.msra.mxu0 0.0
    %3228 = vmatprep.subr.mxu0 0.0
    %3229 = vmatpush1.msra.mxu0 0.0
    %3230 = vmatprep.subr.mxu0 0.0
    %3231 = vmatpush1.msra.mxu0 0.0
    %3232 = vmatprep.subr.mxu0 0.0
    %3233 = vmatpush1.msra.mxu0 0.0
    %3234 = vmatprep.subr.mxu0 0.0
    %3235 = vmatpush1.msra.mxu0 0.0
    %3236 = vmatprep.subr.mxu0 0.0
    %3237 = vmatpush1.msra.mxu0 0.0
    %3238 = vmatprep.subr.mxu0 0.0
    %3239 = vmatpush1.msra.mxu0 0.0
    %3240 = vmatprep.subr.mxu0 0.0
    %3241 = vmatpush1.msra.mxu0 0.0
    %3242 = vmatprep.subr.mxu0 0.0
    %3243 = vmatpush1.msra.mxu0 0.0
    %3244 = vmatprep.subr.mxu0 0.0
    %3245 = vmatpush1.msra.mxu0 0.0
    %3246 = vmatprep.subr.mxu0 0.0
    %3247 = vmatpush1.msra.mxu0 0.0
    %3248 = vmatprep.mubr.f32.mxu0 0.0
    %3249 = vmatmul.mubr.f32.gmra.mrb[0].mxu0 %v3179
    %v3250 = vpop.f32.mrb[0].mxu0
    %v3251 = vadd.f32 %v3176, %v3250
    %v3252 = vpop.f32.mrb[0].mxu0
    %3253 = vmatprep.mubr.f32.mxu0 0.0
    %3254 = vmatmul.mubr.f32.gmra.mrb[0].mxu0 %v3182
    %v3255 = vpop.f32.mrb[0].mxu0
    %v3256 = vadd.f32 %v3176, %v3255
    %v3257 = vpop.f32.mrb[0].mxu0
    %3258 = vdwg.mxu0
    %s3259 = scalar_lea.vmem [#allocation2], 128
    %v3260 = vld [vmem:[%s3259] sm:$0xff]
    %v3261 = vld [vmem:[%s3259 + $0x8] sm:$0xff]
    %v3262 = vld [vmem:[%s3259 + $0x10] sm:$0xff]
    %v3263 = vld [vmem:[%s3259 + $0x18] sm:$0xff]
    %s3264 = scalar_lea.vmem %s7, 4
    %v3265 = vld [vmem:[%s3264] sm:$0x1]
    %v3267 = vlaneseq
    %v3268 = vshrl.u32 %v3267, 7
    %v3269 = vsub.s32 0, %v3268
    %v3270 = vrot.slane %v3265, %v3269
    %3272 = vmatprep.subr.mxu0 0.0
    %3273 = vmatpush1.msra.mxu0 %v3260
    %3274 = vmatprep.subr.mxu0 0.0
    %3275 = vmatpush1.msra.mxu0 %v3261
    %3276 = vmatprep.subr.mxu0 0.0
    %3277 = vmatpush1.msra.mxu0 %v3262
    %3278 = vmatprep.subr.mxu0 0.0
    %3279 = vmatpush1.msra.mxu0 %v3263
    %3280 = vmatprep.subr.mxu0 0.0
    %3281 = vmatpush1.msra.mxu0 0.0
    %3282 = vmatprep.subr.mxu0 0.0
    %3283 = vmatpush1.msra.mxu0 0.0
    %3284 = vmatprep.subr.mxu0 0.0
    %3285 = vmatpush1.msra.mxu0 0.0
    %3286 = vmatprep.subr.mxu0 0.0
    %3287 = vmatpush1.msra.mxu0 0.0
    %3288 = vmatprep.subr.mxu0 0.0
    %3289 = vmatpush1.msra.mxu0 0.0
    %3290 = vmatprep.subr.mxu0 0.0
    %3291 = vmatpush1.msra.mxu0 0.0
    %3292 = vmatprep.subr.mxu0 0.0
    %3293 = vmatpush1.msra.mxu0 0.0
    %3294 = vmatprep.subr.mxu0 0.0
    %3295 = vmatpush1.msra.mxu0 0.0
    %3296 = vmatprep.subr.mxu0 0.0
    %3297 = vmatpush1.msra.mxu0 0.0
    %3298 = vmatprep.subr.mxu0 0.0
    %3299 = vmatpush1.msra.mxu0 0.0
    %3300 = vmatprep.subr.mxu0 0.0
    %3301 = vmatpush1.msra.mxu0 0.0
    %3302 = vmatprep.subr.mxu0 0.0
    %3303 = vmatpush1.msra.mxu0 0.0
    %3304 = vmatprep.subr.mxu0 0.0
    %3305 = vmatpush1.msra.mxu0 0.0
    %3306 = vmatprep.subr.mxu0 0.0
    %3307 = vmatpush1.msra.mxu0 0.0
    %3308 = vmatprep.subr.mxu0 0.0
    %3309 = vmatpush1.msra.mxu0 0.0
    %3310 = vmatprep.subr.mxu0 0.0
    %3311 = vmatpush1.msra.mxu0 0.0
    %3312 = vmatprep.subr.mxu0 0.0
    %3313 = vmatpush1.msra.mxu0 0.0
    %3314 = vmatprep.subr.mxu0 0.0
    %3315 = vmatpush1.msra.mxu0 0.0
    %3316 = vmatprep.subr.mxu0 0.0
    %3317 = vmatpush1.msra.mxu0 0.0
    %3318 = vmatprep.subr.mxu0 0.0
    %3319 = vmatpush1.msra.mxu0 0.0
    %3320 = vmatprep.subr.mxu0 0.0
    %3321 = vmatpush1.msra.mxu0 0.0
    %3322 = vmatprep.subr.mxu0 0.0
    %3323 = vmatpush1.msra.mxu0 0.0
    %3324 = vmatprep.subr.mxu0 0.0
    %3325 = vmatpush1.msra.mxu0 0.0
    %3326 = vmatprep.subr.mxu0 0.0
    %3327 = vmatpush1.msra.mxu0 0.0
    %3328 = vmatprep.subr.mxu0 0.0
    %3329 = vmatpush1.msra.mxu0 0.0
    %3330 = vmatprep.subr.mxu0 0.0
    %3331 = vmatpush1.msra.mxu0 0.0
    %3332 = vmatprep.subr.mxu0 0.0
    %3333 = vmatpush1.msra.mxu0 0.0
    %3334 = vmatprep.subr.mxu0 0.0
    %3335 = vmatpush1.msra.mxu0 0.0
    %3336 = vmatprep.mubr.f32.mxu0 0.0
    %3337 = vmatmul.mubr.f32.gmra.mrb[0].mxu0 %v3179
    %v3338 = vpop.f32.mrb[0].mxu0
    %v3339 = vadd.f32 %v3270, %v3338
    %v3340 = vpop.f32.mrb[0].mxu0
    %3341 = vmatprep.mubr.f32.mxu0 0.0
    %3342 = vmatmul.mubr.f32.gmra.mrb[0].mxu0 %v3182
    %v3343 = vpop.f32.mrb[0].mxu0
    %v3344 = vadd.f32 %v3270, %v3343
    %v3345 = vpop.f32.mrb[0].mxu0
    %3346 = vdwg.mxu0
    %s3347 = scalar_lea.vmem [#allocation4], 128
    %v3348 = vld [vmem:[%s3347] sm:$0xff]
    %v3349 = vld [vmem:[%s3347 + $0x8] sm:$0xff]
    %v3350 = vld [vmem:[%s3347 + $0x10] sm:$0xff]
    %v3351 = vld [vmem:[%s3347 + $0x18] sm:$0xff]
    %s3352 = scalar_lea.vmem %s9, 4
    %v3353 = vld [vmem:[%s3352] sm:$0x1]
    %v3355 = vlaneseq
    %v3356 = vshrl.u32 %v3355, 7
    %v3357 = vsub.s32 0, %v3356
    %v3358 = vrot.slane %v3353, %v3357
    %3360 = vmatprep.subr.mxu0 0.0
    %3361 = vmatpush1.msra.mxu0 %v3348
    %3362 = vmatprep.subr.mxu0 0.0
    %3363 = vmatpush1.msra.mxu0 %v3349
    %3364 = vmatprep.subr.mxu0 0.0
    %3365 = vmatpush1.msra.mxu0 %v3350
    %3366 = vmatprep.subr.mxu0 0.0
    %3367 = vmatpush1.msra.mxu0 %v3351
    %3368 = vmatprep.subr.mxu0 0.0
    %3369 = vmatpush1.msra.mxu0 0.0
    %3370 = vmatprep.subr.mxu0 0.0
    %3371 = vmatpush1.msra.mxu0 0.0
    %3372 = vmatprep.subr.mxu0 0.0
    %3373 = vmatpush1.msra.mxu0 0.0
    %3374 = vmatprep.subr.mxu0 0.0
    %3375 = vmatpush1.msra.mxu0 0.0
    %3376 = vmatprep.subr.mxu0 0.0
    %3377 = vmatpush1.msra.mxu0 0.0
    %3378 = vmatprep.subr.mxu0 0.0
    %3379 = vmatpush1.msra.mxu0 0.0
    %3380 = vmatprep.subr.mxu0 0.0
    %3381 = vmatpush1.msra.mxu0 0.0
    %3382 = vmatprep.subr.mxu0 0.0
    %3383 = vmatpush1.msra.mxu0 0.0
    %3384 = vmatprep.subr.mxu0 0.0
    %3385 = vmatpush1.msra.mxu0 0.0
    %3386 = vmatprep.subr.mxu0 0.0
    %3387 = vmatpush1.msra.mxu0 0.0
    %3388 = vmatprep.subr.mxu0 0.0
    %3389 = vmatpush1.msra.mxu0 0.0
    %3390 = vmatprep.subr.mxu0 0.0
    %3391 = vmatpush1.msra.mxu0 0.0
    %3392 = vmatprep.subr.mxu0 0.0
    %3393 = vmatpush1.msra.mxu0 0.0
    %3394 = vmatprep.subr.mxu0 0.0
    %3395 = vmatpush1.msra.mxu0 0.0
    %3396 = vmatprep.subr.mxu0 0.0
    %3397 = vmatpush1.msra.mxu0 0.0
    %3398 = vmatprep.subr.mxu0 0.0
    %3399 = vmatpush1.msra.mxu0 0.0
    %3400 = vmatprep.subr.mxu0 0.0
    %3401 = vmatpush1.msra.mxu0 0.0
    %3402 = vmatprep.subr.mxu0 0.0
    %3403 = vmatpush1.msra.mxu0 0.0
    %3404 = vmatprep.subr.mxu0 0.0
    %3405 = vmatpush1.msra.mxu0 0.0
    %3406 = vmatprep.subr.mxu0 0.0
    %3407 = vmatpush1.msra.mxu0 0.0
    %3408 = vmatprep.subr.mxu0 0.0
    %3409 = vmatpush1.msra.mxu0 0.0
    %3410 = vmatprep.subr.mxu0 0.0
    %3411 = vmatpush1.msra.mxu0 0.0
    %3412 = vmatprep.subr.mxu0 0.0
    %3413 = vmatpush1.msra.mxu0 0.0
    %3414 = vmatprep.subr.mxu0 0.0
    %3415 = vmatpush1.msra.mxu0 0.0
    %3416 = vmatprep.subr.mxu0 0.0
    %3417 = vmatpush1.msra.mxu0 0.0
    %3418 = vmatprep.subr.mxu0 0.0
    %3419 = vmatpush1.msra.mxu0 0.0
    %3420 = vmatprep.subr.mxu0 0.0
    %3421 = vmatpush1.msra.mxu0 0.0
    %3422 = vmatprep.subr.mxu0 0.0
    %3423 = vmatpush1.msra.mxu0 0.0
    %3424 = vmatprep.mubr.f32.mxu0 0.0
    %3425 = vmatmul.mubr.f32.gmra.mrb[0].mxu0 %v3179
    %v3426 = vpop.f32.mrb[0].mxu0
    %v3427 = vadd.f32 %v3358, %v3426
    %v3428 = vpop.f32.mrb[0].mxu0
    %3429 = vmatprep.mubr.f32.mxu0 0.0
    %3430 = vmatmul.mubr.f32.gmra.mrb[0].mxu0 %v3182
    %v3431 = vpop.f32.mrb[0].mxu0
    %v3432 = vadd.f32 %v3358, %v3431
    %v3433 = vpop.f32.mrb[0].mxu0
    %3434 = vdwg.mxu0
    %v3436 = vsel %vm448, %v3251, 0
    %v3439 = vsel %vm448, %v3339, 0
    %3441 = vmatprep.subr.mxu0 0.0
    %3442 = vmatpush1.xpose.msra.mxu0 %v3439
    %3443 = vmatprep.subr.mxu0 0.0
    %3444 = vmatpush1.xpose.msra.mxu0 0.0
    %3445 = vmatprep.subr.mxu0 0.0
    %3446 = vmatpush1.xpose.msra.mxu0 0.0
    %3447 = vmatprep.subr.mxu0 0.0
    %3448 = vmatpush1.xpose.msra.mxu0 0.0
    %3449 = vmatprep.subr.mxu0 0.0
    %3450 = vmatpush1.xpose.msra.mxu0 0.0
    %3451 = vmatprep.subr.mxu0 0.0
    %3452 = vmatpush1.xpose.msra.mxu0 0.0
    %3453 = vmatprep.subr.mxu0 0.0
    %3454 = vmatpush1.xpose.msra.mxu0 0.0
    %3455 = vmatprep.subr.mxu0 0.0
    %3456 = vmatpush1.xpose.msra.mxu0 0.0
    %3457 = vmatprep.subr.mxu0 0.0
    %3458 = vmatpush1.xpose.msra.mxu0 0.0
    %3459 = vmatprep.subr.mxu0 0.0
    %3460 = vmatpush1.xpose.msra.mxu0 0.0
    %3461 = vmatprep.subr.mxu0 0.0
    %3462 = vmatpush1.xpose.msra.mxu0 0.0
    %3463 = vmatprep.subr.mxu0 0.0
    %3464 = vmatpush1.xpose.msra.mxu0 0.0
    %3465 = vmatprep.subr.mxu0 0.0
    %3466 = vmatpush1.xpose.msra.mxu0 0.0
    %3467 = vmatprep.subr.mxu0 0.0
    %3468 = vmatpush1.xpose.msra.mxu0 0.0
    %3469 = vmatprep.subr.mxu0 0.0
    %3470 = vmatpush1.xpose.msra.mxu0 0.0
    %3471 = vmatprep.subr.mxu0 0.0
    %3472 = vmatpush1.xpose.msra.mxu0 0.0
    %3473 = vmatprep.subr.mxu0 0.0
    %3474 = vmatpush1.xpose.msra.mxu0 0.0
    %3475 = vmatprep.subr.mxu0 0.0
    %3476 = vmatpush1.xpose.msra.mxu0 0.0
    %3477 = vmatprep.subr.mxu0 0.0
    %3478 = vmatpush1.xpose.msra.mxu0 0.0
    %3479 = vmatprep.subr.mxu0 0.0
    %3480 = vmatpush1.xpose.msra.mxu0 0.0
    %3481 = vmatprep.subr.mxu0 0.0
    %3482 = vmatpush1.xpose.msra.mxu0 0.0
    %3483 = vmatprep.subr.mxu0 0.0
    %3484 = vmatpush1.xpose.msra.mxu0 0.0
    %3485 = vmatprep.subr.mxu0 0.0
    %3486 = vmatpush1.xpose.msra.mxu0 0.0
    %3487 = vmatprep.subr.mxu0 0.0
    %3488 = vmatpush1.xpose.msra.mxu0 0.0
    %3489 = vmatprep.subr.mxu0 0.0
    %3490 = vmatpush1.xpose.msra.mxu0 0.0
    %3491 = vmatprep.subr.mxu0 0.0
    %3492 = vmatpush1.xpose.msra.mxu0 0.0
    %3493 = vmatprep.subr.mxu0 0.0
    %3494 = vmatpush1.xpose.msra.mxu0 0.0
    %3495 = vmatprep.subr.mxu0 0.0
    %3496 = vmatpush1.xpose.msra.mxu0 0.0
    %3497 = vmatprep.subr.mxu0 0.0
    %3498 = vmatpush1.xpose.msra.mxu0 0.0
    %3499 = vmatprep.subr.mxu0 0.0
    %3500 = vmatpush1.xpose.msra.mxu0 0.0
    %3501 = vmatprep.subr.mxu0 0.0
    %3502 = vmatpush1.xpose.msra.mxu0 0.0
    %3503 = vmatprep.subr.mxu0 0.0
    %3504 = vmatpush1.xpose.msra.mxu0 0.0
    %3505 = vmatprep.mubr.f32.mxu0 0.0
    %3506 = vmatmul.mubr.f32.gmra.mrb[0].mxu0 %v3436
    %v3507 = vpop.f32.mrb[0].mxu0
    %v3508 = vadd.f32 %v441, %v3507
    %v3509 = vpop.f32.mrb[0].mxu0
    %3510 = vdwg.mxu0
    %v3512 = vsel %vm448, %v3256, 0
    %v3515 = vsel %vm448, %v3344, 0
    %3517 = vmatprep.subr.mxu0 0.0
    %3518 = vmatpush1.xpose.msra.mxu0 %v3515
    %3519 = vmatprep.subr.mxu0 0.0
    %3520 = vmatpush1.xpose.msra.mxu0 0.0
    %3521 = vmatprep.subr.mxu0 0.0
    %3522 = vmatpush1.xpose.msra.mxu0 0.0
    %3523 = vmatprep.subr.mxu0 0.0
    %3524 = vmatpush1.xpose.msra.mxu0 0.0
    %3525 = vmatprep.subr.mxu0 0.0
    %3526 = vmatpush1.xpose.msra.mxu0 0.0
    %3527 = vmatprep.subr.mxu0 0.0
    %3528 = vmatpush1.xpose.msra.mxu0 0.0
    %3529 = vmatprep.subr.mxu0 0.0
    %3530 = vmatpush1.xpose.msra.mxu0 0.0
    %3531 = vmatprep.subr.mxu0 0.0
    %3532 = vmatpush1.xpose.msra.mxu0 0.0
    %3533 = vmatprep.subr.mxu0 0.0
    %3534 = vmatpush1.xpose.msra.mxu0 0.0
    %3535 = vmatprep.subr.mxu0 0.0
    %3536 = vmatpush1.xpose.msra.mxu0 0.0
    %3537 = vmatprep.subr.mxu0 0.0
    %3538 = vmatpush1.xpose.msra.mxu0 0.0
    %3539 = vmatprep.subr.mxu0 0.0
    %3540 = vmatpush1.xpose.msra.mxu0 0.0
    %3541 = vmatprep.subr.mxu0 0.0
    %3542 = vmatpush1.xpose.msra.mxu0 0.0
    %3543 = vmatprep.subr.mxu0 0.0
    %3544 = vmatpush1.xpose.msra.mxu0 0.0
    %3545 = vmatprep.subr.mxu0 0.0
    %3546 = vmatpush1.xpose.msra.mxu0 0.0
    %3547 = vmatprep.subr.mxu0 0.0
    %3548 = vmatpush1.xpose.msra.mxu0 0.0
    %3549 = vmatprep.subr.mxu0 0.0
    %3550 = vmatpush1.xpose.msra.mxu0 0.0
    %3551 = vmatprep.subr.mxu0 0.0
    %3552 = vmatpush1.xpose.msra.mxu0 0.0
    %3553 = vmatprep.subr.mxu0 0.0
    %3554 = vmatpush1.xpose.msra.mxu0 0.0
    %3555 = vmatprep.subr.mxu0 0.0
    %3556 = vmatpush1.xpose.msra.mxu0 0.0
    %3557 = vmatprep.subr.mxu0 0.0
    %3558 = vmatpush1.xpose.msra.mxu0 0.0
    %3559 = vmatprep.subr.mxu0 0.0
    %3560 = vmatpush1.xpose.msra.mxu0 0.0
    %3561 = vmatprep.subr.mxu0 0.0
    %3562 = vmatpush1.xpose.msra.mxu0 0.0
    %3563 = vmatprep.subr.mxu0 0.0
    %3564 = vmatpush1.xpose.msra.mxu0 0.0
    %3565 = vmatprep.subr.mxu0 0.0
    %3566 = vmatpush1.xpose.msra.mxu0 0.0
    %3567 = vmatprep.subr.mxu0 0.0
    %3568 = vmatpush1.xpose.msra.mxu0 0.0
    %3569 = vmatprep.subr.mxu0 0.0
    %3570 = vmatpush1.xpose.msra.mxu0 0.0
    %3571 = vmatprep.subr.mxu0 0.0
    %3572 = vmatpush1.xpose.msra.mxu0 0.0
    %3573 = vmatprep.subr.mxu0 0.0
    %3574 = vmatpush1.xpose.msra.mxu0 0.0
    %3575 = vmatprep.subr.mxu0 0.0
    %3576 = vmatpush1.xpose.msra.mxu0 0.0
    %3577 = vmatprep.subr.mxu0 0.0
    %3578 = vmatpush1.xpose.msra.mxu0 0.0
    %3579 = vmatprep.subr.mxu0 0.0
    %3580 = vmatpush1.xpose.msra.mxu0 0.0
    %3581 = vmatprep.mubr.f32.mxu0 0.0
    %3582 = vmatmul.mubr.f32.gmra.mrb[0].mxu0 %v3512
    %v3583 = vpop.f32.mrb[0].mxu0
    %v3584 = vadd.f32 %v445, %v3583
    %v3585 = vpop.f32.mrb[0].mxu0
    %3586 = vdwg.mxu0
    %v3587 = vsel %vm448, %v3508, -inf
    %3588 = vmax.xlane.f32.xlu0 %v3587
    %v3589 = vpop.xlane.xlu0 %3588
    %v3590 = vsel %vm448, %v3584, -inf
    %3591 = vmax.xlane.f32.xlu0 %v3590
    %v3592 = vpop.xlane.xlu0 %3591
    %v3593 = vsub.f32 %v3508, %v3589
    %v3594 = vsub.f32 %v3584, %v3592
    %v3595 = vmul.f32 %v3593, 1.442695
    %v3596 = vpow.pop %v3595
    %v3597 = vmul.f32 %v3594, 1.442695
    %v3598 = vpow.pop %v3597
    %v3599 = vsel %vm448, %v3596, 0.0
    %3600 = vadd.xlane.f32.xlu0 %v3599
    %v3601 = vpop.xlane.xlu0 %3600
    %v3602 = vsel %vm448, %v3598, 0.0
    %3603 = vadd.xlane.f32.xlu0 %v3602
    %v3604 = vpop.xlane.xlu0 %3603
    %v3605 = vrcp.pop %v3601
    %v3606 = vrcp.pop %v3604
    %v3607 = vmul.f32 %v3596, %v3605
    %v3608 = vmul.f32 %v3598, %v3606
    %v3610 = vsel %vm448, %v3607, 0
    %3612 = vmatprep.subr.mxu0 0.0
    %3613 = vmatpush1.msra.mxu0 %v3427
    %3614 = vmatprep.subr.mxu0 0.0
    %3615 = vmatpush1.msra.mxu0 0.0
    %3616 = vmatprep.subr.mxu0 0.0
    %3617 = vmatpush1.msra.mxu0 0.0
    %3618 = vmatprep.subr.mxu0 0.0
    %3619 = vmatpush1.msra.mxu0 0.0
    %3620 = vmatprep.subr.mxu0 0.0
    %3621 = vmatpush1.msra.mxu0 0.0
    %3622 = vmatprep.subr.mxu0 0.0
    %3623 = vmatpush1.msra.mxu0 0.0
    %3624 = vmatprep.subr.mxu0 0.0
    %3625 = vmatpush1.msra.mxu0 0.0
    %3626 = vmatprep.subr.mxu0 0.0
    %3627 = vmatpush1.msra.mxu0 0.0
    %3628 = vmatprep.subr.mxu0 0.0
    %3629 = vmatpush1.msra.mxu0 0.0
    %3630 = vmatprep.subr.mxu0 0.0
    %3631 = vmatpush1.msra.mxu0 0.0
    %3632 = vmatprep.subr.mxu0 0.0
    %3633 = vmatpush1.msra.mxu0 0.0
    %3634 = vmatprep.subr.mxu0 0.0
    %3635 = vmatpush1.msra.mxu0 0.0
    %3636 = vmatprep.subr.mxu0 0.0
    %3637 = vmatpush1.msra.mxu0 0.0
    %3638 = vmatprep.subr.mxu0 0.0
    %3639 = vmatpush1.msra.mxu0 0.0
    %3640 = vmatprep.subr.mxu0 0.0
    %3641 = vmatpush1.msra.mxu0 0.0
    %3642 = vmatprep.subr.mxu0 0.0
    %3643 = vmatpush1.msra.mxu0 0.0
    %3644 = vmatprep.subr.mxu0 0.0
    %3645 = vmatpush1.msra.mxu0 0.0
    %3646 = vmatprep.subr.mxu0 0.0
    %3647 = vmatpush1.msra.mxu0 0.0
    %3648 = vmatprep.subr.mxu0 0.0
    %3649 = vmatpush1.msra.mxu0 0.0
    %3650 = vmatprep.subr.mxu0 0.0
    %3651 = vmatpush1.msra.mxu0 0.0
    %3652 = vmatprep.subr.mxu0 0.0
    %3653 = vmatpush1.msra.mxu0 0.0
    %3654 = vmatprep.subr.mxu0 0.0
    %3655 = vmatpush1.msra.mxu0 0.0
    %3656 = vmatprep.subr.mxu0 0.0
    %3657 = vmatpush1.msra.mxu0 0.0
    %3658 = vmatprep.subr.mxu0 0.0
    %3659 = vmatpush1.msra.mxu0 0.0
    %3660 = vmatprep.subr.mxu0 0.0
    %3661 = vmatpush1.msra.mxu0 0.0
    %3662 = vmatprep.subr.mxu0 0.0
    %3663 = vmatpush1.msra.mxu0 0.0
    %3664 = vmatprep.subr.mxu0 0.0
    %3665 = vmatpush1.msra.mxu0 0.0
    %3666 = vmatprep.subr.mxu0 0.0
    %3667 = vmatpush1.msra.mxu0 0.0
    %3668 = vmatprep.subr.mxu0 0.0
    %3669 = vmatpush1.msra.mxu0 0.0
    %3670 = vmatprep.subr.mxu0 0.0
    %3671 = vmatpush1.msra.mxu0 0.0
    %3672 = vmatprep.subr.mxu0 0.0
    %3673 = vmatpush1.msra.mxu0 0.0
    %3674 = vmatprep.subr.mxu0 0.0
    %3675 = vmatpush1.msra.mxu0 0.0
    %3676 = vmatprep.mubr.f32.mxu0 0.0
    %3677 = vmatmul.mubr.f32.gmra.mrb[0].mxu0 %v3610
    %v3678 = vpop.f32.mrb[0].mxu0
    %v3679 = vadd.f32 0.0, %v3678
    %v3680 = vpop.f32.mrb[0].mxu0
    %3681 = vdwg.mxu0
    %v3683 = vsel %vm448, %v3608, 0
    %3685 = vmatprep.subr.mxu0 0.0
    %3686 = vmatpush1.msra.mxu0 %v3432
    %3687 = vmatprep.subr.mxu0 0.0
    %3688 = vmatpush1.msra.mxu0 0.0
    %3689 = vmatprep.subr.mxu0 0.0
    %3690 = vmatpush1.msra.mxu0 0.0
    %3691 = vmatprep.subr.mxu0 0.0
    %3692 = vmatpush1.msra.mxu0 0.0
    %3693 = vmatprep.subr.mxu0 0.0
    %3694 = vmatpush1.msra.mxu0 0.0
    %3695 = vmatprep.subr.mxu0 0.0
    %3696 = vmatpush1.msra.mxu0 0.0
    %3697 = vmatprep.subr.mxu0 0.0
    %3698 = vmatpush1.msra.mxu0 0.0
    %3699 = vmatprep.subr.mxu0 0.0
    %3700 = vmatpush1.msra.mxu0 0.0
    %3701 = vmatprep.subr.mxu0 0.0
    %3702 = vmatpush1.msra.mxu0 0.0
    %3703 = vmatprep.subr.mxu0 0.0
    %3704 = vmatpush1.msra.mxu0 0.0
    %3705 = vmatprep.subr.mxu0 0.0
    %3706 = vmatpush1.msra.mxu0 0.0
    %3707 = vmatprep.subr.mxu0 0.0
    %3708 = vmatpush1.msra.mxu0 0.0
    %3709 = vmatprep.subr.mxu0 0.0
    %3710 = vmatpush1.msra.mxu0 0.0
    %3711 = vmatprep.subr.mxu0 0.0
    %3712 = vmatpush1.msra.mxu0 0.0
    %3713 = vmatprep.subr.mxu0 0.0
    %3714 = vmatpush1.msra.mxu0 0.0
    %3715 = vmatprep.subr.mxu0 0.0
    %3716 = vmatpush1.msra.mxu0 0.0
    %3717 = vmatprep.subr.mxu0 0.0
    %3718 = vmatpush1.msra.mxu0 0.0
    %3719 = vmatprep.subr.mxu0 0.0
    %3720 = vmatpush1.msra.mxu0 0.0
    %3721 = vmatprep.subr.mxu0 0.0
    %3722 = vmatpush1.msra.mxu0 0.0
    %3723 = vmatprep.subr.mxu0 0.0
    %3724 = vmatpush1.msra.mxu0 0.0
    %3725 = vmatprep.subr.mxu0 0.0
    %3726 = vmatpush1.msra.mxu0 0.0
    %3727 = vmatprep.subr.mxu0 0.0
    %3728 = vmatpush1.msra.mxu0 0.0
    %3729 = vmatprep.subr.mxu0 0.0
    %3730 = vmatpush1.msra.mxu0 0.0
    %3731 = vmatprep.subr.mxu0 0.0
    %3732 = vmatpush1.msra.mxu0 0.0
    %3733 = vmatprep.subr.mxu0 0.0
    %3734 = vmatpush1.msra.mxu0 0.0
    %3735 = vmatprep.subr.mxu0 0.0
    %3736 = vmatpush1.msra.mxu0 0.0
    %3737 = vmatprep.subr.mxu0 0.0
    %3738 = vmatpush1.msra.mxu0 0.0
    %3739 = vmatprep.subr.mxu0 0.0
    %3740 = vmatpush1.msra.mxu0 0.0
    %3741 = vmatprep.subr.mxu0 0.0
    %3742 = vmatpush1.msra.mxu0 0.0
    %3743 = vmatprep.subr.mxu0 0.0
    %3744 = vmatpush1.msra.mxu0 0.0
    %3745 = vmatprep.subr.mxu0 0.0
    %3746 = vmatpush1.msra.mxu0 0.0
    %3747 = vmatprep.subr.mxu0 0.0
    %3748 = vmatpush1.msra.mxu0 0.0
    %3749 = vmatprep.mubr.f32.mxu0 0.0
    %3750 = vmatmul.mubr.f32.gmra.mrb[0].mxu0 %v3683
    %v3751 = vpop.f32.mrb[0].mxu0
    %v3752 = vadd.f32 0.0, %v3751
    %v3753 = vpop.f32.mrb[0].mxu0
    %3754 = vdwg.mxu0
    %s3755 = scalar_lea.vmem %s10, 32
    %v3756 = vld [vmem:[%s3755] sm:$0xff]
    %s3757 = scalar_lea.vmem %s4, 160
    %v3758 = vld [vmem:[%s3757] sm:$0xff]
    %v3759 = vld [vmem:[%s3757 + $0x8] sm:$0xff]
    %v3760 = vld [vmem:[%s3757 + $0x10] sm:$0xff]
    %v3761 = vld [vmem:[%s3757 + $0x18] sm:$0xff]
    %s3762 = scalar_lea.vmem %s5, 5
    %v3763 = vld [vmem:[%s3762] sm:$0x1]
    %v3765 = vlaneseq
    %v3766 = vshrl.u32 %v3765, 7
    %v3767 = vsub.s32 0, %v3766
    %v3768 = vrot.slane %v3763, %v3767
    %3770 = vmatprep.subr.mxu0 0.0
    %3771 = vmatpush1.msra.mxu0 %v3758
    %3772 = vmatprep.subr.mxu0 0.0
    %3773 = vmatpush1.msra.mxu0 %v3759
    %3774 = vmatprep.subr.mxu0 0.0
    %3775 = vmatpush1.msra.mxu0 %v3760
    %3776 = vmatprep.subr.mxu0 0.0
    %3777 = vmatpush1.msra.mxu0 %v3761
    %3778 = vmatprep.subr.mxu0 0.0
    %3779 = vmatpush1.msra.mxu0 0.0
    %3780 = vmatprep.subr.mxu0 0.0
    %3781 = vmatpush1.msra.mxu0 0.0
    %3782 = vmatprep.subr.mxu0 0.0
    %3783 = vmatpush1.msra.mxu0 0.0
    %3784 = vmatprep.subr.mxu0 0.0
    %3785 = vmatpush1.msra.mxu0 0.0
    %3786 = vmatprep.subr.mxu0 0.0
    %3787 = vmatpush1.msra.mxu0 0.0
    %3788 = vmatprep.subr.mxu0 0.0
    %3789 = vmatpush1.msra.mxu0 0.0
    %3790 = vmatprep.subr.mxu0 0.0
    %3791 = vmatpush1.msra.mxu0 0.0
    %3792 = vmatprep.subr.mxu0 0.0
    %3793 = vmatpush1.msra.mxu0 0.0
    %3794 = vmatprep.subr.mxu0 0.0
    %3795 = vmatpush1.msra.mxu0 0.0
    %3796 = vmatprep.subr.mxu0 0.0
    %3797 = vmatpush1.msra.mxu0 0.0
    %3798 = vmatprep.subr.mxu0 0.0
    %3799 = vmatpush1.msra.mxu0 0.0
    %3800 = vmatprep.subr.mxu0 0.0
    %3801 = vmatpush1.msra.mxu0 0.0
    %3802 = vmatprep.subr.mxu0 0.0
    %3803 = vmatpush1.msra.mxu0 0.0
    %3804 = vmatprep.subr.mxu0 0.0
    %3805 = vmatpush1.msra.mxu0 0.0
    %3806 = vmatprep.subr.mxu0 0.0
    %3807 = vmatpush1.msra.mxu0 0.0
    %3808 = vmatprep.subr.mxu0 0.0
    %3809 = vmatpush1.msra.mxu0 0.0
    %3810 = vmatprep.subr.mxu0 0.0
    %3811 = vmatpush1.msra.mxu0 0.0
    %3812 = vmatprep.subr.mxu0 0.0
    %3813 = vmatpush1.msra.mxu0 0.0
    %3814 = vmatprep.subr.mxu0 0.0
    %3815 = vmatpush1.msra.mxu0 0.0
    %3816 = vmatprep.subr.mxu0 0.0
    %3817 = vmatpush1.msra.mxu0 0.0
    %3818 = vmatprep.subr.mxu0 0.0
    %3819 = vmatpush1.msra.mxu0 0.0
    %3820 = vmatprep.subr.mxu0 0.0
    %3821 = vmatpush1.msra.mxu0 0.0
    %3822 = vmatprep.subr.mxu0 0.0
    %3823 = vmatpush1.msra.mxu0 0.0
    %3824 = vmatprep.subr.mxu0 0.0
    %3825 = vmatpush1.msra.mxu0 0.0
    %3826 = vmatprep.subr.mxu0 0.0
    %3827 = vmatpush1.msra.mxu0 0.0
    %3828 = vmatprep.subr.mxu0 0.0
    %3829 = vmatpush1.msra.mxu0 0.0
    %3830 = vmatprep.subr.mxu0 0.0
    %3831 = vmatpush1.msra.mxu0 0.0
    %3832 = vmatprep.subr.mxu0 0.0
    %3833 = vmatpush1.msra.mxu0 0.0
    %3834 = vmatprep.mubr.f32.mxu0 0.0
    %3835 = vmatmul.mubr.f32.gmra.mrb[0].mxu0 %v3179
    %v3836 = vpop.f32.mrb[0].mxu0
    %v3837 = vadd.f32 %v3768, %v3836
    %v3838 = vpop.f32.mrb[0].mxu0
    %3839 = vmatprep.mubr.f32.mxu0 0.0
    %3840 = vmatmul.mubr.f32.gmra.mrb[0].mxu0 %v3182
    %v3841 = vpop.f32.mrb[0].mxu0
    %v3842 = vadd.f32 %v3768, %v3841
    %v3843 = vpop.f32.mrb[0].mxu0
    %3844 = vdwg.mxu0
    %s3845 = scalar_lea.vmem [#allocation2], 160
    %v3846 = vld [vmem:[%s3845] sm:$0xff]
    %v3847 = vld [vmem:[%s3845 + $0x8] sm:$0xff]
    %v3848 = vld [vmem:[%s3845 + $0x10] sm:$0xff]
    %v3849 = vld [vmem:[%s3845 + $0x18] sm:$0xff]
    %s3850 = scalar_lea.vmem %s7, 5
    %v3851 = vld [vmem:[%s3850] sm:$0x1]
    %v3853 = vlaneseq
    %v3854 = vshrl.u32 %v3853, 7
    %v3855 = vsub.s32 0, %v3854
    %v3856 = vrot.slane %v3851, %v3855
    %3858 = vmatprep.subr.mxu0 0.0
    %3859 = vmatpush1.msra.mxu0 %v3846
    %3860 = vmatprep.subr.mxu0 0.0
    %3861 = vmatpush1.msra.mxu0 %v3847
    %3862 = vmatprep.subr.mxu0 0.0
    %3863 = vmatpush1.msra.mxu0 %v3848
    %3864 = vmatprep.subr.mxu0 0.0
    %3865 = vmatpush1.msra.mxu0 %v3849
    %3866 = vmatprep.subr.mxu0 0.0
    %3867 = vmatpush1.msra.mxu0 0.0
    %3868 = vmatprep.subr.mxu0 0.0
    %3869 = vmatpush1.msra.mxu0 0.0
    %3870 = vmatprep.subr.mxu0 0.0
    %3871 = vmatpush1.msra.mxu0 0.0
    %3872 = vmatprep.subr.mxu0 0.0
    %3873 = vmatpush1.msra.mxu0 0.0
    %3874 = vmatprep.subr.mxu0 0.0
    %3875 = vmatpush1.msra.mxu0 0.0
    %3876 = vmatprep.subr.mxu0 0.0
    %3877 = vmatpush1.msra.mxu0 0.0
    %3878 = vmatprep.subr.mxu0 0.0
    %3879 = vmatpush1.msra.mxu0 0.0
    %3880 = vmatprep.subr.mxu0 0.0
    %3881 = vmatpush1.msra.mxu0 0.0
    %3882 = vmatprep.subr.mxu0 0.0
    %3883 = vmatpush1.msra.mxu0 0.0
    %3884 = vmatprep.subr.mxu0 0.0
    %3885 = vmatpush1.msra.mxu0 0.0
    %3886 = vmatprep.subr.mxu0 0.0
    %3887 = vmatpush1.msra.mxu0 0.0
    %3888 = vmatprep.subr.mxu0 0.0
    %3889 = vmatpush1.msra.mxu0 0.0
    %3890 = vmatprep.subr.mxu0 0.0
    %3891 = vmatpush1.msra.mxu0 0.0
    %3892 = vmatprep.subr.mxu0 0.0
    %3893 = vmatpush1.msra.mxu0 0.0
    %3894 = vmatprep.subr.mxu0 0.0
    %3895 = vmatpush1.msra.mxu0 0.0
    %3896 = vmatprep.subr.mxu0 0.0
    %3897 = vmatpush1.msra.mxu0 0.0
    %3898 = vmatprep.subr.mxu0 0.0
    %3899 = vmatpush1.msra.mxu0 0.0
    %3900 = vmatprep.subr.mxu0 0.0
    %3901 = vmatpush1.msra.mxu0 0.0
    %3902 = vmatprep.subr.mxu0 0.0
    %3903 = vmatpush1.msra.mxu0 0.0
    %3904 = vmatprep.subr.mxu0 0.0
    %3905 = vmatpush1.msra.mxu0 0.0
    %3906 = vmatprep.subr.mxu0 0.0
    %3907 = vmatpush1.msra.mxu0 0.0
    %3908 = vmatprep.subr.mxu0 0.0
    %3909 = vmatpush1.msra.mxu0 0.0
    %3910 = vmatprep.subr.mxu0 0.0
    %3911 = vmatpush1.msra.mxu0 0.0
    %3912 = vmatprep.subr.mxu0 0.0
    %3913 = vmatpush1.msra.mxu0 0.0
    %3914 = vmatprep.subr.mxu0 0.0
    %3915 = vmatpush1.msra.mxu0 0.0
    %3916 = vmatprep.subr.mxu0 0.0
    %3917 = vmatpush1.msra.mxu0 0.0
    %3918 = vmatprep.subr.mxu0 0.0
    %3919 = vmatpush1.msra.mxu0 0.0
    %3920 = vmatprep.subr.mxu0 0.0
    %3921 = vmatpush1.msra.mxu0 0.0
    %3922 = vmatprep.mubr.f32.mxu0 0.0
    %3923 = vmatmul.mubr.f32.gmra.mrb[0].mxu0 %v3179
    %v3924 = vpop.f32.mrb[0].mxu0
    %v3925 = vadd.f32 %v3856, %v3924
    %v3926 = vpop.f32.mrb[0].mxu0
    %3927 = vmatprep.mubr.f32.mxu0 0.0
    %3928 = vmatmul.mubr.f32.gmra.mrb[0].mxu0 %v3182
    %v3929 = vpop.f32.mrb[0].mxu0
    %v3930 = vadd.f32 %v3856, %v3929
    %v3931 = vpop.f32.mrb[0].mxu0
    %3932 = vdwg.mxu0
    %s3933 = scalar_lea.vmem [#allocation4], 160
    %v3934 = vld [vmem:[%s3933] sm:$0xff]
    %v3935 = vld [vmem:[%s3933 + $0x8] sm:$0xff]
    %v3936 = vld [vmem:[%s3933 + $0x10] sm:$0xff]
    %v3937 = vld [vmem:[%s3933 + $0x18] sm:$0xff]
    %s3938 = scalar_lea.vmem %s9, 5
    %v3939 = vld [vmem:[%s3938] sm:$0x1]
    %v3941 = vlaneseq
    %v3942 = vshrl.u32 %v3941, 7
    %v3943 = vsub.s32 0, %v3942
    %v3944 = vrot.slane %v3939, %v3943
    %3946 = vmatprep.subr.mxu0 0.0
    %3947 = vmatpush1.msra.mxu0 %v3934
    %3948 = vmatprep.subr.mxu0 0.0
    %3949 = vmatpush1.msra.mxu0 %v3935
    %3950 = vmatprep.subr.mxu0 0.0
    %3951 = vmatpush1.msra.mxu0 %v3936
    %3952 = vmatprep.subr.mxu0 0.0
    %3953 = vmatpush1.msra.mxu0 %v3937
    %3954 = vmatprep.subr.mxu0 0.0
    %3955 = vmatpush1.msra.mxu0 0.0
    %3956 = vmatprep.subr.mxu0 0.0
    %3957 = vmatpush1.msra.mxu0 0.0
    %3958 = vmatprep.subr.mxu0 0.0
    %3959 = vmatpush1.msra.mxu0 0.0
    %3960 = vmatprep.subr.mxu0 0.0
    %3961 = vmatpush1.msra.mxu0 0.0
    %3962 = vmatprep.subr.mxu0 0.0
    %3963 = vmatpush1.msra.mxu0 0.0
    %3964 = vmatprep.subr.mxu0 0.0
    %3965 = vmatpush1.msra.mxu0 0.0
    %3966 = vmatprep.subr.mxu0 0.0
    %3967 = vmatpush1.msra.mxu0 0.0
    %3968 = vmatprep.subr.mxu0 0.0
    %3969 = vmatpush1.msra.mxu0 0.0
    %3970 = vmatprep.subr.mxu0 0.0
    %3971 = vmatpush1.msra.mxu0 0.0
    %3972 = vmatprep.subr.mxu0 0.0
    %3973 = vmatpush1.msra.mxu0 0.0
    %3974 = vmatprep.subr.mxu0 0.0
    %3975 = vmatpush1.msra.mxu0 0.0
    %3976 = vmatprep.subr.mxu0 0.0
    %3977 = vmatpush1.msra.mxu0 0.0
    %3978 = vmatprep.subr.mxu0 0.0
    %3979 = vmatpush1.msra.mxu0 0.0
    %3980 = vmatprep.subr.mxu0 0.0
    %3981 = vmatpush1.msra.mxu0 0.0
    %3982 = vmatprep.subr.mxu0 0.0
    %3983 = vmatpush1.msra.mxu0 0.0
    %3984 = vmatprep.subr.mxu0 0.0
    %3985 = vmatpush1.msra.mxu0 0.0
    %3986 = vmatprep.subr.mxu0 0.0
    %3987 = vmatpush1.msra.mxu0 0.0
    %3988 = vmatprep.subr.mxu0 0.0
    %3989 = vmatpush1.msra.mxu0 0.0
    %3990 = vmatprep.subr.mxu0 0.0
    %3991 = vmatpush1.msra.mxu0 0.0
    %3992 = vmatprep.subr.mxu0 0.0
    %3993 = vmatpush1.msra.mxu0 0.0
    %3994 = vmatprep.subr.mxu0 0.0
    %3995 = vmatpush1.msra.mxu0 0.0
    %3996 = vmatprep.subr.mxu0 0.0
    %3997 = vmatpush1.msra.mxu0 0.0
    %3998 = vmatprep.subr.mxu0 0.0
    %3999 = vmatpush1.msra.mxu0 0.0
    %4000 = vmatprep.subr.mxu0 0.0
    %4001 = vmatpush1.msra.mxu0 0.0
    %4002 = vmatprep.subr.mxu0 0.0
    %4003 = vmatpush1.msra.mxu0 0.0
    %4004 = vmatprep.subr.mxu0 0.0
    %4005 = vmatpush1.msra.mxu0 0.0
    %4006 = vmatprep.subr.mxu0 0.0
    %4007 = vmatpush1.msra.mxu0 0.0
    %4008 = vmatprep.subr.mxu0 0.0
    %4009 = vmatpush1.msra.mxu0 0.0
    %4010 = vmatprep.mubr.f32.mxu0 0.0
    %4011 = vmatmul.mubr.f32.gmra.mrb[0].mxu0 %v3179
    %v4012 = vpop.f32.mrb[0].mxu0
    %v4013 = vadd.f32 %v3944, %v4012
    %v4014 = vpop.f32.mrb[0].mxu0
    %4015 = vmatprep.mubr.f32.mxu0 0.0
    %4016 = vmatmul.mubr.f32.gmra.mrb[0].mxu0 %v3182
    %v4017 = vpop.f32.mrb[0].mxu0
    %v4018 = vadd.f32 %v3944, %v4017
    %v4019 = vpop.f32.mrb[0].mxu0
    %4020 = vdwg.mxu0
    %v4022 = vsel %vm448, %v3837, 0
    %v4025 = vsel %vm448, %v3925, 0
    %4027 = vmatprep.subr.mxu0 0.0
    %4028 = vmatpush1.xpose.msra.mxu0 %v4025
    %4029 = vmatprep.subr.mxu0 0.0
    %4030 = vmatpush1.xpose.msra.mxu0 0.0
    %4031 = vmatprep.subr.mxu0 0.0
    %4032 = vmatpush1.xpose.msra.mxu0 0.0
    %4033 = vmatprep.subr.mxu0 0.0
    %4034 = vmatpush1.xpose.msra.mxu0 0.0
    %4035 = vmatprep.subr.mxu0 0.0
    %4036 = vmatpush1.xpose.msra.mxu0 0.0
    %4037 = vmatprep.subr.mxu0 0.0
    %4038 = vmatpush1.xpose.msra.mxu0 0.0
    %4039 = vmatprep.subr.mxu0 0.0
    %4040 = vmatpush1.xpose.msra.mxu0 0.0
    %4041 = vmatprep.subr.mxu0 0.0
    %4042 = vmatpush1.xpose.msra.mxu0 0.0
    %4043 = vmatprep.subr.mxu0 0.0
    %4044 = vmatpush1.xpose.msra.mxu0 0.0
    %4045 = vmatprep.subr.mxu0 0.0
    %4046 = vmatpush1.xpose.msra.mxu0 0.0
    %4047 = vmatprep.subr.mxu0 0.0
    %4048 = vmatpush1.xpose.msra.mxu0 0.0
    %4049 = vmatprep.subr.mxu0 0.0
    %4050 = vmatpush1.xpose.msra.mxu0 0.0
    %4051 = vmatprep.subr.mxu0 0.0
    %4052 = vmatpush1.xpose.msra.mxu0 0.0
    %4053 = vmatprep.subr.mxu0 0.0
    %4054 = vmatpush1.xpose.msra.mxu0 0.0
    %4055 = vmatprep.subr.mxu0 0.0
    %4056 = vmatpush1.xpose.msra.mxu0 0.0
    %4057 = vmatprep.subr.mxu0 0.0
    %4058 = vmatpush1.xpose.msra.mxu0 0.0
    %4059 = vmatprep.subr.mxu0 0.0
    %4060 = vmatpush1.xpose.msra.mxu0 0.0
    %4061 = vmatprep.subr.mxu0 0.0
    %4062 = vmatpush1.xpose.msra.mxu0 0.0
    %4063 = vmatprep.subr.mxu0 0.0
    %4064 = vmatpush1.xpose.msra.mxu0 0.0
    %4065 = vmatprep.subr.mxu0 0.0
    %4066 = vmatpush1.xpose.msra.mxu0 0.0
    %4067 = vmatprep.subr.mxu0 0.0
    %4068 = vmatpush1.xpose.msra.mxu0 0.0
    %4069 = vmatprep.subr.mxu0 0.0
    %4070 = vmatpush1.xpose.msra.mxu0 0.0
    %4071 = vmatprep.subr.mxu0 0.0
    %4072 = vmatpush1.xpose.msra.mxu0 0.0
    %4073 = vmatprep.subr.mxu0 0.0
    %4074 = vmatpush1.xpose.msra.mxu0 0.0
    %4075 = vmatprep.subr.mxu0 0.0
    %4076 = vmatpush1.xpose.msra.mxu0 0.0
    %4077 = vmatprep.subr.mxu0 0.0
    %4078 = vmatpush1.xpose.msra.mxu0 0.0
    %4079 = vmatprep.subr.mxu0 0.0
    %4080 = vmatpush1.xpose.msra.mxu0 0.0
    %4081 = vmatprep.subr.mxu0 0.0
    %4082 = vmatpush1.xpose.msra.mxu0 0.0
    %4083 = vmatprep.subr.mxu0 0.0
    %4084 = vmatpush1.xpose.msra.mxu0 0.0
    %4085 = vmatprep.subr.mxu0 0.0
    %4086 = vmatpush1.xpose.msra.mxu0 0.0
    %4087 = vmatprep.subr.mxu0 0.0
    %4088 = vmatpush1.xpose.msra.mxu0 0.0
    %4089 = vmatprep.subr.mxu0 0.0
    %4090 = vmatpush1.xpose.msra.mxu0 0.0
    %4091 = vmatprep.mubr.f32.mxu0 0.0
    %4092 = vmatmul.mubr.f32.gmra.mrb[0].mxu0 %v4022
    %v4093 = vpop.f32.mrb[0].mxu0
    %v4094 = vadd.f32 %v441, %v4093
    %v4095 = vpop.f32.mrb[0].mxu0
    %4096 = vdwg.mxu0
    %v4098 = vsel %vm448, %v3842, 0
    %v4101 = vsel %vm448, %v3930, 0
    %4103 = vmatprep.subr.mxu0 0.0
    %4104 = vmatpush1.xpose.msra.mxu0 %v4101
    %4105 = vmatprep.subr.mxu0 0.0
    %4106 = vmatpush1.xpose.msra.mxu0 0.0
    %4107 = vmatprep.subr.mxu0 0.0
    %4108 = vmatpush1.xpose.msra.mxu0 0.0
    %4109 = vmatprep.subr.mxu0 0.0
    %4110 = vmatpush1.xpose.msra.mxu0 0.0
    %4111 = vmatprep.subr.mxu0 0.0
    %4112 = vmatpush1.xpose.msra.mxu0 0.0
    %4113 = vmatprep.subr.mxu0 0.0
    %4114 = vmatpush1.xpose.msra.mxu0 0.0
    %4115 = vmatprep.subr.mxu0 0.0
    %4116 = vmatpush1.xpose.msra.mxu0 0.0
    %4117 = vmatprep.subr.mxu0 0.0
    %4118 = vmatpush1.xpose.msra.mxu0 0.0
    %4119 = vmatprep.subr.mxu0 0.0
    %4120 = vmatpush1.xpose.msra.mxu0 0.0
    %4121 = vmatprep.subr.mxu0 0.0
    %4122 = vmatpush1.xpose.msra.mxu0 0.0
    %4123 = vmatprep.subr.mxu0 0.0
    %4124 = vmatpush1.xpose.msra.mxu0 0.0
    %4125 = vmatprep.subr.mxu0 0.0
    %4126 = vmatpush1.xpose.msra.mxu0 0.0
    %4127 = vmatprep.subr.mxu0 0.0
    %4128 = vmatpush1.xpose.msra.mxu0 0.0
    %4129 = vmatprep.subr.mxu0 0.0
    %4130 = vmatpush1.xpose.msra.mxu0 0.0
    %4131 = vmatprep.subr.mxu0 0.0
    %4132 = vmatpush1.xpose.msra.mxu0 0.0
    %4133 = vmatprep.subr.mxu0 0.0
    %4134 = vmatpush1.xpose.msra.mxu0 0.0
    %4135 = vmatprep.subr.mxu0 0.0
    %4136 = vmatpush1.xpose.msra.mxu0 0.0
    %4137 = vmatprep.subr.mxu0 0.0
    %4138 = vmatpush1.xpose.msra.mxu0 0.0
    %4139 = vmatprep.subr.mxu0 0.0
    %4140 = vmatpush1.xpose.msra.mxu0 0.0
    %4141 = vmatprep.subr.mxu0 0.0
    %4142 = vmatpush1.xpose.msra.mxu0 0.0
    %4143 = vmatprep.subr.mxu0 0.0
    %4144 = vmatpush1.xpose.msra.mxu0 0.0
    %4145 = vmatprep.subr.mxu0 0.0
    %4146 = vmatpush1.xpose.msra.mxu0 0.0
    %4147 = vmatprep.subr.mxu0 0.0
    %4148 = vmatpush1.xpose.msra.mxu0 0.0
    %4149 = vmatprep.subr.mxu0 0.0
    %4150 = vmatpush1.xpose.msra.mxu0 0.0
    %4151 = vmatprep.subr.mxu0 0.0
    %4152 = vmatpush1.xpose.msra.mxu0 0.0
    %4153 = vmatprep.subr.mxu0 0.0
    %4154 = vmatpush1.xpose.msra.mxu0 0.0
    %4155 = vmatprep.subr.mxu0 0.0
    %4156 = vmatpush1.xpose.msra.mxu0 0.0
    %4157 = vmatprep.subr.mxu0 0.0
    %4158 = vmatpush1.xpose.msra.mxu0 0.0
    %4159 = vmatprep.subr.mxu0 0.0
    %4160 = vmatpush1.xpose.msra.mxu0 0.0
    %4161 = vmatprep.subr.mxu0 0.0
    %4162 = vmatpush1.xpose.msra.mxu0 0.0
    %4163 = vmatprep.subr.mxu0 0.0
    %4164 = vmatpush1.xpose.msra.mxu0 0.0
    %4165 = vmatprep.subr.mxu0 0.0
    %4166 = vmatpush1.xpose.msra.mxu0 0.0
    %4167 = vmatprep.mubr.f32.mxu0 0.0
    %4168 = vmatmul.mubr.f32.gmra.mrb[0].mxu0 %v4098
    %v4169 = vpop.f32.mrb[0].mxu0
    %v4170 = vadd.f32 %v445, %v4169
    %v4171 = vpop.f32.mrb[0].mxu0
    %4172 = vdwg.mxu0
    %v4173 = vsel %vm448, %v4094, -inf
    %4174 = vmax.xlane.f32.xlu0 %v4173
    %v4175 = vpop.xlane.xlu0 %4174
    %v4176 = vsel %vm448, %v4170, -inf
    %4177 = vmax.xlane.f32.xlu0 %v4176
    %v4178 = vpop.xlane.xlu0 %4177
    %v4179 = vsub.f32 %v4094, %v4175
    %v4180 = vsub.f32 %v4170, %v4178
    %v4181 = vmul.f32 %v4179, 1.442695
    %v4182 = vpow.pop %v4181
    %v4183 = vmul.f32 %v4180, 1.442695
    %v4184 = vpow.pop %v4183
    %v4185 = vsel %vm448, %v4182, 0.0
    %4186 = vadd.xlane.f32.xlu0 %v4185
    %v4187 = vpop.xlane.xlu0 %4186
    %v4188 = vsel %vm448, %v4184, 0.0
    %4189 = vadd.xlane.f32.xlu0 %v4188
    %v4190 = vpop.xlane.xlu0 %4189
    %v4191 = vrcp.pop %v4187
    %v4192 = vrcp.pop %v4190
    %v4193 = vmul.f32 %v4182, %v4191
    %v4194 = vmul.f32 %v4184, %v4192
    %v4196 = vsel %vm448, %v4193, 0
    %4198 = vmatprep.subr.mxu0 0.0
    %4199 = vmatpush1.msra.mxu0 %v4013
    %4200 = vmatprep.subr.mxu0 0.0
    %4201 = vmatpush1.msra.mxu0 0.0
    %4202 = vmatprep.subr.mxu0 0.0
    %4203 = vmatpush1.msra.mxu0 0.0
    %4204 = vmatprep.subr.mxu0 0.0
    %4205 = vmatpush1.msra.mxu0 0.0
    %4206 = vmatprep.subr.mxu0 0.0
    %4207 = vmatpush1.msra.mxu0 0.0
    %4208 = vmatprep.subr.mxu0 0.0
    %4209 = vmatpush1.msra.mxu0 0.0
    %4210 = vmatprep.subr.mxu0 0.0
    %4211 = vmatpush1.msra.mxu0 0.0
    %4212 = vmatprep.subr.mxu0 0.0
    %4213 = vmatpush1.msra.mxu0 0.0
    %4214 = vmatprep.subr.mxu0 0.0
    %4215 = vmatpush1.msra.mxu0 0.0
    %4216 = vmatprep.subr.mxu0 0.0
    %4217 = vmatpush1.msra.mxu0 0.0
    %4218 = vmatprep.subr.mxu0 0.0
    %4219 = vmatpush1.msra.mxu0 0.0
    %4220 = vmatprep.subr.mxu0 0.0
    %4221 = vmatpush1.msra.mxu0 0.0
    %4222 = vmatprep.subr.mxu0 0.0
    %4223 = vmatpush1.msra.mxu0 0.0
    %4224 = vmatprep.subr.mxu0 0.0
    %4225 = vmatpush1.msra.mxu0 0.0
    %4226 = vmatprep.subr.mxu0 0.0
    %4227 = vmatpush1.msra.mxu0 0.0
    %4228 = vmatprep.subr.mxu0 0.0
    %4229 = vmatpush1.msra.mxu0 0.0
    %4230 = vmatprep.subr.mxu0 0.0
    %4231 = vmatpush1.msra.mxu0 0.0
    %4232 = vmatprep.subr.mxu0 0.0
    %4233 = vmatpush1.msra.mxu0 0.0
    %4234 = vmatprep.subr.mxu0 0.0
    %4235 = vmatpush1.msra.mxu0 0.0
    %4236 = vmatprep.subr.mxu0 0.0
    %4237 = vmatpush1.msra.mxu0 0.0
    %4238 = vmatprep.subr.mxu0 0.0
    %4239 = vmatpush1.msra.mxu0 0.0
    %4240 = vmatprep.subr.mxu0 0.0
    %4241 = vmatpush1.msra.mxu0 0.0
    %4242 = vmatprep.subr.mxu0 0.0
    %4243 = vmatpush1.msra.mxu0 0.0
    %4244 = vmatprep.subr.mxu0 0.0
    %4245 = vmatpush1.msra.mxu0 0.0
    %4246 = vmatprep.subr.mxu0 0.0
    %4247 = vmatpush1.msra.mxu0 0.0
    %4248 = vmatprep.subr.mxu0 0.0
    %4249 = vmatpush1.msra.mxu0 0.0
    %4250 = vmatprep.subr.mxu0 0.0
    %4251 = vmatpush1.msra.mxu0 0.0
    %4252 = vmatprep.subr.mxu0 0.0
    %4253 = vmatpush1.msra.mxu0 0.0
    %4254 = vmatprep.subr.mxu0 0.0
    %4255 = vmatpush1.msra.mxu0 0.0
    %4256 = vmatprep.subr.mxu0 0.0
    %4257 = vmatpush1.msra.mxu0 0.0
    %4258 = vmatprep.subr.mxu0 0.0
    %4259 = vmatpush1.msra.mxu0 0.0
    %4260 = vmatprep.subr.mxu0 0.0
    %4261 = vmatpush1.msra.mxu0 0.0
    %4262 = vmatprep.mubr.f32.mxu0 0.0
    %4263 = vmatmul.mubr.f32.gmra.mrb[0].mxu0 %v4196
    %v4264 = vpop.f32.mrb[0].mxu0
    %v4265 = vadd.f32 0.0, %v4264
    %v4266 = vpop.f32.mrb[0].mxu0
    %4267 = vdwg.mxu0
    %v4269 = vsel %vm448, %v4194, 0
    %4271 = vmatprep.subr.mxu0 0.0
    %4272 = vmatpush1.msra.mxu0 %v4018
    %4273 = vmatprep.subr.mxu0 0.0
    %4274 = vmatpush1.msra.mxu0 0.0
    %4275 = vmatprep.subr.mxu0 0.0
    %4276 = vmatpush1.msra.mxu0 0.0
    %4277 = vmatprep.subr.mxu0 0.0
    %4278 = vmatpush1.msra.mxu0 0.0
    %4279 = vmatprep.subr.mxu0 0.0
    %4280 = vmatpush1.msra.mxu0 0.0
    %4281 = vmatprep.subr.mxu0 0.0
    %4282 = vmatpush1.msra.mxu0 0.0
    %4283 = vmatprep.subr.mxu0 0.0
    %4284 = vmatpush1.msra.mxu0 0.0
    %4285 = vmatprep.subr.mxu0 0.0
    %4286 = vmatpush1.msra.mxu0 0.0
    %4287 = vmatprep.subr.mxu0 0.0
    %4288 = vmatpush1.msra.mxu0 0.0
    %4289 = vmatprep.subr.mxu0 0.0
    %4290 = vmatpush1.msra.mxu0 0.0
    %4291 = vmatprep.subr.mxu0 0.0
    %4292 = vmatpush1.msra.mxu0 0.0
    %4293 = vmatprep.subr.mxu0 0.0
    %4294 = vmatpush1.msra.mxu0 0.0
    %4295 = vmatprep.subr.mxu0 0.0
    %4296 = vmatpush1.msra.mxu0 0.0
    %4297 = vmatprep.subr.mxu0 0.0
    %4298 = vmatpush1.msra.mxu0 0.0
    %4299 = vmatprep.subr.mxu0 0.0
    %4300 = vmatpush1.msra.mxu0 0.0
    %4301 = vmatprep.subr.mxu0 0.0
    %4302 = vmatpush1.msra.mxu0 0.0
    %4303 = vmatprep.subr.mxu0 0.0
    %4304 = vmatpush1.msra.mxu0 0.0
    %4305 = vmatprep.subr.mxu0 0.0
    %4306 = vmatpush1.msra.mxu0 0.0
    %4307 = vmatprep.subr.mxu0 0.0
    %4308 = vmatpush1.msra.mxu0 0.0
    %4309 = vmatprep.subr.mxu0 0.0
    %4310 = vmatpush1.msra.mxu0 0.0
    %4311 = vmatprep.subr.mxu0 0.0
    %4312 = vmatpush1.msra.mxu0 0.0
    %4313 = vmatprep.subr.mxu0 0.0
    %4314 = vmatpush1.msra.mxu0 0.0
    %4315 = vmatprep.subr.mxu0 0.0
    %4316 = vmatpush1.msra.mxu0 0.0
    %4317 = vmatprep.subr.mxu0 0.0
    %4318 = vmatpush1.msra.mxu0 0.0
    %4319 = vmatprep.subr.mxu0 0.0
    %4320 = vmatpush1.msra.mxu0 0.0
    %4321 = vmatprep.subr.mxu0 0.0
    %4322 = vmatpush1.msra.mxu0 0.0
    %4323 = vmatprep.subr.mxu0 0.0
    %4324 = vmatpush1.msra.mxu0 0.0
    %4325 = vmatprep.subr.mxu0 0.0
    %4326 = vmatpush1.msra.mxu0 0.0
    %4327 = vmatprep.subr.mxu0 0.0
    %4328 = vmatpush1.msra.mxu0 0.0
    %4329 = vmatprep.subr.mxu0 0.0
    %4330 = vmatpush1.msra.mxu0 0.0
    %4331 = vmatprep.subr.mxu0 0.0
    %4332 = vmatpush1.msra.mxu0 0.0
    %4333 = vmatprep.subr.mxu0 0.0
    %4334 = vmatpush1.msra.mxu0 0.0
    %4335 = vmatprep.mubr.f32.mxu0 0.0
    %4336 = vmatmul.mubr.f32.gmra.mrb[0].mxu0 %v4269
    %v4337 = vpop.f32.mrb[0].mxu0
    %v4338 = vadd.f32 0.0, %v4337
    %v4339 = vpop.f32.mrb[0].mxu0
    %4340 = vdwg.mxu0
    %s4341 = scalar_lea.vmem %s10, 40
    %v4342 = vld [vmem:[%s4341] sm:$0xff]
    %v4344 = vsel %vm448, %v4265, 0
    %v4347 = vsel %vm448, %v4338, 0
    %4349 = vmatprep.subr.mxu0 0.0
    %4350 = vmatpush1.msra.mxu0 %v4342
    %4351 = vmatprep.subr.mxu0 0.0
    %4352 = vmatpush1.msra.mxu0 0.0
    %4353 = vmatprep.subr.mxu0 0.0
    %4354 = vmatpush1.msra.mxu0 0.0
    %4355 = vmatprep.subr.mxu0 0.0
    %4356 = vmatpush1.msra.mxu0 0.0
    %4357 = vmatprep.subr.mxu0 0.0
    %4358 = vmatpush1.msra.mxu0 0.0
    %4359 = vmatprep.subr.mxu0 0.0
    %4360 = vmatpush1.msra.mxu0 0.0
    %4361 = vmatprep.subr.mxu0 0.0
    %4362 = vmatpush1.msra.mxu0 0.0
    %4363 = vmatprep.subr.mxu0 0.0
    %4364 = vmatpush1.msra.mxu0 0.0
    %4365 = vmatprep.subr.mxu0 0.0
    %4366 = vmatpush1.msra.mxu0 0.0
    %4367 = vmatprep.subr.mxu0 0.0
    %4368 = vmatpush1.msra.mxu0 0.0
    %4369 = vmatprep.subr.mxu0 0.0
    %4370 = vmatpush1.msra.mxu0 0.0
    %4371 = vmatprep.subr.mxu0 0.0
    %4372 = vmatpush1.msra.mxu0 0.0
    %4373 = vmatprep.subr.mxu0 0.0
    %4374 = vmatpush1.msra.mxu0 0.0
    %4375 = vmatprep.subr.mxu0 0.0
    %4376 = vmatpush1.msra.mxu0 0.0
    %4377 = vmatprep.subr.mxu0 0.0
    %4378 = vmatpush1.msra.mxu0 0.0
    %4379 = vmatprep.subr.mxu0 0.0
    %4380 = vmatpush1.msra.mxu0 0.0
    %4381 = vmatprep.subr.mxu0 0.0
    %4382 = vmatpush1.msra.mxu0 0.0
    %4383 = vmatprep.subr.mxu0 0.0
    %4384 = vmatpush1.msra.mxu0 0.0
    %4385 = vmatprep.subr.mxu0 0.0
    %4386 = vmatpush1.msra.mxu0 0.0
    %4387 = vmatprep.subr.mxu0 0.0
    %4388 = vmatpush1.msra.mxu0 0.0
    %4389 = vmatprep.subr.mxu0 0.0
    %4390 = vmatpush1.msra.mxu0 0.0
    %4391 = vmatprep.subr.mxu0 0.0
    %4392 = vmatpush1.msra.mxu0 0.0
    %4393 = vmatprep.subr.mxu0 0.0
    %4394 = vmatpush1.msra.mxu0 0.0
    %4395 = vmatprep.subr.mxu0 0.0
    %4396 = vmatpush1.msra.mxu0 0.0
    %4397 = vmatprep.subr.mxu0 0.0
    %4398 = vmatpush1.msra.mxu0 0.0
    %4399 = vmatprep.subr.mxu0 0.0
    %4400 = vmatpush1.msra.mxu0 0.0
    %4401 = vmatprep.subr.mxu0 0.0
    %4402 = vmatpush1.msra.mxu0 0.0
    %4403 = vmatprep.subr.mxu0 0.0
    %4404 = vmatpush1.msra.mxu0 0.0
    %4405 = vmatprep.subr.mxu0 0.0
    %4406 = vmatpush1.msra.mxu0 0.0
    %4407 = vmatprep.subr.mxu0 0.0
    %4408 = vmatpush1.msra.mxu0 0.0
    %4409 = vmatprep.subr.mxu0 0.0
    %4410 = vmatpush1.msra.mxu0 0.0
    %4411 = vmatprep.subr.mxu0 0.0
    %4412 = vmatpush1.msra.mxu0 0.0
    %4413 = vmatprep.mubr.f32.mxu0 0.0
    %4414 = vmatmul.mubr.f32.gmra.mrb[0].mxu0 %v4344
    %v4415 = vpop.f32.mrb[0].mxu0
    %v4416 = vadd.f32 0.0, %v4415
    %v4417 = vpop.f32.mrb[0].mxu0
    %4418 = vmatprep.mubr.f32.mxu0 0.0
    %4419 = vmatmul.mubr.f32.gmra.mrb[0].mxu0 %v4347
    %v4420 = vpop.f32.mrb[0].mxu0
    %v4421 = vadd.f32 0.0, %v4420
    %v4422 = vpop.f32.mrb[0].mxu0
    %4423 = vdwg.mxu0
    %v4425 = vsel %vm448, %v3679, 0
    %v4428 = vsel %vm448, %v3752, 0
    %4430 = vmatprep.subr.mxu0 0.0
    %4431 = vmatpush1.msra.mxu0 %v3756
    %4432 = vmatprep.subr.mxu0 0.0
    %4433 = vmatpush1.msra.mxu0 0.0
    %4434 = vmatprep.subr.mxu0 0.0
    %4435 = vmatpush1.msra.mxu0 0.0
    %4436 = vmatprep.subr.mxu0 0.0
    %4437 = vmatpush1.msra.mxu0 0.0
    %4438 = vmatprep.subr.mxu0 0.0
    %4439 = vmatpush1.msra.mxu0 0.0
    %4440 = vmatprep.subr.mxu0 0.0
    %4441 = vmatpush1.msra.mxu0 0.0
    %4442 = vmatprep.subr.mxu0 0.0
    %4443 = vmatpush1.msra.mxu0 0.0
    %4444 = vmatprep.subr.mxu0 0.0
    %4445 = vmatpush1.msra.mxu0 0.0
    %4446 = vmatprep.subr.mxu0 0.0
    %4447 = vmatpush1.msra.mxu0 0.0
    %4448 = vmatprep.subr.mxu0 0.0
    %4449 = vmatpush1.msra.mxu0 0.0
    %4450 = vmatprep.subr.mxu0 0.0
    %4451 = vmatpush1.msra.mxu0 0.0
    %4452 = vmatprep.subr.mxu0 0.0
    %4453 = vmatpush1.msra.mxu0 0.0
    %4454 = vmatprep.subr.mxu0 0.0
    %4455 = vmatpush1.msra.mxu0 0.0
    %4456 = vmatprep.subr.mxu0 0.0
    %4457 = vmatpush1.msra.mxu0 0.0
    %4458 = vmatprep.subr.mxu0 0.0
    %4459 = vmatpush1.msra.mxu0 0.0
    %4460 = vmatprep.subr.mxu0 0.0
    %4461 = vmatpush1.msra.mxu0 0.0
    %4462 = vmatprep.subr.mxu0 0.0
    %4463 = vmatpush1.msra.mxu0 0.0
    %4464 = vmatprep.subr.mxu0 0.0
    %4465 = vmatpush1.msra.mxu0 0.0
    %4466 = vmatprep.subr.mxu0 0.0
    %4467 = vmatpush1.msra.mxu0 0.0
    %4468 = vmatprep.subr.mxu0 0.0
    %4469 = vmatpush1.msra.mxu0 0.0
    %4470 = vmatprep.subr.mxu0 0.0
    %4471 = vmatpush1.msra.mxu0 0.0
    %4472 = vmatprep.subr.mxu0 0.0
    %4473 = vmatpush1.msra.mxu0 0.0
    %4474 = vmatprep.subr.mxu0 0.0
    %4475 = vmatpush1.msra.mxu0 0.0
    %4476 = vmatprep.subr.mxu0 0.0
    %4477 = vmatpush1.msra.mxu0 0.0
    %4478 = vmatprep.subr.mxu0 0.0
    %4479 = vmatpush1.msra.mxu0 0.0
    %4480 = vmatprep.subr.mxu0 0.0
    %4481 = vmatpush1.msra.mxu0 0.0
    %4482 = vmatprep.subr.mxu0 0.0
    %4483 = vmatpush1.msra.mxu0 0.0
    %4484 = vmatprep.subr.mxu0 0.0
    %4485 = vmatpush1.msra.mxu0 0.0
    %4486 = vmatprep.subr.mxu0 0.0
    %4487 = vmatpush1.msra.mxu0 0.0
    %4488 = vmatprep.subr.mxu0 0.0
    %4489 = vmatpush1.msra.mxu0 0.0
    %4490 = vmatprep.subr.mxu0 0.0
    %4491 = vmatpush1.msra.mxu0 0.0
    %4492 = vmatprep.subr.mxu0 0.0
    %4493 = vmatpush1.msra.mxu0 0.0
    %4494 = vmatprep.mubr.f32.mxu0 0.0
    %4495 = vmatmul.mubr.f32.gmra.mrb[0].mxu0 %v4425
    %v4496 = vpop.f32.mrb[0].mxu0
    %v4497 = vadd.f32 %v4416, %v4496
    %v4498 = vpop.f32.mrb[0].mxu0
    %4499 = vmatprep.mubr.f32.mxu0 0.0
    %4500 = vmatmul.mubr.f32.gmra.mrb[0].mxu0 %v4428
    %v4501 = vpop.f32.mrb[0].mxu0
    %v4502 = vadd.f32 %v4421, %v4501
    %v4503 = vpop.f32.mrb[0].mxu0
    %4504 = vdwg.mxu0
    %s4505 = scalar_lea.vmem %s4, 192
    %v4506 = vld [vmem:[%s4505] sm:$0xff]
    %v4507 = vld [vmem:[%s4505 + $0x8] sm:$0xff]
    %v4508 = vld [vmem:[%s4505 + $0x10] sm:$0xff]
    %v4509 = vld [vmem:[%s4505 + $0x18] sm:$0xff]
    %s4510 = scalar_lea.vmem %s5, 6
    %v4511 = vld [vmem:[%s4510] sm:$0x1]
    %v4513 = vlaneseq
    %v4514 = vshrl.u32 %v4513, 7
    %v4515 = vsub.s32 0, %v4514
    %v4516 = vrot.slane %v4511, %v4515
    %4518 = vmatprep.subr.mxu0 0.0
    %4519 = vmatpush1.msra.mxu0 %v4506
    %4520 = vmatprep.subr.mxu0 0.0
    %4521 = vmatpush1.msra.mxu0 %v4507
    %4522 = vmatprep.subr.mxu0 0.0
    %4523 = vmatpush1.msra.mxu0 %v4508
    %4524 = vmatprep.subr.mxu0 0.0
    %4525 = vmatpush1.msra.mxu0 %v4509
    %4526 = vmatprep.subr.mxu0 0.0
    %4527 = vmatpush1.msra.mxu0 0.0
    %4528 = vmatprep.subr.mxu0 0.0
    %4529 = vmatpush1.msra.mxu0 0.0
    %4530 = vmatprep.subr.mxu0 0.0
    %4531 = vmatpush1.msra.mxu0 0.0
    %4532 = vmatprep.subr.mxu0 0.0
    %4533 = vmatpush1.msra.mxu0 0.0
    %4534 = vmatprep.subr.mxu0 0.0
    %4535 = vmatpush1.msra.mxu0 0.0
    %4536 = vmatprep.subr.mxu0 0.0
    %4537 = vmatpush1.msra.mxu0 0.0
    %4538 = vmatprep.subr.mxu0 0.0
    %4539 = vmatpush1.msra.mxu0 0.0
    %4540 = vmatprep.subr.mxu0 0.0
    %4541 = vmatpush1.msra.mxu0 0.0
    %4542 = vmatprep.subr.mxu0 0.0
    %4543 = vmatpush1.msra.mxu0 0.0
    %4544 = vmatprep.subr.mxu0 0.0
    %4545 = vmatpush1.msra.mxu0 0.0
    %4546 = vmatprep.subr.mxu0 0.0
    %4547 = vmatpush1.msra.mxu0 0.0
    %4548 = vmatprep.subr.mxu0 0.0
    %4549 = vmatpush1.msra.mxu0 0.0
    %4550 = vmatprep.subr.mxu0 0.0
    %4551 = vmatpush1.msra.mxu0 0.0
    %4552 = vmatprep.subr.mxu0 0.0
    %4553 = vmatpush1.msra.mxu0 0.0
    %4554 = vmatprep.subr.mxu0 0.0
    %4555 = vmatpush1.msra.mxu0 0.0
    %4556 = vmatprep.subr.mxu0 0.0
    %4557 = vmatpush1.msra.mxu0 0.0
    %4558 = vmatprep.subr.mxu0 0.0
    %4559 = vmatpush1.msra.mxu0 0.0
    %4560 = vmatprep.subr.mxu0 0.0
    %4561 = vmatpush1.msra.mxu0 0.0
    %4562 = vmatprep.subr.mxu0 0.0
    %4563 = vmatpush1.msra.mxu0 0.0
    %4564 = vmatprep.subr.mxu0 0.0
    %4565 = vmatpush1.msra.mxu0 0.0
    %4566 = vmatprep.subr.mxu0 0.0
    %4567 = vmatpush1.msra.mxu0 0.0
    %4568 = vmatprep.subr.mxu0 0.0
    %4569 = vmatpush1.msra.mxu0 0.0
    %4570 = vmatprep.subr.mxu0 0.0
    %4571 = vmatpush1.msra.mxu0 0.0
    %4572 = vmatprep.subr.mxu0 0.0
    %4573 = vmatpush1.msra.mxu0 0.0
    %4574 = vmatprep.subr.mxu0 0.0
    %4575 = vmatpush1.msra.mxu0 0.0
    %4576 = vmatprep.subr.mxu0 0.0
    %4577 = vmatpush1.msra.mxu0 0.0
    %4578 = vmatprep.subr.mxu0 0.0
    %4579 = vmatpush1.msra.mxu0 0.0
    %4580 = vmatprep.subr.mxu0 0.0
    %4581 = vmatpush1.msra.mxu0 0.0
    %4582 = vmatprep.mubr.f32.mxu0 0.0
    %4583 = vmatmul.mubr.f32.gmra.mrb[0].mxu0 %v3179
    %v4584 = vpop.f32.mrb[0].mxu0
    %v4585 = vadd.f32 %v4516, %v4584
    %v4586 = vpop.f32.mrb[0].mxu0
    %4587 = vmatprep.mubr.f32.mxu0 0.0
    %4588 = vmatmul.mubr.f32.gmra.mrb[0].mxu0 %v3182
    %v4589 = vpop.f32.mrb[0].mxu0
    %v4590 = vadd.f32 %v4516, %v4589
    %v4591 = vpop.f32.mrb[0].mxu0
    %4592 = vdwg.mxu0
    %s4593 = scalar_lea.vmem [#allocation2], 192
    %v4594 = vld [vmem:[%s4593] sm:$0xff]
    %v4595 = vld [vmem:[%s4593 + $0x8] sm:$0xff]
    %v4596 = vld [vmem:[%s4593 + $0x10] sm:$0xff]
    %v4597 = vld [vmem:[%s4593 + $0x18] sm:$0xff]
    %s4598 = scalar_lea.vmem %s7, 6
    %v4599 = vld [vmem:[%s4598] sm:$0x1]
    %v4601 = vlaneseq
    %v4602 = vshrl.u32 %v4601, 7
    %v4603 = vsub.s32 0, %v4602
    %v4604 = vrot.slane %v4599, %v4603
    %4606 = vmatprep.subr.mxu0 0.0
    %4607 = vmatpush1.msra.mxu0 %v4594
    %4608 = vmatprep.subr.mxu0 0.0
    %4609 = vmatpush1.msra.mxu0 %v4595
    %4610 = vmatprep.subr.mxu0 0.0
    %4611 = vmatpush1.msra.mxu0 %v4596
    %4612 = vmatprep.subr.mxu0 0.0
    %4613 = vmatpush1.msra.mxu0 %v4597
    %4614 = vmatprep.subr.mxu0 0.0
    %4615 = vmatpush1.msra.mxu0 0.0
    %4616 = vmatprep.subr.mxu0 0.0
    %4617 = vmatpush1.msra.mxu0 0.0
    %4618 = vmatprep.subr.mxu0 0.0
    %4619 = vmatpush1.msra.mxu0 0.0
    %4620 = vmatprep.subr.mxu0 0.0
    %4621 = vmatpush1.msra.mxu0 0.0
    %4622 = vmatprep.subr.mxu0 0.0
    %4623 = vmatpush1.msra.mxu0 0.0
    %4624 = vmatprep.subr.mxu0 0.0
    %4625 = vmatpush1.msra.mxu0 0.0
    %4626 = vmatprep.subr.mxu0 0.0
    %4627 = vmatpush1.msra.mxu0 0.0
    %4628 = vmatprep.subr.mxu0 0.0
    %4629 = vmatpush1.msra.mxu0 0.0
    %4630 = vmatprep.subr.mxu0 0.0
    %4631 = vmatpush1.msra.mxu0 0.0
    %4632 = vmatprep.subr.mxu0 0.0
    %4633 = vmatpush1.msra.mxu0 0.0
    %4634 = vmatprep.subr.mxu0 0.0
    %4635 = vmatpush1.msra.mxu0 0.0
    %4636 = vmatprep.subr.mxu0 0.0
    %4637 = vmatpush1.msra.mxu0 0.0
    %4638 = vmatprep.subr.mxu0 0.0
    %4639 = vmatpush1.msra.mxu0 0.0
    %4640 = vmatprep.subr.mxu0 0.0
    %4641 = vmatpush1.msra.mxu0 0.0
    %4642 = vmatprep.subr.mxu0 0.0
    %4643 = vmatpush1.msra.mxu0 0.0
    %4644 = vmatprep.subr.mxu0 0.0
    %4645 = vmatpush1.msra.mxu0 0.0
    %4646 = vmatprep.subr.mxu0 0.0
    %4647 = vmatpush1.msra.mxu0 0.0
    %4648 = vmatprep.subr.mxu0 0.0
    %4649 = vmatpush1.msra.mxu0 0.0
    %4650 = vmatprep.subr.mxu0 0.0
    %4651 = vmatpush1.msra.mxu0 0.0
    %4652 = vmatprep.subr.mxu0 0.0
    %4653 = vmatpush1.msra.mxu0 0.0
    %4654 = vmatprep.subr.mxu0 0.0
    %4655 = vmatpush1.msra.mxu0 0.0
    %4656 = vmatprep.subr.mxu0 0.0
    %4657 = vmatpush1.msra.mxu0 0.0
    %4658 = vmatprep.subr.mxu0 0.0
    %4659 = vmatpush1.msra.mxu0 0.0
    %4660 = vmatprep.subr.mxu0 0.0
    %4661 = vmatpush1.msra.mxu0 0.0
    %4662 = vmatprep.subr.mxu0 0.0
    %4663 = vmatpush1.msra.mxu0 0.0
    %4664 = vmatprep.subr.mxu0 0.0
    %4665 = vmatpush1.msra.mxu0 0.0
    %4666 = vmatprep.subr.mxu0 0.0
    %4667 = vmatpush1.msra.mxu0 0.0
    %4668 = vmatprep.subr.mxu0 0.0
    %4669 = vmatpush1.msra.mxu0 0.0
    %4670 = vmatprep.mubr.f32.mxu0 0.0
    %4671 = vmatmul.mubr.f32.gmra.mrb[0].mxu0 %v3179
    %v4672 = vpop.f32.mrb[0].mxu0
    %v4673 = vadd.f32 %v4604, %v4672
    %v4674 = vpop.f32.mrb[0].mxu0
    %4675 = vmatprep.mubr.f32.mxu0 0.0
    %4676 = vmatmul.mubr.f32.gmra.mrb[0].mxu0 %v3182
    %v4677 = vpop.f32.mrb[0].mxu0
    %v4678 = vadd.f32 %v4604, %v4677
    %v4679 = vpop.f32.mrb[0].mxu0
    %4680 = vdwg.mxu0
    %s4681 = scalar_lea.vmem [#allocation4], 192
    %v4682 = vld [vmem:[%s4681] sm:$0xff]
    %v4683 = vld [vmem:[%s4681 + $0x8] sm:$0xff]
    %v4684 = vld [vmem:[%s4681 + $0x10] sm:$0xff]
    %v4685 = vld [vmem:[%s4681 + $0x18] sm:$0xff]
    %s4686 = scalar_lea.vmem %s9, 6
    %v4687 = vld [vmem:[%s4686] sm:$0x1]
    %v4689 = vlaneseq
    %v4690 = vshrl.u32 %v4689, 7
    %v4691 = vsub.s32 0, %v4690
    %v4692 = vrot.slane %v4687, %v4691
    %4694 = vmatprep.subr.mxu0 0.0
    %4695 = vmatpush1.msra.mxu0 %v4682
    %4696 = vmatprep.subr.mxu0 0.0
    %4697 = vmatpush1.msra.mxu0 %v4683
    %4698 = vmatprep.subr.mxu0 0.0
    %4699 = vmatpush1.msra.mxu0 %v4684
    %4700 = vmatprep.subr.mxu0 0.0
    %4701 = vmatpush1.msra.mxu0 %v4685
    %4702 = vmatprep.subr.mxu0 0.0
    %4703 = vmatpush1.msra.mxu0 0.0
    %4704 = vmatprep.subr.mxu0 0.0
    %4705 = vmatpush1.msra.mxu0 0.0
    %4706 = vmatprep.subr.mxu0 0.0
    %4707 = vmatpush1.msra.mxu0 0.0
    %4708 = vmatprep.subr.mxu0 0.0
    %4709 = vmatpush1.msra.mxu0 0.0
    %4710 = vmatprep.subr.mxu0 0.0
    %4711 = vmatpush1.msra.mxu0 0.0
    %4712 = vmatprep.subr.mxu0 0.0
    %4713 = vmatpush1.msra.mxu0 0.0
    %4714 = vmatprep.subr.mxu0 0.0
    %4715 = vmatpush1.msra.mxu0 0.0
    %4716 = vmatprep.subr.mxu0 0.0
    %4717 = vmatpush1.msra.mxu0 0.0
    %4718 = vmatprep.subr.mxu0 0.0
    %4719 = vmatpush1.msra.mxu0 0.0
    %4720 = vmatprep.subr.mxu0 0.0
    %4721 = vmatpush1.msra.mxu0 0.0
    %4722 = vmatprep.subr.mxu0 0.0
    %4723 = vmatpush1.msra.mxu0 0.0
    %4724 = vmatprep.subr.mxu0 0.0
    %4725 = vmatpush1.msra.mxu0 0.0
    %4726 = vmatprep.subr.mxu0 0.0
    %4727 = vmatpush1.msra.mxu0 0.0
    %4728 = vmatprep.subr.mxu0 0.0
    %4729 = vmatpush1.msra.mxu0 0.0
    %4730 = vmatprep.subr.mxu0 0.0
    %4731 = vmatpush1.msra.mxu0 0.0
    %4732 = vmatprep.subr.mxu0 0.0
    %4733 = vmatpush1.msra.mxu0 0.0
    %4734 = vmatprep.subr.mxu0 0.0
    %4735 = vmatpush1.msra.mxu0 0.0
    %4736 = vmatprep.subr.mxu0 0.0
    %4737 = vmatpush1.msra.mxu0 0.0
    %4738 = vmatprep.subr.mxu0 0.0
    %4739 = vmatpush1.msra.mxu0 0.0
    %4740 = vmatprep.subr.mxu0 0.0
    %4741 = vmatpush1.msra.mxu0 0.0
    %4742 = vmatprep.subr.mxu0 0.0
    %4743 = vmatpush1.msra.mxu0 0.0
    %4744 = vmatprep.subr.mxu0 0.0
    %4745 = vmatpush1.msra.mxu0 0.0
    %4746 = vmatprep.subr.mxu0 0.0
    %4747 = vmatpush1.msra.mxu0 0.0
    %4748 = vmatprep.subr.mxu0 0.0
    %4749 = vmatpush1.msra.mxu0 0.0
    %4750 = vmatprep.subr.mxu0 0.0
    %4751 = vmatpush1.msra.mxu0 0.0
    %4752 = vmatprep.subr.mxu0 0.0
    %4753 = vmatpush1.msra.mxu0 0.0
    %4754 = vmatprep.subr.mxu0 0.0
    %4755 = vmatpush1.msra.mxu0 0.0
    %4756 = vmatprep.subr.mxu0 0.0
    %4757 = vmatpush1.msra.mxu0 0.0
    %4758 = vmatprep.mubr.f32.mxu0 0.0
    %4759 = vmatmul.mubr.f32.gmra.mrb[0].mxu0 %v3179
    %v4760 = vpop.f32.mrb[0].mxu0
    %v4761 = vadd.f32 %v4692, %v4760
    %v4762 = vpop.f32.mrb[0].mxu0
    %4763 = vmatprep.mubr.f32.mxu0 0.0
    %4764 = vmatmul.mubr.f32.gmra.mrb[0].mxu0 %v3182
    %v4765 = vpop.f32.mrb[0].mxu0
    %v4766 = vadd.f32 %v4692, %v4765
    %v4767 = vpop.f32.mrb[0].mxu0
    %4768 = vdwg.mxu0
    %v4770 = vsel %vm448, %v4585, 0
    %v4773 = vsel %vm448, %v4673, 0
    %4775 = vmatprep.subr.mxu0 0.0
    %4776 = vmatpush1.xpose.msra.mxu0 %v4773
    %4777 = vmatprep.subr.mxu0 0.0
    %4778 = vmatpush1.xpose.msra.mxu0 0.0
    %4779 = vmatprep.subr.mxu0 0.0
    %4780 = vmatpush1.xpose.msra.mxu0 0.0
    %4781 = vmatprep.subr.mxu0 0.0
    %4782 = vmatpush1.xpose.msra.mxu0 0.0
    %4783 = vmatprep.subr.mxu0 0.0
    %4784 = vmatpush1.xpose.msra.mxu0 0.0
    %4785 = vmatprep.subr.mxu0 0.0
    %4786 = vmatpush1.xpose.msra.mxu0 0.0
    %4787 = vmatprep.subr.mxu0 0.0
    %4788 = vmatpush1.xpose.msra.mxu0 0.0
    %4789 = vmatprep.subr.mxu0 0.0
    %4790 = vmatpush1.xpose.msra.mxu0 0.0
    %4791 = vmatprep.subr.mxu0 0.0
    %4792 = vmatpush1.xpose.msra.mxu0 0.0
    %4793 = vmatprep.subr.mxu0 0.0
    %4794 = vmatpush1.xpose.msra.mxu0 0.0
    %4795 = vmatprep.subr.mxu0 0.0
    %4796 = vmatpush1.xpose.msra.mxu0 0.0
    %4797 = vmatprep.subr.mxu0 0.0
    %4798 = vmatpush1.xpose.msra.mxu0 0.0
    %4799 = vmatprep.subr.mxu0 0.0
    %4800 = vmatpush1.xpose.msra.mxu0 0.0
    %4801 = vmatprep.subr.mxu0 0.0
    %4802 = vmatpush1.xpose.msra.mxu0 0.0
    %4803 = vmatprep.subr.mxu0 0.0
    %4804 = vmatpush1.xpose.msra.mxu0 0.0
    %4805 = vmatprep.subr.mxu0 0.0
    %4806 = vmatpush1.xpose.msra.mxu0 0.0
    %4807 = vmatprep.subr.mxu0 0.0
    %4808 = vmatpush1.xpose.msra.mxu0 0.0
    %4809 = vmatprep.subr.mxu0 0.0
    %4810 = vmatpush1.xpose.msra.mxu0 0.0
    %4811 = vmatprep.subr.mxu0 0.0
    %4812 = vmatpush1.xpose.msra.mxu0 0.0
    %4813 = vmatprep.subr.mxu0 0.0
    %4814 = vmatpush1.xpose.msra.mxu0 0.0
    %4815 = vmatprep.subr.mxu0 0.0
    %4816 = vmatpush1.xpose.msra.mxu0 0.0
    %4817 = vmatprep.subr.mxu0 0.0
    %4818 = vmatpush1.xpose.msra.mxu0 0.0
    %4819 = vmatprep.subr.mxu0 0.0
    %4820 = vmatpush1.xpose.msra.mxu0 0.0
    %4821 = vmatprep.subr.mxu0 0.0
    %4822 = vmatpush1.xpose.msra.mxu0 0.0
    %4823 = vmatprep.subr.mxu0 0.0
    %4824 = vmatpush1.xpose.msra.mxu0 0.0
    %4825 = vmatprep.subr.mxu0 0.0
    %4826 = vmatpush1.xpose.msra.mxu0 0.0
    %4827 = vmatprep.subr.mxu0 0.0
    %4828 = vmatpush1.xpose.msra.mxu0 0.0
    %4829 = vmatprep.subr.mxu0 0.0
    %4830 = vmatpush1.xpose.msra.mxu0 0.0
    %4831 = vmatprep.subr.mxu0 0.0
    %4832 = vmatpush1.xpose.msra.mxu0 0.0
    %4833 = vmatprep.subr.mxu0 0.0
    %4834 = vmatpush1.xpose.msra.mxu0 0.0
    %4835 = vmatprep.subr.mxu0 0.0
    %4836 = vmatpush1.xpose.msra.mxu0 0.0
    %4837 = vmatprep.subr.mxu0 0.0
    %4838 = vmatpush1.xpose.msra.mxu0 0.0
    %4839 = vmatprep.mubr.f32.mxu0 0.0
    %4840 = vmatmul.mubr.f32.gmra.mrb[0].mxu0 %v4770
    %v4841 = vpop.f32.mrb[0].mxu0
    %v4842 = vadd.f32 %v441, %v4841
    %v4843 = vpop.f32.mrb[0].mxu0
    %4844 = vdwg.mxu0
    %v4846 = vsel %vm448, %v4590, 0
    %v4849 = vsel %vm448, %v4678, 0
    %4851 = vmatprep.subr.mxu0 0.0
    %4852 = vmatpush1.xpose.msra.mxu0 %v4849
    %4853 = vmatprep.subr.mxu0 0.0
    %4854 = vmatpush1.xpose.msra.mxu0 0.0
    %4855 = vmatprep.subr.mxu0 0.0
    %4856 = vmatpush1.xpose.msra.mxu0 0.0
    %4857 = vmatprep.subr.mxu0 0.0
    %4858 = vmatpush1.xpose.msra.mxu0 0.0
    %4859 = vmatprep.subr.mxu0 0.0
    %4860 = vmatpush1.xpose.msra.mxu0 0.0
    %4861 = vmatprep.subr.mxu0 0.0
    %4862 = vmatpush1.xpose.msra.mxu0 0.0
    %4863 = vmatprep.subr.mxu0 0.0
    %4864 = vmatpush1.xpose.msra.mxu0 0.0
    %4865 = vmatprep.subr.mxu0 0.0
    %4866 = vmatpush1.xpose.msra.mxu0 0.0
    %4867 = vmatprep.subr.mxu0 0.0
    %4868 = vmatpush1.xpose.msra.mxu0 0.0
    %4869 = vmatprep.subr.mxu0 0.0
    %4870 = vmatpush1.xpose.msra.mxu0 0.0
    %4871 = vmatprep.subr.mxu0 0.0
    %4872 = vmatpush1.xpose.msra.mxu0 0.0
    %4873 = vmatprep.subr.mxu0 0.0
    %4874 = vmatpush1.xpose.msra.mxu0 0.0
    %4875 = vmatprep.subr.mxu0 0.0
    %4876 = vmatpush1.xpose.msra.mxu0 0.0
    %4877 = vmatprep.subr.mxu0 0.0
    %4878 = vmatpush1.xpose.msra.mxu0 0.0
    %4879 = vmatprep.subr.mxu0 0.0
    %4880 = vmatpush1.xpose.msra.mxu0 0.0
    %4881 = vmatprep.subr.mxu0 0.0
    %4882 = vmatpush1.xpose.msra.mxu0 0.0
    %4883 = vmatprep.subr.mxu0 0.0
    %4884 = vmatpush1.xpose.msra.mxu0 0.0
    %4885 = vmatprep.subr.mxu0 0.0
    %4886 = vmatpush1.xpose.msra.mxu0 0.0
    %4887 = vmatprep.subr.mxu0 0.0
    %4888 = vmatpush1.xpose.msra.mxu0 0.0
    %4889 = vmatprep.subr.mxu0 0.0
    %4890 = vmatpush1.xpose.msra.mxu0 0.0
    %4891 = vmatprep.subr.mxu0 0.0
    %4892 = vmatpush1.xpose.msra.mxu0 0.0
    %4893 = vmatprep.subr.mxu0 0.0
    %4894 = vmatpush1.xpose.msra.mxu0 0.0
    %4895 = vmatprep.subr.mxu0 0.0
    %4896 = vmatpush1.xpose.msra.mxu0 0.0
    %4897 = vmatprep.subr.mxu0 0.0
    %4898 = vmatpush1.xpose.msra.mxu0 0.0
    %4899 = vmatprep.subr.mxu0 0.0
    %4900 = vmatpush1.xpose.msra.mxu0 0.0
    %4901 = vmatprep.subr.mxu0 0.0
    %4902 = vmatpush1.xpose.msra.mxu0 0.0
    %4903 = vmatprep.subr.mxu0 0.0
    %4904 = vmatpush1.xpose.msra.mxu0 0.0
    %4905 = vmatprep.subr.mxu0 0.0
    %4906 = vmatpush1.xpose.msra.mxu0 0.0
    %4907 = vmatprep.subr.mxu0 0.0
    %4908 = vmatpush1.xpose.msra.mxu0 0.0
    %4909 = vmatprep.subr.mxu0 0.0
    %4910 = vmatpush1.xpose.msra.mxu0 0.0
    %4911 = vmatprep.subr.mxu0 0.0
    %4912 = vmatpush1.xpose.msra.mxu0 0.0
    %4913 = vmatprep.subr.mxu0 0.0
    %4914 = vmatpush1.xpose.msra.mxu0 0.0
    %4915 = vmatprep.mubr.f32.mxu0 0.0
    %4916 = vmatmul.mubr.f32.gmra.mrb[0].mxu0 %v4846
    %v4917 = vpop.f32.mrb[0].mxu0
    %v4918 = vadd.f32 %v445, %v4917
    %v4919 = vpop.f32.mrb[0].mxu0
    %4920 = vdwg.mxu0
    %v4921 = vsel %vm448, %v4842, -inf
    %4922 = vmax.xlane.f32.xlu0 %v4921
    %v4923 = vpop.xlane.xlu0 %4922
    %v4924 = vsel %vm448, %v4918, -inf
    %4925 = vmax.xlane.f32.xlu0 %v4924
    %v4926 = vpop.xlane.xlu0 %4925
    %v4927 = vsub.f32 %v4842, %v4923
    %v4928 = vsub.f32 %v4918, %v4926
    %v4929 = vmul.f32 %v4927, 1.442695
    %v4930 = vpow.pop %v4929
    %v4931 = vmul.f32 %v4928, 1.442695
    %v4932 = vpow.pop %v4931
    %v4933 = vsel %vm448, %v4930, 0.0
    %4934 = vadd.xlane.f32.xlu0 %v4933
    %v4935 = vpop.xlane.xlu0 %4934
    %v4936 = vsel %vm448, %v4932, 0.0
    %4937 = vadd.xlane.f32.xlu0 %v4936
    %v4938 = vpop.xlane.xlu0 %4937
    %v4939 = vrcp.pop %v4935
    %v4940 = vrcp.pop %v4938
    %v4941 = vmul.f32 %v4930, %v4939
    %v4942 = vmul.f32 %v4932, %v4940
    %v4944 = vsel %vm448, %v4941, 0
    %4946 = vmatprep.subr.mxu0 0.0
    %4947 = vmatpush1.msra.mxu0 %v4761
    %4948 = vmatprep.subr.mxu0 0.0
    %4949 = vmatpush1.msra.mxu0 0.0
    %4950 = vmatprep.subr.mxu0 0.0
    %4951 = vmatpush1.msra.mxu0 0.0
    %4952 = vmatprep.subr.mxu0 0.0
    %4953 = vmatpush1.msra.mxu0 0.0
    %4954 = vmatprep.subr.mxu0 0.0
    %4955 = vmatpush1.msra.mxu0 0.0
    %4956 = vmatprep.subr.mxu0 0.0
    %4957 = vmatpush1.msra.mxu0 0.0
    %4958 = vmatprep.subr.mxu0 0.0
    %4959 = vmatpush1.msra.mxu0 0.0
    %4960 = vmatprep.subr.mxu0 0.0
    %4961 = vmatpush1.msra.mxu0 0.0
    %4962 = vmatprep.subr.mxu0 0.0
    %4963 = vmatpush1.msra.mxu0 0.0
    %4964 = vmatprep.subr.mxu0 0.0
    %4965 = vmatpush1.msra.mxu0 0.0
    %4966 = vmatprep.subr.mxu0 0.0
    %4967 = vmatpush1.msra.mxu0 0.0
    %4968 = vmatprep.subr.mxu0 0.0
    %4969 = vmatpush1.msra.mxu0 0.0
    %4970 = vmatprep.subr.mxu0 0.0
    %4971 = vmatpush1.msra.mxu0 0.0
    %4972 = vmatprep.subr.mxu0 0.0
    %4973 = vmatpush1.msra.mxu0 0.0
    %4974 = vmatprep.subr.mxu0 0.0
    %4975 = vmatpush1.msra.mxu0 0.0
    %4976 = vmatprep.subr.mxu0 0.0
    %4977 = vmatpush1.msra.mxu0 0.0
    %4978 = vmatprep.subr.mxu0 0.0
    %4979 = vmatpush1.msra.mxu0 0.0
    %4980 = vmatprep.subr.mxu0 0.0
    %4981 = vmatpush1.msra.mxu0 0.0
    %4982 = vmatprep.subr.mxu0 0.0
    %4983 = vmatpush1.msra.mxu0 0.0
    %4984 = vmatprep.subr.mxu0 0.0
    %4985 = vmatpush1.msra.mxu0 0.0
    %4986 = vmatprep.subr.mxu0 0.0
    %4987 = vmatpush1.msra.mxu0 0.0
    %4988 = vmatprep.subr.mxu0 0.0
    %4989 = vmatpush1.msra.mxu0 0.0
    %4990 = vmatprep.subr.mxu0 0.0
    %4991 = vmatpush1.msra.mxu0 0.0
    %4992 = vmatprep.subr.mxu0 0.0
    %4993 = vmatpush1.msra.mxu0 0.0
    %4994 = vmatprep.subr.mxu0 0.0
    %4995 = vmatpush1.msra.mxu0 0.0
    %4996 = vmatprep.subr.mxu0 0.0
    %4997 = vmatpush1.msra.mxu0 0.0
    %4998 = vmatprep.subr.mxu0 0.0
    %4999 = vmatpush1.msra.mxu0 0.0
    %5000 = vmatprep.subr.mxu0 0.0
    %5001 = vmatpush1.msra.mxu0 0.0
    %5002 = vmatprep.subr.mxu0 0.0
    %5003 = vmatpush1.msra.mxu0 0.0
    %5004 = vmatprep.subr.mxu0 0.0
    %5005 = vmatpush1.msra.mxu0 0.0
    %5006 = vmatprep.subr.mxu0 0.0
    %5007 = vmatpush1.msra.mxu0 0.0
    %5008 = vmatprep.subr.mxu0 0.0
    %5009 = vmatpush1.msra.mxu0 0.0
    %5010 = vmatprep.mubr.f32.mxu0 0.0
    %5011 = vmatmul.mubr.f32.gmra.mrb[0].mxu0 %v4944
    %v5012 = vpop.f32.mrb[0].mxu0
    %v5013 = vadd.f32 0.0, %v5012
    %v5014 = vpop.f32.mrb[0].mxu0
    %5015 = vdwg.mxu0
    %v5017 = vsel %vm448, %v4942, 0
    %5019 = vmatprep.subr.mxu0 0.0
    %5020 = vmatpush1.msra.mxu0 %v4766
    %5021 = vmatprep.subr.mxu0 0.0
    %5022 = vmatpush1.msra.mxu0 0.0
    %5023 = vmatprep.subr.mxu0 0.0
    %5024 = vmatpush1.msra.mxu0 0.0
    %5025 = vmatprep.subr.mxu0 0.0
    %5026 = vmatpush1.msra.mxu0 0.0
    %5027 = vmatprep.subr.mxu0 0.0
    %5028 = vmatpush1.msra.mxu0 0.0
    %5029 = vmatprep.subr.mxu0 0.0
    %5030 = vmatpush1.msra.mxu0 0.0
    %5031 = vmatprep.subr.mxu0 0.0
    %5032 = vmatpush1.msra.mxu0 0.0
    %5033 = vmatprep.subr.mxu0 0.0
    %5034 = vmatpush1.msra.mxu0 0.0
    %5035 = vmatprep.subr.mxu0 0.0
    %5036 = vmatpush1.msra.mxu0 0.0
    %5037 = vmatprep.subr.mxu0 0.0
    %5038 = vmatpush1.msra.mxu0 0.0
    %5039 = vmatprep.subr.mxu0 0.0
    %5040 = vmatpush1.msra.mxu0 0.0
    %5041 = vmatprep.subr.mxu0 0.0
    %5042 = vmatpush1.msra.mxu0 0.0
    %5043 = vmatprep.subr.mxu0 0.0
    %5044 = vmatpush1.msra.mxu0 0.0
    %5045 = vmatprep.subr.mxu0 0.0
    %5046 = vmatpush1.msra.mxu0 0.0
    %5047 = vmatprep.subr.mxu0 0.0
    %5048 = vmatpush1.msra.mxu0 0.0
    %5049 = vmatprep.subr.mxu0 0.0
    %5050 = vmatpush1.msra.mxu0 0.0
    %5051 = vmatprep.subr.mxu0 0.0
    %5052 = vmatpush1.msra.mxu0 0.0
    %5053 = vmatprep.subr.mxu0 0.0
    %5054 = vmatpush1.msra.mxu0 0.0
    %5055 = vmatprep.subr.mxu0 0.0
    %5056 = vmatpush1.msra.mxu0 0.0
    %5057 = vmatprep.subr.mxu0 0.0
    %5058 = vmatpush1.msra.mxu0 0.0
    %5059 = vmatprep.subr.mxu0 0.0
    %5060 = vmatpush1.msra.mxu0 0.0
    %5061 = vmatprep.subr.mxu0 0.0
    %5062 = vmatpush1.msra.mxu0 0.0
    %5063 = vmatprep.subr.mxu0 0.0
    %5064 = vmatpush1.msra.mxu0 0.0
    %5065 = vmatprep.subr.mxu0 0.0
    %5066 = vmatpush1.msra.mxu0 0.0
    %5067 = vmatprep.subr.mxu0 0.0
    %5068 = vmatpush1.msra.mxu0 0.0
    %5069 = vmatprep.subr.mxu0 0.0
    %5070 = vmatpush1.msra.mxu0 0.0
    %5071 = vmatprep.subr.mxu0 0.0
    %5072 = vmatpush1.msra.mxu0 0.0
    %5073 = vmatprep.subr.mxu0 0.0
    %5074 = vmatpush1.msra.mxu0 0.0
    %5075 = vmatprep.subr.mxu0 0.0
    %5076 = vmatpush1.msra.mxu0 0.0
    %5077 = vmatprep.subr.mxu0 0.0
    %5078 = vmatpush1.msra.mxu0 0.0
    %5079 = vmatprep.subr.mxu0 0.0
    %5080 = vmatpush1.msra.mxu0 0.0
    %5081 = vmatprep.subr.mxu0 0.0
    %5082 = vmatpush1.msra.mxu0 0.0
    %5083 = vmatprep.mubr.f32.mxu0 0.0
    %5084 = vmatmul.mubr.f32.gmra.mrb[0].mxu0 %v5017
    %v5085 = vpop.f32.mrb[0].mxu0
    %v5086 = vadd.f32 0.0, %v5085
    %v5087 = vpop.f32.mrb[0].mxu0
    %5088 = vdwg.mxu0
    %s5089 = scalar_lea.vmem %s10, 48
    %v5090 = vld [vmem:[%s5089] sm:$0xff]
    %v5092 = vsel %vm448, %v5013, 0
    %v5095 = vsel %vm448, %v5086, 0
    %5097 = vmatprep.subr.mxu0 0.0
    %5098 = vmatpush1.msra.mxu0 %v5090
    %5099 = vmatprep.subr.mxu0 0.0
    %5100 = vmatpush1.msra.mxu0 0.0
    %5101 = vmatprep.subr.mxu0 0.0
    %5102 = vmatpush1.msra.mxu0 0.0
    %5103 = vmatprep.subr.mxu0 0.0
    %5104 = vmatpush1.msra.mxu0 0.0
    %5105 = vmatprep.subr.mxu0 0.0
    %5106 = vmatpush1.msra.mxu0 0.0
    %5107 = vmatprep.subr.mxu0 0.0
    %5108 = vmatpush1.msra.mxu0 0.0
    %5109 = vmatprep.subr.mxu0 0.0
    %5110 = vmatpush1.msra.mxu0 0.0
    %5111 = vmatprep.subr.mxu0 0.0
    %5112 = vmatpush1.msra.mxu0 0.0
    %5113 = vmatprep.subr.mxu0 0.0
    %5114 = vmatpush1.msra.mxu0 0.0
    %5115 = vmatprep.subr.mxu0 0.0
    %5116 = vmatpush1.msra.mxu0 0.0
    %5117 = vmatprep.subr.mxu0 0.0
    %5118 = vmatpush1.msra.mxu0 0.0
    %5119 = vmatprep.subr.mxu0 0.0
    %5120 = vmatpush1.msra.mxu0 0.0
    %5121 = vmatprep.subr.mxu0 0.0
    %5122 = vmatpush1.msra.mxu0 0.0
    %5123 = vmatprep.subr.mxu0 0.0
    %5124 = vmatpush1.msra.mxu0 0.0
    %5125 = vmatprep.subr.mxu0 0.0
    %5126 = vmatpush1.msra.mxu0 0.0
    %5127 = vmatprep.subr.mxu0 0.0
    %5128 = vmatpush1.msra.mxu0 0.0
    %5129 = vmatprep.subr.mxu0 0.0
    %5130 = vmatpush1.msra.mxu0 0.0
    %5131 = vmatprep.subr.mxu0 0.0
    %5132 = vmatpush1.msra.mxu0 0.0
    %5133 = vmatprep.subr.mxu0 0.0
    %5134 = vmatpush1.msra.mxu0 0.0
    %5135 = vmatprep.subr.mxu0 0.0
    %5136 = vmatpush1.msra.mxu0 0.0
    %5137 = vmatprep.subr.mxu0 0.0
    %5138 = vmatpush1.msra.mxu0 0.0
    %5139 = vmatprep.subr.mxu0 0.0
    %5140 = vmatpush1.msra.mxu0 0.0
    %5141 = vmatprep.subr.mxu0 0.0
    %5142 = vmatpush1.msra.mxu0 0.0
    %5143 = vmatprep.subr.mxu0 0.0
    %5144 = vmatpush1.msra.mxu0 0.0
    %5145 = vmatprep.subr.mxu0 0.0
    %5146 = vmatpush1.msra.mxu0 0.0
    %5147 = vmatprep.subr.mxu0 0.0
    %5148 = vmatpush1.msra.mxu0 0.0
    %5149 = vmatprep.subr.mxu0 0.0
    %5150 = vmatpush1.msra.mxu0 0.0
    %5151 = vmatprep.subr.mxu0 0.0
    %5152 = vmatpush1.msra.mxu0 0.0
    %5153 = vmatprep.subr.mxu0 0.0
    %5154 = vmatpush1.msra.mxu0 0.0
    %5155 = vmatprep.subr.mxu0 0.0
    %5156 = vmatpush1.msra.mxu0 0.0
    %5157 = vmatprep.subr.mxu0 0.0
    %5158 = vmatpush1.msra.mxu0 0.0
    %5159 = vmatprep.subr.mxu0 0.0
    %5160 = vmatpush1.msra.mxu0 0.0
    %5161 = vmatprep.mubr.f32.mxu0 0.0
    %5162 = vmatmul.mubr.f32.gmra.mrb[0].mxu0 %v5092
    %v5163 = vpop.f32.mrb[0].mxu0
    %v5164 = vadd.f32 0.0, %v5163
    %v5165 = vpop.f32.mrb[0].mxu0
    %5166 = vmatprep.mubr.f32.mxu0 0.0
    %5167 = vmatmul.mubr.f32.gmra.mrb[0].mxu0 %v5095
    %v5168 = vpop.f32.mrb[0].mxu0
    %v5169 = vadd.f32 0.0, %v5168
    %v5170 = vpop.f32.mrb[0].mxu0
    %5171 = vdwg.mxu0
    %v5172 = vadd.f32 %v4497, %v5164
    %v5173 = vadd.f32 %v4502, %v5169
    %s5174 = scalar_lea.vmem %s4, 224
    %v5175 = vld [vmem:[%s5174] sm:$0xff]
    %v5176 = vld [vmem:[%s5174 + $0x8] sm:$0xff]
    %v5177 = vld [vmem:[%s5174 + $0x10] sm:$0xff]
    %v5178 = vld [vmem:[%s5174 + $0x18] sm:$0xff]
    %s5179 = scalar_lea.vmem %s5, 7
    %v5180 = vld [vmem:[%s5179] sm:$0x1]
    %v5182 = vlaneseq
    %v5183 = vshrl.u32 %v5182, 7
    %v5184 = vsub.s32 0, %v5183
    %v5185 = vrot.slane %v5180, %v5184
    %5187 = vmatprep.subr.mxu0 0.0
    %5188 = vmatpush1.msra.mxu0 %v5175
    %5189 = vmatprep.subr.mxu0 0.0
    %5190 = vmatpush1.msra.mxu0 %v5176
    %5191 = vmatprep.subr.mxu0 0.0
    %5192 = vmatpush1.msra.mxu0 %v5177
    %5193 = vmatprep.subr.mxu0 0.0
    %5194 = vmatpush1.msra.mxu0 %v5178
    %5195 = vmatprep.subr.mxu0 0.0
    %5196 = vmatpush1.msra.mxu0 0.0
    %5197 = vmatprep.subr.mxu0 0.0
    %5198 = vmatpush1.msra.mxu0 0.0
    %5199 = vmatprep.subr.mxu0 0.0
    %5200 = vmatpush1.msra.mxu0 0.0
    %5201 = vmatprep.subr.mxu0 0.0
    %5202 = vmatpush1.msra.mxu0 0.0
    %5203 = vmatprep.subr.mxu0 0.0
    %5204 = vmatpush1.msra.mxu0 0.0
    %5205 = vmatprep.subr.mxu0 0.0
    %5206 = vmatpush1.msra.mxu0 0.0
    %5207 = vmatprep.subr.mxu0 0.0
    %5208 = vmatpush1.msra.mxu0 0.0
    %5209 = vmatprep.subr.mxu0 0.0
    %5210 = vmatpush1.msra.mxu0 0.0
    %5211 = vmatprep.subr.mxu0 0.0
    %5212 = vmatpush1.msra.mxu0 0.0
    %5213 = vmatprep.subr.mxu0 0.0
    %5214 = vmatpush1.msra.mxu0 0.0
    %5215 = vmatprep.subr.mxu0 0.0
    %5216 = vmatpush1.msra.mxu0 0.0
    %5217 = vmatprep.subr.mxu0 0.0
    %5218 = vmatpush1.msra.mxu0 0.0
    %5219 = vmatprep.subr.mxu0 0.0
    %5220 = vmatpush1.msra.mxu0 0.0
    %5221 = vmatprep.subr.mxu0 0.0
    %5222 = vmatpush1.msra.mxu0 0.0
    %5223 = vmatprep.subr.mxu0 0.0
    %5224 = vmatpush1.msra.mxu0 0.0
    %5225 = vmatprep.subr.mxu0 0.0
    %5226 = vmatpush1.msra.mxu0 0.0
    %5227 = vmatprep.subr.mxu0 0.0
    %5228 = vmatpush1.msra.mxu0 0.0
    %5229 = vmatprep.subr.mxu0 0.0
    %5230 = vmatpush1.msra.mxu0 0.0
    %5231 = vmatprep.subr.mxu0 0.0
    %5232 = vmatpush1.msra.mxu0 0.0
    %5233 = vmatprep.subr.mxu0 0.0
    %5234 = vmatpush1.msra.mxu0 0.0
    %5235 = vmatprep.subr.mxu0 0.0
    %5236 = vmatpush1.msra.mxu0 0.0
    %5237 = vmatprep.subr.mxu0 0.0
    %5238 = vmatpush1.msra.mxu0 0.0
    %5239 = vmatprep.subr.mxu0 0.0
    %5240 = vmatpush1.msra.mxu0 0.0
    %5241 = vmatprep.subr.mxu0 0.0
    %5242 = vmatpush1.msra.mxu0 0.0
    %5243 = vmatprep.subr.mxu0 0.0
    %5244 = vmatpush1.msra.mxu0 0.0
    %5245 = vmatprep.subr.mxu0 0.0
    %5246 = vmatpush1.msra.mxu0 0.0
    %5247 = vmatprep.subr.mxu0 0.0
    %5248 = vmatpush1.msra.mxu0 0.0
    %5249 = vmatprep.subr.mxu0 0.0
    %5250 = vmatpush1.msra.mxu0 0.0
    %5251 = vmatprep.mubr.f32.mxu0 0.0
    %5252 = vmatmul.mubr.f32.gmra.mrb[0].mxu0 %v3179
    %v5253 = vpop.f32.mrb[0].mxu0
    %v5254 = vadd.f32 %v5185, %v5253
    %v5255 = vpop.f32.mrb[0].mxu0
    %5256 = vmatprep.mubr.f32.mxu0 0.0
    %5257 = vmatmul.mubr.f32.gmra.mrb[0].mxu0 %v3182
    %v5258 = vpop.f32.mrb[0].mxu0
    %v5259 = vadd.f32 %v5185, %v5258
    %v5260 = vpop.f32.mrb[0].mxu0
    %5261 = vdwg.mxu0
    %s5262 = scalar_lea.vmem [#allocation2], 224
    %v5263 = vld [vmem:[%s5262] sm:$0xff]
    %v5264 = vld [vmem:[%s5262 + $0x8] sm:$0xff]
    %v5265 = vld [vmem:[%s5262 + $0x10] sm:$0xff]
    %v5266 = vld [vmem:[%s5262 + $0x18] sm:$0xff]
    %s5267 = scalar_lea.vmem %s7, 7
    %v5268 = vld [vmem:[%s5267] sm:$0x1]
    %v5270 = vlaneseq
    %v5271 = vshrl.u32 %v5270, 7
    %v5272 = vsub.s32 0, %v5271
    %v5273 = vrot.slane %v5268, %v5272
    %5275 = vmatprep.subr.mxu0 0.0
    %5276 = vmatpush1.msra.mxu0 %v5263
    %5277 = vmatprep.subr.mxu0 0.0
    %5278 = vmatpush1.msra.mxu0 %v5264
    %5279 = vmatprep.subr.mxu0 0.0
    %5280 = vmatpush1.msra.mxu0 %v5265
    %5281 = vmatprep.subr.mxu0 0.0
    %5282 = vmatpush1.msra.mxu0 %v5266
    %5283 = vmatprep.subr.mxu0 0.0
    %5284 = vmatpush1.msra.mxu0 0.0
    %5285 = vmatprep.subr.mxu0 0.0
    %5286 = vmatpush1.msra.mxu0 0.0
    %5287 = vmatprep.subr.mxu0 0.0
    %5288 = vmatpush1.msra.mxu0 0.0
    %5289 = vmatprep.subr.mxu0 0.0
    %5290 = vmatpush1.msra.mxu0 0.0
    %5291 = vmatprep.subr.mxu0 0.0
    %5292 = vmatpush1.msra.mxu0 0.0
    %5293 = vmatprep.subr.mxu0 0.0
    %5294 = vmatpush1.msra.mxu0 0.0
    %5295 = vmatprep.subr.mxu0 0.0
    %5296 = vmatpush1.msra.mxu0 0.0
    %5297 = vmatprep.subr.mxu0 0.0
    %5298 = vmatpush1.msra.mxu0 0.0
    %5299 = vmatprep.subr.mxu0 0.0
    %5300 = vmatpush1.msra.mxu0 0.0
    %5301 = vmatprep.subr.mxu0 0.0
    %5302 = vmatpush1.msra.mxu0 0.0
    %5303 = vmatprep.subr.mxu0 0.0
    %5304 = vmatpush1.msra.mxu0 0.0
    %5305 = vmatprep.subr.mxu0 0.0
    %5306 = vmatpush1.msra.mxu0 0.0
    %5307 = vmatprep.subr.mxu0 0.0
    %5308 = vmatpush1.msra.mxu0 0.0
    %5309 = vmatprep.subr.mxu0 0.0
    %5310 = vmatpush1.msra.mxu0 0.0
    %5311 = vmatprep.subr.mxu0 0.0
    %5312 = vmatpush1.msra.mxu0 0.0
    %5313 = vmatprep.subr.mxu0 0.0
    %5314 = vmatpush1.msra.mxu0 0.0
    %5315 = vmatprep.subr.mxu0 0.0
    %5316 = vmatpush1.msra.mxu0 0.0
    %5317 = vmatprep.subr.mxu0 0.0
    %5318 = vmatpush1.msra.mxu0 0.0
    %5319 = vmatprep.subr.mxu0 0.0
    %5320 = vmatpush1.msra.mxu0 0.0
    %5321 = vmatprep.subr.mxu0 0.0
    %5322 = vmatpush1.msra.mxu0 0.0
    %5323 = vmatprep.subr.mxu0 0.0
    %5324 = vmatpush1.msra.mxu0 0.0
    %5325 = vmatprep.subr.mxu0 0.0
    %5326 = vmatpush1.msra.mxu0 0.0
    %5327 = vmatprep.subr.mxu0 0.0
    %5328 = vmatpush1.msra.mxu0 0.0
    %5329 = vmatprep.subr.mxu0 0.0
    %5330 = vmatpush1.msra.mxu0 0.0
    %5331 = vmatprep.subr.mxu0 0.0
    %5332 = vmatpush1.msra.mxu0 0.0
    %5333 = vmatprep.subr.mxu0 0.0
    %5334 = vmatpush1.msra.mxu0 0.0
    %5335 = vmatprep.subr.mxu0 0.0
    %5336 = vmatpush1.msra.mxu0 0.0
    %5337 = vmatprep.subr.mxu0 0.0
    %5338 = vmatpush1.msra.mxu0 0.0
    %5339 = vmatprep.mubr.f32.mxu0 0.0
    %5340 = vmatmul.mubr.f32.gmra.mrb[0].mxu0 %v3179
    %v5341 = vpop.f32.mrb[0].mxu0
    %v5342 = vadd.f32 %v5273, %v5341
    %v5343 = vpop.f32.mrb[0].mxu0
    %5344 = vmatprep.mubr.f32.mxu0 0.0
    %5345 = vmatmul.mubr.f32.gmra.mrb[0].mxu0 %v3182
    %v5346 = vpop.f32.mrb[0].mxu0
    %v5347 = vadd.f32 %v5273, %v5346
    %v5348 = vpop.f32.mrb[0].mxu0
    %5349 = vdwg.mxu0
    %s5350 = scalar_lea.vmem [#allocation4], 224
    %v5351 = vld [vmem:[%s5350] sm:$0xff]
    %v5352 = vld [vmem:[%s5350 + $0x8] sm:$0xff]
    %v5353 = vld [vmem:[%s5350 + $0x10] sm:$0xff]
    %v5354 = vld [vmem:[%s5350 + $0x18] sm:$0xff]
    %s5355 = scalar_lea.vmem %s9, 7
    %v5356 = vld [vmem:[%s5355] sm:$0x1]
    %v5358 = vlaneseq
    %v5359 = vshrl.u32 %v5358, 7
    %v5360 = vsub.s32 0, %v5359
    %v5361 = vrot.slane %v5356, %v5360
    %5363 = vmatprep.subr.mxu0 0.0
    %5364 = vmatpush1.msra.mxu0 %v5351
    %5365 = vmatprep.subr.mxu0 0.0
    %5366 = vmatpush1.msra.mxu0 %v5352
    %5367 = vmatprep.subr.mxu0 0.0
    %5368 = vmatpush1.msra.mxu0 %v5353
    %5369 = vmatprep.subr.mxu0 0.0
    %5370 = vmatpush1.msra.mxu0 %v5354
    %5371 = vmatprep.subr.mxu0 0.0
    %5372 = vmatpush1.msra.mxu0 0.0
    %5373 = vmatprep.subr.mxu0 0.0
    %5374 = vmatpush1.msra.mxu0 0.0
    %5375 = vmatprep.subr.mxu0 0.0
    %5376 = vmatpush1.msra.mxu0 0.0
    %5377 = vmatprep.subr.mxu0 0.0
    %5378 = vmatpush1.msra.mxu0 0.0
    %5379 = vmatprep.subr.mxu0 0.0
    %5380 = vmatpush1.msra.mxu0 0.0
    %5381 = vmatprep.subr.mxu0 0.0
    %5382 = vmatpush1.msra.mxu0 0.0
    %5383 = vmatprep.subr.mxu0 0.0
    %5384 = vmatpush1.msra.mxu0 0.0
    %5385 = vmatprep.subr.mxu0 0.0
    %5386 = vmatpush1.msra.mxu0 0.0
    %5387 = vmatprep.subr.mxu0 0.0
    %5388 = vmatpush1.msra.mxu0 0.0
    %5389 = vmatprep.subr.mxu0 0.0
    %5390 = vmatpush1.msra.mxu0 0.0
    %5391 = vmatprep.subr.mxu0 0.0
    %5392 = vmatpush1.msra.mxu0 0.0
    %5393 = vmatprep.subr.mxu0 0.0
    %5394 = vmatpush1.msra.mxu0 0.0
    %5395 = vmatprep.subr.mxu0 0.0
    %5396 = vmatpush1.msra.mxu0 0.0
    %5397 = vmatprep.subr.mxu0 0.0
    %5398 = vmatpush1.msra.mxu0 0.0
    %5399 = vmatprep.subr.mxu0 0.0
    %5400 = vmatpush1.msra.mxu0 0.0
    %5401 = vmatprep.subr.mxu0 0.0
    %5402 = vmatpush1.msra.mxu0 0.0
    %5403 = vmatprep.subr.mxu0 0.0
    %5404 = vmatpush1.msra.mxu0 0.0
    %5405 = vmatprep.subr.mxu0 0.0
    %5406 = vmatpush1.msra.mxu0 0.0
    %5407 = vmatprep.subr.mxu0 0.0
    %5408 = vmatpush1.msra.mxu0 0.0
    %5409 = vmatprep.subr.mxu0 0.0
    %5410 = vmatpush1.msra.mxu0 0.0
    %5411 = vmatprep.subr.mxu0 0.0
    %5412 = vmatpush1.msra.mxu0 0.0
    %5413 = vmatprep.subr.mxu0 0.0
    %5414 = vmatpush1.msra.mxu0 0.0
    %5415 = vmatprep.subr.mxu0 0.0
    %5416 = vmatpush1.msra.mxu0 0.0
    %5417 = vmatprep.subr.mxu0 0.0
    %5418 = vmatpush1.msra.mxu0 0.0
    %5419 = vmatprep.subr.mxu0 0.0
    %5420 = vmatpush1.msra.mxu0 0.0
    %5421 = vmatprep.subr.mxu0 0.0
    %5422 = vmatpush1.msra.mxu0 0.0
    %5423 = vmatprep.subr.mxu0 0.0
    %5424 = vmatpush1.msra.mxu0 0.0
    %5425 = vmatprep.subr.mxu0 0.0
    %5426 = vmatpush1.msra.mxu0 0.0
    %5427 = vmatprep.mubr.f32.mxu0 0.0
    %5428 = vmatmul.mubr.f32.gmra.mrb[0].mxu0 %v3179
    %v5429 = vpop.f32.mrb[0].mxu0
    %v5430 = vadd.f32 %v5361, %v5429
    %v5431 = vpop.f32.mrb[0].mxu0
    %5432 = vmatprep.mubr.f32.mxu0 0.0
    %5433 = vmatmul.mubr.f32.gmra.mrb[0].mxu0 %v3182
    %v5434 = vpop.f32.mrb[0].mxu0
    %v5435 = vadd.f32 %v5361, %v5434
    %v5436 = vpop.f32.mrb[0].mxu0
    %5437 = vdwg.mxu0
    %v5439 = vsel %vm448, %v5254, 0
    %v5442 = vsel %vm448, %v5342, 0
    %5444 = vmatprep.subr.mxu0 0.0
    %5445 = vmatpush1.xpose.msra.mxu0 %v5442
    %5446 = vmatprep.subr.mxu0 0.0
    %5447 = vmatpush1.xpose.msra.mxu0 0.0
    %5448 = vmatprep.subr.mxu0 0.0
    %5449 = vmatpush1.xpose.msra.mxu0 0.0
    %5450 = vmatprep.subr.mxu0 0.0
    %5451 = vmatpush1.xpose.msra.mxu0 0.0
    %5452 = vmatprep.subr.mxu0 0.0
    %5453 = vmatpush1.xpose.msra.mxu0 0.0
    %5454 = vmatprep.subr.mxu0 0.0
    %5455 = vmatpush1.xpose.msra.mxu0 0.0
    %5456 = vmatprep.subr.mxu0 0.0
    %5457 = vmatpush1.xpose.msra.mxu0 0.0
    %5458 = vmatprep.subr.mxu0 0.0
    %5459 = vmatpush1.xpose.msra.mxu0 0.0
    %5460 = vmatprep.subr.mxu0 0.0
    %5461 = vmatpush1.xpose.msra.mxu0 0.0
    %5462 = vmatprep.subr.mxu0 0.0
    %5463 = vmatpush1.xpose.msra.mxu0 0.0
    %5464 = vmatprep.subr.mxu0 0.0
    %5465 = vmatpush1.xpose.msra.mxu0 0.0
    %5466 = vmatprep.subr.mxu0 0.0
    %5467 = vmatpush1.xpose.msra.mxu0 0.0
    %5468 = vmatprep.subr.mxu0 0.0
    %5469 = vmatpush1.xpose.msra.mxu0 0.0
    %5470 = vmatprep.subr.mxu0 0.0
    %5471 = vmatpush1.xpose.msra.mxu0 0.0
    %5472 = vmatprep.subr.mxu0 0.0
    %5473 = vmatpush1.xpose.msra.mxu0 0.0
    %5474 = vmatprep.subr.mxu0 0.0
    %5475 = vmatpush1.xpose.msra.mxu0 0.0
    %5476 = vmatprep.subr.mxu0 0.0
    %5477 = vmatpush1.xpose.msra.mxu0 0.0
    %5478 = vmatprep.subr.mxu0 0.0
    %5479 = vmatpush1.xpose.msra.mxu0 0.0
    %5480 = vmatprep.subr.mxu0 0.0
    %5481 = vmatpush1.xpose.msra.mxu0 0.0
    %5482 = vmatprep.subr.mxu0 0.0
    %5483 = vmatpush1.xpose.msra.mxu0 0.0
    %5484 = vmatprep.subr.mxu0 0.0
    %5485 = vmatpush1.xpose.msra.mxu0 0.0
    %5486 = vmatprep.subr.mxu0 0.0
    %5487 = vmatpush1.xpose.msra.mxu0 0.0
    %5488 = vmatprep.subr.mxu0 0.0
    %5489 = vmatpush1.xpose.msra.mxu0 0.0
    %5490 = vmatprep.subr.mxu0 0.0
    %5491 = vmatpush1.xpose.msra.mxu0 0.0
    %5492 = vmatprep.subr.mxu0 0.0
    %5493 = vmatpush1.xpose.msra.mxu0 0.0
    %5494 = vmatprep.subr.mxu0 0.0
    %5495 = vmatpush1.xpose.msra.mxu0 0.0
    %5496 = vmatprep.subr.mxu0 0.0
    %5497 = vmatpush1.xpose.msra.mxu0 0.0
    %5498 = vmatprep.subr.mxu0 0.0
    %5499 = vmatpush1.xpose.msra.mxu0 0.0
    %5500 = vmatprep.subr.mxu0 0.0
    %5501 = vmatpush1.xpose.msra.mxu0 0.0
    %5502 = vmatprep.subr.mxu0 0.0
    %5503 = vmatpush1.xpose.msra.mxu0 0.0
    %5504 = vmatprep.subr.mxu0 0.0
    %5505 = vmatpush1.xpose.msra.mxu0 0.0
    %5506 = vmatprep.subr.mxu0 0.0
    %5507 = vmatpush1.xpose.msra.mxu0 0.0
    %5508 = vmatprep.mubr.f32.mxu0 0.0
    %5509 = vmatmul.mubr.f32.gmra.mrb[0].mxu0 %v5439
    %v5510 = vpop.f32.mrb[0].mxu0
    %v5511 = vadd.f32 %v441, %v5510
    %v5512 = vpop.f32.mrb[0].mxu0
    %5513 = vdwg.mxu0
    %v5515 = vsel %vm448, %v5259, 0
    %v5518 = vsel %vm448, %v5347, 0
    %5520 = vmatprep.subr.mxu0 0.0
    %5521 = vmatpush1.xpose.msra.mxu0 %v5518
    %5522 = vmatprep.subr.mxu0 0.0
    %5523 = vmatpush1.xpose.msra.mxu0 0.0
    %5524 = vmatprep.subr.mxu0 0.0
    %5525 = vmatpush1.xpose.msra.mxu0 0.0
    %5526 = vmatprep.subr.mxu0 0.0
    %5527 = vmatpush1.xpose.msra.mxu0 0.0
    %5528 = vmatprep.subr.mxu0 0.0
    %5529 = vmatpush1.xpose.msra.mxu0 0.0
    %5530 = vmatprep.subr.mxu0 0.0
    %5531 = vmatpush1.xpose.msra.mxu0 0.0
    %5532 = vmatprep.subr.mxu0 0.0
    %5533 = vmatpush1.xpose.msra.mxu0 0.0
    %5534 = vmatprep.subr.mxu0 0.0
    %5535 = vmatpush1.xpose.msra.mxu0 0.0
    %5536 = vmatprep.subr.mxu0 0.0
    %5537 = vmatpush1.xpose.msra.mxu0 0.0
    %5538 = vmatprep.subr.mxu0 0.0
    %5539 = vmatpush1.xpose.msra.mxu0 0.0
    %5540 = vmatprep.subr.mxu0 0.0
    %5541 = vmatpush1.xpose.msra.mxu0 0.0
    %5542 = vmatprep.subr.mxu0 0.0
    %5543 = vmatpush1.xpose.msra.mxu0 0.0
    %5544 = vmatprep.subr.mxu0 0.0
    %5545 = vmatpush1.xpose.msra.mxu0 0.0
    %5546 = vmatprep.subr.mxu0 0.0
    %5547 = vmatpush1.xpose.msra.mxu0 0.0
    %5548 = vmatprep.subr.mxu0 0.0
    %5549 = vmatpush1.xpose.msra.mxu0 0.0
    %5550 = vmatprep.subr.mxu0 0.0
    %5551 = vmatpush1.xpose.msra.mxu0 0.0
    %5552 = vmatprep.subr.mxu0 0.0
    %5553 = vmatpush1.xpose.msra.mxu0 0.0
    %5554 = vmatprep.subr.mxu0 0.0
    %5555 = vmatpush1.xpose.msra.mxu0 0.0
    %5556 = vmatprep.subr.mxu0 0.0
    %5557 = vmatpush1.xpose.msra.mxu0 0.0
    %5558 = vmatprep.subr.mxu0 0.0
    %5559 = vmatpush1.xpose.msra.mxu0 0.0
    %5560 = vmatprep.subr.mxu0 0.0
    %5561 = vmatpush1.xpose.msra.mxu0 0.0
    %5562 = vmatprep.subr.mxu0 0.0
    %5563 = vmatpush1.xpose.msra.mxu0 0.0
    %5564 = vmatprep.subr.mxu0 0.0
    %5565 = vmatpush1.xpose.msra.mxu0 0.0
    %5566 = vmatprep.subr.mxu0 0.0
    %5567 = vmatpush1.xpose.msra.mxu0 0.0
    %5568 = vmatprep.subr.mxu0 0.0
    %5569 = vmatpush1.xpose.msra.mxu0 0.0
    %5570 = vmatprep.subr.mxu0 0.0
    %5571 = vmatpush1.xpose.msra.mxu0 0.0
    %5572 = vmatprep.subr.mxu0 0.0
    %5573 = vmatpush1.xpose.msra.mxu0 0.0
    %5574 = vmatprep.subr.mxu0 0.0
    %5575 = vmatpush1.xpose.msra.mxu0 0.0
    %5576 = vmatprep.subr.mxu0 0.0
    %5577 = vmatpush1.xpose.msra.mxu0 0.0
    %5578 = vmatprep.subr.mxu0 0.0
    %5579 = vmatpush1.xpose.msra.mxu0 0.0
    %5580 = vmatprep.subr.mxu0 0.0
    %5581 = vmatpush1.xpose.msra.mxu0 0.0
    %5582 = vmatprep.subr.mxu0 0.0
    %5583 = vmatpush1.xpose.msra.mxu0 0.0
    %5584 = vmatprep.mubr.f32.mxu0 0.0
    %5585 = vmatmul.mubr.f32.gmra.mrb[0].mxu0 %v5515
    %v5586 = vpop.f32.mrb[0].mxu0
    %v5587 = vadd.f32 %v445, %v5586
    %v5588 = vpop.f32.mrb[0].mxu0
    %5589 = vdwg.mxu0
    %v5590 = vsel %vm448, %v5511, -inf
    %5591 = vmax.xlane.f32.xlu0 %v5590
    %v5592 = vpop.xlane.xlu0 %5591
    %v5593 = vsel %vm448, %v5587, -inf
    %5594 = vmax.xlane.f32.xlu0 %v5593
    %v5595 = vpop.xlane.xlu0 %5594
    %v5596 = vsub.f32 %v5511, %v5592
    %v5597 = vsub.f32 %v5587, %v5595
    %v5598 = vmul.f32 %v5596, 1.442695
    %v5599 = vpow.pop %v5598
    %v5600 = vmul.f32 %v5597, 1.442695
    %v5601 = vpow.pop %v5600
    %v5602 = vsel %vm448, %v5599, 0.0
    %5603 = vadd.xlane.f32.xlu0 %v5602
    %v5604 = vpop.xlane.xlu0 %5603
    %v5605 = vsel %vm448, %v5601, 0.0
    %5606 = vadd.xlane.f32.xlu0 %v5605
    %v5607 = vpop.xlane.xlu0 %5606
    %v5608 = vrcp.pop %v5604
    %v5609 = vrcp.pop %v5607
    %v5610 = vmul.f32 %v5599, %v5608
    %v5611 = vmul.f32 %v5601, %v5609
    %v5613 = vsel %vm448, %v5610, 0
    %5615 = vmatprep.subr.mxu0 0.0
    %5616 = vmatpush1.msra.mxu0 %v5430
    %5617 = vmatprep.subr.mxu0 0.0
    %5618 = vmatpush1.msra.mxu0 0.0
    %5619 = vmatprep.subr.mxu0 0.0
    %5620 = vmatpush1.msra.mxu0 0.0
    %5621 = vmatprep.subr.mxu0 0.0
    %5622 = vmatpush1.msra.mxu0 0.0
    %5623 = vmatprep.subr.mxu0 0.0
    %5624 = vmatpush1.msra.mxu0 0.0
    %5625 = vmatprep.subr.mxu0 0.0
    %5626 = vmatpush1.msra.mxu0 0.0
    %5627 = vmatprep.subr.mxu0 0.0
    %5628 = vmatpush1.msra.mxu0 0.0
    %5629 = vmatprep.subr.mxu0 0.0
    %5630 = vmatpush1.msra.mxu0 0.0
    %5631 = vmatprep.subr.mxu0 0.0
    %5632 = vmatpush1.msra.mxu0 0.0
    %5633 = vmatprep.subr.mxu0 0.0
    %5634 = vmatpush1.msra.mxu0 0.0
    %5635 = vmatprep.subr.mxu0 0.0
    %5636 = vmatpush1.msra.mxu0 0.0
    %5637 = vmatprep.subr.mxu0 0.0
    %5638 = vmatpush1.msra.mxu0 0.0
    %5639 = vmatprep.subr.mxu0 0.0
    %5640 = vmatpush1.msra.mxu0 0.0
    %5641 = vmatprep.subr.mxu0 0.0
    %5642 = vmatpush1.msra.mxu0 0.0
    %5643 = vmatprep.subr.mxu0 0.0
    %5644 = vmatpush1.msra.mxu0 0.0
    %5645 = vmatprep.subr.mxu0 0.0
    %5646 = vmatpush1.msra.mxu0 0.0
    %5647 = vmatprep.subr.mxu0 0.0
    %5648 = vmatpush1.msra.mxu0 0.0
    %5649 = vmatprep.subr.mxu0 0.0
    %5650 = vmatpush1.msra.mxu0 0.0
    %5651 = vmatprep.subr.mxu0 0.0
    %5652 = vmatpush1.msra.mxu0 0.0
    %5653 = vmatprep.subr.mxu0 0.0
    %5654 = vmatpush1.msra.mxu0 0.0
    %5655 = vmatprep.subr.mxu0 0.0
    %5656 = vmatpush1.msra.mxu0 0.0
    %5657 = vmatprep.subr.mxu0 0.0
    %5658 = vmatpush1.msra.mxu0 0.0
    %5659 = vmatprep.subr.mxu0 0.0
    %5660 = vmatpush1.msra.mxu0 0.0
    %5661 = vmatprep.subr.mxu0 0.0
    %5662 = vmatpush1.msra.mxu0 0.0
    %5663 = vmatprep.subr.mxu0 0.0
    %5664 = vmatpush1.msra.mxu0 0.0
    %5665 = vmatprep.subr.mxu0 0.0
    %5666 = vmatpush1.msra.mxu0 0.0
    %5667 = vmatprep.subr.mxu0 0.0
    %5668 = vmatpush1.msra.mxu0 0.0
    %5669 = vmatprep.subr.mxu0 0.0
    %5670 = vmatpush1.msra.mxu0 0.0
    %5671 = vmatprep.subr.mxu0 0.0
    %5672 = vmatpush1.msra.mxu0 0.0
    %5673 = vmatprep.subr.mxu0 0.0
    %5674 = vmatpush1.msra.mxu0 0.0
    %5675 = vmatprep.subr.mxu0 0.0
    %5676 = vmatpush1.msra.mxu0 0.0
    %5677 = vmatprep.subr.mxu0 0.0
    %5678 = vmatpush1.msra.mxu0 0.0
    %5679 = vmatprep.mubr.f32.mxu0 0.0
    %5680 = vmatmul.mubr.f32.gmra.mrb[0].mxu0 %v5613
    %v5681 = vpop.f32.mrb[0].mxu0
    %v5682 = vadd.f32 0.0, %v5681
    %v5683 = vpop.f32.mrb[0].mxu0
    %5684 = vdwg.mxu0
    %v5686 = vsel %vm448, %v5611, 0
    %5688 = vmatprep.subr.mxu0 0.0
    %5689 = vmatpush1.msra.mxu0 %v5435
    %5690 = vmatprep.subr.mxu0 0.0
    %5691 = vmatpush1.msra.mxu0 0.0
    %5692 = vmatprep.subr.mxu0 0.0
    %5693 = vmatpush1.msra.mxu0 0.0
    %5694 = vmatprep.subr.mxu0 0.0
    %5695 = vmatpush1.msra.mxu0 0.0
    %5696 = vmatprep.subr.mxu0 0.0
    %5697 = vmatpush1.msra.mxu0 0.0
    %5698 = vmatprep.subr.mxu0 0.0
    %5699 = vmatpush1.msra.mxu0 0.0
    %5700 = vmatprep.subr.mxu0 0.0
    %5701 = vmatpush1.msra.mxu0 0.0
    %5702 = vmatprep.subr.mxu0 0.0
    %5703 = vmatpush1.msra.mxu0 0.0
    %5704 = vmatprep.subr.mxu0 0.0
    %5705 = vmatpush1.msra.mxu0 0.0
    %5706 = vmatprep.subr.mxu0 0.0
    %5707 = vmatpush1.msra.mxu0 0.0
    %5708 = vmatprep.subr.mxu0 0.0
    %5709 = vmatpush1.msra.mxu0 0.0
    %5710 = vmatprep.subr.mxu0 0.0
    %5711 = vmatpush1.msra.mxu0 0.0
    %5712 = vmatprep.subr.mxu0 0.0
    %5713 = vmatpush1.msra.mxu0 0.0
    %5714 = vmatprep.subr.mxu0 0.0
    %5715 = vmatpush1.msra.mxu0 0.0
    %5716 = vmatprep.subr.mxu0 0.0
    %5717 = vmatpush1.msra.mxu0 0.0
    %5718 = vmatprep.subr.mxu0 0.0
    %5719 = vmatpush1.msra.mxu0 0.0
    %5720 = vmatprep.subr.mxu0 0.0
    %5721 = vmatpush1.msra.mxu0 0.0
    %5722 = vmatprep.subr.mxu0 0.0
    %5723 = vmatpush1.msra.mxu0 0.0
    %5724 = vmatprep.subr.mxu0 0.0
    %5725 = vmatpush1.msra.mxu0 0.0
    %5726 = vmatprep.subr.mxu0 0.0
    %5727 = vmatpush1.msra.mxu0 0.0
    %5728 = vmatprep.subr.mxu0 0.0
    %5729 = vmatpush1.msra.mxu0 0.0
    %5730 = vmatprep.subr.mxu0 0.0
    %5731 = vmatpush1.msra.mxu0 0.0
    %5732 = vmatprep.subr.mxu0 0.0
    %5733 = vmatpush1.msra.mxu0 0.0
    %5734 = vmatprep.subr.mxu0 0.0
    %5735 = vmatpush1.msra.mxu0 0.0
    %5736 = vmatprep.subr.mxu0 0.0
    %5737 = vmatpush1.msra.mxu0 0.0
    %5738 = vmatprep.subr.mxu0 0.0
    %5739 = vmatpush1.msra.mxu0 0.0
    %5740 = vmatprep.subr.mxu0 0.0
    %5741 = vmatpush1.msra.mxu0 0.0
    %5742 = vmatprep.subr.mxu0 0.0
    %5743 = vmatpush1.msra.mxu0 0.0
    %5744 = vmatprep.subr.mxu0 0.0
    %5745 = vmatpush1.msra.mxu0 0.0
    %5746 = vmatprep.subr.mxu0 0.0
    %5747 = vmatpush1.msra.mxu0 0.0
    %5748 = vmatprep.subr.mxu0 0.0
    %5749 = vmatpush1.msra.mxu0 0.0
    %5750 = vmatprep.subr.mxu0 0.0
    %5751 = vmatpush1.msra.mxu0 0.0
    %5752 = vmatprep.mubr.f32.mxu0 0.0
    %5753 = vmatmul.mubr.f32.gmra.mrb[0].mxu0 %v5686
    %v5754 = vpop.f32.mrb[0].mxu0
    %v5755 = vadd.f32 0.0, %v5754
    %v5756 = vpop.f32.mrb[0].mxu0
    %5757 = vdwg.mxu0
    %s5758 = scalar_lea.vmem %s10, 56
    %v5759 = vld [vmem:[%s5758] sm:$0xff]
    %v5761 = vsel %vm448, %v5682, 0
    %v5764 = vsel %vm448, %v5755, 0
    %5766 = vmatprep.subr.mxu0 0.0
    %5767 = vmatpush1.msra.mxu0 %v5759
    %5768 = vmatprep.subr.mxu0 0.0
    %5769 = vmatpush1.msra.mxu0 0.0
    %5770 = vmatprep.subr.mxu0 0.0
    %5771 = vmatpush1.msra.mxu0 0.0
    %5772 = vmatprep.subr.mxu0 0.0
    %5773 = vmatpush1.msra.mxu0 0.0
    %5774 = vmatprep.subr.mxu0 0.0
    %5775 = vmatpush1.msra.mxu0 0.0
    %5776 = vmatprep.subr.mxu0 0.0
    %5777 = vmatpush1.msra.mxu0 0.0
    %5778 = vmatprep.subr.mxu0 0.0
    %5779 = vmatpush1.msra.mxu0 0.0
    %5780 = vmatprep.subr.mxu0 0.0
    %5781 = vmatpush1.msra.mxu0 0.0
    %5782 = vmatprep.subr.mxu0 0.0
    %5783 = vmatpush1.msra.mxu0 0.0
    %5784 = vmatprep.subr.mxu0 0.0
    %5785 = vmatpush1.msra.mxu0 0.0
    %5786 = vmatprep.subr.mxu0 0.0
    %5787 = vmatpush1.msra.mxu0 0.0
    %5788 = vmatprep.subr.mxu0 0.0
    %5789 = vmatpush1.msra.mxu0 0.0
    %5790 = vmatprep.subr.mxu0 0.0
    %5791 = vmatpush1.msra.mxu0 0.0
    %5792 = vmatprep.subr.mxu0 0.0
    %5793 = vmatpush1.msra.mxu0 0.0
    %5794 = vmatprep.subr.mxu0 0.0
    %5795 = vmatpush1.msra.mxu0 0.0
    %5796 = vmatprep.subr.mxu0 0.0
    %5797 = vmatpush1.msra.mxu0 0.0
    %5798 = vmatprep.subr.mxu0 0.0
    %5799 = vmatpush1.msra.mxu0 0.0
    %5800 = vmatprep.subr.mxu0 0.0
    %5801 = vmatpush1.msra.mxu0 0.0
    %5802 = vmatprep.subr.mxu0 0.0
    %5803 = vmatpush1.msra.mxu0 0.0
    %5804 = vmatprep.subr.mxu0 0.0
    %5805 = vmatpush1.msra.mxu0 0.0
    %5806 = vmatprep.subr.mxu0 0.0
    %5807 = vmatpush1.msra.mxu0 0.0
    %5808 = vmatprep.subr.mxu0 0.0
    %5809 = vmatpush1.msra.mxu0 0.0
    %5810 = vmatprep.subr.mxu0 0.0
    %5811 = vmatpush1.msra.mxu0 0.0
    %5812 = vmatprep.subr.mxu0 0.0
    %5813 = vmatpush1.msra.mxu0 0.0
    %5814 = vmatprep.subr.mxu0 0.0
    %5815 = vmatpush1.msra.mxu0 0.0
    %5816 = vmatprep.subr.mxu0 0.0
    %5817 = vmatpush1.msra.mxu0 0.0
    %5818 = vmatprep.subr.mxu0 0.0
    %5819 = vmatpush1.msra.mxu0 0.0
    %5820 = vmatprep.subr.mxu0 0.0
    %5821 = vmatpush1.msra.mxu0 0.0
    %5822 = vmatprep.subr.mxu0 0.0
    %5823 = vmatpush1.msra.mxu0 0.0
    %5824 = vmatprep.subr.mxu0 0.0
    %5825 = vmatpush1.msra.mxu0 0.0
    %5826 = vmatprep.subr.mxu0 0.0
    %5827 = vmatpush1.msra.mxu0 0.0
    %5828 = vmatprep.subr.mxu0 0.0
    %5829 = vmatpush1.msra.mxu0 0.0
    %5830 = vmatprep.mubr.f32.mxu0 0.0
    %5831 = vmatmul.mubr.f32.gmra.mrb[0].mxu0 %v5761
    %v5832 = vpop.f32.mrb[0].mxu0
    %v5833 = vadd.f32 0.0, %v5832
    %v5834 = vpop.f32.mrb[0].mxu0
    %5835 = vmatprep.mubr.f32.mxu0 0.0
    %5836 = vmatmul.mubr.f32.gmra.mrb[0].mxu0 %v5764
    %v5837 = vpop.f32.mrb[0].mxu0
    %v5838 = vadd.f32 0.0, %v5837
    %v5839 = vpop.f32.mrb[0].mxu0
    %5840 = vdwg.mxu0
    %v5841 = vadd.f32 %v5172, %v5833
    %v5842 = vadd.f32 %v5173, %v5838
    %v5843 = vadd.f32 %v3163, %v5841
    %v5844 = vadd.f32 %v3164, %v5842
    %s5845 = scalar_lea.vmem %s11, 1
    %v5846 = vld [vmem:[%s5845] sm:$0x1]
    %v5848 = vlaneseq
    %v5849 = vshrl.u32 %v5848, 7
    %v5850 = vsub.s32 0, %v5849
    %v5851 = vrot.slane %v5846, %v5850
    %v5853 = vadd.f32 %v5843, %v5851
    %v5854 = vadd.f32 %v5844, %v5851
    %s5855 = scalar_lea.vmem %s12, 1
    %v5856 = vld [vmem:[%s5855] sm:$0x1]
    %s5857 = scalar_lea.vmem %s13, 1
    %v5858 = vld [vmem:[%s5857] sm:$0x1]
    %v5859 = vsel %vm122, %v5853, 0.0
    %5860 = vadd.xlane.f32.xlu0 %v5859
    %v5861 = vpop.xlane.xlu0 %5860
    %v5862 = vsel %vm122, %v5854, 0.0
    %5863 = vadd.xlane.f32.xlu0 %v5862
    %v5864 = vpop.xlane.xlu0 %5863
    %v5865 = vmul.f32 %v5861, %v129
    %v5866 = vmul.f32 %v5864, %v129
    %v5867 = vsub.f32 %v5853, %v5865
    %v5868 = vsub.f32 %v5854, %v5866
    %v5869 = vmul.f32 %v5867, %v5867
    %v5870 = vmul.f32 %v5868, %v5868
    %v5871 = vsel %vm122, %v5869, 0.0
    %5872 = vadd.xlane.f32.xlu0 %v5871
    %v5873 = vpop.xlane.xlu0 %5872
    %v5874 = vsel %vm122, %v5870, 0.0
    %5875 = vadd.xlane.f32.xlu0 %v5874
    %v5876 = vpop.xlane.xlu0 %5875
    %v5877 = vmul.f32 %v5873, %v129
    %v5878 = vmul.f32 %v5876, %v129
    %v5879 = vadd.f32 %v5877, 1e-12
    %v5880 = vadd.f32 %v5878, 1e-12
    %v5881 = vrsqrt.pop %v5879
    %v5882 = vrsqrt.pop %v5880
    %v5883 = vmul.f32 %v5867, %v5881
    %v5884 = vmul.f32 %v5868, %v5882
    %v5886 = vlaneseq
    %v5887 = vshrl.u32 %v5886, 7
    %v5888 = vsub.s32 0, %v5887
    %v5889 = vrot.slane %v5856, %v5888
    %v5891 = vmul.f32 %v5883, %v5889
    %v5892 = vmul.f32 %v5884, %v5889
    %v5894 = vlaneseq
    %v5895 = vshrl.u32 %v5894, 7
    %v5896 = vsub.s32 0, %v5895
    %v5897 = vrot.slane %v5858, %v5896
    %v5899 = vadd.f32 %v5891, %v5897
    %v5900 = vadd.f32 %v5892, %v5897
    %s5901 = scalar_lea.vmem %s14, 32
    %v5902 = vld [vmem:[%s5901] sm:$0xff]
    %v5903 = vld [vmem:[%s5901 + $0x8] sm:$0xff]
    %v5904 = vld [vmem:[%s5901 + $0x10] sm:$0xff]
    %v5905 = vld [vmem:[%s5901 + $0x18] sm:$0xff]
    %s5906 = scalar_lea.vmem %s15, 1
    %v5907 = vld [vmem:[%s5906] sm:$0x1]
    %v5909 = vlaneseq
    %v5910 = vshrl.u32 %v5909, 7
    %v5911 = vsub.s32 0, %v5910
    %v5912 = vrot.slane %v5907, %v5911
    %v5915 = vsel %vm122, %v5899, 0
    %v5918 = vsel %vm122, %v5900, 0
    %5920 = vmatprep.subr.mxu0 0.0
    %5921 = vmatpush1.msra.mxu0 %v5902
    %5922 = vmatprep.subr.mxu0 0.0
    %5923 = vmatpush1.msra.mxu0 %v5903
    %5924 = vmatprep.subr.mxu0 0.0
    %5925 = vmatpush1.msra.mxu0 %v5904
    %5926 = vmatprep.subr.mxu0 0.0
    %5927 = vmatpush1.msra.mxu0 %v5905
    %5928 = vmatprep.subr.mxu0 0.0
    %5929 = vmatpush1.msra.mxu0 0.0
    %5930 = vmatprep.subr.mxu0 0.0
    %5931 = vmatpush1.msra.mxu0 0.0
    %5932 = vmatprep.subr.mxu0 0.0
    %5933 = vmatpush1.msra.mxu0 0.0
    %5934 = vmatprep.subr.mxu0 0.0
    %5935 = vmatpush1.msra.mxu0 0.0
    %5936 = vmatprep.subr.mxu0 0.0
    %5937 = vmatpush1.msra.mxu0 0.0
    %5938 = vmatprep.subr.mxu0 0.0
    %5939 = vmatpush1.msra.mxu0 0.0
    %5940 = vmatprep.subr.mxu0 0.0
    %5941 = vmatpush1.msra.mxu0 0.0
    %5942 = vmatprep.subr.mxu0 0.0
    %5943 = vmatpush1.msra.mxu0 0.0
    %5944 = vmatprep.subr.mxu0 0.0
    %5945 = vmatpush1.msra.mxu0 0.0
    %5946 = vmatprep.subr.mxu0 0.0
    %5947 = vmatpush1.msra.mxu0 0.0
    %5948 = vmatprep.subr.mxu0 0.0
    %5949 = vmatpush1.msra.mxu0 0.0
    %5950 = vmatprep.subr.mxu0 0.0
    %5951 = vmatpush1.msra.mxu0 0.0
    %5952 = vmatprep.subr.mxu0 0.0
    %5953 = vmatpush1.msra.mxu0 0.0
    %5954 = vmatprep.subr.mxu0 0.0
    %5955 = vmatpush1.msra.mxu0 0.0
    %5956 = vmatprep.subr.mxu0 0.0
    %5957 = vmatpush1.msra.mxu0 0.0
    %5958 = vmatprep.subr.mxu0 0.0
    %5959 = vmatpush1.msra.mxu0 0.0
    %5960 = vmatprep.subr.mxu0 0.0
    %5961 = vmatpush1.msra.mxu0 0.0
    %5962 = vmatprep.subr.mxu0 0.0
    %5963 = vmatpush1.msra.mxu0 0.0
    %5964 = vmatprep.subr.mxu0 0.0
    %5965 = vmatpush1.msra.mxu0 0.0
    %5966 = vmatprep.subr.mxu0 0.0
    %5967 = vmatpush1.msra.mxu0 0.0
    %5968 = vmatprep.subr.mxu0 0.0
    %5969 = vmatpush1.msra.mxu0 0.0
    %5970 = vmatprep.subr.mxu0 0.0
    %5971 = vmatpush1.msra.mxu0 0.0
    %5972 = vmatprep.subr.mxu0 0.0
    %5973 = vmatpush1.msra.mxu0 0.0
    %5974 = vmatprep.subr.mxu0 0.0
    %5975 = vmatpush1.msra.mxu0 0.0
    %5976 = vmatprep.subr.mxu0 0.0
    %5977 = vmatpush1.msra.mxu0 0.0
    %5978 = vmatprep.subr.mxu0 0.0
    %5979 = vmatpush1.msra.mxu0 0.0
    %5980 = vmatprep.subr.mxu0 0.0
    %5981 = vmatpush1.msra.mxu0 0.0
    %5982 = vmatprep.subr.mxu0 0.0
    %5983 = vmatpush1.msra.mxu0 0.0
    %5984 = vmatprep.mubr.f32.mxu0 0.0
    %5985 = vmatmul.mubr.f32.gmra.mrb[0].mxu0 %v5915
    %v5986 = vpop.f32.mrb[0].mxu0
    %v5987 = vadd.f32 %v5912, %v5986
    %v5988 = vpop.f32.mrb[0].mxu0
    %5989 = vmatprep.mubr.f32.mxu0 0.0
    %5990 = vmatmul.mubr.f32.gmra.mrb[0].mxu0 %v5918
    %v5991 = vpop.f32.mrb[0].mxu0
    %v5992 = vadd.f32 %v5912, %v5991
    %v5993 = vpop.f32.mrb[0].mxu0
    %5994 = vdwg.mxu0
    %v5995 = vmul.f32 %v5987, %v5987
    %v5996 = vmul.f32 %v5992, %v5992
    %v5997 = vmul.f32 %v5987, %v5995
    %v5998 = vmul.f32 %v5992, %v5996
    %v5999 = vmul.f32 %v5997, 0.044715
    %v6000 = vmul.f32 %v5998, 0.044715
    %v6001 = vadd.f32 %v5987, %v5999
    %v6002 = vadd.f32 %v5992, %v6000
    %v6003 = vmul.f32 %v6001, 0.7978846
    %v6004 = vmul.f32 %v6002, 0.7978846
    %v6005 = vtanh.pop %v6003
    %v6006 = vtanh.pop %v6004
    %v6007 = vadd.f32 %v6005, 1.0
    %v6008 = vadd.f32 %v6006, 1.0
    %v6009 = vmul.f32 %v6007, 0.5
    %v6010 = vmul.f32 %v6008, 0.5
    %v6011 = vmul.f32 %v5987, %v6009
    %v6012 = vmul.f32 %v5992, %v6010
    %s6013 = scalar_lea.vmem [#allocation6], 128
    %v6014 = vld [vmem:[%s6013] sm:$0xff]
    %v6015 = vld [vmem:[%s6013 + $0x8] sm:$0xff]
    %v6016 = vld [vmem:[%s6013 + $0x10] sm:$0xff]
    %v6017 = vld [vmem:[%s6013 + $0x18] sm:$0xff]
    %v6018 = vld [vmem:[%s6013 + $0x20] sm:$0xff]
    %v6019 = vld [vmem:[%s6013 + $0x28] sm:$0xff]
    %v6020 = vld [vmem:[%s6013 + $0x30] sm:$0xff]
    %v6021 = vld [vmem:[%s6013 + $0x38] sm:$0xff]
    %v6022 = vld [vmem:[%s6013 + $0x40] sm:$0xff]
    %v6023 = vld [vmem:[%s6013 + $0x48] sm:$0xff]
    %v6024 = vld [vmem:[%s6013 + $0x50] sm:$0xff]
    %v6025 = vld [vmem:[%s6013 + $0x58] sm:$0xff]
    %v6026 = vld [vmem:[%s6013 + $0x60] sm:$0xff]
    %v6027 = vld [vmem:[%s6013 + $0x68] sm:$0xff]
    %v6028 = vld [vmem:[%s6013 + $0x70] sm:$0xff]
    %v6029 = vld [vmem:[%s6013 + $0x78] sm:$0xff]
    %s6030 = scalar_lea.vmem %s17, 1
    %v6031 = vld [vmem:[%s6030] sm:$0x1]
    %v6033 = vlaneseq
    %v6034 = vshrl.u32 %v6033, 7
    %v6035 = vsub.s32 0, %v6034
    %v6036 = vrot.slane %v6031, %v6035
    %6038 = vmatprep.subr.mxu0 0.0
    %6039 = vmatpush1.msra.mxu0 %v6014
    %6040 = vmatprep.subr.mxu0 0.0
    %6041 = vmatpush1.msra.mxu0 %v6015
    %6042 = vmatprep.subr.mxu0 0.0
    %6043 = vmatpush1.msra.mxu0 %v6016
    %6044 = vmatprep.subr.mxu0 0.0
    %6045 = vmatpush1.msra.mxu0 %v6017
    %6046 = vmatprep.subr.mxu0 0.0
    %6047 = vmatpush1.msra.mxu0 %v6018
    %6048 = vmatprep.subr.mxu0 0.0
    %6049 = vmatpush1.msra.mxu0 %v6019
    %6050 = vmatprep.subr.mxu0 0.0
    %6051 = vmatpush1.msra.mxu0 %v6020
    %6052 = vmatprep.subr.mxu0 0.0
    %6053 = vmatpush1.msra.mxu0 %v6021
    %6054 = vmatprep.subr.mxu0 0.0
    %6055 = vmatpush1.msra.mxu0 %v6022
    %6056 = vmatprep.subr.mxu0 0.0
    %6057 = vmatpush1.msra.mxu0 %v6023
    %6058 = vmatprep.subr.mxu0 0.0
    %6059 = vmatpush1.msra.mxu0 %v6024
    %6060 = vmatprep.subr.mxu0 0.0
    %6061 = vmatpush1.msra.mxu0 %v6025
    %6062 = vmatprep.subr.mxu0 0.0
    %6063 = vmatpush1.msra.mxu0 %v6026
    %6064 = vmatprep.subr.mxu0 0.0
    %6065 = vmatpush1.msra.mxu0 %v6027
    %6066 = vmatprep.subr.mxu0 0.0
    %6067 = vmatpush1.msra.mxu0 %v6028
    %6068 = vmatprep.subr.mxu0 0.0
    %6069 = vmatpush1.msra.mxu0 %v6029
    %6070 = vmatprep.subr.mxu0 0.0
    %6071 = vmatpush1.msra.mxu0 0.0
    %6072 = vmatprep.subr.mxu0 0.0
    %6073 = vmatpush1.msra.mxu0 0.0
    %6074 = vmatprep.subr.mxu0 0.0
    %6075 = vmatpush1.msra.mxu0 0.0
    %6076 = vmatprep.subr.mxu0 0.0
    %6077 = vmatpush1.msra.mxu0 0.0
    %6078 = vmatprep.subr.mxu0 0.0
    %6079 = vmatpush1.msra.mxu0 0.0
    %6080 = vmatprep.subr.mxu0 0.0
    %6081 = vmatpush1.msra.mxu0 0.0
    %6082 = vmatprep.subr.mxu0 0.0
    %6083 = vmatpush1.msra.mxu0 0.0
    %6084 = vmatprep.subr.mxu0 0.0
    %6085 = vmatpush1.msra.mxu0 0.0
    %6086 = vmatprep.subr.mxu0 0.0
    %6087 = vmatpush1.msra.mxu0 0.0
    %6088 = vmatprep.subr.mxu0 0.0
    %6089 = vmatpush1.msra.mxu0 0.0
    %6090 = vmatprep.subr.mxu0 0.0
    %6091 = vmatpush1.msra.mxu0 0.0
    %6092 = vmatprep.subr.mxu0 0.0
    %6093 = vmatpush1.msra.mxu0 0.0
    %6094 = vmatprep.subr.mxu0 0.0
    %6095 = vmatpush1.msra.mxu0 0.0
    %6096 = vmatprep.subr.mxu0 0.0
    %6097 = vmatpush1.msra.mxu0 0.0
    %6098 = vmatprep.subr.mxu0 0.0
    %6099 = vmatpush1.msra.mxu0 0.0
    %6100 = vmatprep.subr.mxu0 0.0
    %6101 = vmatpush1.msra.mxu0 0.0
    %6102 = vmatprep.mubr.f32.mxu0 0.0
    %6103 = vmatmul.mubr.f32.gmra.mrb[0].mxu0 %v6011
    %v6104 = vpop.f32.mrb[0].mxu0
    %v6105 = vadd.f32 %v6036, %v6104
    %v6106 = vpop.f32.mrb[0].mxu0
    %6107 = vmatprep.mubr.f32.mxu0 0.0
    %6108 = vmatmul.mubr.f32.gmra.mrb[0].mxu0 %v6012
    %v6109 = vpop.f32.mrb[0].mxu0
    %v6110 = vadd.f32 %v6036, %v6109
    %v6111 = vpop.f32.mrb[0].mxu0
    %6112 = vdwg.mxu0
    %v6113 = vadd.f32 %v5899, %v6105
    %v6114 = vadd.f32 %v5900, %v6110
    %s6115 = scalar_lea.vmem %s18, 1
    %v6116 = vld [vmem:[%s6115] sm:$0x1]
    %s6117 = scalar_lea.vmem %s19, 1
    %v6118 = vld [vmem:[%s6117] sm:$0x1]
    %v6119 = vsel %vm122, %v6113, 0.0
    %6120 = vadd.xlane.f32.xlu0 %v6119
    %v6121 = vpop.xlane.xlu0 %6120
    %v6122 = vsel %vm122, %v6114, 0.0
    %6123 = vadd.xlane.f32.xlu0 %v6122
    %v6124 = vpop.xlane.xlu0 %6123
    %v6125 = vmul.f32 %v6121, %v129
    %v6126 = vmul.f32 %v6124, %v129
    %v6127 = vsub.f32 %v6113, %v6125
    %v6128 = vsub.f32 %v6114, %v6126
    %v6129 = vmul.f32 %v6127, %v6127
    %v6130 = vmul.f32 %v6128, %v6128
    %v6131 = vsel %vm122, %v6129, 0.0
    %6132 = vadd.xlane.f32.xlu0 %v6131
    %v6133 = vpop.xlane.xlu0 %6132
    %v6134 = vsel %vm122, %v6130, 0.0
    %6135 = vadd.xlane.f32.xlu0 %v6134
    %v6136 = vpop.xlane.xlu0 %6135
    %v6137 = vmul.f32 %v6133, %v129
    %v6138 = vmul.f32 %v6136, %v129
    %v6139 = vadd.f32 %v6137, 1e-12
    %v6140 = vadd.f32 %v6138, 1e-12
    %v6141 = vrsqrt.pop %v6139
    %v6142 = vrsqrt.pop %v6140
    %v6143 = vmul.f32 %v6127, %v6141
    %v6144 = vmul.f32 %v6128, %v6142
    %v6146 = vlaneseq
    %v6147 = vshrl.u32 %v6146, 7
    %v6148 = vsub.s32 0, %v6147
    %v6149 = vrot.slane %v6116, %v6148
    %v6151 = vmul.f32 %v6143, %v6149
    %v6152 = vmul.f32 %v6144, %v6149
    %v6154 = vlaneseq
    %v6155 = vshrl.u32 %v6154, 7
    %v6156 = vsub.s32 0, %v6155
    %v6157 = vrot.slane %v6118, %v6156
    %v6159 = vadd.f32 %v6151, %v6157
    %v6160 = vadd.f32 %v6152, %v6157
    %v6161 = vlaneseq
    %v6162 = vand.u32 %v6161, 127
    %v6163 = vlaneseq
    %v6164 = vshrl.u32 %v6163, 7
    %v6165 = vmul.u32 %v6164, 8
    %vm6166 = vcmp.eq.s32.totalorder %v6162, %v6165
    %v6167 = vsel %vm6166, 1, 0
    %v6168 = vcvt.s32.f32 %v6167
    %vm6169 = vcmask 130048
    %v6171 = vsel %vm6169, %v6168, 0
    %6173 = vmatprep.subr.mxu0 0.0
    %6174 = vmatpush1.msra.mxu0 %v6159
    %6175 = vmatprep.subr.mxu0 0.0
    %6176 = vmatpush1.msra.mxu0 %v6160
    %6177 = vmatprep.subr.mxu0 0.0
    %6178 = vmatpush1.msra.mxu0 0.0
    %6179 = vmatprep.subr.mxu0 0.0
    %6180 = vmatpush1.msra.mxu0 0.0
    %6181 = vmatprep.subr.mxu0 0.0
    %6182 = vmatpush1.msra.mxu0 0.0
    %6183 = vmatprep.subr.mxu0 0.0
    %6184 = vmatpush1.msra.mxu0 0.0
    %6185 = vmatprep.subr.mxu0 0.0
    %6186 = vmatpush1.msra.mxu0 0.0
    %6187 = vmatprep.subr.mxu0 0.0
    %6188 = vmatpush1.msra.mxu0 0.0
    %6189 = vmatprep.subr.mxu0 0.0
    %6190 = vmatpush1.msra.mxu0 0.0
    %6191 = vmatprep.subr.mxu0 0.0
    %6192 = vmatpush1.msra.mxu0 0.0
    %6193 = vmatprep.subr.mxu0 0.0
    %6194 = vmatpush1.msra.mxu0 0.0
    %6195 = vmatprep.subr.mxu0 0.0
    %6196 = vmatpush1.msra.mxu0 0.0
    %6197 = vmatprep.subr.mxu0 0.0
    %6198 = vmatpush1.msra.mxu0 0.0
    %6199 = vmatprep.subr.mxu0 0.0
    %6200 = vmatpush1.msra.mxu0 0.0
    %6201 = vmatprep.subr.mxu0 0.0
    %6202 = vmatpush1.msra.mxu0 0.0
    %6203 = vmatprep.subr.mxu0 0.0
    %6204 = vmatpush1.msra.mxu0 0.0
    %6205 = vmatprep.subr.mxu0 0.0
    %6206 = vmatpush1.msra.mxu0 0.0
    %6207 = vmatprep.subr.mxu0 0.0
    %6208 = vmatpush1.msra.mxu0 0.0
    %6209 = vmatprep.subr.mxu0 0.0
    %6210 = vmatpush1.msra.mxu0 0.0
    %6211 = vmatprep.subr.mxu0 0.0
    %6212 = vmatpush1.msra.mxu0 0.0
    %6213 = vmatprep.subr.mxu0 0.0
    %6214 = vmatpush1.msra.mxu0 0.0
    %6215 = vmatprep.subr.mxu0 0.0
    %6216 = vmatpush1.msra.mxu0 0.0
    %6217 = vmatprep.subr.mxu0 0.0
    %6218 = vmatpush1.msra.mxu0 0.0
    %6219 = vmatprep.subr.mxu0 0.0
    %6220 = vmatpush1.msra.mxu0 0.0
    %6221 = vmatprep.subr.mxu0 0.0
    %6222 = vmatpush1.msra.mxu0 0.0
    %6223 = vmatprep.subr.mxu0 0.0
    %6224 = vmatpush1.msra.mxu0 0.0
    %6225 = vmatprep.subr.mxu0 0.0
    %6226 = vmatpush1.msra.mxu0 0.0
    %6227 = vmatprep.subr.mxu0 0.0
    %6228 = vmatpush1.msra.mxu0 0.0
    %6229 = vmatprep.subr.mxu0 0.0
    %6230 = vmatpush1.msra.mxu0 0.0
    %6231 = vmatprep.subr.mxu0 0.0
    %6232 = vmatpush1.msra.mxu0 0.0
    %6233 = vmatprep.subr.mxu0 0.0
    %6234 = vmatpush1.msra.mxu0 0.0
    %6235 = vmatprep.subr.mxu0 0.0
    %6236 = vmatpush1.msra.mxu0 0.0
    %6237 = vmatprep.mubr.f32.mxu0 0.0
    %6238 = vmatmul.mubr.f32.gmra.mrb[0].mxu0 %v6171
    %v6239 = vpop.f32.mrb[0].mxu0
    %v6240 = vadd.f32 0.0, %v6239
    %v6241 = vpop.f32.mrb[0].mxu0
    %6242 = vdwg.mxu0
    %v6243 = vld [vmem:[%s20] sm:$0xff]
    %v6244 = vld [vmem:[%s20 + $0x8] sm:$0xff]
    %v6245 = vld [vmem:[%s20 + $0x10] sm:$0xff]
    %v6246 = vld [vmem:[%s20 + $0x18] sm:$0xff]
    %v6247 = vld [vmem:[%s21] sm:$0x1]
    %v6249 = vlaneseq
    %v6250 = vshrl.u32 %v6249, 7
    %v6251 = vsub.s32 0, %v6250
    %v6252 = vrot.slane %v6247, %v6251
    %v6255 = vsel %vm122, %v6240, 0
    %6257 = vmatprep.subr.mxu0 0.0
    %6258 = vmatpush1.msra.mxu0 %v6243
    %6259 = vmatprep.subr.mxu0 0.0
    %6260 = vmatpush1.msra.mxu0 %v6244
    %6261 = vmatprep.subr.mxu0 0.0
    %6262 = vmatpush1.msra.mxu0 %v6245
    %6263 = vmatprep.subr.mxu0 0.0
    %6264 = vmatpush1.msra.mxu0 %v6246
    %6265 = vmatprep.subr.mxu0 0.0
    %6266 = vmatpush1.msra.mxu0 0.0
    %6267 = vmatprep.subr.mxu0 0.0
    %6268 = vmatpush1.msra.mxu0 0.0
    %6269 = vmatprep.subr.mxu0 0.0
    %6270 = vmatpush1.msra.mxu0 0.0
    %6271 = vmatprep.subr.mxu0 0.0
    %6272 = vmatpush1.msra.mxu0 0.0
    %6273 = vmatprep.subr.mxu0 0.0
    %6274 = vmatpush1.msra.mxu0 0.0
    %6275 = vmatprep.subr.mxu0 0.0
    %6276 = vmatpush1.msra.mxu0 0.0
    %6277 = vmatprep.subr.mxu0 0.0
    %6278 = vmatpush1.msra.mxu0 0.0
    %6279 = vmatprep.subr.mxu0 0.0
    %6280 = vmatpush1.msra.mxu0 0.0
    %6281 = vmatprep.subr.mxu0 0.0
    %6282 = vmatpush1.msra.mxu0 0.0
    %6283 = vmatprep.subr.mxu0 0.0
    %6284 = vmatpush1.msra.mxu0 0.0
    %6285 = vmatprep.subr.mxu0 0.0
    %6286 = vmatpush1.msra.mxu0 0.0
    %6287 = vmatprep.subr.mxu0 0.0
    %6288 = vmatpush1.msra.mxu0 0.0
    %6289 = vmatprep.subr.mxu0 0.0
    %6290 = vmatpush1.msra.mxu0 0.0
    %6291 = vmatprep.subr.mxu0 0.0
    %6292 = vmatpush1.msra.mxu0 0.0
    %6293 = vmatprep.subr.mxu0 0.0
    %6294 = vmatpush1.msra.mxu0 0.0
    %6295 = vmatprep.subr.mxu0 0.0
    %6296 = vmatpush1.msra.mxu0 0.0
    %6297 = vmatprep.subr.mxu0 0.0
    %6298 = vmatpush1.msra.mxu0 0.0
    %6299 = vmatprep.subr.mxu0 0.0
    %6300 = vmatpush1.msra.mxu0 0.0
    %6301 = vmatprep.subr.mxu0 0.0
    %6302 = vmatpush1.msra.mxu0 0.0
    %6303 = vmatprep.subr.mxu0 0.0
    %6304 = vmatpush1.msra.mxu0 0.0
    %6305 = vmatprep.subr.mxu0 0.0
    %6306 = vmatpush1.msra.mxu0 0.0
    %6307 = vmatprep.subr.mxu0 0.0
    %6308 = vmatpush1.msra.mxu0 0.0
    %6309 = vmatprep.subr.mxu0 0.0
    %6310 = vmatpush1.msra.mxu0 0.0
    %6311 = vmatprep.subr.mxu0 0.0
    %6312 = vmatpush1.msra.mxu0 0.0
    %6313 = vmatprep.subr.mxu0 0.0
    %6314 = vmatpush1.msra.mxu0 0.0
    %6315 = vmatprep.subr.mxu0 0.0
    %6316 = vmatpush1.msra.mxu0 0.0
    %6317 = vmatprep.subr.mxu0 0.0
    %6318 = vmatpush1.msra.mxu0 0.0
    %6319 = vmatprep.subr.mxu0 0.0
    %6320 = vmatpush1.msra.mxu0 0.0
    %6321 = vmatprep.mubr.f32.mxu0 0.0
    %6322 = vmatmul.mubr.f32.gmra.mrb[0].mxu0 %v6255
    %v6323 = vpop.f32.mrb[0].mxu0
    %v6324 = vadd.f32 %v6252, %v6323
    %v6325 = vpop.f32.mrb[0].mxu0
    %6326 = vdwg.mxu0
    %v6327 = vtanh.pop %v6324
    %v6328 = vld [vmem:[%s22] sm:$0xff]
    %v6329 = vld [vmem:[%s22 + $0x8] sm:$0xff]
    %v6330 = vld [vmem:[%s22 + $0x10] sm:$0xff]
    %v6331 = vld [vmem:[%s22 + $0x18] sm:$0xff]
    %v6332 = vld [vmem:[%s23] sm:$0x1]
    %v6334 = vlaneseq
    %v6335 = vshrl.u32 %v6334, 7
    %v6336 = vsub.s32 0, %v6335
    %v6337 = vrot.slane %v6332, %v6336
    %v6340 = vsel %vm122, %v6327, 0
    %6342 = vmatprep.subr.mxu0 0.0
    %6343 = vmatpush1.msra.mxu0 %v6328
    %6344 = vmatprep.subr.mxu0 0.0
    %6345 = vmatpush1.msra.mxu0 %v6329
    %6346 = vmatprep.subr.mxu0 0.0
    %6347 = vmatpush1.msra.mxu0 %v6330
    %6348 = vmatprep.subr.mxu0 0.0
    %6349 = vmatpush1.msra.mxu0 %v6331
    %6350 = vmatprep.subr.mxu0 0.0
    %6351 = vmatpush1.msra.mxu0 0.0
    %6352 = vmatprep.subr.mxu0 0.0
    %6353 = vmatpush1.msra.mxu0 0.0
    %6354 = vmatprep.subr.mxu0 0.0
    %6355 = vmatpush1.msra.mxu0 0.0
    %6356 = vmatprep.subr.mxu0 0.0
    %6357 = vmatpush1.msra.mxu0 0.0
    %6358 = vmatprep.subr.mxu0 0.0
    %6359 = vmatpush1.msra.mxu0 0.0
    %6360 = vmatprep.subr.mxu0 0.0
    %6361 = vmatpush1.msra.mxu0 0.0
    %6362 = vmatprep.subr.mxu0 0.0
    %6363 = vmatpush1.msra.mxu0 0.0
    %6364 = vmatprep.subr.mxu0 0.0
    %6365 = vmatpush1.msra.mxu0 0.0
    %6366 = vmatprep.subr.mxu0 0.0
    %6367 = vmatpush1.msra.mxu0 0.0
    %6368 = vmatprep.subr.mxu0 0.0
    %6369 = vmatpush1.msra.mxu0 0.0
    %6370 = vmatprep.subr.mxu0 0.0
    %6371 = vmatpush1.msra.mxu0 0.0
    %6372 = vmatprep.subr.mxu0 0.0
    %6373 = vmatpush1.msra.mxu0 0.0
    %6374 = vmatprep.subr.mxu0 0.0
    %6375 = vmatpush1.msra.mxu0 0.0
    %6376 = vmatprep.subr.mxu0 0.0
    %6377 = vmatpush1.msra.mxu0 0.0
    %6378 = vmatprep.subr.mxu0 0.0
    %6379 = vmatpush1.msra.mxu0 0.0
    %6380 = vmatprep.subr.mxu0 0.0
    %6381 = vmatpush1.msra.mxu0 0.0
    %6382 = vmatprep.subr.mxu0 0.0
    %6383 = vmatpush1.msra.mxu0 0.0
    %6384 = vmatprep.subr.mxu0 0.0
    %6385 = vmatpush1.msra.mxu0 0.0
    %6386 = vmatprep.subr.mxu0 0.0
    %6387 = vmatpush1.msra.mxu0 0.0
    %6388 = vmatprep.subr.mxu0 0.0
    %6389 = vmatpush1.msra.mxu0 0.0
    %6390 = vmatprep.subr.mxu0 0.0
    %6391 = vmatpush1.msra.mxu0 0.0
    %6392 = vmatprep.subr.mxu0 0.0
    %6393 = vmatpush1.msra.mxu0 0.0
    %6394 = vmatprep.subr.mxu0 0.0
    %6395 = vmatpush1.msra.mxu0 0.0
    %6396 = vmatprep.subr.mxu0 0.0
    %6397 = vmatpush1.msra.mxu0 0.0
    %6398 = vmatprep.subr.mxu0 0.0
    %6399 = vmatpush1.msra.mxu0 0.0
    %6400 = vmatprep.subr.mxu0 0.0
    %6401 = vmatpush1.msra.mxu0 0.0
    %6402 = vmatprep.subr.mxu0 0.0
    %6403 = vmatpush1.msra.mxu0 0.0
    %6404 = vmatprep.subr.mxu0 0.0
    %6405 = vmatpush1.msra.mxu0 0.0
    %6406 = vmatprep.mubr.f32.mxu0 0.0
    %6407 = vmatmul.mubr.f32.gmra.mrb[0].mxu0 %v6340
    %v6408 = vpop.f32.mrb[0].mxu0
    %v6409 = vadd.f32 %v6337, %v6408
    %v6410 = vpop.f32.mrb[0].mxu0
    %6411 = vdwg.mxu0
    %vm6412 = vcmask 33792
    %v6413 = vsel %vm6412, %v6409, -inf
    %6414 = vmax.xlane.f32.xlu0 %v6413
    %v6415 = vpop.xlane.xlu0 %6414
    %vm6416 = vcmp.eq.f32.partialorder %v6409, %v6415
    %v6417 = vsel %vm6416, %v6162, 5
    %v6418 = vsel %vm6412, %v6417, 2147483647
    %v6419 = vand.u32 %v6418, 65535
    %v6420 = vshra.s32 %v6418, 16
    %v6421 = vcvt.s32.f32 %v6419
    %v6422 = vcvt.s32.f32 %v6420
    %6423 = vmin.xlane.f32.xlu0 %v6422
    %v6424 = vpop.xlane.xlu0 %6423
    %vm6425 = vcmp.eq.f32.partialorder %v6422, %v6424
    %v6426 = vsel %vm6425, %v6421, inf
    %6427 = vmin.xlane.f32.xlu0 %v6426
    %v6428 = vpop.xlane.xlu0 %6427
    %v6429 = vcvt.f32.s32 %v6428
    %v6430 = vcvt.f32.s32 %v6424
    %v6431 = vshll.u32 %v6430, 16
    %v6432 = vadd.s32 %v6431, %v6429
    %vm6433 = vcmask 1024
    %6434 = vst.msk [vmem:[%s24] sm:$0x3] %vm6433, %v6432
    // Predicated region
    $region110: #{bert_for_sentence_codes.1} parent=1 // pred_check
      _
    $region111: #{bert_for_sentence_codes.1} parent=1 // pred_check_branch
      %6436 = sbr.rel (0) target = $region113
    $region112: #{bert_for_sentence_codes.1} parent=1 // pred_region
      _
    $region113: #{bert_for_sentence_codes.1} parent=1 // pred_fallthru
      _
    // Predicated region
    $region114: #{bert_for_sentence_codes.1} parent=1 // pred_check
      _
    $region115: #{bert_for_sentence_codes.1} parent=1 // pred_check_branch
      %6438 = sbr.rel (0) target = $region117
    $region116: #{bert_for_sentence_codes.1} parent=1 // pred_region
      _
    $region117: #{bert_for_sentence_codes.1} parent=1 // pred_fallthru
      _
    %6439 = vsyncpa [#allocation3], 1
    %6440 = vsyncpa [#allocation5], 1

</llo_original>
